<compile_context>
chip_gen: v7x
topology: tpu7x:2x2x1
jax: 0.10.0
libtpu: 0.0.40
codegen_flags: <defaults>
</compile_context>

<pallas_src>
import jax
import jax.numpy as jnp
from jax import lax
from jax.experimental import pallas as pl
from jax.experimental.pallas import tpu as pltpu


_LANE = 128
_TARGET_BLOCK_BYTES = 1 << 20  # ~1 MiB of (in + out) block per grid step

_COMPILER_PARAMS = pltpu.CompilerParams(
    dimension_semantics=("parallel",),
    vmem_limit_bytes=32 * 1024 * 1024,
)


def _round_up(x, m):
    return (x + m - 1) // m * m


def _pick_block_rows(rows, bytes_per_row):
    """Rows per grid block: big enough to amortize the ~0.35us per-step
    overhead, small enough to double-buffer comfortably, and >= 2 blocks when
    possible so both v7x TensorCores get work."""
    tr = max(1, _TARGET_BLOCK_BYTES // max(1, bytes_per_row))
    tr = min(tr, 512)
    if rows >= 2:
        tr = min(tr, (rows + 1) // 2)  # at least two grid blocks
    tr = max(1, min(tr, rows))
    if tr >= 8:
        tr = (tr // 8) * 8
    return tr


# ----------------------------------------------------------------------------
# Fused 3x3 / stride-1 / pad-1 convolution (im2col fused into the kernel)
# ----------------------------------------------------------------------------
def conv3x3_same(x, w, b, pad_cout_to=None):
    """x: (N,H,W,Cin) f32, w: (3,3,Cin,Cout), b: (Cout,) -> (N,H,W,Cout)."""
    N, H, W, Cin = x.shape
    kh, kw, wcin, Cout = w.shape
    assert (kh, kw, wcin) == (3, 3, Cin)

    # Pad tiny Cin (3 -> 8) with zeros: aligned contraction dim, same result.
    Cin_p = _round_up(Cin, 8)
    if Cin_p != Cin:
        x = jnp.pad(x, ((0, 0), (0, 0), (0, 0), (0, Cin_p - Cin)))
        w = jnp.pad(w, ((0, 0), (0, 0), (0, Cin_p - Cin), (0, 0)))

    # Lane-dense output channels (e.g. cout=3 -> 128); sliced back afterwards.
    Cout_p = Cout if pad_cout_to is None else _round_up(Cout, pad_cout_to)
    if Cout_p != Cout:
        w = jnp.pad(w, ((0, 0), (0, 0), (0, 0), (0, Cout_p - Cout)))
        b = jnp.pad(b, ((0, Cout_p - Cout),))

    # Zero pad spatially; three H-shifted views (one per kernel-row tap).
    x_pad = jnp.pad(x, ((0, 0), (1, 1), (1, 1), (0, 0)))
    rows = N * H
    xs = [x_pad[:, di:di + H, :, :].reshape(rows, W + 2, Cin_p)
          for di in range(3)]
    b2 = b.reshape(1, Cout_p)

    in_row_bytes = 3 * _round_up(W + 2, 8) * _round_up(Cin_p, _LANE) * 4
    out_row_bytes = _round_up(W, 8) * _round_up(Cout_p, _LANE) * 4
    tr = _pick_block_rows(rows, in_row_bytes + out_row_bytes)
    grid = (pl.cdiv(rows, tr),)

    def kernel(x0_ref, x1_ref, x2_ref, w_ref, b_ref, o_ref):
        acc = jnp.zeros((tr * W, Cout_p), jnp.float32)
        for di, x_ref in enumerate((x0_ref, x1_ref, x2_ref)):
            v = x_ref[...]  # (tr, W+2, Cin_p) -- row tap di
            for dj in range(3):  # column taps: cheap sublane slices
                a = v[:, dj:dj + W, :].reshape(tr * W, Cin_p)
                acc = acc + jnp.dot(a, w_ref[di, dj],
                                    preferred_element_type=jnp.float32)
        acc = acc + b_ref[...]  # fused bias epilogue
        o_ref[...] = acc.reshape(tr, W, Cout_p)

    x_spec = pl.BlockSpec((tr, W + 2, Cin_p), lambda i: (i, 0, 0))
    out = pl.pallas_call(
        kernel,
        out_shape=jax.ShapeDtypeStruct((rows, W, Cout_p), jnp.float32),
        grid=grid,
        in_specs=[x_spec, x_spec, x_spec,
                  pl.BlockSpec((3, 3, Cin_p, Cout_p), lambda i: (0, 0, 0, 0)),
                  pl.BlockSpec((1, Cout_p), lambda i: (0, 0))],
        out_specs=pl.BlockSpec((tr, W, Cout_p), lambda i: (i, 0, 0)),
        compiler_params=_COMPILER_PARAMS,
    )(*xs, w, b2)

    out = out.reshape(N, H, W, Cout_p)
    if Cout_p != Cout:
        out = out[..., :Cout]
    return out


# ----------------------------------------------------------------------------
# Fused downsample stage: maxpool2x2 + conv2x2(stride 2) + bias + residual add
# ----------------------------------------------------------------------------
def down_stage(x, w, b):
    """x: (N,H,W,C) f32 (H,W even), w: (2,2,C,C), b: (C,)
    Returns maxpool2x2(x) + conv2x2_s2(x) + b, shape (N, H//2, W//2, C)."""
    N, H, W, C = x.shape
    assert H % 2 == 0 and W % 2 == 0, "MaxPool2d/stride-2 conv expect even H,W"
    assert w.shape == (2, 2, C, C)
    Ho, Wo = H // 2, W // 2
    rows = N * Ho

    # FREE reshape: row p=(n,oh), dim1=(ki,ow), dim2=(kj,c).  The kernel reads
    # x exactly once in this layout; no space-to-depth HBM copy is needed.
    x3 = x.reshape(rows, 2 * Wo, 2 * C)
    wk = w.reshape(2, 2 * C, C)  # per kernel-row weight, K ordered as (kj, c)
    b2 = b.reshape(1, C)

    in_row_bytes = 2 * Wo * _round_up(2 * C, _LANE) * 4
    out_row_bytes = _round_up(Wo, 8) * _round_up(C, _LANE) * 4
    tr = _pick_block_rows(rows, in_row_bytes + out_row_bytes)
    grid = (pl.cdiv(rows, tr),)

    def kernel(x_ref, w_ref, b_ref, o_ref):
        v = x_ref[...]                                 # (tr, 2*Wo, 2*C)
        a0 = v[:, :Wo, :].reshape(tr * Wo, 2 * C)      # input rows 2*oh + 0
        a1 = v[:, Wo:, :].reshape(tr * Wo, 2 * C)      # input rows 2*oh + 1
        # MaxPool2d(2,2): max over the four corners (lane halves = kj=0/1).
        pooled = jnp.maximum(jnp.maximum(a0[:, :C], a0[:, C:]),
                             jnp.maximum(a1[:, :C], a1[:, C:]))
        # Conv2d(k=2, s=2) + bias, accumulated over the two kernel rows.
        down = (jnp.dot(a0, w_ref[0], preferred_element_type=jnp.float32)
                + jnp.dot(a1, w_ref[1], preferred_element_type=jnp.float32)
                + b_ref[...])
        o_ref[...] = (pooled + down).reshape(tr, Wo, C)  # fused residual add

    out = pl.pallas_call(
        kernel,
        out_shape=jax.ShapeDtypeStruct((rows, Wo, C), jnp.float32),
        grid=grid,
        in_specs=[pl.BlockSpec((tr, 2 * Wo, 2 * C), lambda i: (i, 0, 0)),
                  pl.BlockSpec((2, 2 * C, C), lambda i: (0, 0, 0)),
                  pl.BlockSpec((1, C), lambda i: (0, 0))],
        out_specs=pl.BlockSpec((tr, Wo, C), lambda i: (i, 0, 0)),
        compiler_params=_COMPILER_PARAMS,
    )(x3, wk, b2)
    return out.reshape(N, Ho, Wo, C)


# ----------------------------------------------------------------------------
# Parameters (deterministic synthetic init)
# ----------------------------------------------------------------------------
def _conv_params(key, kh, kw, cin, cout):
    k1, k2 = jax.random.split(key)
    w = 0.05 * jax.random.normal(k1, (kh, kw, cin, cout), jnp.float32)
    b = 0.01 * jax.random.normal(k2, (cout,), jnp.float32)
    return w, b


def init_params(key):
    ks = jax.random.split(key, 5)
    # NOTE: DownSample_x8 also defines nn.PReLU(), but forward() never uses
    # it, so that parameter is intentionally omitted.
    return {
        "conv1":     _conv_params(ks[0], 3, 3, 3, 64),
        "down_x2_1": _conv_params(ks[1], 2, 2, 64, 64),
        "down_x2_2": _conv_params(ks[2], 2, 2, 64, 64),
        "down_x2_3": _conv_params(ks[3], 2, 2, 64, 64),
        "conv2":     _conv_params(ks[4], 3, 3, 64, 3),
    }


# ----------------------------------------------------------------------------
# Full forward pass: DownSample_x8
# ----------------------------------------------------------------------------
@jax.jit
def downsample_x8_forward(x_nchw, params):
    x = jnp.transpose(x_nchw, (0, 2, 3, 1)).astype(jnp.float32)  # -> NHWC

    x = conv3x3_same(x, *params["conv1"])                # (N, H,   W,   64)
    x = down_stage(x, *params["down_x2_1"])              # (N, H/2, W/2, 64)
    x = down_stage(x, *params["down_x2_2"])              # (N, H/4, W/4, 64)
    x = down_stage(x, *params["down_x2_3"])              # (N, H/8, W/8, 64)
    x = conv3x3_same(x, *params["conv2"], pad_cout_to=_LANE)  # (N,H/8,W/8,3)

    return jnp.transpose(x, (0, 3, 1, 2))                # -> NCHW


# ----------------------------------------------------------------------------
# Pure-JAX reference (for numerical validation of the Pallas path)
# ----------------------------------------------------------------------------
def _reference_forward(x_nchw, params):
    x = jnp.transpose(x_nchw, (0, 2, 3, 1)).astype(jnp.float32)

    def conv(x, w, b, stride, padding):
        y = lax.conv_general_dilated(
            x, w, window_strides=(stride, stride), padding=padding,
            dimension_numbers=("NHWC", "HWIO", "NHWC"),
            precision=lax.Precision.HIGHEST)
        return y + b

    def pool(x):
        return lax.reduce_window(x, -jnp.inf, lax.max,
                                 (1, 2, 2, 1), (1, 2, 2, 1), "VALID")

    x = conv(x, *params["conv1"], 1, "SAME")
    for name in ("down_x2_1", "down_x2_2", "down_x2_3"):
        x = pool(x) + conv(x, *params[name], 2, "VALID")
    x = conv(x, *params["conv2"], 1, "SAME")
    return jnp.transpose(x, (0, 3, 1, 2))


# ----------------------------------------------------------------------------
if __name__ == "__main__":
    key = jax.random.PRNGKey(0)
    k_param, k_x = jax.random.split(key)

    params = init_params(k_param)
    x = jax.random.uniform(k_x, (2, 3, 32, 32), dtype=jnp.float32)  # NCHW

    out = downsample_x8_forward(x, params)
    out = jax.block_until_ready(out)

    assert out.shape == (2, 3, 4, 4), out.shape
    assert bool(jnp.all(jnp.isfinite(out)))

    ref = jax.block_until_ready(_reference_forward(x, params))
    max_err = float(jnp.max(jnp.abs(out - ref)))
    assert bool(jnp.allclose(out, ref, atol=5e-3, rtol=5e-3)), max_err

    print("KERNEL_OK")
</pallas_src>

<mosaic_0001>
module attributes {stable_mosaic.version = 11 : i64} {
  func.func @kernel(%arg0: i32, %arg1: memref<8x34x8xf32, #tpu.memory_space<vmem>>, %arg2: memref<8x34x8xf32, #tpu.memory_space<vmem>>, %arg3: memref<8x34x8xf32, #tpu.memory_space<vmem>>, %arg4: memref<3x3x8x64xf32, #tpu.memory_space<vmem>>, %arg5: memref<1x64xf32, #tpu.memory_space<vmem>>, %arg6: memref<8x32x64xf32, #tpu.memory_space<vmem>>) attributes {dimension_semantics = [#tpu.dimension_semantics<parallel>], iteration_bounds = array<i64: 8>, scalar_prefetch = 0 : i64, scratch_operands = 0 : i64, tpu.core_type = #tpu.core_type<tc>, window_params = [{transform_indices = @transform_0, window_bounds = array<i64: 8, 34, 8>}, {transform_indices = @transform_1, window_bounds = array<i64: 8, 34, 8>}, {transform_indices = @transform_2, window_bounds = array<i64: 8, 34, 8>}, {pipeline_mode = #tpu.pipeline_mode<synchronous>, transform_indices = @transform_3, window_bounds = array<i64: 3, 3, 8, 64>}, {pipeline_mode = #tpu.pipeline_mode<synchronous>, transform_indices = @transform_4, window_bounds = array<i64: 1, 64>}, {transform_indices = @transform_5, window_bounds = array<i64: 8, 32, 64>}]} {
    %cst = arith.constant 0.000000e+00 : f32
    %0 = vector.broadcast %cst : f32 to vector<256x64xf32>
    %c0 = arith.constant 0 : index
    %c0_0 = arith.constant 0 : index
    %c0_1 = arith.constant 0 : index
    %1 = vector.load %arg1[%c0, %c0_0, %c0_1] : memref<8x34x8xf32, #tpu.memory_space<vmem>>, vector<8x34x8xf32>
    %2 = vector.extract_strided_slice %1 {offsets = [0, 0, 0], sizes = [8, 32, 8], strides = [1, 1, 1]} : vector<8x34x8xf32> to vector<8x32x8xf32>
    %3 = vector.shape_cast %2 : vector<8x32x8xf32> to vector<256x8xf32>
    %c0_2 = arith.constant 0 : index
    %c0_3 = arith.constant 0 : index
    %c0_4 = arith.constant 0 : index
    %c0_5 = arith.constant 0 : index
    %4 = vector.load %arg4[%c0_2, %c0_3, %c0_4, %c0_5] : memref<3x3x8x64xf32, #tpu.memory_space<vmem>>, vector<1x1x8x64xf32>
    %5 = vector.shape_cast %4 : vector<1x1x8x64xf32> to vector<8x64xf32>
    %cst_6 = arith.constant dense<0.000000e+00> : vector<256x64xf32>
    %6 = tpu.matmul %3, %5, %cst_6 {dimension_numbers = #tpu.dot_dimension_numbers<[1], [0], [0], [1], [0, 0, 1, 1], [], []>} : vector<256x8xf32>, vector<8x64xf32>, vector<256x64xf32> -> vector<256x64xf32>
    %7 = arith.addf %0, %6 : vector<256x64xf32>
    %8 = vector.extract_strided_slice %1 {offsets = [0, 1, 0], sizes = [8, 32, 8], strides = [1, 1, 1]} : vector<8x34x8xf32> to vector<8x32x8xf32>
    %9 = vector.shape_cast %8 : vector<8x32x8xf32> to vector<256x8xf32>
    %c0_7 = arith.constant 0 : index
    %c1 = arith.constant 1 : index
    %c0_8 = arith.constant 0 : index
    %c0_9 = arith.constant 0 : index
    %10 = vector.load %arg4[%c0_7, %c1, %c0_8, %c0_9] : memref<3x3x8x64xf32, #tpu.memory_space<vmem>>, vector<1x1x8x64xf32>
    %11 = vector.shape_cast %10 : vector<1x1x8x64xf32> to vector<8x64xf32>
    %cst_10 = arith.constant dense<0.000000e+00> : vector<256x64xf32>
    %12 = tpu.matmul %9, %11, %cst_10 {dimension_numbers = #tpu.dot_dimension_numbers<[1], [0], [0], [1], [0, 0, 1, 1], [], []>} : vector<256x8xf32>, vector<8x64xf32>, vector<256x64xf32> -> vector<256x64xf32>
    %13 = arith.addf %7, %12 : vector<256x64xf32>
    %14 = vector.extract_strided_slice %1 {offsets = [0, 2, 0], sizes = [8, 32, 8], strides = [1, 1, 1]} : vector<8x34x8xf32> to vector<8x32x8xf32>
    %15 = vector.shape_cast %14 : vector<8x32x8xf32> to vector<256x8xf32>
    %c0_11 = arith.constant 0 : index
    %c2 = arith.constant 2 : index
    %c0_12 = arith.constant 0 : index
    %c0_13 = arith.constant 0 : index
    %16 = vector.load %arg4[%c0_11, %c2, %c0_12, %c0_13] : memref<3x3x8x64xf32, #tpu.memory_space<vmem>>, vector<1x1x8x64xf32>
    %17 = vector.shape_cast %16 : vector<1x1x8x64xf32> to vector<8x64xf32>
    %cst_14 = arith.constant dense<0.000000e+00> : vector<256x64xf32>
    %18 = tpu.matmul %15, %17, %cst_14 {dimension_numbers = #tpu.dot_dimension_numbers<[1], [0], [0], [1], [0, 0, 1, 1], [], []>} : vector<256x8xf32>, vector<8x64xf32>, vector<256x64xf32> -> vector<256x64xf32>
    %19 = arith.addf %13, %18 : vector<256x64xf32>
    %c0_15 = arith.constant 0 : index
    %c0_16 = arith.constant 0 : index
    %c0_17 = arith.constant 0 : index
    %20 = vector.load %arg2[%c0_15, %c0_16, %c0_17] : memref<8x34x8xf32, #tpu.memory_space<vmem>>, vector<8x34x8xf32>
    %21 = vector.extract_strided_slice %20 {offsets = [0, 0, 0], sizes = [8, 32, 8], strides = [1, 1, 1]} : vector<8x34x8xf32> to vector<8x32x8xf32>
    %22 = vector.shape_cast %21 : vector<8x32x8xf32> to vector<256x8xf32>
    %c1_18 = arith.constant 1 : index
    %c0_19 = arith.constant 0 : index
    %c0_20 = arith.constant 0 : index
    %c0_21 = arith.constant 0 : index
    %23 = vector.load %arg4[%c1_18, %c0_19, %c0_20, %c0_21] : memref<3x3x8x64xf32, #tpu.memory_space<vmem>>, vector<1x1x8x64xf32>
    %24 = vector.shape_cast %23 : vector<1x1x8x64xf32> to vector<8x64xf32>
    %cst_22 = arith.constant dense<0.000000e+00> : vector<256x64xf32>
    %25 = tpu.matmul %22, %24, %cst_22 {dimension_numbers = #tpu.dot_dimension_numbers<[1], [0], [0], [1], [0, 0, 1, 1], [], []>} : vector<256x8xf32>, vector<8x64xf32>, vector<256x64xf32> -> vector<256x64xf32>
    %26 = arith.addf %19, %25 : vector<256x64xf32>
    %27 = vector.extract_strided_slice %20 {offsets = [0, 1, 0], sizes = [8, 32, 8], strides = [1, 1, 1]} : vector<8x34x8xf32> to vector<8x32x8xf32>
    %28 = vector.shape_cast %27 : vector<8x32x8xf32> to vector<256x8xf32>
    %c1_23 = arith.constant 1 : index
    %c1_24 = arith.constant 1 : index
    %c0_25 = arith.constant 0 : index
    %c0_26 = arith.constant 0 : index
    %29 = vector.load %arg4[%c1_23, %c1_24, %c0_25, %c0_26] : memref<3x3x8x64xf32, #tpu.memory_space<vmem>>, vector<1x1x8x64xf32>
    %30 = vector.shape_cast %29 : vector<1x1x8x64xf32> to vector<8x64xf32>
    %cst_27 = arith.constant dense<0.000000e+00> : vector<256x64xf32>
    %31 = tpu.matmul %28, %30, %cst_27 {dimension_numbers = #tpu.dot_dimension_numbers<[1], [0], [0], [1], [0, 0, 1, 1], [], []>} : vector<256x8xf32>, vector<8x64xf32>, vector<256x64xf32> -> vector<256x64xf32>
    %32 = arith.addf %26, %31 : vector<256x64xf32>
    %33 = vector.extract_strided_slice %20 {offsets = [0, 2, 0], sizes = [8, 32, 8], strides = [1, 1, 1]} : vector<8x34x8xf32> to vector<8x32x8xf32>
    %34 = vector.shape_cast %33 : vector<8x32x8xf32> to vector<256x8xf32>
    %c1_28 = arith.constant 1 : index
    %c2_29 = arith.constant 2 : index
    %c0_30 = arith.constant 0 : index
    %c0_31 = arith.constant 0 : index
    %35 = vector.load %arg4[%c1_28, %c2_29, %c0_30, %c0_31] : memref<3x3x8x64xf32, #tpu.memory_space<vmem>>, vector<1x1x8x64xf32>
    %36 = vector.shape_cast %35 : vector<1x1x8x64xf32> to vector<8x64xf32>
    %cst_32 = arith.constant dense<0.000000e+00> : vector<256x64xf32>
    %37 = tpu.matmul %34, %36, %cst_32 {dimension_numbers = #tpu.dot_dimension_numbers<[1], [0], [0], [1], [0, 0, 1, 1], [], []>} : vector<256x8xf32>, vector<8x64xf32>, vector<256x64xf32> -> vector<256x64xf32>
    %38 = arith.addf %32, %37 : vector<256x64xf32>
    %c0_33 = arith.constant 0 : index
    %c0_34 = arith.constant 0 : index
    %c0_35 = arith.constant 0 : index
    %39 = vector.load %arg3[%c0_33, %c0_34, %c0_35] : memref<8x34x8xf32, #tpu.memory_space<vmem>>, vector<8x34x8xf32>
    %40 = vector.extract_strided_slice %39 {offsets = [0, 0, 0], sizes = [8, 32, 8], strides = [1, 1, 1]} : vector<8x34x8xf32> to vector<8x32x8xf32>
    %41 = vector.shape_cast %40 : vector<8x32x8xf32> to vector<256x8xf32>
    %c2_36 = arith.constant 2 : index
    %c0_37 = arith.constant 0 : index
    %c0_38 = arith.constant 0 : index
    %c0_39 = arith.constant 0 : index
    %42 = vector.load %arg4[%c2_36, %c0_37, %c0_38, %c0_39] : memref<3x3x8x64xf32, #tpu.memory_space<vmem>>, vector<1x1x8x64xf32>
    %43 = vector.shape_cast %42 : vector<1x1x8x64xf32> to vector<8x64xf32>
    %cst_40 = arith.constant dense<0.000000e+00> : vector<256x64xf32>
    %44 = tpu.matmul %41, %43, %cst_40 {dimension_numbers = #tpu.dot_dimension_numbers<[1], [0], [0], [1], [0, 0, 1, 1], [], []>} : vector<256x8xf32>, vector<8x64xf32>, vector<256x64xf32> -> vector<256x64xf32>
    %45 = arith.addf %38, %44 : vector<256x64xf32>
    %46 = vector.extract_strided_slice %39 {offsets = [0, 1, 0], sizes = [8, 32, 8], strides = [1, 1, 1]} : vector<8x34x8xf32> to vector<8x32x8xf32>
    %47 = vector.shape_cast %46 : vector<8x32x8xf32> to vector<256x8xf32>
    %c2_41 = arith.constant 2 : index
    %c1_42 = arith.constant 1 : index
    %c0_43 = arith.constant 0 : index
    %c0_44 = arith.constant 0 : index
    %48 = vector.load %arg4[%c2_41, %c1_42, %c0_43, %c0_44] : memref<3x3x8x64xf32, #tpu.memory_space<vmem>>, vector<1x1x8x64xf32>
    %49 = vector.shape_cast %48 : vector<1x1x8x64xf32> to vector<8x64xf32>
    %cst_45 = arith.constant dense<0.000000e+00> : vector<256x64xf32>
    %50 = tpu.matmul %47, %49, %cst_45 {dimension_numbers = #tpu.dot_dimension_numbers<[1], [0], [0], [1], [0, 0, 1, 1], [], []>} : vector<256x8xf32>, vector<8x64xf32>, vector<256x64xf32> -> vector<256x64xf32>
    %51 = arith.addf %45, %50 : vector<256x64xf32>
    %52 = vector.extract_strided_slice %39 {offsets = [0, 2, 0], sizes = [8, 32, 8], strides = [1, 1, 1]} : vector<8x34x8xf32> to vector<8x32x8xf32>
    %53 = vector.shape_cast %52 : vector<8x32x8xf32> to vector<256x8xf32>
    %c2_46 = arith.constant 2 : index
    %c2_47 = arith.constant 2 : index
    %c0_48 = arith.constant 0 : index
    %c0_49 = arith.constant 0 : index
    %54 = vector.load %arg4[%c2_46, %c2_47, %c0_48, %c0_49] : memref<3x3x8x64xf32, #tpu.memory_space<vmem>>, vector<1x1x8x64xf32>
    %55 = vector.shape_cast %54 : vector<1x1x8x64xf32> to vector<8x64xf32>
    %cst_50 = arith.constant dense<0.000000e+00> : vector<256x64xf32>
    %56 = tpu.matmul %53, %55, %cst_50 {dimension_numbers = #tpu.dot_dimension_numbers<[1], [0], [0], [1], [0, 0, 1, 1], [], []>} : vector<256x8xf32>, vector<8x64xf32>, vector<256x64xf32> -> vector<256x64xf32>
    %57 = arith.addf %51, %56 : vector<256x64xf32>
    %c0_51 = arith.constant 0 : index
    %c0_52 = arith.constant 0 : index
    %58 = vector.load %arg5[%c0_51, %c0_52] : memref<1x64xf32, #tpu.memory_space<vmem>>, vector<1x64xf32>
    %59 = vector.broadcast %58 : vector<1x64xf32> to vector<256x64xf32>
    %60 = arith.addf %57, %59 : vector<256x64xf32>
    %61 = vector.shape_cast %60 : vector<256x64xf32> to vector<8x32x64xf32>
    %c0_53 = arith.constant 0 : index
    %c0_54 = arith.constant 0 : index
    %c0_55 = arith.constant 0 : index
    %62 = vector.load %arg6[%c0_53, %c0_54, %c0_55] : memref<8x32x64xf32, #tpu.memory_space<vmem>>, vector<8x32x64xf32>
    tpu.vector_store %arg6[%c0_53, %c0_54, %c0_55], %61 {strides = array<i32>} : memref<8x32x64xf32, #tpu.memory_space<vmem>>, vector<8x32x64xf32>,
    return
  }
  func.func @transform_0(%arg0: i32) -> (i32, i32, i32) {
    %c0_i32 = arith.constant 0 : i32
    %c0_i32_0 = arith.constant 0 : i32
    %c0_i32_1 = arith.constant 0 : i32
    return %arg0, %c0_i32, %c0_i32_0 : i32, i32, i32
  }
  func.func @transform_1(%arg0: i32) -> (i32, i32, i32) {
    %c0_i32 = arith.constant 0 : i32
    %c0_i32_0 = arith.constant 0 : i32
    %c0_i32_1 = arith.constant 0 : i32
    return %arg0, %c0_i32, %c0_i32_0 : i32, i32, i32
  }
  func.func @transform_2(%arg0: i32) -> (i32, i32, i32) {
    %c0_i32 = arith.constant 0 : i32
    %c0_i32_0 = arith.constant 0 : i32
    %c0_i32_1 = arith.constant 0 : i32
    return %arg0, %c0_i32, %c0_i32_0 : i32, i32, i32
  }
  func.func @transform_3(%arg0: i32) -> (i32, i32, i32, i32) {
    %c0_i32 = arith.constant 0 : i32
    %c0_i32_0 = arith.constant 0 : i32
    %c0_i32_1 = arith.constant 0 : i32
    %c0_i32_2 = arith.constant 0 : i32
    %c0_i32_3 = arith.constant 0 : i32
    return %c0_i32, %c0_i32_0, %c0_i32_1, %c0_i32_2 : i32, i32, i32, i32
  }
  func.func @transform_4(%arg0: i32) -> (i32, i32) {
    %c0_i32 = arith.constant 0 : i32
    %c0_i32_0 = arith.constant 0 : i32
    %c0_i32_1 = arith.constant 0 : i32
    return %c0_i32, %c0_i32_0 : i32, i32
  }
  func.func @transform_5(%arg0: i32) -> (i32, i32, i32) {
    %c0_i32 = arith.constant 0 : i32
    %c0_i32_0 = arith.constant 0 : i32
    %c0_i32_1 = arith.constant 0 : i32
    return %arg0, %c0_i32, %c0_i32_0 : i32, i32, i32
  }
}

module attributes {stable_mosaic.version = 11 : i64} {
  func.func @kernel(%arg0: i32, %arg1: memref<16x32x128xf32, #tpu.memory_space<vmem>>, %arg2: memref<2x128x64xf32, #tpu.memory_space<vmem>>, %arg3: memref<1x64xf32, #tpu.memory_space<vmem>>, %arg4: memref<16x16x64xf32, #tpu.memory_space<vmem>>) attributes {dimension_semantics = [#tpu.dimension_semantics<parallel>], iteration_bounds = array<i64: 2>, scalar_prefetch = 0 : i64, scratch_operands = 0 : i64, tpu.core_type = #tpu.core_type<tc>, window_params = [{transform_indices = @transform_0, window_bounds = array<i64: 16, 32, 128>}, {pipeline_mode = #tpu.pipeline_mode<synchronous>, transform_indices = @transform_1, window_bounds = array<i64: 2, 128, 64>}, {pipeline_mode = #tpu.pipeline_mode<synchronous>, transform_indices = @transform_2, window_bounds = array<i64: 1, 64>}, {transform_indices = @transform_3, window_bounds = array<i64: 16, 16, 64>}]} {
    %c0 = arith.constant 0 : index
    %c0_0 = arith.constant 0 : index
    %c0_1 = arith.constant 0 : index
    %0 = vector.load %arg1[%c0, %c0_0, %c0_1] : memref<16x32x128xf32, #tpu.memory_space<vmem>>, vector<16x32x128xf32>
    %1 = vector.extract_strided_slice %0 {offsets = [0, 0, 0], sizes = [16, 16, 128], strides = [1, 1, 1]} : vector<16x32x128xf32> to vector<16x16x128xf32>
    %2 = vector.shape_cast %1 : vector<16x16x128xf32> to vector<256x128xf32>
    %3 = vector.extract_strided_slice %0 {offsets = [0, 16, 0], sizes = [16, 16, 128], strides = [1, 1, 1]} : vector<16x32x128xf32> to vector<16x16x128xf32>
    %4 = vector.shape_cast %3 : vector<16x16x128xf32> to vector<256x128xf32>
    %5 = vector.extract_strided_slice %2 {offsets = [0, 0], sizes = [256, 64], strides = [1, 1]} : vector<256x128xf32> to vector<256x64xf32>
    %6 = vector.extract_strided_slice %2 {offsets = [0, 64], sizes = [256, 64], strides = [1, 1]} : vector<256x128xf32> to vector<256x64xf32>
    %7 = arith.maximumf %5, %6 : vector<256x64xf32>
    %8 = vector.extract_strided_slice %4 {offsets = [0, 0], sizes = [256, 64], strides = [1, 1]} : vector<256x128xf32> to vector<256x64xf32>
    %9 = vector.extract_strided_slice %4 {offsets = [0, 64], sizes = [256, 64], strides = [1, 1]} : vector<256x128xf32> to vector<256x64xf32>
    %10 = arith.maximumf %8, %9 : vector<256x64xf32>
    %11 = arith.maximumf %7, %10 : vector<256x64xf32>
    %c0_2 = arith.constant 0 : index
    %c0_3 = arith.constant 0 : index
    %c0_4 = arith.constant 0 : index
    %12 = vector.load %arg2[%c0_2, %c0_3, %c0_4] : memref<2x128x64xf32, #tpu.memory_space<vmem>>, vector<1x128x64xf32>
    %13 = vector.shape_cast %12 : vector<1x128x64xf32> to vector<128x64xf32>
    %cst = arith.constant dense<0.000000e+00> : vector<256x64xf32>
    %14 = tpu.matmul %2, %13, %cst {dimension_numbers = #tpu.dot_dimension_numbers<[1], [0], [0], [1], [0, 0, 1, 1], [], []>} : vector<256x128xf32>, vector<128x64xf32>, vector<256x64xf32> -> vector<256x64xf32>
    %c1 = arith.constant 1 : index
    %c0_5 = arith.constant 0 : index
    %c0_6 = arith.constant 0 : index
    %15 = vector.load %arg2[%c1, %c0_5, %c0_6] : memref<2x128x64xf32, #tpu.memory_space<vmem>>, vector<1x128x64xf32>
    %16 = vector.shape_cast %15 : vector<1x128x64xf32> to vector<128x64xf32>
    %cst_7 = arith.constant dense<0.000000e+00> : vector<256x64xf32>
    %17 = tpu.matmul %4, %16, %cst_7 {dimension_numbers = #tpu.dot_dimension_numbers<[1], [0], [0], [1], [0, 0, 1, 1], [], []>} : vector<256x128xf32>, vector<128x64xf32>, vector<256x64xf32> -> vector<256x64xf32>
    %18 = arith.addf %14, %17 : vector<256x64xf32>
    %c0_8 = arith.constant 0 : index
    %c0_9 = arith.constant 0 : index
    %19 = vector.load %arg3[%c0_8, %c0_9] : memref<1x64xf32, #tpu.memory_space<vmem>>, vector<1x64xf32>
    %20 = vector.broadcast %19 : vector<1x64xf32> to vector<256x64xf32>
    %21 = arith.addf %18, %20 : vector<256x64xf32>
    %22 = arith.addf %11, %21 : vector<256x64xf32>
    %23 = vector.shape_cast %22 : vector<256x64xf32> to vector<16x16x64xf32>
    %c0_10 = arith.constant 0 : index
    %c0_11 = arith.constant 0 : index
    %c0_12 = arith.constant 0 : index
    %24 = vector.load %arg4[%c0_10, %c0_11, %c0_12] : memref<16x16x64xf32, #tpu.memory_space<vmem>>, vector<16x16x64xf32>
    tpu.vector_store %arg4[%c0_10, %c0_11, %c0_12], %23 {strides = array<i32>} : memref<16x16x64xf32, #tpu.memory_space<vmem>>, vector<16x16x64xf32>,
    return
  }
  func.func @transform_0(%arg0: i32) -> (i32, i32, i32) {
    %c0_i32 = arith.constant 0 : i32
    %c0_i32_0 = arith.constant 0 : i32
    %c0_i32_1 = arith.constant 0 : i32
    return %arg0, %c0_i32, %c0_i32_0 : i32, i32, i32
  }
  func.func @transform_1(%arg0: i32) -> (i32, i32, i32) {
    %c0_i32 = arith.constant 0 : i32
    %c0_i32_0 = arith.constant 0 : i32
    %c0_i32_1 = arith.constant 0 : i32
    %c0_i32_2 = arith.constant 0 : i32
    return %c0_i32, %c0_i32_0, %c0_i32_1 : i32, i32, i32
  }
  func.func @transform_2(%arg0: i32) -> (i32, i32) {
    %c0_i32 = arith.constant 0 : i32
    %c0_i32_0 = arith.constant 0 : i32
    %c0_i32_1 = arith.constant 0 : i32
    return %c0_i32, %c0_i32_0 : i32, i32
  }
  func.func @transform_3(%arg0: i32) -> (i32, i32, i32) {
    %c0_i32 = arith.constant 0 : i32
    %c0_i32_0 = arith.constant 0 : i32
    %c0_i32_1 = arith.constant 0 : i32
    return %arg0, %c0_i32, %c0_i32_0 : i32, i32, i32
  }
}

module attributes {stable_mosaic.version = 11 : i64} {
  func.func @kernel(%arg0: i32, %arg1: memref<8x16x128xf32, #tpu.memory_space<vmem>>, %arg2: memref<2x128x64xf32, #tpu.memory_space<vmem>>, %arg3: memref<1x64xf32, #tpu.memory_space<vmem>>, %arg4: memref<8x8x64xf32, #tpu.memory_space<vmem>>) attributes {dimension_semantics = [#tpu.dimension_semantics<parallel>], iteration_bounds = array<i64: 2>, scalar_prefetch = 0 : i64, scratch_operands = 0 : i64, tpu.core_type = #tpu.core_type<tc>, window_params = [{transform_indices = @transform_0, window_bounds = array<i64: 8, 16, 128>}, {pipeline_mode = #tpu.pipeline_mode<synchronous>, transform_indices = @transform_1, window_bounds = array<i64: 2, 128, 64>}, {pipeline_mode = #tpu.pipeline_mode<synchronous>, transform_indices = @transform_2, window_bounds = array<i64: 1, 64>}, {transform_indices = @transform_3, window_bounds = array<i64: 8, 8, 64>}]} {
    %c0 = arith.constant 0 : index
    %c0_0 = arith.constant 0 : index
    %c0_1 = arith.constant 0 : index
    %0 = vector.load %arg1[%c0, %c0_0, %c0_1] : memref<8x16x128xf32, #tpu.memory_space<vmem>>, vector<8x16x128xf32>
    %1 = vector.extract_strided_slice %0 {offsets = [0, 0, 0], sizes = [8, 8, 128], strides = [1, 1, 1]} : vector<8x16x128xf32> to vector<8x8x128xf32>
    %2 = vector.shape_cast %1 : vector<8x8x128xf32> to vector<64x128xf32>
    %3 = vector.extract_strided_slice %0 {offsets = [0, 8, 0], sizes = [8, 8, 128], strides = [1, 1, 1]} : vector<8x16x128xf32> to vector<8x8x128xf32>
    %4 = vector.shape_cast %3 : vector<8x8x128xf32> to vector<64x128xf32>
    %5 = vector.extract_strided_slice %2 {offsets = [0, 0], sizes = [64, 64], strides = [1, 1]} : vector<64x128xf32> to vector<64x64xf32>
    %6 = vector.extract_strided_slice %2 {offsets = [0, 64], sizes = [64, 64], strides = [1, 1]} : vector<64x128xf32> to vector<64x64xf32>
    %7 = arith.maximumf %5, %6 : vector<64x64xf32>
    %8 = vector.extract_strided_slice %4 {offsets = [0, 0], sizes = [64, 64], strides = [1, 1]} : vector<64x128xf32> to vector<64x64xf32>
    %9 = vector.extract_strided_slice %4 {offsets = [0, 64], sizes = [64, 64], strides = [1, 1]} : vector<64x128xf32> to vector<64x64xf32>
    %10 = arith.maximumf %8, %9 : vector<64x64xf32>
    %11 = arith.maximumf %7, %10 : vector<64x64xf32>
    %c0_2 = arith.constant 0 : index
    %c0_3 = arith.constant 0 : index
    %c0_4 = arith.constant 0 : index
    %12 = vector.load %arg2[%c0_2, %c0_3, %c0_4] : memref<2x128x64xf32, #tpu.memory_space<vmem>>, vector<1x128x64xf32>
    %13 = vector.shape_cast %12 : vector<1x128x64xf32> to vector<128x64xf32>
    %cst = arith.constant dense<0.000000e+00> : vector<64x64xf32>
    %14 = tpu.matmul %2, %13, %cst {dimension_numbers = #tpu.dot_dimension_numbers<[1], [0], [0], [1], [0, 0, 1, 1], [], []>} : vector<64x128xf32>, vector<128x64xf32>, vector<64x64xf32> -> vector<64x64xf32>
    %c1 = arith.constant 1 : index
    %c0_5 = arith.constant 0 : index
    %c0_6 = arith.constant 0 : index
    %15 = vector.load %arg2[%c1, %c0_5, %c0_6] : memref<2x128x64xf32, #tpu.memory_space<vmem>>, vector<1x128x64xf32>
    %16 = vector.shape_cast %15 : vector<1x128x64xf32> to vector<128x64xf32>
    %cst_7 = arith.constant dense<0.000000e+00> : vector<64x64xf32>
    %17 = tpu.matmul %4, %16, %cst_7 {dimension_numbers = #tpu.dot_dimension_numbers<[1], [0], [0], [1], [0, 0, 1, 1], [], []>} : vector<64x128xf32>, vector<128x64xf32>, vector<64x64xf32> -> vector<64x64xf32>
    %18 = arith.addf %14, %17 : vector<64x64xf32>
    %c0_8 = arith.constant 0 : index
    %c0_9 = arith.constant 0 : index
    %19 = vector.load %arg3[%c0_8, %c0_9] : memref<1x64xf32, #tpu.memory_space<vmem>>, vector<1x64xf32>
    %20 = vector.broadcast %19 : vector<1x64xf32> to vector<64x64xf32>
    %21 = arith.addf %18, %20 : vector<64x64xf32>
    %22 = arith.addf %11, %21 : vector<64x64xf32>
    %23 = vector.shape_cast %22 : vector<64x64xf32> to vector<8x8x64xf32>
    %c0_10 = arith.constant 0 : index
    %c0_11 = arith.constant 0 : index
    %c0_12 = arith.constant 0 : index
    %24 = vector.load %arg4[%c0_10, %c0_11, %c0_12] : memref<8x8x64xf32, #tpu.memory_space<vmem>>, vector<8x8x64xf32>
    tpu.vector_store %arg4[%c0_10, %c0_11, %c0_12], %23 {strides = array<i32>} : memref<8x8x64xf32, #tpu.memory_space<vmem>>, vector<8x8x64xf32>,
    return
  }
  func.func @transform_0(%arg0: i32) -> (i32, i32, i32) {
    %c0_i32 = arith.constant 0 : i32
    %c0_i32_0 = arith.constant 0 : i32
    %c0_i32_1 = arith.constant 0 : i32
    return %arg0, %c0_i32, %c0_i32_0 : i32, i32, i32
  }
  func.func @transform_1(%arg0: i32) -> (i32, i32, i32) {
    %c0_i32 = arith.constant 0 : i32
    %c0_i32_0 = arith.constant 0 : i32
    %c0_i32_1 = arith.constant 0 : i32
    %c0_i32_2 = arith.constant 0 : i32
    return %c0_i32, %c0_i32_0, %c0_i32_1 : i32, i32, i32
  }
  func.func @transform_2(%arg0: i32) -> (i32, i32) {
    %c0_i32 = arith.constant 0 : i32
    %c0_i32_0 = arith.constant 0 : i32
    %c0_i32_1 = arith.constant 0 : i32
    return %c0_i32, %c0_i32_0 : i32, i32
  }
  func.func @transform_3(%arg0: i32) -> (i32, i32, i32) {
    %c0_i32 = arith.constant 0 : i32
    %c0_i32_0 = arith.constant 0 : i32
    %c0_i32_1 = arith.constant 0 : i32
    return %arg0, %c0_i32, %c0_i32_0 : i32, i32, i32
  }
}

module attributes {stable_mosaic.version = 11 : i64} {
  func.func @kernel(%arg0: i32, %arg1: memref<4x8x128xf32, #tpu.memory_space<vmem>>, %arg2: memref<2x128x64xf32, #tpu.memory_space<vmem>>, %arg3: memref<1x64xf32, #tpu.memory_space<vmem>>, %arg4: memref<4x4x64xf32, #tpu.memory_space<vmem>>) attributes {dimension_semantics = [#tpu.dimension_semantics<parallel>], iteration_bounds = array<i64: 2>, scalar_prefetch = 0 : i64, scratch_operands = 0 : i64, tpu.core_type = #tpu.core_type<tc>, window_params = [{transform_indices = @transform_0, window_bounds = array<i64: 4, 8, 128>}, {pipeline_mode = #tpu.pipeline_mode<synchronous>, transform_indices = @transform_1, window_bounds = array<i64: 2, 128, 64>}, {pipeline_mode = #tpu.pipeline_mode<synchronous>, transform_indices = @transform_2, window_bounds = array<i64: 1, 64>}, {transform_indices = @transform_3, window_bounds = array<i64: 4, 4, 64>}]} {
    %c0 = arith.constant 0 : index
    %c0_0 = arith.constant 0 : index
    %c0_1 = arith.constant 0 : index
    %0 = vector.load %arg1[%c0, %c0_0, %c0_1] : memref<4x8x128xf32, #tpu.memory_space<vmem>>, vector<4x8x128xf32>
    %1 = vector.extract_strided_slice %0 {offsets = [0, 0, 0], sizes = [4, 4, 128], strides = [1, 1, 1]} : vector<4x8x128xf32> to vector<4x4x128xf32>
    %2 = vector.shape_cast %1 : vector<4x4x128xf32> to vector<16x128xf32>
    %3 = vector.extract_strided_slice %0 {offsets = [0, 4, 0], sizes = [4, 4, 128], strides = [1, 1, 1]} : vector<4x8x128xf32> to vector<4x4x128xf32>
    %4 = vector.shape_cast %3 : vector<4x4x128xf32> to vector<16x128xf32>
    %5 = vector.extract_strided_slice %2 {offsets = [0, 0], sizes = [16, 64], strides = [1, 1]} : vector<16x128xf32> to vector<16x64xf32>
    %6 = vector.extract_strided_slice %2 {offsets = [0, 64], sizes = [16, 64], strides = [1, 1]} : vector<16x128xf32> to vector<16x64xf32>
    %7 = arith.maximumf %5, %6 : vector<16x64xf32>
    %8 = vector.extract_strided_slice %4 {offsets = [0, 0], sizes = [16, 64], strides = [1, 1]} : vector<16x128xf32> to vector<16x64xf32>
    %9 = vector.extract_strided_slice %4 {offsets = [0, 64], sizes = [16, 64], strides = [1, 1]} : vector<16x128xf32> to vector<16x64xf32>
    %10 = arith.maximumf %8, %9 : vector<16x64xf32>
    %11 = arith.maximumf %7, %10 : vector<16x64xf32>
    %c0_2 = arith.constant 0 : index
    %c0_3 = arith.constant 0 : index
    %c0_4 = arith.constant 0 : index
    %12 = vector.load %arg2[%c0_2, %c0_3, %c0_4] : memref<2x128x64xf32, #tpu.memory_space<vmem>>, vector<1x128x64xf32>
    %13 = vector.shape_cast %12 : vector<1x128x64xf32> to vector<128x64xf32>
    %cst = arith.constant dense<0.000000e+00> : vector<16x64xf32>
    %14 = tpu.matmul %2, %13, %cst {dimension_numbers = #tpu.dot_dimension_numbers<[1], [0], [0], [1], [0, 0, 1, 1], [], []>} : vector<16x128xf32>, vector<128x64xf32>, vector<16x64xf32> -> vector<16x64xf32>
    %c1 = arith.constant 1 : index
    %c0_5 = arith.constant 0 : index
    %c0_6 = arith.constant 0 : index
    %15 = vector.load %arg2[%c1, %c0_5, %c0_6] : memref<2x128x64xf32, #tpu.memory_space<vmem>>, vector<1x128x64xf32>
    %16 = vector.shape_cast %15 : vector<1x128x64xf32> to vector<128x64xf32>
    %cst_7 = arith.constant dense<0.000000e+00> : vector<16x64xf32>
    %17 = tpu.matmul %4, %16, %cst_7 {dimension_numbers = #tpu.dot_dimension_numbers<[1], [0], [0], [1], [0, 0, 1, 1], [], []>} : vector<16x128xf32>, vector<128x64xf32>, vector<16x64xf32> -> vector<16x64xf32>
    %18 = arith.addf %14, %17 : vector<16x64xf32>
    %c0_8 = arith.constant 0 : index
    %c0_9 = arith.constant 0 : index
    %19 = vector.load %arg3[%c0_8, %c0_9] : memref<1x64xf32, #tpu.memory_space<vmem>>, vector<1x64xf32>
    %20 = vector.broadcast %19 : vector<1x64xf32> to vector<16x64xf32>
    %21 = arith.addf %18, %20 : vector<16x64xf32>
    %22 = arith.addf %11, %21 : vector<16x64xf32>
    %23 = vector.shape_cast %22 : vector<16x64xf32> to vector<4x4x64xf32>
    %c0_10 = arith.constant 0 : index
    %c0_11 = arith.constant 0 : index
    %c0_12 = arith.constant 0 : index
    %24 = vector.load %arg4[%c0_10, %c0_11, %c0_12] : memref<4x4x64xf32, #tpu.memory_space<vmem>>, vector<4x4x64xf32>
    tpu.vector_store %arg4[%c0_10, %c0_11, %c0_12], %23 {strides = array<i32>} : memref<4x4x64xf32, #tpu.memory_space<vmem>>, vector<4x4x64xf32>,
    return
  }
  func.func @transform_0(%arg0: i32) -> (i32, i32, i32) {
    %c0_i32 = arith.constant 0 : i32
    %c0_i32_0 = arith.constant 0 : i32
    %c0_i32_1 = arith.constant 0 : i32
    return %arg0, %c0_i32, %c0_i32_0 : i32, i32, i32
  }
  func.func @transform_1(%arg0: i32) -> (i32, i32, i32) {
    %c0_i32 = arith.constant 0 : i32
    %c0_i32_0 = arith.constant 0 : i32
    %c0_i32_1 = arith.constant 0 : i32
    %c0_i32_2 = arith.constant 0 : i32
    return %c0_i32, %c0_i32_0, %c0_i32_1 : i32, i32, i32
  }
  func.func @transform_2(%arg0: i32) -> (i32, i32) {
    %c0_i32 = arith.constant 0 : i32
    %c0_i32_0 = arith.constant 0 : i32
    %c0_i32_1 = arith.constant 0 : i32
    return %c0_i32, %c0_i32_0 : i32, i32
  }
  func.func @transform_3(%arg0: i32) -> (i32, i32, i32) {
    %c0_i32 = arith.constant 0 : i32
    %c0_i32_0 = arith.constant 0 : i32
    %c0_i32_1 = arith.constant 0 : i32
    return %arg0, %c0_i32, %c0_i32_0 : i32, i32, i32
  }
}

module attributes {stable_mosaic.version = 11 : i64} {
  func.func @kernel(%arg0: i32, %arg1: memref<4x6x64xf32, #tpu.memory_space<vmem>>, %arg2: memref<4x6x64xf32, #tpu.memory_space<vmem>>, %arg3: memref<4x6x64xf32, #tpu.memory_space<vmem>>, %arg4: memref<3x3x64x128xf32, #tpu.memory_space<vmem>>, %arg5: memref<1x128xf32, #tpu.memory_space<vmem>>, %arg6: memref<4x4x128xf32, #tpu.memory_space<vmem>>) attributes {dimension_semantics = [#tpu.dimension_semantics<parallel>], iteration_bounds = array<i64: 2>, scalar_prefetch = 0 : i64, scratch_operands = 0 : i64, tpu.core_type = #tpu.core_type<tc>, window_params = [{transform_indices = @transform_0, window_bounds = array<i64: 4, 6, 64>}, {transform_indices = @transform_1, window_bounds = array<i64: 4, 6, 64>}, {transform_indices = @transform_2, window_bounds = array<i64: 4, 6, 64>}, {pipeline_mode = #tpu.pipeline_mode<synchronous>, transform_indices = @transform_3, window_bounds = array<i64: 3, 3, 64, 128>}, {pipeline_mode = #tpu.pipeline_mode<synchronous>, transform_indices = @transform_4, window_bounds = array<i64: 1, 128>}, {transform_indices = @transform_5, window_bounds = array<i64: 4, 4, 128>}]} {
    %cst = arith.constant 0.000000e+00 : f32
    %0 = vector.broadcast %cst : f32 to vector<16x128xf32>
    %c0 = arith.constant 0 : index
    %c0_0 = arith.constant 0 : index
    %c0_1 = arith.constant 0 : index
    %1 = vector.load %arg1[%c0, %c0_0, %c0_1] : memref<4x6x64xf32, #tpu.memory_space<vmem>>, vector<4x6x64xf32>
    %2 = vector.extract_strided_slice %1 {offsets = [0, 0, 0], sizes = [4, 4, 64], strides = [1, 1, 1]} : vector<4x6x64xf32> to vector<4x4x64xf32>
    %3 = vector.shape_cast %2 : vector<4x4x64xf32> to vector<16x64xf32>
    %c0_2 = arith.constant 0 : index
    %c0_3 = arith.constant 0 : index
    %c0_4 = arith.constant 0 : index
    %c0_5 = arith.constant 0 : index
    %4 = vector.load %arg4[%c0_2, %c0_3, %c0_4, %c0_5] : memref<3x3x64x128xf32, #tpu.memory_space<vmem>>, vector<1x1x64x128xf32>
    %5 = vector.shape_cast %4 : vector<1x1x64x128xf32> to vector<64x128xf32>
    %cst_6 = arith.constant dense<0.000000e+00> : vector<16x128xf32>
    %6 = tpu.matmul %3, %5, %cst_6 {dimension_numbers = #tpu.dot_dimension_numbers<[1], [0], [0], [1], [0, 0, 1, 1], [], []>} : vector<16x64xf32>, vector<64x128xf32>, vector<16x128xf32> -> vector<16x128xf32>
    %7 = arith.addf %0, %6 : vector<16x128xf32>
    %8 = vector.extract_strided_slice %1 {offsets = [0, 1, 0], sizes = [4, 4, 64], strides = [1, 1, 1]} : vector<4x6x64xf32> to vector<4x4x64xf32>
    %9 = vector.shape_cast %8 : vector<4x4x64xf32> to vector<16x64xf32>
    %c0_7 = arith.constant 0 : index
    %c1 = arith.constant 1 : index
    %c0_8 = arith.constant 0 : index
    %c0_9 = arith.constant 0 : index
    %10 = vector.load %arg4[%c0_7, %c1, %c0_8, %c0_9] : memref<3x3x64x128xf32, #tpu.memory_space<vmem>>, vector<1x1x64x128xf32>
    %11 = vector.shape_cast %10 : vector<1x1x64x128xf32> to vector<64x128xf32>
    %cst_10 = arith.constant dense<0.000000e+00> : vector<16x128xf32>
    %12 = tpu.matmul %9, %11, %cst_10 {dimension_numbers = #tpu.dot_dimension_numbers<[1], [0], [0], [1], [0, 0, 1, 1], [], []>} : vector<16x64xf32>, vector<64x128xf32>, vector<16x128xf32> -> vector<16x128xf32>
    %13 = arith.addf %7, %12 : vector<16x128xf32>
    %14 = vector.extract_strided_slice %1 {offsets = [0, 2, 0], sizes = [4, 4, 64], strides = [1, 1, 1]} : vector<4x6x64xf32> to vector<4x4x64xf32>
    %15 = vector.shape_cast %14 : vector<4x4x64xf32> to vector<16x64xf32>
    %c0_11 = arith.constant 0 : index
    %c2 = arith.constant 2 : index
    %c0_12 = arith.constant 0 : index
    %c0_13 = arith.constant 0 : index
    %16 = vector.load %arg4[%c0_11, %c2, %c0_12, %c0_13] : memref<3x3x64x128xf32, #tpu.memory_space<vmem>>, vector<1x1x64x128xf32>
    %17 = vector.shape_cast %16 : vector<1x1x64x128xf32> to vector<64x128xf32>
    %cst_14 = arith.constant dense<0.000000e+00> : vector<16x128xf32>
    %18 = tpu.matmul %15, %17, %cst_14 {dimension_numbers = #tpu.dot_dimension_numbers<[1], [0], [0], [1], [0, 0, 1, 1], [], []>} : vector<16x64xf32>, vector<64x128xf32>, vector<16x128xf32> -> vector<16x128xf32>
    %19 = arith.addf %13, %18 : vector<16x128xf32>
    %c0_15 = arith.constant 0 : index
    %c0_16 = arith.constant 0 : index
    %c0_17 = arith.constant 0 : index
    %20 = vector.load %arg2[%c0_15, %c0_16, %c0_17] : memref<4x6x64xf32, #tpu.memory_space<vmem>>, vector<4x6x64xf32>
    %21 = vector.extract_strided_slice %20 {offsets = [0, 0, 0], sizes = [4, 4, 64], strides = [1, 1, 1]} : vector<4x6x64xf32> to vector<4x4x64xf32>
    %22 = vector.shape_cast %21 : vector<4x4x64xf32> to vector<16x64xf32>
    %c1_18 = arith.constant 1 : index
    %c0_19 = arith.constant 0 : index
    %c0_20 = arith.constant 0 : index
    %c0_21 = arith.constant 0 : index
    %23 = vector.load %arg4[%c1_18, %c0_19, %c0_20, %c0_21] : memref<3x3x64x128xf32, #tpu.memory_space<vmem>>, vector<1x1x64x128xf32>
    %24 = vector.shape_cast %23 : vector<1x1x64x128xf32> to vector<64x128xf32>
    %cst_22 = arith.constant dense<0.000000e+00> : vector<16x128xf32>
    %25 = tpu.matmul %22, %24, %cst_22 {dimension_numbers = #tpu.dot_dimension_numbers<[1], [0], [0], [1], [0, 0, 1, 1], [], []>} : vector<16x64xf32>, vector<64x128xf32>, vector<16x128xf32> -> vector<16x128xf32>
    %26 = arith.addf %19, %25 : vector<16x128xf32>
    %27 = vector.extract_strided_slice %20 {offsets = [0, 1, 0], sizes = [4, 4, 64], strides = [1, 1, 1]} : vector<4x6x64xf32> to vector<4x4x64xf32>
    %28 = vector.shape_cast %27 : vector<4x4x64xf32> to vector<16x64xf32>
    %c1_23 = arith.constant 1 : index
    %c1_24 = arith.constant 1 : index
    %c0_25 = arith.constant 0 : index
    %c0_26 = arith.constant 0 : index
    %29 = vector.load %arg4[%c1_23, %c1_24, %c0_25, %c0_26] : memref<3x3x64x128xf32, #tpu.memory_space<vmem>>, vector<1x1x64x128xf32>
    %30 = vector.shape_cast %29 : vector<1x1x64x128xf32> to vector<64x128xf32>
    %cst_27 = arith.constant dense<0.000000e+00> : vector<16x128xf32>
    %31 = tpu.matmul %28, %30, %cst_27 {dimension_numbers = #tpu.dot_dimension_numbers<[1], [0], [0], [1], [0, 0, 1, 1], [], []>} : vector<16x64xf32>, vector<64x128xf32>, vector<16x128xf32> -> vector<16x128xf32>
    %32 = arith.addf %26, %31 : vector<16x128xf32>
    %33 = vector.extract_strided_slice %20 {offsets = [0, 2, 0], sizes = [4, 4, 64], strides = [1, 1, 1]} : vector<4x6x64xf32> to vector<4x4x64xf32>
    %34 = vector.shape_cast %33 : vector<4x4x64xf32> to vector<16x64xf32>
    %c1_28 = arith.constant 1 : index
    %c2_29 = arith.constant 2 : index
    %c0_30 = arith.constant 0 : index
    %c0_31 = arith.constant 0 : index
    %35 = vector.load %arg4[%c1_28, %c2_29, %c0_30, %c0_31] : memref<3x3x64x128xf32, #tpu.memory_space<vmem>>, vector<1x1x64x128xf32>
    %36 = vector.shape_cast %35 : vector<1x1x64x128xf32> to vector<64x128xf32>
    %cst_32 = arith.constant dense<0.000000e+00> : vector<16x128xf32>
    %37 = tpu.matmul %34, %36, %cst_32 {dimension_numbers = #tpu.dot_dimension_numbers<[1], [0], [0], [1], [0, 0, 1, 1], [], []>} : vector<16x64xf32>, vector<64x128xf32>, vector<16x128xf32> -> vector<16x128xf32>
    %38 = arith.addf %32, %37 : vector<16x128xf32>
    %c0_33 = arith.constant 0 : index
    %c0_34 = arith.constant 0 : index
    %c0_35 = arith.constant 0 : index
    %39 = vector.load %arg3[%c0_33, %c0_34, %c0_35] : memref<4x6x64xf32, #tpu.memory_space<vmem>>, vector<4x6x64xf32>
    %40 = vector.extract_strided_slice %39 {offsets = [0, 0, 0], sizes = [4, 4, 64], strides = [1, 1, 1]} : vector<4x6x64xf32> to vector<4x4x64xf32>
    %41 = vector.shape_cast %40 : vector<4x4x64xf32> to vector<16x64xf32>
    %c2_36 = arith.constant 2 : index
    %c0_37 = arith.constant 0 : index
    %c0_38 = arith.constant 0 : index
    %c0_39 = arith.constant 0 : index
    %42 = vector.load %arg4[%c2_36, %c0_37, %c0_38, %c0_39] : memref<3x3x64x128xf32, #tpu.memory_space<vmem>>, vector<1x1x64x128xf32>
    %43 = vector.shape_cast %42 : vector<1x1x64x128xf32> to vector<64x128xf32>
    %cst_40 = arith.constant dense<0.000000e+00> : vector<16x128xf32>
    %44 = tpu.matmul %41, %43, %cst_40 {dimension_numbers = #tpu.dot_dimension_numbers<[1], [0], [0], [1], [0, 0, 1, 1], [], []>} : vector<16x64xf32>, vector<64x128xf32>, vector<16x128xf32> -> vector<16x128xf32>
    %45 = arith.addf %38, %44 : vector<16x128xf32>
    %46 = vector.extract_strided_slice %39 {offsets = [0, 1, 0], sizes = [4, 4, 64], strides = [1, 1, 1]} : vector<4x6x64xf32> to vector<4x4x64xf32>
    %47 = vector.shape_cast %46 : vector<4x4x64xf32> to vector<16x64xf32>
    %c2_41 = arith.constant 2 : index
    %c1_42 = arith.constant 1 : index
    %c0_43 = arith.constant 0 : index
    %c0_44 = arith.constant 0 : index
    %48 = vector.load %arg4[%c2_41, %c1_42, %c0_43, %c0_44] : memref<3x3x64x128xf32, #tpu.memory_space<vmem>>, vector<1x1x64x128xf32>
    %49 = vector.shape_cast %48 : vector<1x1x64x128xf32> to vector<64x128xf32>
    %cst_45 = arith.constant dense<0.000000e+00> : vector<16x128xf32>
    %50 = tpu.matmul %47, %49, %cst_45 {dimension_numbers = #tpu.dot_dimension_numbers<[1], [0], [0], [1], [0, 0, 1, 1], [], []>} : vector<16x64xf32>, vector<64x128xf32>, vector<16x128xf32> -> vector<16x128xf32>
    %51 = arith.addf %45, %50 : vector<16x128xf32>
    %52 = vector.extract_strided_slice %39 {offsets = [0, 2, 0], sizes = [4, 4, 64], strides = [1, 1, 1]} : vector<4x6x64xf32> to vector<4x4x64xf32>
    %53 = vector.shape_cast %52 : vector<4x4x64xf32> to vector<16x64xf32>
    %c2_46 = arith.constant 2 : index
    %c2_47 = arith.constant 2 : index
    %c0_48 = arith.constant 0 : index
    %c0_49 = arith.constant 0 : index
    %54 = vector.load %arg4[%c2_46, %c2_47, %c0_48, %c0_49] : memref<3x3x64x128xf32, #tpu.memory_space<vmem>>, vector<1x1x64x128xf32>
    %55 = vector.shape_cast %54 : vector<1x1x64x128xf32> to vector<64x128xf32>
    %cst_50 = arith.constant dense<0.000000e+00> : vector<16x128xf32>
    %56 = tpu.matmul %53, %55, %cst_50 {dimension_numbers = #tpu.dot_dimension_numbers<[1], [0], [0], [1], [0, 0, 1, 1], [], []>} : vector<16x64xf32>, vector<64x128xf32>, vector<16x128xf32> -> vector<16x128xf32>
    %57 = arith.addf %51, %56 : vector<16x128xf32>
    %c0_51 = arith.constant 0 : index
    %c0_52 = arith.constant 0 : index
    %58 = vector.load %arg5[%c0_51, %c0_52] : memref<1x128xf32, #tpu.memory_space<vmem>>, vector<1x128xf32>
    %59 = vector.broadcast %58 : vector<1x128xf32> to vector<16x128xf32>
    %60 = arith.addf %57, %59 : vector<16x128xf32>
    %61 = vector.shape_cast %60 : vector<16x128xf32> to vector<4x4x128xf32>
    %c0_53 = arith.constant 0 : index
    %c0_54 = arith.constant 0 : index
    %c0_55 = arith.constant 0 : index
    %62 = vector.load %arg6[%c0_53, %c0_54, %c0_55] : memref<4x4x128xf32, #tpu.memory_space<vmem>>, vector<4x4x128xf32>
    tpu.vector_store %arg6[%c0_53, %c0_54, %c0_55], %61 {strides = array<i32>} : memref<4x4x128xf32, #tpu.memory_space<vmem>>, vector<4x4x128xf32>,
    return
  }
  func.func @transform_0(%arg0: i32) -> (i32, i32, i32) {
    %c0_i32 = arith.constant 0 : i32
    %c0_i32_0 = arith.constant 0 : i32
    %c0_i32_1 = arith.constant 0 : i32
    return %arg0, %c0_i32, %c0_i32_0 : i32, i32, i32
  }
  func.func @transform_1(%arg0: i32) -> (i32, i32, i32) {
    %c0_i32 = arith.constant 0 : i32
    %c0_i32_0 = arith.constant 0 : i32
    %c0_i32_1 = arith.constant 0 : i32
    return %arg0, %c0_i32, %c0_i32_0 : i32, i32, i32
  }
  func.func @transform_2(%arg0: i32) -> (i32, i32, i32) {
    %c0_i32 = arith.constant 0 : i32
    %c0_i32_0 = arith.constant 0 : i32
    %c0_i32_1 = arith.constant 0 : i32
    return %arg0, %c0_i32, %c0_i32_0 : i32, i32, i32
  }
  func.func @transform_3(%arg0: i32) -> (i32, i32, i32, i32) {
    %c0_i32 = arith.constant 0 : i32
    %c0_i32_0 = arith.constant 0 : i32
    %c0_i32_1 = arith.constant 0 : i32
    %c0_i32_2 = arith.constant 0 : i32
    %c0_i32_3 = arith.constant 0 : i32
    return %c0_i32, %c0_i32_0, %c0_i32_1, %c0_i32_2 : i32, i32, i32, i32
  }
  func.func @transform_4(%arg0: i32) -> (i32, i32) {
    %c0_i32 = arith.constant 0 : i32
    %c0_i32_0 = arith.constant 0 : i32
    %c0_i32_1 = arith.constant 0 : i32
    return %c0_i32, %c0_i32_0 : i32, i32
  }
  func.func @transform_5(%arg0: i32) -> (i32, i32, i32) {
    %c0_i32 = arith.constant 0 : i32
    %c0_i32_0 = arith.constant 0 : i32
    %c0_i32_1 = arith.constant 0 : i32
    return %arg0, %c0_i32, %c0_i32_0 : i32, i32, i32
  }
}

</mosaic_0001>

<llo_original>
// kernel: downsample_x8_forward.6
$region0: #{downsample_x8_forward.6}
  #allocation0 [shape = 'u32[]', space=smem, size = 0x4, offset = 0x4, fixed_abs, tag = 'smem constant byte address 0x4 - core index']
  #allocation1 [shape = 'u32[144,128]{1,0:T(1,128)}', space=vmem, size = 0x12000, scoped, tag = 'internal scratch']
  %s0 = inlined_call_operand.vmem [shape: f32[32,32,128], index: 0, kind: input, shape index: {}]
  %s1 = inlined_call_operand.vmem [shape: f32[2,128,64], index: 1, kind: input, shape index: {}]
  %s2 = inlined_call_operand.vmem [shape: f32[1,64], index: 2, kind: input, shape index: {}]
  %s3 = inlined_call_operand.vmem [shape: f32[32,16,64], index: 3, kind: output, shape index: {}]
  %s4 = sld [smem:[#allocation0]]
  $region45: #{downsample_x8_forward.6} parent=0
    _
  %s6 = ssub.s32 1, %s4
  %s7 = scalar_select 0, %s6, %s4
  loop: start=0, step=1, limit=4
  $region2: #{downsample_x8_forward.6} parent=0 // loop_pre_header
    _
  $region3: #{downsample_x8_forward.6} parent=0 // loop_header
    %s9 = sphi 0, %s13
    %p10 = scmp.ge.s32.totalorder %s9, 4
    %s19 = sphi 0, %s21
    %s22 = sphi 0, %s19
    %s23 = sphi 0, %s22
    %s39 = sphi 0, %s23
    %s43 = sphi 0, %s43
    %s45 = sphi 0, %s43
    %s46 = sphi 0, %s45
    %s60 = sphi 0, %s46
    %s64 = sphi 0, %s64
    %s66 = sphi 0, %s64
    %s67 = sphi 0, %s66
    %s81 = sphi 0, %s67
    %s87 = sphi 0, %s89
    %s90 = sphi 0, %s87
    %s91 = sphi 0, %s90
    %s107 = sphi 0, %s91
  $region4: #{downsample_x8_forward.6} parent=0 // loop_header_branch
    %12 = sbr.rel (%p10) target = $region8
  $region5: #{downsample_x8_forward.6} parent=0 // loop_body
    %s14 = ssub.s32 %s9, 1
    %s15 = ssub.s32 %s9, 2
    %s16 = sadd.s32 %s9, 1
    %s17 = ssub.s32 %s9, %s16
    %p18 = scmp.eq.s32.totalorder %s17, 0
    %s20 = sadd.s32 %s19, 1
    %s21 = scalar_select %p18, %s19, %s20
    %p24 = pneg %p18
    %p25 = scmp.eq.s32.totalorder %s9, 1
    %p26 = por %p24, %p25
    %p27 = scmp.ne.s32.totalorder %s19, %s22
    %p28 = scmp.eq.s32.totalorder %s9, 0
    %p29 = por %p27, %p28
    %p30 = scmp.ne.s32.totalorder %s19, %s22
    %p31 = scmp.eq.s32.totalorder %s14, 1
    %p32 = por %p30, %p31
    %p33 = scmp.ne.s32.totalorder %s22, %s23
    %p34 = scmp.eq.s32.totalorder %s14, 0
    %p35 = por %p33, %p34
    %p36 = scmp.ne.s32.totalorder %s22, %s23
    %p37 = scmp.eq.s32.totalorder %s15, 1
    %p38 = por %p36, %p37
    %p40 = scmp.ne.s32.totalorder %s23, %s39
    %p41 = scmp.eq.s32.totalorder %s15, 0
    %p42 = por %p40, %p41
    %s44 = sadd.s32 %s43, 1
    %p47 = scmp.eq.s32.totalorder %s9, 1
    %p48 = scmp.ne.s32.totalorder %s43, %s45
    %p49 = scmp.eq.s32.totalorder %s9, 0
    %p50 = por %p48, %p49
    %p51 = scmp.ne.s32.totalorder %s43, %s45
    %p52 = scmp.eq.s32.totalorder %s14, 1
    %p53 = por %p51, %p52
    %p54 = scmp.ne.s32.totalorder %s45, %s46
    %p55 = scmp.eq.s32.totalorder %s14, 0
    %p56 = por %p54, %p55
    %p57 = scmp.ne.s32.totalorder %s45, %s46
    %p58 = scmp.eq.s32.totalorder %s15, 1
    %p59 = por %p57, %p58
    %p61 = scmp.ne.s32.totalorder %s46, %s60
    %p62 = scmp.eq.s32.totalorder %s15, 0
    %p63 = por %p61, %p62
    %s65 = sadd.s32 %s64, 1
    %p68 = scmp.eq.s32.totalorder %s9, 1
    %p69 = scmp.ne.s32.totalorder %s64, %s66
    %p70 = scmp.eq.s32.totalorder %s9, 0
    %p71 = por %p69, %p70
    %p72 = scmp.ne.s32.totalorder %s64, %s66
    %p73 = scmp.eq.s32.totalorder %s14, 1
    %p74 = por %p72, %p73
    %p75 = scmp.ne.s32.totalorder %s66, %s67
    %p76 = scmp.eq.s32.totalorder %s14, 0
    %p77 = por %p75, %p76
    %p78 = scmp.ne.s32.totalorder %s66, %s67
    %p79 = scmp.eq.s32.totalorder %s15, 1
    %p80 = por %p78, %p79
    %p82 = scmp.ne.s32.totalorder %s67, %s81
    %p83 = scmp.eq.s32.totalorder %s15, 0
    %p84 = por %p82, %p83
    %s85 = ssub.s32 %s9, %s16
    %p86 = scmp.eq.s32.totalorder %s85, 0
    %s88 = sadd.s32 %s87, 1
    %s89 = scalar_select %p86, %s87, %s88
    %p92 = pneg %p86
    %p93 = scmp.eq.s32.totalorder %s9, 1
    %p94 = por %p92, %p93
    %p95 = scmp.ne.s32.totalorder %s87, %s90
    %p96 = scmp.eq.s32.totalorder %s9, 0
    %p97 = por %p95, %p96
    %p98 = scmp.ne.s32.totalorder %s87, %s90
    %p99 = scmp.eq.s32.totalorder %s14, 1
    %p100 = por %p98, %p99
    %p101 = scmp.ne.s32.totalorder %s90, %s91
    %p102 = scmp.eq.s32.totalorder %s14, 0
    %p103 = por %p101, %p102
    %p104 = scmp.ne.s32.totalorder %s90, %s91
    %p105 = scmp.eq.s32.totalorder %s15, 1
    %p106 = por %p104, %p105
    %p108 = scmp.ne.s32.totalorder %s91, %s107
    %p109 = scmp.eq.s32.totalorder %s15, 0
    %p110 = por %p108, %p109
    %p111 = scmp.le.s32.totalorder 1, %s9
    %p112 = scmp.lt.s32.totalorder %s9, 3
    %p113 = pnand %p111, %p112
    %p114 = pneg %p113
    // Predicated region
    $region9: #{downsample_x8_forward.6} parent=5 // pred_check
      _
    $region10: #{downsample_x8_forward.6} parent=5 // pred_check_branch
      %116 = sbr.rel (%p113) target = $region12
    $region11: #{downsample_x8_forward.6} parent=5 // pred_region
      %s117 = ssub.s32 %s9, 1
      // Predicated region
      $region13: #{downsample_x8_forward.6} parent=11 // pred_check
        %p118 = pneg %p56
      $region14: #{downsample_x8_forward.6} parent=11 // pred_check_branch
        %120 = sbr.rel (%p118) target = $region16
      $region15: #{downsample_x8_forward.6} parent=11 // pred_region
        _
      $region16: #{downsample_x8_forward.6} parent=11 // pred_fallthru
        _
      // Predicated region
      $region17: #{downsample_x8_forward.6} parent=11 // pred_check
        %p121 = pneg %p77
      $region18: #{downsample_x8_forward.6} parent=11 // pred_check_branch
        %123 = sbr.rel (%p121) target = $region20
      $region19: #{downsample_x8_forward.6} parent=11 // pred_region
        _
      $region20: #{downsample_x8_forward.6} parent=11 // pred_fallthru
        _
    $region12: #{downsample_x8_forward.6} parent=5 // pred_fallthru
      _
    %p124 = scmp.lt.s32.totalorder %s9, 2
    // Predicated region
    $region21: #{downsample_x8_forward.6} parent=5 // pred_check
      %p125 = pneg %p124
    $region22: #{downsample_x8_forward.6} parent=5 // pred_check_branch
      %127 = sbr.rel (%p125) target = $region24
    $region23: #{downsample_x8_forward.6} parent=5 // pred_region
      // Predicated region
      $region25: #{downsample_x8_forward.6} parent=23 // pred_check
        %p128 = pneg %p29
      $region26: #{downsample_x8_forward.6} parent=23 // pred_check_branch
        %130 = sbr.rel (%p128) target = $region28
      $region27: #{downsample_x8_forward.6} parent=23 // pred_region
        %s131 = smul.u32 16, %s9
        %p132 = scmp.lt.s32.totalorder %s131, 31
        %s133 = scalar_select %p132, %s131, 31
        %s134 = smul.addr %s133, 4
        %s135 = smul.addr %s134, 8
        %s136 = scalar_lea.vmem %s0, %s135
        %s137 = smul.u32 16, %s9
      $region28: #{downsample_x8_forward.6} parent=23 // pred_fallthru
        _
    $region24: #{downsample_x8_forward.6} parent=5 // pred_fallthru
      _
    %p138 = scmp.le.s32.totalorder 1, %s9
    %p139 = scmp.lt.s32.totalorder %s9, 3
    %p140 = pnand %p138, %p139
    %p141 = pneg %p140
    // Predicated region
    $region29: #{downsample_x8_forward.6} parent=5 // pred_check
      _
    $region30: #{downsample_x8_forward.6} parent=5 // pred_check_branch
      %143 = sbr.rel (%p140) target = $region32
    $region31: #{downsample_x8_forward.6} parent=5 // pred_region
      %s144 = ssub.s32 %s9, 1
      %s145 = smul.u32 16, %s14
      %p146 = scmp.lt.s32.totalorder %s145, 31
      %s147 = scalar_select %p146, %s145, 31
      %s148 = smul.addr %s147, 4
      %s149 = smul.addr %s148, 8
      %s150 = scalar_lea.vmem %s0, %s149
      %p151 = pneg %p35
      %p152 = pneg %p32
      %p153 = pneg %p56
      %p154 = pneg %p53
      %p155 = pneg %p77
      %p156 = pneg %p74
      %p157 = pneg %p103
      %p158 = pneg %p100
      %s159 = smul.u32 16, %s14
      %p160 = scmp.lt.s32.totalorder %s159, 31
      %s161 = scalar_select %p160, %s159, 31
      %s162 = smul.addr %s161, 2
      %s163 = smul.addr %s162, 8
      %s164 = scalar_lea.vmem %s3, %s163
      %s165 = smul.u32 16, %s14
      %p166 = scmp.lt.s32.totalorder %s165, 31
      %s167 = scalar_select %p166, %s165, 31
      %s168 = smul.addr %s167, 4
      %s169 = smul.addr %s168, 8
      %s170 = scalar_lea.vmem %s0, %s169
      %s171 = smul.u32 16, %s14
      %s172 = smul.u32 16, %s14
      %p173 = scmp.lt.s32.totalorder %s172, 31
      %s174 = scalar_select %p173, %s172, 31
      %s175 = smul.addr %s174, 2
      %s176 = smul.addr %s175, 8
      %s177 = scalar_lea.vmem %s3, %s176
      %s178 = smul.u32 16, %s14
      %v179 = vld [vmem:[%s170] sm:$0xff]
      %v180 = vld [vmem:[%s170 + $0x8] sm:$0xff]
      %v181 = vld [vmem:[%s170 + $0x10] sm:$0xff]
      %v182 = vld [vmem:[%s170 + $0x18] sm:$0xff]
      %v183 = vld [vmem:[%s170 + $0x20] sm:$0xff]
      %v184 = vld [vmem:[%s170 + $0x28] sm:$0xff]
      %v185 = vld [vmem:[%s170 + $0x30] sm:$0xff]
      %v186 = vld [vmem:[%s170 + $0x38] sm:$0xff]
      %v187 = vld [vmem:[%s170 + $0x40] sm:$0xff]
      %v188 = vld [vmem:[%s170 + $0x48] sm:$0xff]
      %v189 = vld [vmem:[%s170 + $0x50] sm:$0xff]
      %v190 = vld [vmem:[%s170 + $0x58] sm:$0xff]
      %v191 = vld [vmem:[%s170 + $0x60] sm:$0xff]
      %v192 = vld [vmem:[%s170 + $0x68] sm:$0xff]
      %v193 = vld [vmem:[%s170 + $0x70] sm:$0xff]
      %v194 = vld [vmem:[%s170 + $0x78] sm:$0xff]
      %v195 = vld [vmem:[%s170 + $0x80] sm:$0xff]
      %v196 = vld [vmem:[%s170 + $0x88] sm:$0xff]
      %v197 = vld [vmem:[%s170 + $0x90] sm:$0xff]
      %v198 = vld [vmem:[%s170 + $0x98] sm:$0xff]
      %v199 = vld [vmem:[%s170 + $0xa0] sm:$0xff]
      %v200 = vld [vmem:[%s170 + $0xa8] sm:$0xff]
      %v201 = vld [vmem:[%s170 + $0xb0] sm:$0xff]
      %v202 = vld [vmem:[%s170 + $0xb8] sm:$0xff]
      %v203 = vld [vmem:[%s170 + $0xc0] sm:$0xff]
      %v204 = vld [vmem:[%s170 + $0xc8] sm:$0xff]
      %v205 = vld [vmem:[%s170 + $0xd0] sm:$0xff]
      %v206 = vld [vmem:[%s170 + $0xd8] sm:$0xff]
      %v207 = vld [vmem:[%s170 + $0xe0] sm:$0xff]
      %v208 = vld [vmem:[%s170 + $0xe8] sm:$0xff]
      %v209 = vld [vmem:[%s170 + $0xf0] sm:$0xff]
      %v210 = vld [vmem:[%s170 + $0xf8] sm:$0xff]
      %v211 = vld [vmem:[%s170 + $0x100] sm:$0xff]
      %v212 = vld [vmem:[%s170 + $0x108] sm:$0xff]
      %v213 = vld [vmem:[%s170 + $0x110] sm:$0xff]
      %v214 = vld [vmem:[%s170 + $0x118] sm:$0xff]
      %v215 = vld [vmem:[%s170 + $0x120] sm:$0xff]
      %v216 = vld [vmem:[%s170 + $0x128] sm:$0xff]
      %v217 = vld [vmem:[%s170 + $0x130] sm:$0xff]
      %v218 = vld [vmem:[%s170 + $0x138] sm:$0xff]
      %v219 = vld [vmem:[%s170 + $0x140] sm:$0xff]
      %v220 = vld [vmem:[%s170 + $0x148] sm:$0xff]
      %v221 = vld [vmem:[%s170 + $0x150] sm:$0xff]
      %v222 = vld [vmem:[%s170 + $0x158] sm:$0xff]
      %v223 = vld [vmem:[%s170 + $0x160] sm:$0xff]
      %v224 = vld [vmem:[%s170 + $0x168] sm:$0xff]
      %v225 = vld [vmem:[%s170 + $0x170] sm:$0xff]
      %v226 = vld [vmem:[%s170 + $0x178] sm:$0xff]
      %v227 = vld [vmem:[%s170 + $0x180] sm:$0xff]
      %v228 = vld [vmem:[%s170 + $0x188] sm:$0xff]
      %v229 = vld [vmem:[%s170 + $0x190] sm:$0xff]
      %v230 = vld [vmem:[%s170 + $0x198] sm:$0xff]
      %v231 = vld [vmem:[%s170 + $0x1a0] sm:$0xff]
      %v232 = vld [vmem:[%s170 + $0x1a8] sm:$0xff]
      %v233 = vld [vmem:[%s170 + $0x1b0] sm:$0xff]
      %v234 = vld [vmem:[%s170 + $0x1b8] sm:$0xff]
      %v235 = vld [vmem:[%s170 + $0x1c0] sm:$0xff]
      %v236 = vld [vmem:[%s170 + $0x1c8] sm:$0xff]
      %v237 = vld [vmem:[%s170 + $0x1d0] sm:$0xff]
      %v238 = vld [vmem:[%s170 + $0x1d8] sm:$0xff]
      %v239 = vld [vmem:[%s170 + $0x1e0] sm:$0xff]
      %v240 = vld [vmem:[%s170 + $0x1e8] sm:$0xff]
      %v241 = vld [vmem:[%s170 + $0x1f0] sm:$0xff]
      %v242 = vld [vmem:[%s170 + $0x1f8] sm:$0xff]
      %275 = vrot.lane.b32.xlu0 %v179, 64
      %v276 = vpop.permute.xlu0 %275
      %277 = vrot.lane.b32.xlu0 %v180, 64
      %v278 = vpop.permute.xlu0 %277
      %279 = vrot.lane.b32.xlu0 %v183, 64
      %v280 = vpop.permute.xlu0 %279
      %281 = vrot.lane.b32.xlu0 %v184, 64
      %v282 = vpop.permute.xlu0 %281
      %283 = vrot.lane.b32.xlu0 %v187, 64
      %v284 = vpop.permute.xlu0 %283
      %285 = vrot.lane.b32.xlu0 %v188, 64
      %v286 = vpop.permute.xlu0 %285
      %287 = vrot.lane.b32.xlu0 %v191, 64
      %v288 = vpop.permute.xlu0 %287
      %289 = vrot.lane.b32.xlu0 %v192, 64
      %v290 = vpop.permute.xlu0 %289
      %291 = vrot.lane.b32.xlu0 %v195, 64
      %v292 = vpop.permute.xlu0 %291
      %293 = vrot.lane.b32.xlu0 %v196, 64
      %v294 = vpop.permute.xlu0 %293
      %295 = vrot.lane.b32.xlu0 %v199, 64
      %v296 = vpop.permute.xlu0 %295
      %297 = vrot.lane.b32.xlu0 %v200, 64
      %v298 = vpop.permute.xlu0 %297
      %299 = vrot.lane.b32.xlu0 %v203, 64
      %v300 = vpop.permute.xlu0 %299
      %301 = vrot.lane.b32.xlu0 %v204, 64
      %v302 = vpop.permute.xlu0 %301
      %303 = vrot.lane.b32.xlu0 %v207, 64
      %v304 = vpop.permute.xlu0 %303
      %305 = vrot.lane.b32.xlu0 %v208, 64
      %v306 = vpop.permute.xlu0 %305
      %307 = vrot.lane.b32.xlu0 %v211, 64
      %v308 = vpop.permute.xlu0 %307
      %309 = vrot.lane.b32.xlu0 %v212, 64
      %v310 = vpop.permute.xlu0 %309
      %311 = vrot.lane.b32.xlu0 %v215, 64
      %v312 = vpop.permute.xlu0 %311
      %313 = vrot.lane.b32.xlu0 %v216, 64
      %v314 = vpop.permute.xlu0 %313
      %315 = vrot.lane.b32.xlu0 %v219, 64
      %v316 = vpop.permute.xlu0 %315
      %317 = vrot.lane.b32.xlu0 %v220, 64
      %v318 = vpop.permute.xlu0 %317
      %319 = vrot.lane.b32.xlu0 %v223, 64
      %v320 = vpop.permute.xlu0 %319
      %321 = vrot.lane.b32.xlu0 %v224, 64
      %v322 = vpop.permute.xlu0 %321
      %323 = vrot.lane.b32.xlu0 %v227, 64
      %v324 = vpop.permute.xlu0 %323
      %325 = vrot.lane.b32.xlu0 %v228, 64
      %v326 = vpop.permute.xlu0 %325
      %327 = vrot.lane.b32.xlu0 %v231, 64
      %v328 = vpop.permute.xlu0 %327
      %329 = vrot.lane.b32.xlu0 %v232, 64
      %v330 = vpop.permute.xlu0 %329
      %331 = vrot.lane.b32.xlu0 %v235, 64
      %v332 = vpop.permute.xlu0 %331
      %333 = vrot.lane.b32.xlu0 %v236, 64
      %v334 = vpop.permute.xlu0 %333
      %335 = vrot.lane.b32.xlu0 %v239, 64
      %v336 = vpop.permute.xlu0 %335
      %337 = vrot.lane.b32.xlu0 %v240, 64
      %v338 = vpop.permute.xlu0 %337
      %v371 = vmax.f32 %v179, %v276
      %v372 = vmax.f32 %v180, %v278
      %v373 = vmax.f32 %v183, %v280
      %v374 = vmax.f32 %v184, %v282
      %v375 = vmax.f32 %v187, %v284
      %v376 = vmax.f32 %v188, %v286
      %v377 = vmax.f32 %v191, %v288
      %v378 = vmax.f32 %v192, %v290
      %v379 = vmax.f32 %v195, %v292
      %v380 = vmax.f32 %v196, %v294
      %v381 = vmax.f32 %v199, %v296
      %v382 = vmax.f32 %v200, %v298
      %v383 = vmax.f32 %v203, %v300
      %v384 = vmax.f32 %v204, %v302
      %v385 = vmax.f32 %v207, %v304
      %v386 = vmax.f32 %v208, %v306
      %v387 = vmax.f32 %v211, %v308
      %v388 = vmax.f32 %v212, %v310
      %v389 = vmax.f32 %v215, %v312
      %v390 = vmax.f32 %v216, %v314
      %v391 = vmax.f32 %v219, %v316
      %v392 = vmax.f32 %v220, %v318
      %v393 = vmax.f32 %v223, %v320
      %v394 = vmax.f32 %v224, %v322
      %v395 = vmax.f32 %v227, %v324
      %v396 = vmax.f32 %v228, %v326
      %v397 = vmax.f32 %v231, %v328
      %v398 = vmax.f32 %v232, %v330
      %v399 = vmax.f32 %v235, %v332
      %v400 = vmax.f32 %v236, %v334
      %v401 = vmax.f32 %v239, %v336
      %v402 = vmax.f32 %v240, %v338
      %435 = vrot.lane.b32.xlu0 %v181, 64
      %v436 = vpop.permute.xlu0 %435
      %437 = vrot.lane.b32.xlu0 %v182, 64
      %v438 = vpop.permute.xlu0 %437
      %439 = vrot.lane.b32.xlu0 %v185, 64
      %v440 = vpop.permute.xlu0 %439
      %441 = vrot.lane.b32.xlu0 %v186, 64
      %v442 = vpop.permute.xlu0 %441
      %443 = vrot.lane.b32.xlu0 %v189, 64
      %v444 = vpop.permute.xlu0 %443
      %445 = vrot.lane.b32.xlu0 %v190, 64
      %v446 = vpop.permute.xlu0 %445
      %447 = vrot.lane.b32.xlu0 %v193, 64
      %v448 = vpop.permute.xlu0 %447
      %449 = vrot.lane.b32.xlu0 %v194, 64
      %v450 = vpop.permute.xlu0 %449
      %451 = vrot.lane.b32.xlu0 %v197, 64
      %v452 = vpop.permute.xlu0 %451
      %453 = vrot.lane.b32.xlu0 %v198, 64
      %v454 = vpop.permute.xlu0 %453
      %455 = vrot.lane.b32.xlu0 %v201, 64
      %v456 = vpop.permute.xlu0 %455
      %457 = vrot.lane.b32.xlu0 %v202, 64
      %v458 = vpop.permute.xlu0 %457
      %459 = vrot.lane.b32.xlu0 %v205, 64
      %v460 = vpop.permute.xlu0 %459
      %461 = vrot.lane.b32.xlu0 %v206, 64
      %v462 = vpop.permute.xlu0 %461
      %463 = vrot.lane.b32.xlu0 %v209, 64
      %v464 = vpop.permute.xlu0 %463
      %465 = vrot.lane.b32.xlu0 %v210, 64
      %v466 = vpop.permute.xlu0 %465
      %467 = vrot.lane.b32.xlu0 %v213, 64
      %v468 = vpop.permute.xlu0 %467
      %469 = vrot.lane.b32.xlu0 %v214, 64
      %v470 = vpop.permute.xlu0 %469
      %471 = vrot.lane.b32.xlu0 %v217, 64
      %v472 = vpop.permute.xlu0 %471
      %473 = vrot.lane.b32.xlu0 %v218, 64
      %v474 = vpop.permute.xlu0 %473
      %475 = vrot.lane.b32.xlu0 %v221, 64
      %v476 = vpop.permute.xlu0 %475
      %477 = vrot.lane.b32.xlu0 %v222, 64
      %v478 = vpop.permute.xlu0 %477
      %479 = vrot.lane.b32.xlu0 %v225, 64
      %v480 = vpop.permute.xlu0 %479
      %481 = vrot.lane.b32.xlu0 %v226, 64
      %v482 = vpop.permute.xlu0 %481
      %483 = vrot.lane.b32.xlu0 %v229, 64
      %v484 = vpop.permute.xlu0 %483
      %485 = vrot.lane.b32.xlu0 %v230, 64
      %v486 = vpop.permute.xlu0 %485
      %487 = vrot.lane.b32.xlu0 %v233, 64
      %v488 = vpop.permute.xlu0 %487
      %489 = vrot.lane.b32.xlu0 %v234, 64
      %v490 = vpop.permute.xlu0 %489
      %491 = vrot.lane.b32.xlu0 %v237, 64
      %v492 = vpop.permute.xlu0 %491
      %493 = vrot.lane.b32.xlu0 %v238, 64
      %v494 = vpop.permute.xlu0 %493
      %495 = vrot.lane.b32.xlu0 %v241, 64
      %v496 = vpop.permute.xlu0 %495
      %497 = vrot.lane.b32.xlu0 %v242, 64
      %v498 = vpop.permute.xlu0 %497
      %v531 = vmax.f32 %v181, %v436
      %v532 = vmax.f32 %v182, %v438
      %v533 = vmax.f32 %v185, %v440
      %v534 = vmax.f32 %v186, %v442
      %v535 = vmax.f32 %v189, %v444
      %v536 = vmax.f32 %v190, %v446
      %v537 = vmax.f32 %v193, %v448
      %v538 = vmax.f32 %v194, %v450
      %v539 = vmax.f32 %v197, %v452
      %v540 = vmax.f32 %v198, %v454
      %v541 = vmax.f32 %v201, %v456
      %v542 = vmax.f32 %v202, %v458
      %v543 = vmax.f32 %v205, %v460
      %v544 = vmax.f32 %v206, %v462
      %v545 = vmax.f32 %v209, %v464
      %v546 = vmax.f32 %v210, %v466
      %v547 = vmax.f32 %v213, %v468
      %v548 = vmax.f32 %v214, %v470
      %v549 = vmax.f32 %v217, %v472
      %v550 = vmax.f32 %v218, %v474
      %v551 = vmax.f32 %v221, %v476
      %v552 = vmax.f32 %v222, %v478
      %v553 = vmax.f32 %v225, %v480
      %v554 = vmax.f32 %v226, %v482
      %v555 = vmax.f32 %v229, %v484
      %v556 = vmax.f32 %v230, %v486
      %v557 = vmax.f32 %v233, %v488
      %v558 = vmax.f32 %v234, %v490
      %v559 = vmax.f32 %v237, %v492
      %v560 = vmax.f32 %v238, %v494
      %v561 = vmax.f32 %v241, %v496
      %v562 = vmax.f32 %v242, %v498
      %v563 = vmax.f32 %v371, %v531
      %v564 = vmax.f32 %v372, %v532
      %v565 = vmax.f32 %v373, %v533
      %v566 = vmax.f32 %v374, %v534
      %v567 = vmax.f32 %v375, %v535
      %v568 = vmax.f32 %v376, %v536
      %v569 = vmax.f32 %v377, %v537
      %v570 = vmax.f32 %v378, %v538
      %v571 = vmax.f32 %v379, %v539
      %v572 = vmax.f32 %v380, %v540
      %v573 = vmax.f32 %v381, %v541
      %v574 = vmax.f32 %v382, %v542
      %v575 = vmax.f32 %v383, %v543
      %v576 = vmax.f32 %v384, %v544
      %v577 = vmax.f32 %v385, %v545
      %v578 = vmax.f32 %v386, %v546
      %v579 = vmax.f32 %v387, %v547
      %v580 = vmax.f32 %v388, %v548
      %v581 = vmax.f32 %v389, %v549
      %v582 = vmax.f32 %v390, %v550
      %v583 = vmax.f32 %v391, %v551
      %v584 = vmax.f32 %v392, %v552
      %v585 = vmax.f32 %v393, %v553
      %v586 = vmax.f32 %v394, %v554
      %v587 = vmax.f32 %v395, %v555
      %v588 = vmax.f32 %v396, %v556
      %v589 = vmax.f32 %v397, %v557
      %v590 = vmax.f32 %v398, %v558
      %v591 = vmax.f32 %v399, %v559
      %v592 = vmax.f32 %v400, %v560
      %v593 = vmax.f32 %v401, %v561
      %v594 = vmax.f32 %v402, %v562
      %v595 = vld [vmem:[%s1] sm:$0xff]
      %v596 = vld [vmem:[%s1 + $0x8] sm:$0xff]
      %v597 = vld [vmem:[%s1 + $0x10] sm:$0xff]
      %v598 = vld [vmem:[%s1 + $0x18] sm:$0xff]
      %v599 = vld [vmem:[%s1 + $0x20] sm:$0xff]
      %v600 = vld [vmem:[%s1 + $0x28] sm:$0xff]
      %v601 = vld [vmem:[%s1 + $0x30] sm:$0xff]
      %v602 = vld [vmem:[%s1 + $0x38] sm:$0xff]
      %v603 = vld [vmem:[%s1 + $0x40] sm:$0xff]
      %v604 = vld [vmem:[%s1 + $0x48] sm:$0xff]
      %v605 = vld [vmem:[%s1 + $0x50] sm:$0xff]
      %v606 = vld [vmem:[%s1 + $0x58] sm:$0xff]
      %v607 = vld [vmem:[%s1 + $0x60] sm:$0xff]
      %v608 = vld [vmem:[%s1 + $0x68] sm:$0xff]
      %v609 = vld [vmem:[%s1 + $0x70] sm:$0xff]
      %v610 = vld [vmem:[%s1 + $0x78] sm:$0xff]
      %s611 = scalar_lea.vmem %s1, 128
      %v612 = vld [vmem:[%s611] sm:$0xff]
      %v613 = vld [vmem:[%s611 + $0x8] sm:$0xff]
      %v614 = vld [vmem:[%s611 + $0x10] sm:$0xff]
      %v615 = vld [vmem:[%s611 + $0x18] sm:$0xff]
      %v616 = vld [vmem:[%s611 + $0x20] sm:$0xff]
      %v617 = vld [vmem:[%s611 + $0x28] sm:$0xff]
      %v618 = vld [vmem:[%s611 + $0x30] sm:$0xff]
      %v619 = vld [vmem:[%s611 + $0x38] sm:$0xff]
      %v620 = vld [vmem:[%s611 + $0x40] sm:$0xff]
      %v621 = vld [vmem:[%s611 + $0x48] sm:$0xff]
      %v622 = vld [vmem:[%s611 + $0x50] sm:$0xff]
      %v623 = vld [vmem:[%s611 + $0x58] sm:$0xff]
      %v624 = vld [vmem:[%s611 + $0x60] sm:$0xff]
      %v625 = vld [vmem:[%s611 + $0x68] sm:$0xff]
      %v626 = vld [vmem:[%s611 + $0x70] sm:$0xff]
      %v627 = vld [vmem:[%s611 + $0x78] sm:$0xff]
      %628 = vmatprep.subr.mxu0 0.0
      %629 = vmatpush1.msra.mxu0 %v612
      %630 = vmatprep.subr.mxu0 0.0
      %631 = vmatpush1.msra.mxu0 %v613
      %632 = vmatprep.subr.mxu0 0.0
      %633 = vmatpush1.msra.mxu0 %v614
      %634 = vmatprep.subr.mxu0 0.0
      %635 = vmatpush1.msra.mxu0 %v615
      %636 = vmatprep.subr.mxu0 0.0
      %637 = vmatpush1.msra.mxu0 %v616
      %638 = vmatprep.subr.mxu0 0.0
      %639 = vmatpush1.msra.mxu0 %v617
      %640 = vmatprep.subr.mxu0 0.0
      %641 = vmatpush1.msra.mxu0 %v618
      %642 = vmatprep.subr.mxu0 0.0
      %643 = vmatpush1.msra.mxu0 %v619
      %644 = vmatprep.subr.mxu0 0.0
      %645 = vmatpush1.msra.mxu0 %v620
      %646 = vmatprep.subr.mxu0 0.0
      %647 = vmatpush1.msra.mxu0 %v621
      %648 = vmatprep.subr.mxu0 0.0
      %649 = vmatpush1.msra.mxu0 %v622
      %650 = vmatprep.subr.mxu0 0.0
      %651 = vmatpush1.msra.mxu0 %v623
      %652 = vmatprep.subr.mxu0 0.0
      %653 = vmatpush1.msra.mxu0 %v624
      %654 = vmatprep.subr.mxu0 0.0
      %655 = vmatpush1.msra.mxu0 %v625
      %656 = vmatprep.subr.mxu0 0.0
      %657 = vmatpush1.msra.mxu0 %v626
      %658 = vmatprep.subr.mxu0 0.0
      %659 = vmatpush1.msra.mxu0 %v627
      %660 = vmatprep.subr.mxu0 0.0
      %661 = vmatpush1.msra.mxu0 0.0
      %662 = vmatprep.subr.mxu0 0.0
      %663 = vmatpush1.msra.mxu0 0.0
      %664 = vmatprep.subr.mxu0 0.0
      %665 = vmatpush1.msra.mxu0 0.0
      %666 = vmatprep.subr.mxu0 0.0
      %667 = vmatpush1.msra.mxu0 0.0
      %668 = vmatprep.subr.mxu0 0.0
      %669 = vmatpush1.msra.mxu0 0.0
      %670 = vmatprep.subr.mxu0 0.0
      %671 = vmatpush1.msra.mxu0 0.0
      %672 = vmatprep.subr.mxu0 0.0
      %673 = vmatpush1.msra.mxu0 0.0
      %674 = vmatprep.subr.mxu0 0.0
      %675 = vmatpush1.msra.mxu0 0.0
      %676 = vmatprep.subr.mxu0 0.0
      %677 = vmatpush1.msra.mxu0 0.0
      %678 = vmatprep.subr.mxu0 0.0
      %679 = vmatpush1.msra.mxu0 0.0
      %680 = vmatprep.subr.mxu0 0.0
      %681 = vmatpush1.msra.mxu0 0.0
      %682 = vmatprep.subr.mxu0 0.0
      %683 = vmatpush1.msra.mxu0 0.0
      %684 = vmatprep.subr.mxu0 0.0
      %685 = vmatpush1.msra.mxu0 0.0
      %686 = vmatprep.subr.mxu0 0.0
      %687 = vmatpush1.msra.mxu0 0.0
      %688 = vmatprep.subr.mxu0 0.0
      %689 = vmatpush1.msra.mxu0 0.0
      %690 = vmatprep.subr.mxu0 0.0
      %691 = vmatpush1.msra.mxu0 0.0
      %692 = vmatprep.mubr.f32.mxu0 0.0
      %693 = vmatmul.mubr.f32.gmra.mrb[0].mxu0 %v181
      %v694 = vpop.f32.mrb[0].mxu0
      %v695 = vadd.f32 0.0, %v694
      %v696 = vpop.f32.mrb[0].mxu0
      %697 = vmatprep.mubr.f32.mxu0 0.0
      %698 = vmatmul.mubr.f32.gmra.mrb[0].mxu0 %v182
      %v699 = vpop.f32.mrb[0].mxu0
      %v700 = vadd.f32 0.0, %v699
      %v701 = vpop.f32.mrb[0].mxu0
      %702 = vmatprep.mubr.f32.mxu0 0.0
      %703 = vmatmul.mubr.f32.gmra.mrb[0].mxu0 %v185
      %v704 = vpop.f32.mrb[0].mxu0
      %v705 = vadd.f32 0.0, %v704
      %v706 = vpop.f32.mrb[0].mxu0
      %707 = vmatprep.mubr.f32.mxu0 0.0
      %708 = vmatmul.mubr.f32.gmra.mrb[0].mxu0 %v186
      %v709 = vpop.f32.mrb[0].mxu0
      %v710 = vadd.f32 0.0, %v709
      %v711 = vpop.f32.mrb[0].mxu0
      %712 = vmatprep.mubr.f32.mxu0 0.0
      %713 = vmatmul.mubr.f32.gmra.mrb[0].mxu0 %v189
      %v714 = vpop.f32.mrb[0].mxu0
      %v715 = vadd.f32 0.0, %v714
      %v716 = vpop.f32.mrb[0].mxu0
      %717 = vmatprep.mubr.f32.mxu0 0.0
      %718 = vmatmul.mubr.f32.gmra.mrb[0].mxu0 %v190
      %v719 = vpop.f32.mrb[0].mxu0
      %v720 = vadd.f32 0.0, %v719
      %v721 = vpop.f32.mrb[0].mxu0
      %722 = vmatprep.mubr.f32.mxu0 0.0
      %723 = vmatmul.mubr.f32.gmra.mrb[0].mxu0 %v193
      %v724 = vpop.f32.mrb[0].mxu0
      %v725 = vadd.f32 0.0, %v724
      %v726 = vpop.f32.mrb[0].mxu0
      %727 = vmatprep.mubr.f32.mxu0 0.0
      %728 = vmatmul.mubr.f32.gmra.mrb[0].mxu0 %v194
      %v729 = vpop.f32.mrb[0].mxu0
      %v730 = vadd.f32 0.0, %v729
      %v731 = vpop.f32.mrb[0].mxu0
      %732 = vmatprep.mubr.f32.mxu0 0.0
      %733 = vmatmul.mubr.f32.gmra.mrb[0].mxu0 %v197
      %v734 = vpop.f32.mrb[0].mxu0
      %v735 = vadd.f32 0.0, %v734
      %v736 = vpop.f32.mrb[0].mxu0
      %737 = vmatprep.mubr.f32.mxu0 0.0
      %738 = vmatmul.mubr.f32.gmra.mrb[0].mxu0 %v198
      %v739 = vpop.f32.mrb[0].mxu0
      %v740 = vadd.f32 0.0, %v739
      %v741 = vpop.f32.mrb[0].mxu0
      %742 = vmatprep.mubr.f32.mxu0 0.0
      %743 = vmatmul.mubr.f32.gmra.mrb[0].mxu0 %v201
      %v744 = vpop.f32.mrb[0].mxu0
      %v745 = vadd.f32 0.0, %v744
      %v746 = vpop.f32.mrb[0].mxu0
      %747 = vmatprep.mubr.f32.mxu0 0.0
      %748 = vmatmul.mubr.f32.gmra.mrb[0].mxu0 %v202
      %v749 = vpop.f32.mrb[0].mxu0
      %v750 = vadd.f32 0.0, %v749
      %v751 = vpop.f32.mrb[0].mxu0
      %752 = vmatprep.mubr.f32.mxu0 0.0
      %753 = vmatmul.mubr.f32.gmra.mrb[0].mxu0 %v205
      %v754 = vpop.f32.mrb[0].mxu0
      %v755 = vadd.f32 0.0, %v754
      %v756 = vpop.f32.mrb[0].mxu0
      %757 = vmatprep.mubr.f32.mxu0 0.0
      %758 = vmatmul.mubr.f32.gmra.mrb[0].mxu0 %v206
      %v759 = vpop.f32.mrb[0].mxu0
      %v760 = vadd.f32 0.0, %v759
      %v761 = vpop.f32.mrb[0].mxu0
      %762 = vmatprep.mubr.f32.mxu0 0.0
      %763 = vmatmul.mubr.f32.gmra.mrb[0].mxu0 %v209
      %v764 = vpop.f32.mrb[0].mxu0
      %v765 = vadd.f32 0.0, %v764
      %v766 = vpop.f32.mrb[0].mxu0
      %767 = vmatprep.mubr.f32.mxu0 0.0
      %768 = vmatmul.mubr.f32.gmra.mrb[0].mxu0 %v210
      %v769 = vpop.f32.mrb[0].mxu0
      %v770 = vadd.f32 0.0, %v769
      %v771 = vpop.f32.mrb[0].mxu0
      %772 = vmatprep.mubr.f32.mxu0 0.0
      %773 = vmatmul.mubr.f32.gmra.mrb[0].mxu0 %v213
      %v774 = vpop.f32.mrb[0].mxu0
      %v775 = vadd.f32 0.0, %v774
      %v776 = vpop.f32.mrb[0].mxu0
      %777 = vmatprep.mubr.f32.mxu0 0.0
      %778 = vmatmul.mubr.f32.gmra.mrb[0].mxu0 %v214
      %v779 = vpop.f32.mrb[0].mxu0
      %v780 = vadd.f32 0.0, %v779
      %v781 = vpop.f32.mrb[0].mxu0
      %782 = vmatprep.mubr.f32.mxu0 0.0
      %783 = vmatmul.mubr.f32.gmra.mrb[0].mxu0 %v217
      %v784 = vpop.f32.mrb[0].mxu0
      %v785 = vadd.f32 0.0, %v784
      %v786 = vpop.f32.mrb[0].mxu0
      %787 = vmatprep.mubr.f32.mxu0 0.0
      %788 = vmatmul.mubr.f32.gmra.mrb[0].mxu0 %v218
      %v789 = vpop.f32.mrb[0].mxu0
      %v790 = vadd.f32 0.0, %v789
      %v791 = vpop.f32.mrb[0].mxu0
      %792 = vmatprep.mubr.f32.mxu0 0.0
      %793 = vmatmul.mubr.f32.gmra.mrb[0].mxu0 %v221
      %v794 = vpop.f32.mrb[0].mxu0
      %v795 = vadd.f32 0.0, %v794
      %v796 = vpop.f32.mrb[0].mxu0
      %797 = vmatprep.mubr.f32.mxu0 0.0
      %798 = vmatmul.mubr.f32.gmra.mrb[0].mxu0 %v222
      %v799 = vpop.f32.mrb[0].mxu0
      %v800 = vadd.f32 0.0, %v799
      %v801 = vpop.f32.mrb[0].mxu0
      %802 = vmatprep.mubr.f32.mxu0 0.0
      %803 = vmatmul.mubr.f32.gmra.mrb[0].mxu0 %v225
      %v804 = vpop.f32.mrb[0].mxu0
      %v805 = vadd.f32 0.0, %v804
      %v806 = vpop.f32.mrb[0].mxu0
      %807 = vmatprep.mubr.f32.mxu0 0.0
      %808 = vmatmul.mubr.f32.gmra.mrb[0].mxu0 %v226
      %v809 = vpop.f32.mrb[0].mxu0
      %v810 = vadd.f32 0.0, %v809
      %v811 = vpop.f32.mrb[0].mxu0
      %812 = vmatprep.mubr.f32.mxu0 0.0
      %813 = vmatmul.mubr.f32.gmra.mrb[0].mxu0 %v229
      %v814 = vpop.f32.mrb[0].mxu0
      %v815 = vadd.f32 0.0, %v814
      %v816 = vpop.f32.mrb[0].mxu0
      %817 = vmatprep.mubr.f32.mxu0 0.0
      %818 = vmatmul.mubr.f32.gmra.mrb[0].mxu0 %v230
      %v819 = vpop.f32.mrb[0].mxu0
      %v820 = vadd.f32 0.0, %v819
      %v821 = vpop.f32.mrb[0].mxu0
      %822 = vmatprep.mubr.f32.mxu0 0.0
      %823 = vmatmul.mubr.f32.gmra.mrb[0].mxu0 %v233
      %v824 = vpop.f32.mrb[0].mxu0
      %v825 = vadd.f32 0.0, %v824
      %v826 = vpop.f32.mrb[0].mxu0
      %827 = vmatprep.mubr.f32.mxu0 0.0
      %828 = vmatmul.mubr.f32.gmra.mrb[0].mxu0 %v234
      %v829 = vpop.f32.mrb[0].mxu0
      %v830 = vadd.f32 0.0, %v829
      %v831 = vpop.f32.mrb[0].mxu0
      %832 = vmatprep.mubr.f32.mxu0 0.0
      %833 = vmatmul.mubr.f32.gmra.mrb[0].mxu0 %v237
      %v834 = vpop.f32.mrb[0].mxu0
      %v835 = vadd.f32 0.0, %v834
      %v836 = vpop.f32.mrb[0].mxu0
      %837 = vmatprep.mubr.f32.mxu0 0.0
      %838 = vmatmul.mubr.f32.gmra.mrb[0].mxu0 %v238
      %v839 = vpop.f32.mrb[0].mxu0
      %v840 = vadd.f32 0.0, %v839
      %v841 = vpop.f32.mrb[0].mxu0
      %842 = vmatprep.mubr.f32.mxu0 0.0
      %843 = vmatmul.mubr.f32.gmra.mrb[0].mxu0 %v241
      %v844 = vpop.f32.mrb[0].mxu0
      %v845 = vadd.f32 0.0, %v844
      %v846 = vpop.f32.mrb[0].mxu0
      %847 = vmatprep.mubr.f32.mxu0 0.0
      %848 = vmatmul.mubr.f32.gmra.mrb[0].mxu0 %v242
      %v849 = vpop.f32.mrb[0].mxu0
      %v850 = vadd.f32 0.0, %v849
      %v851 = vpop.f32.mrb[0].mxu0
      %852 = vdwg.mxu0
      %853 = vmatprep.subr.mxu0 0.0
      %854 = vmatpush1.msra.mxu0 %v595
      %855 = vmatprep.subr.mxu0 0.0
      %856 = vmatpush1.msra.mxu0 %v596
      %857 = vmatprep.subr.mxu0 0.0
      %858 = vmatpush1.msra.mxu0 %v597
      %859 = vmatprep.subr.mxu0 0.0
      %860 = vmatpush1.msra.mxu0 %v598
      %861 = vmatprep.subr.mxu0 0.0
      %862 = vmatpush1.msra.mxu0 %v599
      %863 = vmatprep.subr.mxu0 0.0
      %864 = vmatpush1.msra.mxu0 %v600
      %865 = vmatprep.subr.mxu0 0.0
      %866 = vmatpush1.msra.mxu0 %v601
      %867 = vmatprep.subr.mxu0 0.0
      %868 = vmatpush1.msra.mxu0 %v602
      %869 = vmatprep.subr.mxu0 0.0
      %870 = vmatpush1.msra.mxu0 %v603
      %871 = vmatprep.subr.mxu0 0.0
      %872 = vmatpush1.msra.mxu0 %v604
      %873 = vmatprep.subr.mxu0 0.0
      %874 = vmatpush1.msra.mxu0 %v605
      %875 = vmatprep.subr.mxu0 0.0
      %876 = vmatpush1.msra.mxu0 %v606
      %877 = vmatprep.subr.mxu0 0.0
      %878 = vmatpush1.msra.mxu0 %v607
      %879 = vmatprep.subr.mxu0 0.0
      %880 = vmatpush1.msra.mxu0 %v608
      %881 = vmatprep.subr.mxu0 0.0
      %882 = vmatpush1.msra.mxu0 %v609
      %883 = vmatprep.subr.mxu0 0.0
      %884 = vmatpush1.msra.mxu0 %v610
      %885 = vmatprep.subr.mxu0 0.0
      %886 = vmatpush1.msra.mxu0 0.0
      %887 = vmatprep.subr.mxu0 0.0
      %888 = vmatpush1.msra.mxu0 0.0
      %889 = vmatprep.subr.mxu0 0.0
      %890 = vmatpush1.msra.mxu0 0.0
      %891 = vmatprep.subr.mxu0 0.0
      %892 = vmatpush1.msra.mxu0 0.0
      %893 = vmatprep.subr.mxu0 0.0
      %894 = vmatpush1.msra.mxu0 0.0
      %895 = vmatprep.subr.mxu0 0.0
      %896 = vmatpush1.msra.mxu0 0.0
      %897 = vmatprep.subr.mxu0 0.0
      %898 = vmatpush1.msra.mxu0 0.0
      %899 = vmatprep.subr.mxu0 0.0
      %900 = vmatpush1.msra.mxu0 0.0
      %901 = vmatprep.subr.mxu0 0.0
      %902 = vmatpush1.msra.mxu0 0.0
      %903 = vmatprep.subr.mxu0 0.0
      %904 = vmatpush1.msra.mxu0 0.0
      %905 = vmatprep.subr.mxu0 0.0
      %906 = vmatpush1.msra.mxu0 0.0
      %907 = vmatprep.subr.mxu0 0.0
      %908 = vmatpush1.msra.mxu0 0.0
      %909 = vmatprep.subr.mxu0 0.0
      %910 = vmatpush1.msra.mxu0 0.0
      %911 = vmatprep.subr.mxu0 0.0
      %912 = vmatpush1.msra.mxu0 0.0
      %913 = vmatprep.subr.mxu0 0.0
      %914 = vmatpush1.msra.mxu0 0.0
      %915 = vmatprep.subr.mxu0 0.0
      %916 = vmatpush1.msra.mxu0 0.0
      %917 = vmatprep.mubr.f32.mxu0 0.0
      %918 = vmatmul.mubr.f32.gmra.mrb[0].mxu0 %v179
      %v919 = vpop.f32.mrb[0].mxu0
      %v920 = vadd.f32 %v695, %v919
      %v921 = vpop.f32.mrb[0].mxu0
      %922 = vmatprep.mubr.f32.mxu0 0.0
      %923 = vmatmul.mubr.f32.gmra.mrb[0].mxu0 %v180
      %v924 = vpop.f32.mrb[0].mxu0
      %v925 = vadd.f32 %v700, %v924
      %v926 = vpop.f32.mrb[0].mxu0
      %927 = vmatprep.mubr.f32.mxu0 0.0
      %928 = vmatmul.mubr.f32.gmra.mrb[0].mxu0 %v183
      %v929 = vpop.f32.mrb[0].mxu0
      %v930 = vadd.f32 %v705, %v929
      %v931 = vpop.f32.mrb[0].mxu0
      %932 = vmatprep.mubr.f32.mxu0 0.0
      %933 = vmatmul.mubr.f32.gmra.mrb[0].mxu0 %v184
      %v934 = vpop.f32.mrb[0].mxu0
      %v935 = vadd.f32 %v710, %v934
      %v936 = vpop.f32.mrb[0].mxu0
      %937 = vmatprep.mubr.f32.mxu0 0.0
      %938 = vmatmul.mubr.f32.gmra.mrb[0].mxu0 %v187
      %v939 = vpop.f32.mrb[0].mxu0
      %v940 = vadd.f32 %v715, %v939
      %v941 = vpop.f32.mrb[0].mxu0
      %942 = vmatprep.mubr.f32.mxu0 0.0
      %943 = vmatmul.mubr.f32.gmra.mrb[0].mxu0 %v188
      %v944 = vpop.f32.mrb[0].mxu0
      %v945 = vadd.f32 %v720, %v944
      %v946 = vpop.f32.mrb[0].mxu0
      %947 = vmatprep.mubr.f32.mxu0 0.0
      %948 = vmatmul.mubr.f32.gmra.mrb[0].mxu0 %v191
      %v949 = vpop.f32.mrb[0].mxu0
      %v950 = vadd.f32 %v725, %v949
      %v951 = vpop.f32.mrb[0].mxu0
      %952 = vmatprep.mubr.f32.mxu0 0.0
      %953 = vmatmul.mubr.f32.gmra.mrb[0].mxu0 %v192
      %v954 = vpop.f32.mrb[0].mxu0
      %v955 = vadd.f32 %v730, %v954
      %v956 = vpop.f32.mrb[0].mxu0
      %957 = vmatprep.mubr.f32.mxu0 0.0
      %958 = vmatmul.mubr.f32.gmra.mrb[0].mxu0 %v195
      %v959 = vpop.f32.mrb[0].mxu0
      %v960 = vadd.f32 %v735, %v959
      %v961 = vpop.f32.mrb[0].mxu0
      %962 = vmatprep.mubr.f32.mxu0 0.0
      %963 = vmatmul.mubr.f32.gmra.mrb[0].mxu0 %v196
      %v964 = vpop.f32.mrb[0].mxu0
      %v965 = vadd.f32 %v740, %v964
      %v966 = vpop.f32.mrb[0].mxu0
      %967 = vmatprep.mubr.f32.mxu0 0.0
      %968 = vmatmul.mubr.f32.gmra.mrb[0].mxu0 %v199
      %v969 = vpop.f32.mrb[0].mxu0
      %v970 = vadd.f32 %v745, %v969
      %v971 = vpop.f32.mrb[0].mxu0
      %972 = vmatprep.mubr.f32.mxu0 0.0
      %973 = vmatmul.mubr.f32.gmra.mrb[0].mxu0 %v200
      %v974 = vpop.f32.mrb[0].mxu0
      %v975 = vadd.f32 %v750, %v974
      %v976 = vpop.f32.mrb[0].mxu0
      %977 = vmatprep.mubr.f32.mxu0 0.0
      %978 = vmatmul.mubr.f32.gmra.mrb[0].mxu0 %v203
      %v979 = vpop.f32.mrb[0].mxu0
      %v980 = vadd.f32 %v755, %v979
      %v981 = vpop.f32.mrb[0].mxu0
      %982 = vmatprep.mubr.f32.mxu0 0.0
      %983 = vmatmul.mubr.f32.gmra.mrb[0].mxu0 %v204
      %v984 = vpop.f32.mrb[0].mxu0
      %v985 = vadd.f32 %v760, %v984
      %v986 = vpop.f32.mrb[0].mxu0
      %987 = vmatprep.mubr.f32.mxu0 0.0
      %988 = vmatmul.mubr.f32.gmra.mrb[0].mxu0 %v207
      %v989 = vpop.f32.mrb[0].mxu0
      %v990 = vadd.f32 %v765, %v989
      %v991 = vpop.f32.mrb[0].mxu0
      %992 = vmatprep.mubr.f32.mxu0 0.0
      %993 = vmatmul.mubr.f32.gmra.mrb[0].mxu0 %v208
      %v994 = vpop.f32.mrb[0].mxu0
      %v995 = vadd.f32 %v770, %v994
      %v996 = vpop.f32.mrb[0].mxu0
      %997 = vmatprep.mubr.f32.mxu0 0.0
      %998 = vmatmul.mubr.f32.gmra.mrb[0].mxu0 %v211
      %v999 = vpop.f32.mrb[0].mxu0
      %v1000 = vadd.f32 %v775, %v999
      %v1001 = vpop.f32.mrb[0].mxu0
      %1002 = vmatprep.mubr.f32.mxu0 0.0
      %1003 = vmatmul.mubr.f32.gmra.mrb[0].mxu0 %v212
      %v1004 = vpop.f32.mrb[0].mxu0
      %v1005 = vadd.f32 %v780, %v1004
      %v1006 = vpop.f32.mrb[0].mxu0
      %1007 = vmatprep.mubr.f32.mxu0 0.0
      %1008 = vmatmul.mubr.f32.gmra.mrb[0].mxu0 %v215
      %v1009 = vpop.f32.mrb[0].mxu0
      %v1010 = vadd.f32 %v785, %v1009
      %v1011 = vpop.f32.mrb[0].mxu0
      %1012 = vmatprep.mubr.f32.mxu0 0.0
      %1013 = vmatmul.mubr.f32.gmra.mrb[0].mxu0 %v216
      %v1014 = vpop.f32.mrb[0].mxu0
      %v1015 = vadd.f32 %v790, %v1014
      %v1016 = vpop.f32.mrb[0].mxu0
      %1017 = vmatprep.mubr.f32.mxu0 0.0
      %1018 = vmatmul.mubr.f32.gmra.mrb[0].mxu0 %v219
      %v1019 = vpop.f32.mrb[0].mxu0
      %v1020 = vadd.f32 %v795, %v1019
      %v1021 = vpop.f32.mrb[0].mxu0
      %1022 = vmatprep.mubr.f32.mxu0 0.0
      %1023 = vmatmul.mubr.f32.gmra.mrb[0].mxu0 %v220
      %v1024 = vpop.f32.mrb[0].mxu0
      %v1025 = vadd.f32 %v800, %v1024
      %v1026 = vpop.f32.mrb[0].mxu0
      %1027 = vmatprep.mubr.f32.mxu0 0.0
      %1028 = vmatmul.mubr.f32.gmra.mrb[0].mxu0 %v223
      %v1029 = vpop.f32.mrb[0].mxu0
      %v1030 = vadd.f32 %v805, %v1029
      %v1031 = vpop.f32.mrb[0].mxu0
      %1032 = vmatprep.mubr.f32.mxu0 0.0
      %1033 = vmatmul.mubr.f32.gmra.mrb[0].mxu0 %v224
      %v1034 = vpop.f32.mrb[0].mxu0
      %v1035 = vadd.f32 %v810, %v1034
      %v1036 = vpop.f32.mrb[0].mxu0
      %1037 = vmatprep.mubr.f32.mxu0 0.0
      %1038 = vmatmul.mubr.f32.gmra.mrb[0].mxu0 %v227
      %v1039 = vpop.f32.mrb[0].mxu0
      %v1040 = vadd.f32 %v815, %v1039
      %v1041 = vpop.f32.mrb[0].mxu0
      %1042 = vmatprep.mubr.f32.mxu0 0.0
      %1043 = vmatmul.mubr.f32.gmra.mrb[0].mxu0 %v228
      %v1044 = vpop.f32.mrb[0].mxu0
      %v1045 = vadd.f32 %v820, %v1044
      %v1046 = vpop.f32.mrb[0].mxu0
      %1047 = vmatprep.mubr.f32.mxu0 0.0
      %1048 = vmatmul.mubr.f32.gmra.mrb[0].mxu0 %v231
      %v1049 = vpop.f32.mrb[0].mxu0
      %v1050 = vadd.f32 %v825, %v1049
      %v1051 = vpop.f32.mrb[0].mxu0
      %1052 = vmatprep.mubr.f32.mxu0 0.0
      %1053 = vmatmul.mubr.f32.gmra.mrb[0].mxu0 %v232
      %v1054 = vpop.f32.mrb[0].mxu0
      %v1055 = vadd.f32 %v830, %v1054
      %v1056 = vpop.f32.mrb[0].mxu0
      %1057 = vmatprep.mubr.f32.mxu0 0.0
      %1058 = vmatmul.mubr.f32.gmra.mrb[0].mxu0 %v235
      %v1059 = vpop.f32.mrb[0].mxu0
      %v1060 = vadd.f32 %v835, %v1059
      %v1061 = vpop.f32.mrb[0].mxu0
      %1062 = vmatprep.mubr.f32.mxu0 0.0
      %1063 = vmatmul.mubr.f32.gmra.mrb[0].mxu0 %v236
      %v1064 = vpop.f32.mrb[0].mxu0
      %v1065 = vadd.f32 %v840, %v1064
      %v1066 = vpop.f32.mrb[0].mxu0
      %1067 = vmatprep.mubr.f32.mxu0 0.0
      %1068 = vmatmul.mubr.f32.gmra.mrb[0].mxu0 %v239
      %v1069 = vpop.f32.mrb[0].mxu0
      %v1070 = vadd.f32 %v845, %v1069
      %v1071 = vpop.f32.mrb[0].mxu0
      %1072 = vmatprep.mubr.f32.mxu0 0.0
      %1073 = vmatmul.mubr.f32.gmra.mrb[0].mxu0 %v240
      %v1074 = vpop.f32.mrb[0].mxu0
      %v1075 = vadd.f32 %v850, %v1074
      %v1076 = vpop.f32.mrb[0].mxu0
      %1077 = vdwg.mxu0
      %v1078 = vld [vmem:[%s2] sm:$0x1]
      %v1080 = vlaneseq
      %v1081 = vshrl.u32 %v1080, 7
      %v1082 = vsub.s32 0, %v1081
      %v1083 = vrot.slane %v1078, %v1082
      %v1085 = vadd.f32 %v920, %v1083
      %v1086 = vadd.f32 %v925, %v1083
      %v1087 = vadd.f32 %v930, %v1083
      %v1088 = vadd.f32 %v935, %v1083
      %v1089 = vadd.f32 %v940, %v1083
      %v1090 = vadd.f32 %v945, %v1083
      %v1091 = vadd.f32 %v950, %v1083
      %v1092 = vadd.f32 %v955, %v1083
      %v1093 = vadd.f32 %v960, %v1083
      %v1094 = vadd.f32 %v965, %v1083
      %v1095 = vadd.f32 %v970, %v1083
      %v1096 = vadd.f32 %v975, %v1083
      %v1097 = vadd.f32 %v980, %v1083
      %v1098 = vadd.f32 %v985, %v1083
      %v1099 = vadd.f32 %v990, %v1083
      %v1100 = vadd.f32 %v995, %v1083
      %v1101 = vadd.f32 %v1000, %v1083
      %v1102 = vadd.f32 %v1005, %v1083
      %v1103 = vadd.f32 %v1010, %v1083
      %v1104 = vadd.f32 %v1015, %v1083
      %v1105 = vadd.f32 %v1020, %v1083
      %v1106 = vadd.f32 %v1025, %v1083
      %v1107 = vadd.f32 %v1030, %v1083
      %v1108 = vadd.f32 %v1035, %v1083
      %v1109 = vadd.f32 %v1040, %v1083
      %v1110 = vadd.f32 %v1045, %v1083
      %v1111 = vadd.f32 %v1050, %v1083
      %v1112 = vadd.f32 %v1055, %v1083
      %v1113 = vadd.f32 %v1060, %v1083
      %v1114 = vadd.f32 %v1065, %v1083
      %v1115 = vadd.f32 %v1070, %v1083
      %v1116 = vadd.f32 %v1075, %v1083
      %v1117 = vadd.f32 %v563, %v1085
      %v1118 = vadd.f32 %v564, %v1086
      %v1119 = vadd.f32 %v565, %v1087
      %v1120 = vadd.f32 %v566, %v1088
      %v1121 = vadd.f32 %v567, %v1089
      %v1122 = vadd.f32 %v568, %v1090
      %v1123 = vadd.f32 %v569, %v1091
      %v1124 = vadd.f32 %v570, %v1092
      %v1125 = vadd.f32 %v571, %v1093
      %v1126 = vadd.f32 %v572, %v1094
      %v1127 = vadd.f32 %v573, %v1095
      %v1128 = vadd.f32 %v574, %v1096
      %v1129 = vadd.f32 %v575, %v1097
      %v1130 = vadd.f32 %v576, %v1098
      %v1131 = vadd.f32 %v577, %v1099
      %v1132 = vadd.f32 %v578, %v1100
      %v1133 = vadd.f32 %v579, %v1101
      %v1134 = vadd.f32 %v580, %v1102
      %v1135 = vadd.f32 %v581, %v1103
      %v1136 = vadd.f32 %v582, %v1104
      %v1137 = vadd.f32 %v583, %v1105
      %v1138 = vadd.f32 %v584, %v1106
      %v1139 = vadd.f32 %v585, %v1107
      %v1140 = vadd.f32 %v586, %v1108
      %v1141 = vadd.f32 %v587, %v1109
      %v1142 = vadd.f32 %v588, %v1110
      %v1143 = vadd.f32 %v589, %v1111
      %v1144 = vadd.f32 %v590, %v1112
      %v1145 = vadd.f32 %v591, %v1113
      %v1146 = vadd.f32 %v592, %v1114
      %v1147 = vadd.f32 %v593, %v1115
      %v1148 = vadd.f32 %v594, %v1116
      %vm1149 = vcmask 523264
      %1150 = vst.msk [vmem:[%s177] sm:$0xff] %vm1149, %v1117
      %1151 = vst.msk [vmem:[%s177 + $0x8] sm:$0xff] %vm1149, %v1118
      %1152 = vst.msk [vmem:[%s177 + $0x10] sm:$0xff] %vm1149, %v1119
      %1153 = vst.msk [vmem:[%s177 + $0x18] sm:$0xff] %vm1149, %v1120
      %1154 = vst.msk [vmem:[%s177 + $0x20] sm:$0xff] %vm1149, %v1121
      %1155 = vst.msk [vmem:[%s177 + $0x28] sm:$0xff] %vm1149, %v1122
      %1156 = vst.msk [vmem:[%s177 + $0x30] sm:$0xff] %vm1149, %v1123
      %1157 = vst.msk [vmem:[%s177 + $0x38] sm:$0xff] %vm1149, %v1124
      %1158 = vst.msk [vmem:[%s177 + $0x40] sm:$0xff] %vm1149, %v1125
      %1159 = vst.msk [vmem:[%s177 + $0x48] sm:$0xff] %vm1149, %v1126
      %1160 = vst.msk [vmem:[%s177 + $0x50] sm:$0xff] %vm1149, %v1127
      %1161 = vst.msk [vmem:[%s177 + $0x58] sm:$0xff] %vm1149, %v1128
      %1162 = vst.msk [vmem:[%s177 + $0x60] sm:$0xff] %vm1149, %v1129
      %1163 = vst.msk [vmem:[%s177 + $0x68] sm:$0xff] %vm1149, %v1130
      %1164 = vst.msk [vmem:[%s177 + $0x70] sm:$0xff] %vm1149, %v1131
      %1165 = vst.msk [vmem:[%s177 + $0x78] sm:$0xff] %vm1149, %v1132
      %1166 = vst.msk [vmem:[%s177 + $0x80] sm:$0xff] %vm1149, %v1133
      %1167 = vst.msk [vmem:[%s177 + $0x88] sm:$0xff] %vm1149, %v1134
      %1168 = vst.msk [vmem:[%s177 + $0x90] sm:$0xff] %vm1149, %v1135
      %1169 = vst.msk [vmem:[%s177 + $0x98] sm:$0xff] %vm1149, %v1136
      %1170 = vst.msk [vmem:[%s177 + $0xa0] sm:$0xff] %vm1149, %v1137
      %1171 = vst.msk [vmem:[%s177 + $0xa8] sm:$0xff] %vm1149, %v1138
      %1172 = vst.msk [vmem:[%s177 + $0xb0] sm:$0xff] %vm1149, %v1139
      %1173 = vst.msk [vmem:[%s177 + $0xb8] sm:$0xff] %vm1149, %v1140
      %1174 = vst.msk [vmem:[%s177 + $0xc0] sm:$0xff] %vm1149, %v1141
      %1175 = vst.msk [vmem:[%s177 + $0xc8] sm:$0xff] %vm1149, %v1142
      %1176 = vst.msk [vmem:[%s177 + $0xd0] sm:$0xff] %vm1149, %v1143
      %1177 = vst.msk [vmem:[%s177 + $0xd8] sm:$0xff] %vm1149, %v1144
      %1178 = vst.msk [vmem:[%s177 + $0xe0] sm:$0xff] %vm1149, %v1145
      %1179 = vst.msk [vmem:[%s177 + $0xe8] sm:$0xff] %vm1149, %v1146
      %1180 = vst.msk [vmem:[%s177 + $0xf0] sm:$0xff] %vm1149, %v1147
      %1181 = vst.msk [vmem:[%s177 + $0xf8] sm:$0xff] %vm1149, %v1148
      %s1182 = smul.u32 16, %s14
      %p1183 = scmp.lt.s32.totalorder %s1182, 31
      %s1184 = scalar_select %p1183, %s1182, 31
      %s1185 = smul.addr %s1184, 2
      %s1186 = smul.addr %s1185, 8
      %s1187 = scalar_lea.vmem %s3, %s1186
      // Predicated region
      $region33: #{downsample_x8_forward.6} parent=31 // pred_check
        %p1188 = pneg %p100
      $region34: #{downsample_x8_forward.6} parent=31 // pred_check_branch
        %1190 = sbr.rel (%p1188) target = $region36
      $region35: #{downsample_x8_forward.6} parent=31 // pred_region
        %s1191 = smul.u32 16, %s14
      $region36: #{downsample_x8_forward.6} parent=31 // pred_fallthru
        _
    $region32: #{downsample_x8_forward.6} parent=5 // pred_fallthru
      _
    %p1192 = scmp.le.s32.totalorder 2, %s9
    // Predicated region
    $region37: #{downsample_x8_forward.6} parent=5 // pred_check
      %p1193 = pneg %p1192
    $region38: #{downsample_x8_forward.6} parent=5 // pred_check_branch
      %1195 = sbr.rel (%p1193) target = $region40
    $region39: #{downsample_x8_forward.6} parent=5 // pred_region
      %s1196 = ssub.s32 %s9, 2
      // Predicated region
      $region41: #{downsample_x8_forward.6} parent=39 // pred_check
        %p1197 = pneg %p106
      $region42: #{downsample_x8_forward.6} parent=39 // pred_check_branch
        %1199 = sbr.rel (%p1197) target = $region44
      $region43: #{downsample_x8_forward.6} parent=39 // pred_region
        %s1200 = smul.u32 16, %s15
        %p1201 = scmp.lt.s32.totalorder %s1200, 31
        %s1202 = scalar_select %p1201, %s1200, 31
        %s1203 = smul.addr %s1202, 2
        %s1204 = smul.addr %s1203, 8
        %s1205 = scalar_lea.vmem %s3, %s1204
      $region44: #{downsample_x8_forward.6} parent=39 // pred_fallthru
        _
    $region40: #{downsample_x8_forward.6} parent=5 // pred_fallthru
      _
  $region6: #{downsample_x8_forward.6} parent=0 // loop_footer
    %s13 = sadd.s32 1, %s9
  $region7: #{downsample_x8_forward.6} parent=0 // loop_footer_branch
    %8 = sbr.rel target = $region3
  $region8: #{downsample_x8_forward.6} parent=0 // loop_exit
    _

// kernel: downsample_x8_forward.7
$region0: #{downsample_x8_forward.7}
  #allocation0 [shape = 'u32[]', space=smem, size = 0x4, offset = 0x4, fixed_abs, tag = 'smem constant byte address 0x4 - core index']
  #allocation1 [shape = 'u32[144,128]{1,0:T(1,128)}', space=vmem, size = 0x12000, scoped, tag = 'internal scratch']
  %s0 = inlined_call_operand.vmem [shape: f32[16,16,128], index: 0, kind: input, shape index: {}]
  %s1 = inlined_call_operand.vmem [shape: f32[2,128,64], index: 1, kind: input, shape index: {}]
  %s2 = inlined_call_operand.vmem [shape: f32[1,64], index: 2, kind: input, shape index: {}]
  %s3 = inlined_call_operand.vmem [shape: f32[16,8,64], index: 3, kind: output, shape index: {}]
  %s4 = sld [smem:[#allocation0]]
  $region45: #{downsample_x8_forward.7} parent=0
    _
  %s6 = ssub.s32 1, %s4
  %s7 = scalar_select 0, %s6, %s4
  loop: start=0, step=1, limit=4
  $region2: #{downsample_x8_forward.7} parent=0 // loop_pre_header
    _
  $region3: #{downsample_x8_forward.7} parent=0 // loop_header
    %s9 = sphi 0, %s13
    %p10 = scmp.ge.s32.totalorder %s9, 4
    %s19 = sphi 0, %s21
    %s22 = sphi 0, %s19
    %s23 = sphi 0, %s22
    %s39 = sphi 0, %s23
    %s43 = sphi 0, %s43
    %s45 = sphi 0, %s43
    %s46 = sphi 0, %s45
    %s60 = sphi 0, %s46
    %s64 = sphi 0, %s64
    %s66 = sphi 0, %s64
    %s67 = sphi 0, %s66
    %s81 = sphi 0, %s67
    %s87 = sphi 0, %s89
    %s90 = sphi 0, %s87
    %s91 = sphi 0, %s90
    %s107 = sphi 0, %s91
  $region4: #{downsample_x8_forward.7} parent=0 // loop_header_branch
    %12 = sbr.rel (%p10) target = $region8
  $region5: #{downsample_x8_forward.7} parent=0 // loop_body
    %s14 = ssub.s32 %s9, 1
    %s15 = ssub.s32 %s9, 2
    %s16 = sadd.s32 %s9, 1
    %s17 = ssub.s32 %s9, %s16
    %p18 = scmp.eq.s32.totalorder %s17, 0
    %s20 = sadd.s32 %s19, 1
    %s21 = scalar_select %p18, %s19, %s20
    %p24 = pneg %p18
    %p25 = scmp.eq.s32.totalorder %s9, 1
    %p26 = por %p24, %p25
    %p27 = scmp.ne.s32.totalorder %s19, %s22
    %p28 = scmp.eq.s32.totalorder %s9, 0
    %p29 = por %p27, %p28
    %p30 = scmp.ne.s32.totalorder %s19, %s22
    %p31 = scmp.eq.s32.totalorder %s14, 1
    %p32 = por %p30, %p31
    %p33 = scmp.ne.s32.totalorder %s22, %s23
    %p34 = scmp.eq.s32.totalorder %s14, 0
    %p35 = por %p33, %p34
    %p36 = scmp.ne.s32.totalorder %s22, %s23
    %p37 = scmp.eq.s32.totalorder %s15, 1
    %p38 = por %p36, %p37
    %p40 = scmp.ne.s32.totalorder %s23, %s39
    %p41 = scmp.eq.s32.totalorder %s15, 0
    %p42 = por %p40, %p41
    %s44 = sadd.s32 %s43, 1
    %p47 = scmp.eq.s32.totalorder %s9, 1
    %p48 = scmp.ne.s32.totalorder %s43, %s45
    %p49 = scmp.eq.s32.totalorder %s9, 0
    %p50 = por %p48, %p49
    %p51 = scmp.ne.s32.totalorder %s43, %s45
    %p52 = scmp.eq.s32.totalorder %s14, 1
    %p53 = por %p51, %p52
    %p54 = scmp.ne.s32.totalorder %s45, %s46
    %p55 = scmp.eq.s32.totalorder %s14, 0
    %p56 = por %p54, %p55
    %p57 = scmp.ne.s32.totalorder %s45, %s46
    %p58 = scmp.eq.s32.totalorder %s15, 1
    %p59 = por %p57, %p58
    %p61 = scmp.ne.s32.totalorder %s46, %s60
    %p62 = scmp.eq.s32.totalorder %s15, 0
    %p63 = por %p61, %p62
    %s65 = sadd.s32 %s64, 1
    %p68 = scmp.eq.s32.totalorder %s9, 1
    %p69 = scmp.ne.s32.totalorder %s64, %s66
    %p70 = scmp.eq.s32.totalorder %s9, 0
    %p71 = por %p69, %p70
    %p72 = scmp.ne.s32.totalorder %s64, %s66
    %p73 = scmp.eq.s32.totalorder %s14, 1
    %p74 = por %p72, %p73
    %p75 = scmp.ne.s32.totalorder %s66, %s67
    %p76 = scmp.eq.s32.totalorder %s14, 0
    %p77 = por %p75, %p76
    %p78 = scmp.ne.s32.totalorder %s66, %s67
    %p79 = scmp.eq.s32.totalorder %s15, 1
    %p80 = por %p78, %p79
    %p82 = scmp.ne.s32.totalorder %s67, %s81
    %p83 = scmp.eq.s32.totalorder %s15, 0
    %p84 = por %p82, %p83
    %s85 = ssub.s32 %s9, %s16
    %p86 = scmp.eq.s32.totalorder %s85, 0
    %s88 = sadd.s32 %s87, 1
    %s89 = scalar_select %p86, %s87, %s88
    %p92 = pneg %p86
    %p93 = scmp.eq.s32.totalorder %s9, 1
    %p94 = por %p92, %p93
    %p95 = scmp.ne.s32.totalorder %s87, %s90
    %p96 = scmp.eq.s32.totalorder %s9, 0
    %p97 = por %p95, %p96
    %p98 = scmp.ne.s32.totalorder %s87, %s90
    %p99 = scmp.eq.s32.totalorder %s14, 1
    %p100 = por %p98, %p99
    %p101 = scmp.ne.s32.totalorder %s90, %s91
    %p102 = scmp.eq.s32.totalorder %s14, 0
    %p103 = por %p101, %p102
    %p104 = scmp.ne.s32.totalorder %s90, %s91
    %p105 = scmp.eq.s32.totalorder %s15, 1
    %p106 = por %p104, %p105
    %p108 = scmp.ne.s32.totalorder %s91, %s107
    %p109 = scmp.eq.s32.totalorder %s15, 0
    %p110 = por %p108, %p109
    %p111 = scmp.le.s32.totalorder 1, %s9
    %p112 = scmp.lt.s32.totalorder %s9, 3
    %p113 = pnand %p111, %p112
    %p114 = pneg %p113
    // Predicated region
    $region9: #{downsample_x8_forward.7} parent=5 // pred_check
      _
    $region10: #{downsample_x8_forward.7} parent=5 // pred_check_branch
      %116 = sbr.rel (%p113) target = $region12
    $region11: #{downsample_x8_forward.7} parent=5 // pred_region
      %s117 = ssub.s32 %s9, 1
      // Predicated region
      $region13: #{downsample_x8_forward.7} parent=11 // pred_check
        %p118 = pneg %p56
      $region14: #{downsample_x8_forward.7} parent=11 // pred_check_branch
        %120 = sbr.rel (%p118) target = $region16
      $region15: #{downsample_x8_forward.7} parent=11 // pred_region
        _
      $region16: #{downsample_x8_forward.7} parent=11 // pred_fallthru
        _
      // Predicated region
      $region17: #{downsample_x8_forward.7} parent=11 // pred_check
        %p121 = pneg %p77
      $region18: #{downsample_x8_forward.7} parent=11 // pred_check_branch
        %123 = sbr.rel (%p121) target = $region20
      $region19: #{downsample_x8_forward.7} parent=11 // pred_region
        _
      $region20: #{downsample_x8_forward.7} parent=11 // pred_fallthru
        _
    $region12: #{downsample_x8_forward.7} parent=5 // pred_fallthru
      _
    %p124 = scmp.lt.s32.totalorder %s9, 2
    // Predicated region
    $region21: #{downsample_x8_forward.7} parent=5 // pred_check
      %p125 = pneg %p124
    $region22: #{downsample_x8_forward.7} parent=5 // pred_check_branch
      %127 = sbr.rel (%p125) target = $region24
    $region23: #{downsample_x8_forward.7} parent=5 // pred_region
      // Predicated region
      $region25: #{downsample_x8_forward.7} parent=23 // pred_check
        %p128 = pneg %p29
      $region26: #{downsample_x8_forward.7} parent=23 // pred_check_branch
        %130 = sbr.rel (%p128) target = $region28
      $region27: #{downsample_x8_forward.7} parent=23 // pred_region
        %s131 = smul.u32 8, %s9
        %p132 = scmp.lt.s32.totalorder %s131, 15
        %s133 = scalar_select %p132, %s131, 15
        %s134 = smul.addr %s133, 2
        %s135 = smul.addr %s134, 8
        %s136 = scalar_lea.vmem %s0, %s135
        %s137 = smul.u32 8, %s9
      $region28: #{downsample_x8_forward.7} parent=23 // pred_fallthru
        _
    $region24: #{downsample_x8_forward.7} parent=5 // pred_fallthru
      _
    %p138 = scmp.le.s32.totalorder 1, %s9
    %p139 = scmp.lt.s32.totalorder %s9, 3
    %p140 = pnand %p138, %p139
    %p141 = pneg %p140
    // Predicated region
    $region29: #{downsample_x8_forward.7} parent=5 // pred_check
      _
    $region30: #{downsample_x8_forward.7} parent=5 // pred_check_branch
      %143 = sbr.rel (%p140) target = $region32
    $region31: #{downsample_x8_forward.7} parent=5 // pred_region
      %s144 = ssub.s32 %s9, 1
      %s145 = smul.u32 8, %s14
      %p146 = scmp.lt.s32.totalorder %s145, 15
      %s147 = scalar_select %p146, %s145, 15
      %s148 = smul.addr %s147, 2
      %s149 = smul.addr %s148, 8
      %s150 = scalar_lea.vmem %s0, %s149
      %p151 = pneg %p35
      %p152 = pneg %p32
      %p153 = pneg %p56
      %p154 = pneg %p53
      %p155 = pneg %p77
      %p156 = pneg %p74
      %p157 = pneg %p103
      %p158 = pneg %p100
      %s159 = smul.u32 8, %s14
      %p160 = scmp.lt.s32.totalorder %s159, 15
      %s161 = scalar_select %p160, %s159, 15
      %s162 = smul.addr %s161, 8
      %s163 = scalar_lea.vmem %s3, %s162
      %s164 = smul.u32 8, %s14
      %p165 = scmp.lt.s32.totalorder %s164, 15
      %s166 = scalar_select %p165, %s164, 15
      %s167 = smul.addr %s166, 2
      %s168 = smul.addr %s167, 8
      %s169 = scalar_lea.vmem %s0, %s168
      %s170 = smul.u32 8, %s14
      %s171 = smul.u32 8, %s14
      %p172 = scmp.lt.s32.totalorder %s171, 15
      %s173 = scalar_select %p172, %s171, 15
      %s174 = smul.addr %s173, 8
      %s175 = scalar_lea.vmem %s3, %s174
      %s176 = smul.u32 8, %s14
      %v177 = vld [vmem:[%s169] sm:$0xff]
      %v178 = vld [vmem:[%s169 + $0x8] sm:$0xff]
      %v179 = vld [vmem:[%s169 + $0x10] sm:$0xff]
      %v180 = vld [vmem:[%s169 + $0x18] sm:$0xff]
      %v181 = vld [vmem:[%s169 + $0x20] sm:$0xff]
      %v182 = vld [vmem:[%s169 + $0x28] sm:$0xff]
      %v183 = vld [vmem:[%s169 + $0x30] sm:$0xff]
      %v184 = vld [vmem:[%s169 + $0x38] sm:$0xff]
      %v185 = vld [vmem:[%s169 + $0x40] sm:$0xff]
      %v186 = vld [vmem:[%s169 + $0x48] sm:$0xff]
      %v187 = vld [vmem:[%s169 + $0x50] sm:$0xff]
      %v188 = vld [vmem:[%s169 + $0x58] sm:$0xff]
      %v189 = vld [vmem:[%s169 + $0x60] sm:$0xff]
      %v190 = vld [vmem:[%s169 + $0x68] sm:$0xff]
      %v191 = vld [vmem:[%s169 + $0x70] sm:$0xff]
      %v192 = vld [vmem:[%s169 + $0x78] sm:$0xff]
      %201 = vrot.lane.b32.xlu0 %v177, 64
      %v202 = vpop.permute.xlu0 %201
      %203 = vrot.lane.b32.xlu0 %v179, 64
      %v204 = vpop.permute.xlu0 %203
      %205 = vrot.lane.b32.xlu0 %v181, 64
      %v206 = vpop.permute.xlu0 %205
      %207 = vrot.lane.b32.xlu0 %v183, 64
      %v208 = vpop.permute.xlu0 %207
      %209 = vrot.lane.b32.xlu0 %v185, 64
      %v210 = vpop.permute.xlu0 %209
      %211 = vrot.lane.b32.xlu0 %v187, 64
      %v212 = vpop.permute.xlu0 %211
      %213 = vrot.lane.b32.xlu0 %v189, 64
      %v214 = vpop.permute.xlu0 %213
      %215 = vrot.lane.b32.xlu0 %v191, 64
      %v216 = vpop.permute.xlu0 %215
      %v225 = vmax.f32 %v177, %v202
      %v226 = vmax.f32 %v179, %v204
      %v227 = vmax.f32 %v181, %v206
      %v228 = vmax.f32 %v183, %v208
      %v229 = vmax.f32 %v185, %v210
      %v230 = vmax.f32 %v187, %v212
      %v231 = vmax.f32 %v189, %v214
      %v232 = vmax.f32 %v191, %v216
      %241 = vrot.lane.b32.xlu0 %v178, 64
      %v242 = vpop.permute.xlu0 %241
      %243 = vrot.lane.b32.xlu0 %v180, 64
      %v244 = vpop.permute.xlu0 %243
      %245 = vrot.lane.b32.xlu0 %v182, 64
      %v246 = vpop.permute.xlu0 %245
      %247 = vrot.lane.b32.xlu0 %v184, 64
      %v248 = vpop.permute.xlu0 %247
      %249 = vrot.lane.b32.xlu0 %v186, 64
      %v250 = vpop.permute.xlu0 %249
      %251 = vrot.lane.b32.xlu0 %v188, 64
      %v252 = vpop.permute.xlu0 %251
      %253 = vrot.lane.b32.xlu0 %v190, 64
      %v254 = vpop.permute.xlu0 %253
      %255 = vrot.lane.b32.xlu0 %v192, 64
      %v256 = vpop.permute.xlu0 %255
      %v265 = vmax.f32 %v178, %v242
      %v266 = vmax.f32 %v180, %v244
      %v267 = vmax.f32 %v182, %v246
      %v268 = vmax.f32 %v184, %v248
      %v269 = vmax.f32 %v186, %v250
      %v270 = vmax.f32 %v188, %v252
      %v271 = vmax.f32 %v190, %v254
      %v272 = vmax.f32 %v192, %v256
      %v273 = vmax.f32 %v225, %v265
      %v274 = vmax.f32 %v226, %v266
      %v275 = vmax.f32 %v227, %v267
      %v276 = vmax.f32 %v228, %v268
      %v277 = vmax.f32 %v229, %v269
      %v278 = vmax.f32 %v230, %v270
      %v279 = vmax.f32 %v231, %v271
      %v280 = vmax.f32 %v232, %v272
      %v281 = vld [vmem:[%s1] sm:$0xff]
      %v282 = vld [vmem:[%s1 + $0x8] sm:$0xff]
      %v283 = vld [vmem:[%s1 + $0x10] sm:$0xff]
      %v284 = vld [vmem:[%s1 + $0x18] sm:$0xff]
      %v285 = vld [vmem:[%s1 + $0x20] sm:$0xff]
      %v286 = vld [vmem:[%s1 + $0x28] sm:$0xff]
      %v287 = vld [vmem:[%s1 + $0x30] sm:$0xff]
      %v288 = vld [vmem:[%s1 + $0x38] sm:$0xff]
      %v289 = vld [vmem:[%s1 + $0x40] sm:$0xff]
      %v290 = vld [vmem:[%s1 + $0x48] sm:$0xff]
      %v291 = vld [vmem:[%s1 + $0x50] sm:$0xff]
      %v292 = vld [vmem:[%s1 + $0x58] sm:$0xff]
      %v293 = vld [vmem:[%s1 + $0x60] sm:$0xff]
      %v294 = vld [vmem:[%s1 + $0x68] sm:$0xff]
      %v295 = vld [vmem:[%s1 + $0x70] sm:$0xff]
      %v296 = vld [vmem:[%s1 + $0x78] sm:$0xff]
      %s297 = scalar_lea.vmem %s1, 128
      %v298 = vld [vmem:[%s297] sm:$0xff]
      %v299 = vld [vmem:[%s297 + $0x8] sm:$0xff]
      %v300 = vld [vmem:[%s297 + $0x10] sm:$0xff]
      %v301 = vld [vmem:[%s297 + $0x18] sm:$0xff]
      %v302 = vld [vmem:[%s297 + $0x20] sm:$0xff]
      %v303 = vld [vmem:[%s297 + $0x28] sm:$0xff]
      %v304 = vld [vmem:[%s297 + $0x30] sm:$0xff]
      %v305 = vld [vmem:[%s297 + $0x38] sm:$0xff]
      %v306 = vld [vmem:[%s297 + $0x40] sm:$0xff]
      %v307 = vld [vmem:[%s297 + $0x48] sm:$0xff]
      %v308 = vld [vmem:[%s297 + $0x50] sm:$0xff]
      %v309 = vld [vmem:[%s297 + $0x58] sm:$0xff]
      %v310 = vld [vmem:[%s297 + $0x60] sm:$0xff]
      %v311 = vld [vmem:[%s297 + $0x68] sm:$0xff]
      %v312 = vld [vmem:[%s297 + $0x70] sm:$0xff]
      %v313 = vld [vmem:[%s297 + $0x78] sm:$0xff]
      %314 = vmatprep.subr.mxu0 0.0
      %315 = vmatpush1.msra.mxu0 %v298
      %316 = vmatprep.subr.mxu0 0.0
      %317 = vmatpush1.msra.mxu0 %v299
      %318 = vmatprep.subr.mxu0 0.0
      %319 = vmatpush1.msra.mxu0 %v300
      %320 = vmatprep.subr.mxu0 0.0
      %321 = vmatpush1.msra.mxu0 %v301
      %322 = vmatprep.subr.mxu0 0.0
      %323 = vmatpush1.msra.mxu0 %v302
      %324 = vmatprep.subr.mxu0 0.0
      %325 = vmatpush1.msra.mxu0 %v303
      %326 = vmatprep.subr.mxu0 0.0
      %327 = vmatpush1.msra.mxu0 %v304
      %328 = vmatprep.subr.mxu0 0.0
      %329 = vmatpush1.msra.mxu0 %v305
      %330 = vmatprep.subr.mxu0 0.0
      %331 = vmatpush1.msra.mxu0 %v306
      %332 = vmatprep.subr.mxu0 0.0
      %333 = vmatpush1.msra.mxu0 %v307
      %334 = vmatprep.subr.mxu0 0.0
      %335 = vmatpush1.msra.mxu0 %v308
      %336 = vmatprep.subr.mxu0 0.0
      %337 = vmatpush1.msra.mxu0 %v309
      %338 = vmatprep.subr.mxu0 0.0
      %339 = vmatpush1.msra.mxu0 %v310
      %340 = vmatprep.subr.mxu0 0.0
      %341 = vmatpush1.msra.mxu0 %v311
      %342 = vmatprep.subr.mxu0 0.0
      %343 = vmatpush1.msra.mxu0 %v312
      %344 = vmatprep.subr.mxu0 0.0
      %345 = vmatpush1.msra.mxu0 %v313
      %346 = vmatprep.subr.mxu0 0.0
      %347 = vmatpush1.msra.mxu0 0.0
      %348 = vmatprep.subr.mxu0 0.0
      %349 = vmatpush1.msra.mxu0 0.0
      %350 = vmatprep.subr.mxu0 0.0
      %351 = vmatpush1.msra.mxu0 0.0
      %352 = vmatprep.subr.mxu0 0.0
      %353 = vmatpush1.msra.mxu0 0.0
      %354 = vmatprep.subr.mxu0 0.0
      %355 = vmatpush1.msra.mxu0 0.0
      %356 = vmatprep.subr.mxu0 0.0
      %357 = vmatpush1.msra.mxu0 0.0
      %358 = vmatprep.subr.mxu0 0.0
      %359 = vmatpush1.msra.mxu0 0.0
      %360 = vmatprep.subr.mxu0 0.0
      %361 = vmatpush1.msra.mxu0 0.0
      %362 = vmatprep.subr.mxu0 0.0
      %363 = vmatpush1.msra.mxu0 0.0
      %364 = vmatprep.subr.mxu0 0.0
      %365 = vmatpush1.msra.mxu0 0.0
      %366 = vmatprep.subr.mxu0 0.0
      %367 = vmatpush1.msra.mxu0 0.0
      %368 = vmatprep.subr.mxu0 0.0
      %369 = vmatpush1.msra.mxu0 0.0
      %370 = vmatprep.subr.mxu0 0.0
      %371 = vmatpush1.msra.mxu0 0.0
      %372 = vmatprep.subr.mxu0 0.0
      %373 = vmatpush1.msra.mxu0 0.0
      %374 = vmatprep.subr.mxu0 0.0
      %375 = vmatpush1.msra.mxu0 0.0
      %376 = vmatprep.subr.mxu0 0.0
      %377 = vmatpush1.msra.mxu0 0.0
      %378 = vmatprep.mubr.f32.mxu0 0.0
      %379 = vmatmul.mubr.f32.gmra.mrb[0].mxu0 %v178
      %v380 = vpop.f32.mrb[0].mxu0
      %v381 = vadd.f32 0.0, %v380
      %v382 = vpop.f32.mrb[0].mxu0
      %383 = vmatprep.mubr.f32.mxu0 0.0
      %384 = vmatmul.mubr.f32.gmra.mrb[0].mxu0 %v180
      %v385 = vpop.f32.mrb[0].mxu0
      %v386 = vadd.f32 0.0, %v385
      %v387 = vpop.f32.mrb[0].mxu0
      %388 = vmatprep.mubr.f32.mxu0 0.0
      %389 = vmatmul.mubr.f32.gmra.mrb[0].mxu0 %v182
      %v390 = vpop.f32.mrb[0].mxu0
      %v391 = vadd.f32 0.0, %v390
      %v392 = vpop.f32.mrb[0].mxu0
      %393 = vmatprep.mubr.f32.mxu0 0.0
      %394 = vmatmul.mubr.f32.gmra.mrb[0].mxu0 %v184
      %v395 = vpop.f32.mrb[0].mxu0
      %v396 = vadd.f32 0.0, %v395
      %v397 = vpop.f32.mrb[0].mxu0
      %398 = vmatprep.mubr.f32.mxu0 0.0
      %399 = vmatmul.mubr.f32.gmra.mrb[0].mxu0 %v186
      %v400 = vpop.f32.mrb[0].mxu0
      %v401 = vadd.f32 0.0, %v400
      %v402 = vpop.f32.mrb[0].mxu0
      %403 = vmatprep.mubr.f32.mxu0 0.0
      %404 = vmatmul.mubr.f32.gmra.mrb[0].mxu0 %v188
      %v405 = vpop.f32.mrb[0].mxu0
      %v406 = vadd.f32 0.0, %v405
      %v407 = vpop.f32.mrb[0].mxu0
      %408 = vmatprep.mubr.f32.mxu0 0.0
      %409 = vmatmul.mubr.f32.gmra.mrb[0].mxu0 %v190
      %v410 = vpop.f32.mrb[0].mxu0
      %v411 = vadd.f32 0.0, %v410
      %v412 = vpop.f32.mrb[0].mxu0
      %413 = vmatprep.mubr.f32.mxu0 0.0
      %414 = vmatmul.mubr.f32.gmra.mrb[0].mxu0 %v192
      %v415 = vpop.f32.mrb[0].mxu0
      %v416 = vadd.f32 0.0, %v415
      %v417 = vpop.f32.mrb[0].mxu0
      %418 = vdwg.mxu0
      %419 = vmatprep.subr.mxu0 0.0
      %420 = vmatpush1.msra.mxu0 %v281
      %421 = vmatprep.subr.mxu0 0.0
      %422 = vmatpush1.msra.mxu0 %v282
      %423 = vmatprep.subr.mxu0 0.0
      %424 = vmatpush1.msra.mxu0 %v283
      %425 = vmatprep.subr.mxu0 0.0
      %426 = vmatpush1.msra.mxu0 %v284
      %427 = vmatprep.subr.mxu0 0.0
      %428 = vmatpush1.msra.mxu0 %v285
      %429 = vmatprep.subr.mxu0 0.0
      %430 = vmatpush1.msra.mxu0 %v286
      %431 = vmatprep.subr.mxu0 0.0
      %432 = vmatpush1.msra.mxu0 %v287
      %433 = vmatprep.subr.mxu0 0.0
      %434 = vmatpush1.msra.mxu0 %v288
      %435 = vmatprep.subr.mxu0 0.0
      %436 = vmatpush1.msra.mxu0 %v289
      %437 = vmatprep.subr.mxu0 0.0
      %438 = vmatpush1.msra.mxu0 %v290
      %439 = vmatprep.subr.mxu0 0.0
      %440 = vmatpush1.msra.mxu0 %v291
      %441 = vmatprep.subr.mxu0 0.0
      %442 = vmatpush1.msra.mxu0 %v292
      %443 = vmatprep.subr.mxu0 0.0
      %444 = vmatpush1.msra.mxu0 %v293
      %445 = vmatprep.subr.mxu0 0.0
      %446 = vmatpush1.msra.mxu0 %v294
      %447 = vmatprep.subr.mxu0 0.0
      %448 = vmatpush1.msra.mxu0 %v295
      %449 = vmatprep.subr.mxu0 0.0
      %450 = vmatpush1.msra.mxu0 %v296
      %451 = vmatprep.subr.mxu0 0.0
      %452 = vmatpush1.msra.mxu0 0.0
      %453 = vmatprep.subr.mxu0 0.0
      %454 = vmatpush1.msra.mxu0 0.0
      %455 = vmatprep.subr.mxu0 0.0
      %456 = vmatpush1.msra.mxu0 0.0
      %457 = vmatprep.subr.mxu0 0.0
      %458 = vmatpush1.msra.mxu0 0.0
      %459 = vmatprep.subr.mxu0 0.0
      %460 = vmatpush1.msra.mxu0 0.0
      %461 = vmatprep.subr.mxu0 0.0
      %462 = vmatpush1.msra.mxu0 0.0
      %463 = vmatprep.subr.mxu0 0.0
      %464 = vmatpush1.msra.mxu0 0.0
      %465 = vmatprep.subr.mxu0 0.0
      %466 = vmatpush1.msra.mxu0 0.0
      %467 = vmatprep.subr.mxu0 0.0
      %468 = vmatpush1.msra.mxu0 0.0
      %469 = vmatprep.subr.mxu0 0.0
      %470 = vmatpush1.msra.mxu0 0.0
      %471 = vmatprep.subr.mxu0 0.0
      %472 = vmatpush1.msra.mxu0 0.0
      %473 = vmatprep.subr.mxu0 0.0
      %474 = vmatpush1.msra.mxu0 0.0
      %475 = vmatprep.subr.mxu0 0.0
      %476 = vmatpush1.msra.mxu0 0.0
      %477 = vmatprep.subr.mxu0 0.0
      %478 = vmatpush1.msra.mxu0 0.0
      %479 = vmatprep.subr.mxu0 0.0
      %480 = vmatpush1.msra.mxu0 0.0
      %481 = vmatprep.subr.mxu0 0.0
      %482 = vmatpush1.msra.mxu0 0.0
      %483 = vmatprep.mubr.f32.mxu0 0.0
      %484 = vmatmul.mubr.f32.gmra.mrb[0].mxu0 %v177
      %v485 = vpop.f32.mrb[0].mxu0
      %v486 = vadd.f32 %v381, %v485
      %v487 = vpop.f32.mrb[0].mxu0
      %488 = vmatprep.mubr.f32.mxu0 0.0
      %489 = vmatmul.mubr.f32.gmra.mrb[0].mxu0 %v179
      %v490 = vpop.f32.mrb[0].mxu0
      %v491 = vadd.f32 %v386, %v490
      %v492 = vpop.f32.mrb[0].mxu0
      %493 = vmatprep.mubr.f32.mxu0 0.0
      %494 = vmatmul.mubr.f32.gmra.mrb[0].mxu0 %v181
      %v495 = vpop.f32.mrb[0].mxu0
      %v496 = vadd.f32 %v391, %v495
      %v497 = vpop.f32.mrb[0].mxu0
      %498 = vmatprep.mubr.f32.mxu0 0.0
      %499 = vmatmul.mubr.f32.gmra.mrb[0].mxu0 %v183
      %v500 = vpop.f32.mrb[0].mxu0
      %v501 = vadd.f32 %v396, %v500
      %v502 = vpop.f32.mrb[0].mxu0
      %503 = vmatprep.mubr.f32.mxu0 0.0
      %504 = vmatmul.mubr.f32.gmra.mrb[0].mxu0 %v185
      %v505 = vpop.f32.mrb[0].mxu0
      %v506 = vadd.f32 %v401, %v505
      %v507 = vpop.f32.mrb[0].mxu0
      %508 = vmatprep.mubr.f32.mxu0 0.0
      %509 = vmatmul.mubr.f32.gmra.mrb[0].mxu0 %v187
      %v510 = vpop.f32.mrb[0].mxu0
      %v511 = vadd.f32 %v406, %v510
      %v512 = vpop.f32.mrb[0].mxu0
      %513 = vmatprep.mubr.f32.mxu0 0.0
      %514 = vmatmul.mubr.f32.gmra.mrb[0].mxu0 %v189
      %v515 = vpop.f32.mrb[0].mxu0
      %v516 = vadd.f32 %v411, %v515
      %v517 = vpop.f32.mrb[0].mxu0
      %518 = vmatprep.mubr.f32.mxu0 0.0
      %519 = vmatmul.mubr.f32.gmra.mrb[0].mxu0 %v191
      %v520 = vpop.f32.mrb[0].mxu0
      %v521 = vadd.f32 %v416, %v520
      %v522 = vpop.f32.mrb[0].mxu0
      %523 = vdwg.mxu0
      %v524 = vld [vmem:[%s2] sm:$0x1]
      %v526 = vlaneseq
      %v527 = vshrl.u32 %v526, 7
      %v528 = vsub.s32 0, %v527
      %v529 = vrot.slane %v524, %v528
      %v531 = vadd.f32 %v486, %v529
      %v532 = vadd.f32 %v491, %v529
      %v533 = vadd.f32 %v496, %v529
      %v534 = vadd.f32 %v501, %v529
      %v535 = vadd.f32 %v506, %v529
      %v536 = vadd.f32 %v511, %v529
      %v537 = vadd.f32 %v516, %v529
      %v538 = vadd.f32 %v521, %v529
      %v539 = vadd.f32 %v273, %v531
      %v540 = vadd.f32 %v274, %v532
      %v541 = vadd.f32 %v275, %v533
      %v542 = vadd.f32 %v276, %v534
      %v543 = vadd.f32 %v277, %v535
      %v544 = vadd.f32 %v278, %v536
      %v545 = vadd.f32 %v279, %v537
      %v546 = vadd.f32 %v280, %v538
      %vm547 = vcmask 523264
      %548 = vst.msk [vmem:[%s175] sm:$0xff] %vm547, %v539
      %549 = vst.msk [vmem:[%s175 + $0x8] sm:$0xff] %vm547, %v540
      %550 = vst.msk [vmem:[%s175 + $0x10] sm:$0xff] %vm547, %v541
      %551 = vst.msk [vmem:[%s175 + $0x18] sm:$0xff] %vm547, %v542
      %552 = vst.msk [vmem:[%s175 + $0x20] sm:$0xff] %vm547, %v543
      %553 = vst.msk [vmem:[%s175 + $0x28] sm:$0xff] %vm547, %v544
      %554 = vst.msk [vmem:[%s175 + $0x30] sm:$0xff] %vm547, %v545
      %555 = vst.msk [vmem:[%s175 + $0x38] sm:$0xff] %vm547, %v546
      %s556 = smul.u32 8, %s14
      %p557 = scmp.lt.s32.totalorder %s556, 15
      %s558 = scalar_select %p557, %s556, 15
      %s559 = smul.addr %s558, 8
      %s560 = scalar_lea.vmem %s3, %s559
      // Predicated region
      $region33: #{downsample_x8_forward.7} parent=31 // pred_check
        %p561 = pneg %p100
      $region34: #{downsample_x8_forward.7} parent=31 // pred_check_branch
        %563 = sbr.rel (%p561) target = $region36
      $region35: #{downsample_x8_forward.7} parent=31 // pred_region
        %s564 = smul.u32 8, %s14
      $region36: #{downsample_x8_forward.7} parent=31 // pred_fallthru
        _
    $region32: #{downsample_x8_forward.7} parent=5 // pred_fallthru
      _
    %p565 = scmp.le.s32.totalorder 2, %s9
    // Predicated region
    $region37: #{downsample_x8_forward.7} parent=5 // pred_check
      %p566 = pneg %p565
    $region38: #{downsample_x8_forward.7} parent=5 // pred_check_branch
      %568 = sbr.rel (%p566) target = $region40
    $region39: #{downsample_x8_forward.7} parent=5 // pred_region
      %s569 = ssub.s32 %s9, 2
      // Predicated region
      $region41: #{downsample_x8_forward.7} parent=39 // pred_check
        %p570 = pneg %p106
      $region42: #{downsample_x8_forward.7} parent=39 // pred_check_branch
        %572 = sbr.rel (%p570) target = $region44
      $region43: #{downsample_x8_forward.7} parent=39 // pred_region
        %s573 = smul.u32 8, %s15
        %p574 = scmp.lt.s32.totalorder %s573, 15
        %s575 = scalar_select %p574, %s573, 15
        %s576 = smul.addr %s575, 8
        %s577 = scalar_lea.vmem %s3, %s576
      $region44: #{downsample_x8_forward.7} parent=39 // pred_fallthru
        _
    $region40: #{downsample_x8_forward.7} parent=5 // pred_fallthru
      _
  $region6: #{downsample_x8_forward.7} parent=0 // loop_footer
    %s13 = sadd.s32 1, %s9
  $region7: #{downsample_x8_forward.7} parent=0 // loop_footer_branch
    %8 = sbr.rel target = $region3
  $region8: #{downsample_x8_forward.7} parent=0 // loop_exit
    _

// kernel: downsample_x8_forward.5
$region0: #{downsample_x8_forward.5}
  #allocation0 [shape = 'u32[]', space=smem, size = 0x4, offset = 0x4, fixed_abs, tag = 'smem constant byte address 0x4 - core index']
  #allocation1 [shape = 'u32[144,128]{1,0:T(1,128)}', space=vmem, size = 0x12000, scoped, tag = 'internal scratch']
  %s0 = inlined_call_operand.vmem [shape: f32[64,34,8], index: 0, kind: input, shape index: {}]
  %s1 = inlined_call_operand.vmem [shape: f32[64,34,8], index: 1, kind: input, shape index: {}]
  %s2 = inlined_call_operand.vmem [shape: f32[64,34,8], index: 2, kind: input, shape index: {}]
  %s3 = inlined_call_operand.vmem [shape: f32[3,3,8,64], index: 3, kind: input, shape index: {}]
  %s4 = inlined_call_operand.vmem [shape: f32[1,64], index: 4, kind: input, shape index: {}]
  %s5 = inlined_call_operand.vmem [shape: f32[64,32,64], index: 5, kind: output, shape index: {}]
  %s6 = sld [smem:[#allocation0]]
  $region53: #{downsample_x8_forward.5} parent=0
    _
  %s8 = ssub.s32 1, %s6
  %s9 = scalar_select 0, %s8, %s6
  loop: start=0, step=1, limit=10
  $region2: #{downsample_x8_forward.5} parent=0 // loop_pre_header
    _
  $region3: #{downsample_x8_forward.5} parent=0 // loop_header
    %s11 = sphi 0, %s15
    %p12 = scmp.ge.s32.totalorder %s11, 10
    %s21 = sphi 0, %s23
    %s24 = sphi 0, %s21
    %s25 = sphi 0, %s24
    %s41 = sphi 0, %s25
    %s47 = sphi 0, %s49
    %s50 = sphi 0, %s47
    %s51 = sphi 0, %s50
    %s67 = sphi 0, %s51
    %s73 = sphi 0, %s75
    %s76 = sphi 0, %s73
    %s77 = sphi 0, %s76
    %s93 = sphi 0, %s77
    %s97 = sphi 0, %s97
    %s99 = sphi 0, %s97
    %s100 = sphi 0, %s99
    %s114 = sphi 0, %s100
    %s118 = sphi 0, %s118
    %s120 = sphi 0, %s118
    %s121 = sphi 0, %s120
    %s135 = sphi 0, %s121
    %s141 = sphi 0, %s143
    %s144 = sphi 0, %s141
    %s145 = sphi 0, %s144
    %s161 = sphi 0, %s145
  $region4: #{downsample_x8_forward.5} parent=0 // loop_header_branch
    %14 = sbr.rel (%p12) target = $region8
  $region5: #{downsample_x8_forward.5} parent=0 // loop_body
    %s16 = ssub.s32 %s11, 1
    %s17 = ssub.s32 %s11, 2
    %s18 = sadd.s32 %s11, 1
    %s19 = ssub.s32 %s11, %s18
    %p20 = scmp.eq.s32.totalorder %s19, 0
    %s22 = sadd.s32 %s21, 1
    %s23 = scalar_select %p20, %s21, %s22
    %p26 = pneg %p20
    %p27 = scmp.eq.s32.totalorder %s11, 7
    %p28 = por %p26, %p27
    %p29 = scmp.ne.s32.totalorder %s21, %s24
    %p30 = scmp.eq.s32.totalorder %s11, 0
    %p31 = por %p29, %p30
    %p32 = scmp.ne.s32.totalorder %s21, %s24
    %p33 = scmp.eq.s32.totalorder %s16, 7
    %p34 = por %p32, %p33
    %p35 = scmp.ne.s32.totalorder %s24, %s25
    %p36 = scmp.eq.s32.totalorder %s16, 0
    %p37 = por %p35, %p36
    %p38 = scmp.ne.s32.totalorder %s24, %s25
    %p39 = scmp.eq.s32.totalorder %s17, 7
    %p40 = por %p38, %p39
    %p42 = scmp.ne.s32.totalorder %s25, %s41
    %p43 = scmp.eq.s32.totalorder %s17, 0
    %p44 = por %p42, %p43
    %s45 = ssub.s32 %s11, %s18
    %p46 = scmp.eq.s32.totalorder %s45, 0
    %s48 = sadd.s32 %s47, 1
    %s49 = scalar_select %p46, %s47, %s48
    %p52 = pneg %p46
    %p53 = scmp.eq.s32.totalorder %s11, 7
    %p54 = por %p52, %p53
    %p55 = scmp.ne.s32.totalorder %s47, %s50
    %p56 = scmp.eq.s32.totalorder %s11, 0
    %p57 = por %p55, %p56
    %p58 = scmp.ne.s32.totalorder %s47, %s50
    %p59 = scmp.eq.s32.totalorder %s16, 7
    %p60 = por %p58, %p59
    %p61 = scmp.ne.s32.totalorder %s50, %s51
    %p62 = scmp.eq.s32.totalorder %s16, 0
    %p63 = por %p61, %p62
    %p64 = scmp.ne.s32.totalorder %s50, %s51
    %p65 = scmp.eq.s32.totalorder %s17, 7
    %p66 = por %p64, %p65
    %p68 = scmp.ne.s32.totalorder %s51, %s67
    %p69 = scmp.eq.s32.totalorder %s17, 0
    %p70 = por %p68, %p69
    %s71 = ssub.s32 %s11, %s18
    %p72 = scmp.eq.s32.totalorder %s71, 0
    %s74 = sadd.s32 %s73, 1
    %s75 = scalar_select %p72, %s73, %s74
    %p78 = pneg %p72
    %p79 = scmp.eq.s32.totalorder %s11, 7
    %p80 = por %p78, %p79
    %p81 = scmp.ne.s32.totalorder %s73, %s76
    %p82 = scmp.eq.s32.totalorder %s11, 0
    %p83 = por %p81, %p82
    %p84 = scmp.ne.s32.totalorder %s73, %s76
    %p85 = scmp.eq.s32.totalorder %s16, 7
    %p86 = por %p84, %p85
    %p87 = scmp.ne.s32.totalorder %s76, %s77
    %p88 = scmp.eq.s32.totalorder %s16, 0
    %p89 = por %p87, %p88
    %p90 = scmp.ne.s32.totalorder %s76, %s77
    %p91 = scmp.eq.s32.totalorder %s17, 7
    %p92 = por %p90, %p91
    %p94 = scmp.ne.s32.totalorder %s77, %s93
    %p95 = scmp.eq.s32.totalorder %s17, 0
    %p96 = por %p94, %p95
    %s98 = sadd.s32 %s97, 1
    %p101 = scmp.eq.s32.totalorder %s11, 7
    %p102 = scmp.ne.s32.totalorder %s97, %s99
    %p103 = scmp.eq.s32.totalorder %s11, 0
    %p104 = por %p102, %p103
    %p105 = scmp.ne.s32.totalorder %s97, %s99
    %p106 = scmp.eq.s32.totalorder %s16, 7
    %p107 = por %p105, %p106
    %p108 = scmp.ne.s32.totalorder %s99, %s100
    %p109 = scmp.eq.s32.totalorder %s16, 0
    %p110 = por %p108, %p109
    %p111 = scmp.ne.s32.totalorder %s99, %s100
    %p112 = scmp.eq.s32.totalorder %s17, 7
    %p113 = por %p111, %p112
    %p115 = scmp.ne.s32.totalorder %s100, %s114
    %p116 = scmp.eq.s32.totalorder %s17, 0
    %p117 = por %p115, %p116
    %s119 = sadd.s32 %s118, 1
    %p122 = scmp.eq.s32.totalorder %s11, 7
    %p123 = scmp.ne.s32.totalorder %s118, %s120
    %p124 = scmp.eq.s32.totalorder %s11, 0
    %p125 = por %p123, %p124
    %p126 = scmp.ne.s32.totalorder %s118, %s120
    %p127 = scmp.eq.s32.totalorder %s16, 7
    %p128 = por %p126, %p127
    %p129 = scmp.ne.s32.totalorder %s120, %s121
    %p130 = scmp.eq.s32.totalorder %s16, 0
    %p131 = por %p129, %p130
    %p132 = scmp.ne.s32.totalorder %s120, %s121
    %p133 = scmp.eq.s32.totalorder %s17, 7
    %p134 = por %p132, %p133
    %p136 = scmp.ne.s32.totalorder %s121, %s135
    %p137 = scmp.eq.s32.totalorder %s17, 0
    %p138 = por %p136, %p137
    %s139 = ssub.s32 %s11, %s18
    %p140 = scmp.eq.s32.totalorder %s139, 0
    %s142 = sadd.s32 %s141, 1
    %s143 = scalar_select %p140, %s141, %s142
    %p146 = pneg %p140
    %p147 = scmp.eq.s32.totalorder %s11, 7
    %p148 = por %p146, %p147
    %p149 = scmp.ne.s32.totalorder %s141, %s144
    %p150 = scmp.eq.s32.totalorder %s11, 0
    %p151 = por %p149, %p150
    %p152 = scmp.ne.s32.totalorder %s141, %s144
    %p153 = scmp.eq.s32.totalorder %s16, 7
    %p154 = por %p152, %p153
    %p155 = scmp.ne.s32.totalorder %s144, %s145
    %p156 = scmp.eq.s32.totalorder %s16, 0
    %p157 = por %p155, %p156
    %p158 = scmp.ne.s32.totalorder %s144, %s145
    %p159 = scmp.eq.s32.totalorder %s17, 7
    %p160 = por %p158, %p159
    %p162 = scmp.ne.s32.totalorder %s145, %s161
    %p163 = scmp.eq.s32.totalorder %s17, 0
    %p164 = por %p162, %p163
    %p165 = scmp.le.s32.totalorder 1, %s11
    %p166 = scmp.lt.s32.totalorder %s11, 9
    %p167 = pnand %p165, %p166
    %p168 = pneg %p167
    // Predicated region
    $region9: #{downsample_x8_forward.5} parent=5 // pred_check
      _
    $region10: #{downsample_x8_forward.5} parent=5 // pred_check_branch
      %170 = sbr.rel (%p167) target = $region12
    $region11: #{downsample_x8_forward.5} parent=5 // pred_region
      %s171 = ssub.s32 %s11, 1
      // Predicated region
      $region13: #{downsample_x8_forward.5} parent=11 // pred_check
        %p172 = pneg %p110
      $region14: #{downsample_x8_forward.5} parent=11 // pred_check_branch
        %174 = sbr.rel (%p172) target = $region16
      $region15: #{downsample_x8_forward.5} parent=11 // pred_region
        _
      $region16: #{downsample_x8_forward.5} parent=11 // pred_fallthru
        _
      // Predicated region
      $region17: #{downsample_x8_forward.5} parent=11 // pred_check
        %p175 = pneg %p131
      $region18: #{downsample_x8_forward.5} parent=11 // pred_check_branch
        %177 = sbr.rel (%p175) target = $region20
      $region19: #{downsample_x8_forward.5} parent=11 // pred_region
        _
      $region20: #{downsample_x8_forward.5} parent=11 // pred_fallthru
        _
    $region12: #{downsample_x8_forward.5} parent=5 // pred_fallthru
      _
    %p178 = scmp.lt.s32.totalorder %s11, 8
    // Predicated region
    $region21: #{downsample_x8_forward.5} parent=5 // pred_check
      %p179 = pneg %p178
    $region22: #{downsample_x8_forward.5} parent=5 // pred_check_branch
      %181 = sbr.rel (%p179) target = $region24
    $region23: #{downsample_x8_forward.5} parent=5 // pred_region
      // Predicated region
      $region25: #{downsample_x8_forward.5} parent=23 // pred_check
        %p182 = pneg %p31
      $region26: #{downsample_x8_forward.5} parent=23 // pred_check_branch
        %184 = sbr.rel (%p182) target = $region28
      $region27: #{downsample_x8_forward.5} parent=23 // pred_region
        %s185 = smul.u32 8, %s11
        %p186 = scmp.lt.s32.totalorder %s185, 63
        %s187 = scalar_select %p186, %s185, 63
        %s188 = smul.addr %s187, 5
        %s189 = smul.addr %s188, 8
        %s190 = scalar_lea.vmem %s0, %s189
        %s191 = smul.u32 8, %s11
      $region28: #{downsample_x8_forward.5} parent=23 // pred_fallthru
        _
      // Predicated region
      $region29: #{downsample_x8_forward.5} parent=23 // pred_check
        %p192 = pneg %p57
      $region30: #{downsample_x8_forward.5} parent=23 // pred_check_branch
        %194 = sbr.rel (%p192) target = $region32
      $region31: #{downsample_x8_forward.5} parent=23 // pred_region
        %s195 = smul.u32 8, %s11
        %p196 = scmp.lt.s32.totalorder %s195, 63
        %s197 = scalar_select %p196, %s195, 63
        %s198 = smul.addr %s197, 5
        %s199 = smul.addr %s198, 8
        %s200 = scalar_lea.vmem %s1, %s199
        %s201 = smul.u32 8, %s11
      $region32: #{downsample_x8_forward.5} parent=23 // pred_fallthru
        _
      // Predicated region
      $region33: #{downsample_x8_forward.5} parent=23 // pred_check
        %p202 = pneg %p83
      $region34: #{downsample_x8_forward.5} parent=23 // pred_check_branch
        %204 = sbr.rel (%p202) target = $region36
      $region35: #{downsample_x8_forward.5} parent=23 // pred_region
        %s205 = smul.u32 8, %s11
        %p206 = scmp.lt.s32.totalorder %s205, 63
        %s207 = scalar_select %p206, %s205, 63
        %s208 = smul.addr %s207, 5
        %s209 = smul.addr %s208, 8
        %s210 = scalar_lea.vmem %s2, %s209
        %s211 = smul.u32 8, %s11
      $region36: #{downsample_x8_forward.5} parent=23 // pred_fallthru
        _
    $region24: #{downsample_x8_forward.5} parent=5 // pred_fallthru
      _
    %p212 = scmp.le.s32.totalorder 1, %s11
    %p213 = scmp.lt.s32.totalorder %s11, 9
    %p214 = pnand %p212, %p213
    %p215 = pneg %p214
    // Predicated region
    $region37: #{downsample_x8_forward.5} parent=5 // pred_check
      _
    $region38: #{downsample_x8_forward.5} parent=5 // pred_check_branch
      %217 = sbr.rel (%p214) target = $region40
    $region39: #{downsample_x8_forward.5} parent=5 // pred_region
      %s218 = ssub.s32 %s11, 1
      %s219 = smul.u32 8, %s16
      %p220 = scmp.lt.s32.totalorder %s219, 63
      %s221 = scalar_select %p220, %s219, 63
      %s222 = smul.addr %s221, 5
      %s223 = smul.addr %s222, 8
      %s224 = scalar_lea.vmem %s0, %s223
      %p225 = pneg %p37
      %p226 = pneg %p34
      %s227 = smul.u32 8, %s16
      %p228 = scmp.lt.s32.totalorder %s227, 63
      %s229 = scalar_select %p228, %s227, 63
      %s230 = smul.addr %s229, 5
      %s231 = smul.addr %s230, 8
      %s232 = scalar_lea.vmem %s1, %s231
      %p233 = pneg %p63
      %p234 = pneg %p60
      %s235 = smul.u32 8, %s16
      %p236 = scmp.lt.s32.totalorder %s235, 63
      %s237 = scalar_select %p236, %s235, 63
      %s238 = smul.addr %s237, 5
      %s239 = smul.addr %s238, 8
      %s240 = scalar_lea.vmem %s2, %s239
      %p241 = pneg %p89
      %p242 = pneg %p86
      %p243 = pneg %p110
      %p244 = pneg %p107
      %p245 = pneg %p131
      %p246 = pneg %p128
      %p247 = pneg %p157
      %p248 = pneg %p154
      %s249 = smul.u32 8, %s16
      %p250 = scmp.lt.s32.totalorder %s249, 63
      %s251 = scalar_select %p250, %s249, 63
      %s252 = smul.addr %s251, 4
      %s253 = smul.addr %s252, 8
      %s254 = scalar_lea.vmem %s5, %s253
      %s255 = smul.u32 8, %s16
      %p256 = scmp.lt.s32.totalorder %s255, 63
      %s257 = scalar_select %p256, %s255, 63
      %s258 = smul.addr %s257, 5
      %s259 = smul.addr %s258, 8
      %s260 = scalar_lea.vmem %s0, %s259
      %s261 = smul.u32 8, %s16
      %s262 = smul.u32 8, %s16
      %p263 = scmp.lt.s32.totalorder %s262, 63
      %s264 = scalar_select %p263, %s262, 63
      %s265 = smul.addr %s264, 5
      %s266 = smul.addr %s265, 8
      %s267 = scalar_lea.vmem %s1, %s266
      %s268 = smul.u32 8, %s16
      %s269 = smul.u32 8, %s16
      %p270 = scmp.lt.s32.totalorder %s269, 63
      %s271 = scalar_select %p270, %s269, 63
      %s272 = smul.addr %s271, 5
      %s273 = smul.addr %s272, 8
      %s274 = scalar_lea.vmem %s2, %s273
      %s275 = smul.u32 8, %s16
      %s276 = smul.u32 8, %s16
      %p277 = scmp.lt.s32.totalorder %s276, 63
      %s278 = scalar_select %p277, %s276, 63
      %s279 = smul.addr %s278, 4
      %s280 = smul.addr %s279, 8
      %s281 = scalar_lea.vmem %s5, %s280
      %s282 = smul.u32 8, %s16
      %v283 = vld [vmem:[%s260] sm:$0xff]
      %v284 = vld [vmem:[%s260 + $0x8] sm:$0xff]
      %v285 = vld [vmem:[%s260 + $0x10] sm:$0xff]
      %v286 = vld [vmem:[%s260 + $0x18] sm:$0xff]
      %v287 = vld [vmem:[%s260 + $0x20] sm:$0x3]
      %v288 = vld [vmem:[%s260 + $0x28] sm:$0xff]
      %v289 = vld [vmem:[%s260 + $0x30] sm:$0xff]
      %v290 = vld [vmem:[%s260 + $0x38] sm:$0xff]
      %v291 = vld [vmem:[%s260 + $0x40] sm:$0xff]
      %v292 = vld [vmem:[%s260 + $0x48] sm:$0x3]
      %v293 = vld [vmem:[%s260 + $0x50] sm:$0xff]
      %v294 = vld [vmem:[%s260 + $0x58] sm:$0xff]
      %v295 = vld [vmem:[%s260 + $0x60] sm:$0xff]
      %v296 = vld [vmem:[%s260 + $0x68] sm:$0xff]
      %v297 = vld [vmem:[%s260 + $0x70] sm:$0x3]
      %v298 = vld [vmem:[%s260 + $0x78] sm:$0xff]
      %v299 = vld [vmem:[%s260 + $0x80] sm:$0xff]
      %v300 = vld [vmem:[%s260 + $0x88] sm:$0xff]
      %v301 = vld [vmem:[%s260 + $0x90] sm:$0xff]
      %v302 = vld [vmem:[%s260 + $0x98] sm:$0x3]
      %v303 = vld [vmem:[%s260 + $0xa0] sm:$0xff]
      %v304 = vld [vmem:[%s260 + $0xa8] sm:$0xff]
      %v305 = vld [vmem:[%s260 + $0xb0] sm:$0xff]
      %v306 = vld [vmem:[%s260 + $0xb8] sm:$0xff]
      %v307 = vld [vmem:[%s260 + $0xc0] sm:$0x3]
      %v308 = vld [vmem:[%s260 + $0xc8] sm:$0xff]
      %v309 = vld [vmem:[%s260 + $0xd0] sm:$0xff]
      %v310 = vld [vmem:[%s260 + $0xd8] sm:$0xff]
      %v311 = vld [vmem:[%s260 + $0xe0] sm:$0xff]
      %v312 = vld [vmem:[%s260 + $0xe8] sm:$0x3]
      %v313 = vld [vmem:[%s260 + $0xf0] sm:$0xff]
      %v314 = vld [vmem:[%s260 + $0xf8] sm:$0xff]
      %v315 = vld [vmem:[%s260 + $0x100] sm:$0xff]
      %v316 = vld [vmem:[%s260 + $0x108] sm:$0xff]
      %v317 = vld [vmem:[%s260 + $0x110] sm:$0x3]
      %v318 = vld [vmem:[%s260 + $0x118] sm:$0xff]
      %v319 = vld [vmem:[%s260 + $0x120] sm:$0xff]
      %v320 = vld [vmem:[%s260 + $0x128] sm:$0xff]
      %v321 = vld [vmem:[%s260 + $0x130] sm:$0xff]
      %v322 = vld [vmem:[%s260 + $0x138] sm:$0x3]
      %v323 = vld [vmem:[%s3] sm:$0xff]
      %vm364 = vcmask 1046528
      %v365 = vrot.slane %v283, 1
      %v366 = vrot.slane %v284, 1
      %v367 = vsel %vm364, %v365, %v366
      %v368 = vrot.slane %v285, 1
      %v369 = vsel %vm364, %v366, %v368
      %v370 = vrot.slane %v286, 1
      %v371 = vsel %vm364, %v368, %v370
      %v372 = vrot.slane %v287, 1
      %v373 = vsel %vm364, %v370, %v372
      %v374 = vrot.slane %v288, 1
      %v375 = vrot.slane %v289, 1
      %v376 = vsel %vm364, %v374, %v375
      %v377 = vrot.slane %v290, 1
      %v378 = vsel %vm364, %v375, %v377
      %v379 = vrot.slane %v291, 1
      %v380 = vsel %vm364, %v377, %v379
      %v381 = vrot.slane %v292, 1
      %v382 = vsel %vm364, %v379, %v381
      %v383 = vrot.slane %v293, 1
      %v384 = vrot.slane %v294, 1
      %v385 = vsel %vm364, %v383, %v384
      %v386 = vrot.slane %v295, 1
      %v387 = vsel %vm364, %v384, %v386
      %v388 = vrot.slane %v296, 1
      %v389 = vsel %vm364, %v386, %v388
      %v390 = vrot.slane %v297, 1
      %v391 = vsel %vm364, %v388, %v390
      %v392 = vrot.slane %v298, 1
      %v393 = vrot.slane %v299, 1
      %v394 = vsel %vm364, %v392, %v393
      %v395 = vrot.slane %v300, 1
      %v396 = vsel %vm364, %v393, %v395
      %v397 = vrot.slane %v301, 1
      %v398 = vsel %vm364, %v395, %v397
      %v399 = vrot.slane %v302, 1
      %v400 = vsel %vm364, %v397, %v399
      %v401 = vrot.slane %v303, 1
      %v402 = vrot.slane %v304, 1
      %v403 = vsel %vm364, %v401, %v402
      %v404 = vrot.slane %v305, 1
      %v405 = vsel %vm364, %v402, %v404
      %v406 = vrot.slane %v306, 1
      %v407 = vsel %vm364, %v404, %v406
      %v408 = vrot.slane %v307, 1
      %v409 = vsel %vm364, %v406, %v408
      %v410 = vrot.slane %v308, 1
      %v411 = vrot.slane %v309, 1
      %v412 = vsel %vm364, %v410, %v411
      %v413 = vrot.slane %v310, 1
      %v414 = vsel %vm364, %v411, %v413
      %v415 = vrot.slane %v311, 1
      %v416 = vsel %vm364, %v413, %v415
      %v417 = vrot.slane %v312, 1
      %v418 = vsel %vm364, %v415, %v417
      %v419 = vrot.slane %v313, 1
      %v420 = vrot.slane %v314, 1
      %v421 = vsel %vm364, %v419, %v420
      %v422 = vrot.slane %v315, 1
      %v423 = vsel %vm364, %v420, %v422
      %v424 = vrot.slane %v316, 1
      %v425 = vsel %vm364, %v422, %v424
      %v426 = vrot.slane %v317, 1
      %v427 = vsel %vm364, %v424, %v426
      %v428 = vrot.slane %v318, 1
      %v429 = vrot.slane %v319, 1
      %v430 = vsel %vm364, %v428, %v429
      %v431 = vrot.slane %v320, 1
      %v432 = vsel %vm364, %v429, %v431
      %v433 = vrot.slane %v321, 1
      %v434 = vsel %vm364, %v431, %v433
      %v435 = vrot.slane %v322, 1
      %v436 = vsel %vm364, %v433, %v435
      %s437 = scalar_lea.vmem %s3, 8
      %v438 = vld [vmem:[%s437] sm:$0xff]
      %vm439 = vcmask 64512
      %v440 = vsel %vm439, %v367, 0
      %v442 = vsel %vm439, %v369, 0
      %v444 = vsel %vm439, %v371, 0
      %v446 = vsel %vm439, %v373, 0
      %v448 = vsel %vm439, %v376, 0
      %v450 = vsel %vm439, %v378, 0
      %v452 = vsel %vm439, %v380, 0
      %v454 = vsel %vm439, %v382, 0
      %v456 = vsel %vm439, %v385, 0
      %v458 = vsel %vm439, %v387, 0
      %v460 = vsel %vm439, %v389, 0
      %v462 = vsel %vm439, %v391, 0
      %v464 = vsel %vm439, %v394, 0
      %v466 = vsel %vm439, %v396, 0
      %v468 = vsel %vm439, %v398, 0
      %v470 = vsel %vm439, %v400, 0
      %v472 = vsel %vm439, %v403, 0
      %v474 = vsel %vm439, %v405, 0
      %v476 = vsel %vm439, %v407, 0
      %v478 = vsel %vm439, %v409, 0
      %v480 = vsel %vm439, %v412, 0
      %v482 = vsel %vm439, %v414, 0
      %v484 = vsel %vm439, %v416, 0
      %v486 = vsel %vm439, %v418, 0
      %v488 = vsel %vm439, %v421, 0
      %v490 = vsel %vm439, %v423, 0
      %v492 = vsel %vm439, %v425, 0
      %v494 = vsel %vm439, %v427, 0
      %v496 = vsel %vm439, %v430, 0
      %v498 = vsel %vm439, %v432, 0
      %v500 = vsel %vm439, %v434, 0
      %v502 = vsel %vm439, %v436, 0
      %504 = vmatprep.subr.mxu0 0.0
      %505 = vmatpush1.msra.mxu0 %v438
      %506 = vmatprep.subr.mxu0 0.0
      %507 = vmatpush1.msra.mxu0 0.0
      %508 = vmatprep.subr.mxu0 0.0
      %509 = vmatpush1.msra.mxu0 0.0
      %510 = vmatprep.subr.mxu0 0.0
      %511 = vmatpush1.msra.mxu0 0.0
      %512 = vmatprep.subr.mxu0 0.0
      %513 = vmatpush1.msra.mxu0 0.0
      %514 = vmatprep.subr.mxu0 0.0
      %515 = vmatpush1.msra.mxu0 0.0
      %516 = vmatprep.subr.mxu0 0.0
      %517 = vmatpush1.msra.mxu0 0.0
      %518 = vmatprep.subr.mxu0 0.0
      %519 = vmatpush1.msra.mxu0 0.0
      %520 = vmatprep.subr.mxu0 0.0
      %521 = vmatpush1.msra.mxu0 0.0
      %522 = vmatprep.subr.mxu0 0.0
      %523 = vmatpush1.msra.mxu0 0.0
      %524 = vmatprep.subr.mxu0 0.0
      %525 = vmatpush1.msra.mxu0 0.0
      %526 = vmatprep.subr.mxu0 0.0
      %527 = vmatpush1.msra.mxu0 0.0
      %528 = vmatprep.subr.mxu0 0.0
      %529 = vmatpush1.msra.mxu0 0.0
      %530 = vmatprep.subr.mxu0 0.0
      %531 = vmatpush1.msra.mxu0 0.0
      %532 = vmatprep.subr.mxu0 0.0
      %533 = vmatpush1.msra.mxu0 0.0
      %534 = vmatprep.subr.mxu0 0.0
      %535 = vmatpush1.msra.mxu0 0.0
      %536 = vmatprep.subr.mxu0 0.0
      %537 = vmatpush1.msra.mxu0 0.0
      %538 = vmatprep.subr.mxu0 0.0
      %539 = vmatpush1.msra.mxu0 0.0
      %540 = vmatprep.subr.mxu0 0.0
      %541 = vmatpush1.msra.mxu0 0.0
      %542 = vmatprep.subr.mxu0 0.0
      %543 = vmatpush1.msra.mxu0 0.0
      %544 = vmatprep.subr.mxu0 0.0
      %545 = vmatpush1.msra.mxu0 0.0
      %546 = vmatprep.subr.mxu0 0.0
      %547 = vmatpush1.msra.mxu0 0.0
      %548 = vmatprep.subr.mxu0 0.0
      %549 = vmatpush1.msra.mxu0 0.0
      %550 = vmatprep.subr.mxu0 0.0
      %551 = vmatpush1.msra.mxu0 0.0
      %552 = vmatprep.subr.mxu0 0.0
      %553 = vmatpush1.msra.mxu0 0.0
      %554 = vmatprep.subr.mxu0 0.0
      %555 = vmatpush1.msra.mxu0 0.0
      %556 = vmatprep.subr.mxu0 0.0
      %557 = vmatpush1.msra.mxu0 0.0
      %558 = vmatprep.subr.mxu0 0.0
      %559 = vmatpush1.msra.mxu0 0.0
      %560 = vmatprep.subr.mxu0 0.0
      %561 = vmatpush1.msra.mxu0 0.0
      %562 = vmatprep.subr.mxu0 0.0
      %563 = vmatpush1.msra.mxu0 0.0
      %564 = vmatprep.subr.mxu0 0.0
      %565 = vmatpush1.msra.mxu0 0.0
      %566 = vmatprep.subr.mxu0 0.0
      %567 = vmatpush1.msra.mxu0 0.0
      %568 = vmatprep.mubr.f32.mxu0 0.0
      %569 = vmatmul.mubr.f32.gmra.mrb[0].mxu0 %v440
      %v570 = vpop.f32.mrb[0].mxu0
      %v571 = vadd.f32 0.0, %v570
      %v572 = vpop.f32.mrb[0].mxu0
      %573 = vmatprep.mubr.f32.mxu0 0.0
      %574 = vmatmul.mubr.f32.gmra.mrb[0].mxu0 %v442
      %v575 = vpop.f32.mrb[0].mxu0
      %v576 = vadd.f32 0.0, %v575
      %v577 = vpop.f32.mrb[0].mxu0
      %578 = vmatprep.mubr.f32.mxu0 0.0
      %579 = vmatmul.mubr.f32.gmra.mrb[0].mxu0 %v444
      %v580 = vpop.f32.mrb[0].mxu0
      %v581 = vadd.f32 0.0, %v580
      %v582 = vpop.f32.mrb[0].mxu0
      %583 = vmatprep.mubr.f32.mxu0 0.0
      %584 = vmatmul.mubr.f32.gmra.mrb[0].mxu0 %v446
      %v585 = vpop.f32.mrb[0].mxu0
      %v586 = vadd.f32 0.0, %v585
      %v587 = vpop.f32.mrb[0].mxu0
      %588 = vmatprep.mubr.f32.mxu0 0.0
      %589 = vmatmul.mubr.f32.gmra.mrb[0].mxu0 %v448
      %v590 = vpop.f32.mrb[0].mxu0
      %v591 = vadd.f32 0.0, %v590
      %v592 = vpop.f32.mrb[0].mxu0
      %593 = vmatprep.mubr.f32.mxu0 0.0
      %594 = vmatmul.mubr.f32.gmra.mrb[0].mxu0 %v450
      %v595 = vpop.f32.mrb[0].mxu0
      %v596 = vadd.f32 0.0, %v595
      %v597 = vpop.f32.mrb[0].mxu0
      %598 = vmatprep.mubr.f32.mxu0 0.0
      %599 = vmatmul.mubr.f32.gmra.mrb[0].mxu0 %v452
      %v600 = vpop.f32.mrb[0].mxu0
      %v601 = vadd.f32 0.0, %v600
      %v602 = vpop.f32.mrb[0].mxu0
      %603 = vmatprep.mubr.f32.mxu0 0.0
      %604 = vmatmul.mubr.f32.gmra.mrb[0].mxu0 %v454
      %v605 = vpop.f32.mrb[0].mxu0
      %v606 = vadd.f32 0.0, %v605
      %v607 = vpop.f32.mrb[0].mxu0
      %608 = vmatprep.mubr.f32.mxu0 0.0
      %609 = vmatmul.mubr.f32.gmra.mrb[0].mxu0 %v456
      %v610 = vpop.f32.mrb[0].mxu0
      %v611 = vadd.f32 0.0, %v610
      %v612 = vpop.f32.mrb[0].mxu0
      %613 = vmatprep.mubr.f32.mxu0 0.0
      %614 = vmatmul.mubr.f32.gmra.mrb[0].mxu0 %v458
      %v615 = vpop.f32.mrb[0].mxu0
      %v616 = vadd.f32 0.0, %v615
      %v617 = vpop.f32.mrb[0].mxu0
      %618 = vmatprep.mubr.f32.mxu0 0.0
      %619 = vmatmul.mubr.f32.gmra.mrb[0].mxu0 %v460
      %v620 = vpop.f32.mrb[0].mxu0
      %v621 = vadd.f32 0.0, %v620
      %v622 = vpop.f32.mrb[0].mxu0
      %623 = vmatprep.mubr.f32.mxu0 0.0
      %624 = vmatmul.mubr.f32.gmra.mrb[0].mxu0 %v462
      %v625 = vpop.f32.mrb[0].mxu0
      %v626 = vadd.f32 0.0, %v625
      %v627 = vpop.f32.mrb[0].mxu0
      %628 = vmatprep.mubr.f32.mxu0 0.0
      %629 = vmatmul.mubr.f32.gmra.mrb[0].mxu0 %v464
      %v630 = vpop.f32.mrb[0].mxu0
      %v631 = vadd.f32 0.0, %v630
      %v632 = vpop.f32.mrb[0].mxu0
      %633 = vmatprep.mubr.f32.mxu0 0.0
      %634 = vmatmul.mubr.f32.gmra.mrb[0].mxu0 %v466
      %v635 = vpop.f32.mrb[0].mxu0
      %v636 = vadd.f32 0.0, %v635
      %v637 = vpop.f32.mrb[0].mxu0
      %638 = vmatprep.mubr.f32.mxu0 0.0
      %639 = vmatmul.mubr.f32.gmra.mrb[0].mxu0 %v468
      %v640 = vpop.f32.mrb[0].mxu0
      %v641 = vadd.f32 0.0, %v640
      %v642 = vpop.f32.mrb[0].mxu0
      %643 = vmatprep.mubr.f32.mxu0 0.0
      %644 = vmatmul.mubr.f32.gmra.mrb[0].mxu0 %v470
      %v645 = vpop.f32.mrb[0].mxu0
      %v646 = vadd.f32 0.0, %v645
      %v647 = vpop.f32.mrb[0].mxu0
      %648 = vmatprep.mubr.f32.mxu0 0.0
      %649 = vmatmul.mubr.f32.gmra.mrb[0].mxu0 %v472
      %v650 = vpop.f32.mrb[0].mxu0
      %v651 = vadd.f32 0.0, %v650
      %v652 = vpop.f32.mrb[0].mxu0
      %653 = vmatprep.mubr.f32.mxu0 0.0
      %654 = vmatmul.mubr.f32.gmra.mrb[0].mxu0 %v474
      %v655 = vpop.f32.mrb[0].mxu0
      %v656 = vadd.f32 0.0, %v655
      %v657 = vpop.f32.mrb[0].mxu0
      %658 = vmatprep.mubr.f32.mxu0 0.0
      %659 = vmatmul.mubr.f32.gmra.mrb[0].mxu0 %v476
      %v660 = vpop.f32.mrb[0].mxu0
      %v661 = vadd.f32 0.0, %v660
      %v662 = vpop.f32.mrb[0].mxu0
      %663 = vmatprep.mubr.f32.mxu0 0.0
      %664 = vmatmul.mubr.f32.gmra.mrb[0].mxu0 %v478
      %v665 = vpop.f32.mrb[0].mxu0
      %v666 = vadd.f32 0.0, %v665
      %v667 = vpop.f32.mrb[0].mxu0
      %668 = vmatprep.mubr.f32.mxu0 0.0
      %669 = vmatmul.mubr.f32.gmra.mrb[0].mxu0 %v480
      %v670 = vpop.f32.mrb[0].mxu0
      %v671 = vadd.f32 0.0, %v670
      %v672 = vpop.f32.mrb[0].mxu0
      %673 = vmatprep.mubr.f32.mxu0 0.0
      %674 = vmatmul.mubr.f32.gmra.mrb[0].mxu0 %v482
      %v675 = vpop.f32.mrb[0].mxu0
      %v676 = vadd.f32 0.0, %v675
      %v677 = vpop.f32.mrb[0].mxu0
      %678 = vmatprep.mubr.f32.mxu0 0.0
      %679 = vmatmul.mubr.f32.gmra.mrb[0].mxu0 %v484
      %v680 = vpop.f32.mrb[0].mxu0
      %v681 = vadd.f32 0.0, %v680
      %v682 = vpop.f32.mrb[0].mxu0
      %683 = vmatprep.mubr.f32.mxu0 0.0
      %684 = vmatmul.mubr.f32.gmra.mrb[0].mxu0 %v486
      %v685 = vpop.f32.mrb[0].mxu0
      %v686 = vadd.f32 0.0, %v685
      %v687 = vpop.f32.mrb[0].mxu0
      %688 = vmatprep.mubr.f32.mxu0 0.0
      %689 = vmatmul.mubr.f32.gmra.mrb[0].mxu0 %v488
      %v690 = vpop.f32.mrb[0].mxu0
      %v691 = vadd.f32 0.0, %v690
      %v692 = vpop.f32.mrb[0].mxu0
      %693 = vmatprep.mubr.f32.mxu0 0.0
      %694 = vmatmul.mubr.f32.gmra.mrb[0].mxu0 %v490
      %v695 = vpop.f32.mrb[0].mxu0
      %v696 = vadd.f32 0.0, %v695
      %v697 = vpop.f32.mrb[0].mxu0
      %698 = vmatprep.mubr.f32.mxu0 0.0
      %699 = vmatmul.mubr.f32.gmra.mrb[0].mxu0 %v492
      %v700 = vpop.f32.mrb[0].mxu0
      %v701 = vadd.f32 0.0, %v700
      %v702 = vpop.f32.mrb[0].mxu0
      %703 = vmatprep.mubr.f32.mxu0 0.0
      %704 = vmatmul.mubr.f32.gmra.mrb[0].mxu0 %v494
      %v705 = vpop.f32.mrb[0].mxu0
      %v706 = vadd.f32 0.0, %v705
      %v707 = vpop.f32.mrb[0].mxu0
      %708 = vmatprep.mubr.f32.mxu0 0.0
      %709 = vmatmul.mubr.f32.gmra.mrb[0].mxu0 %v496
      %v710 = vpop.f32.mrb[0].mxu0
      %v711 = vadd.f32 0.0, %v710
      %v712 = vpop.f32.mrb[0].mxu0
      %713 = vmatprep.mubr.f32.mxu0 0.0
      %714 = vmatmul.mubr.f32.gmra.mrb[0].mxu0 %v498
      %v715 = vpop.f32.mrb[0].mxu0
      %v716 = vadd.f32 0.0, %v715
      %v717 = vpop.f32.mrb[0].mxu0
      %718 = vmatprep.mubr.f32.mxu0 0.0
      %719 = vmatmul.mubr.f32.gmra.mrb[0].mxu0 %v500
      %v720 = vpop.f32.mrb[0].mxu0
      %v721 = vadd.f32 0.0, %v720
      %v722 = vpop.f32.mrb[0].mxu0
      %723 = vmatprep.mubr.f32.mxu0 0.0
      %724 = vmatmul.mubr.f32.gmra.mrb[0].mxu0 %v502
      %v725 = vpop.f32.mrb[0].mxu0
      %v726 = vadd.f32 0.0, %v725
      %v727 = vpop.f32.mrb[0].mxu0
      %728 = vdwg.mxu0
      %v729 = vsel %vm439, %v283, 0
      %v731 = vsel %vm439, %v284, 0
      %v733 = vsel %vm439, %v285, 0
      %v735 = vsel %vm439, %v286, 0
      %v737 = vsel %vm439, %v288, 0
      %v739 = vsel %vm439, %v289, 0
      %v741 = vsel %vm439, %v290, 0
      %v743 = vsel %vm439, %v291, 0
      %v745 = vsel %vm439, %v293, 0
      %v747 = vsel %vm439, %v294, 0
      %v749 = vsel %vm439, %v295, 0
      %v751 = vsel %vm439, %v296, 0
      %v753 = vsel %vm439, %v298, 0
      %v755 = vsel %vm439, %v299, 0
      %v757 = vsel %vm439, %v300, 0
      %v759 = vsel %vm439, %v301, 0
      %v761 = vsel %vm439, %v303, 0
      %v763 = vsel %vm439, %v304, 0
      %v765 = vsel %vm439, %v305, 0
      %v767 = vsel %vm439, %v306, 0
      %v769 = vsel %vm439, %v308, 0
      %v771 = vsel %vm439, %v309, 0
      %v773 = vsel %vm439, %v310, 0
      %v775 = vsel %vm439, %v311, 0
      %v777 = vsel %vm439, %v313, 0
      %v779 = vsel %vm439, %v314, 0
      %v781 = vsel %vm439, %v315, 0
      %v783 = vsel %vm439, %v316, 0
      %v785 = vsel %vm439, %v318, 0
      %v787 = vsel %vm439, %v319, 0
      %v789 = vsel %vm439, %v320, 0
      %v791 = vsel %vm439, %v321, 0
      %793 = vmatprep.subr.mxu0 0.0
      %794 = vmatpush1.msra.mxu0 %v323
      %795 = vmatprep.subr.mxu0 0.0
      %796 = vmatpush1.msra.mxu0 0.0
      %797 = vmatprep.subr.mxu0 0.0
      %798 = vmatpush1.msra.mxu0 0.0
      %799 = vmatprep.subr.mxu0 0.0
      %800 = vmatpush1.msra.mxu0 0.0
      %801 = vmatprep.subr.mxu0 0.0
      %802 = vmatpush1.msra.mxu0 0.0
      %803 = vmatprep.subr.mxu0 0.0
      %804 = vmatpush1.msra.mxu0 0.0
      %805 = vmatprep.subr.mxu0 0.0
      %806 = vmatpush1.msra.mxu0 0.0
      %807 = vmatprep.subr.mxu0 0.0
      %808 = vmatpush1.msra.mxu0 0.0
      %809 = vmatprep.subr.mxu0 0.0
      %810 = vmatpush1.msra.mxu0 0.0
      %811 = vmatprep.subr.mxu0 0.0
      %812 = vmatpush1.msra.mxu0 0.0
      %813 = vmatprep.subr.mxu0 0.0
      %814 = vmatpush1.msra.mxu0 0.0
      %815 = vmatprep.subr.mxu0 0.0
      %816 = vmatpush1.msra.mxu0 0.0
      %817 = vmatprep.subr.mxu0 0.0
      %818 = vmatpush1.msra.mxu0 0.0
      %819 = vmatprep.subr.mxu0 0.0
      %820 = vmatpush1.msra.mxu0 0.0
      %821 = vmatprep.subr.mxu0 0.0
      %822 = vmatpush1.msra.mxu0 0.0
      %823 = vmatprep.subr.mxu0 0.0
      %824 = vmatpush1.msra.mxu0 0.0
      %825 = vmatprep.subr.mxu0 0.0
      %826 = vmatpush1.msra.mxu0 0.0
      %827 = vmatprep.subr.mxu0 0.0
      %828 = vmatpush1.msra.mxu0 0.0
      %829 = vmatprep.subr.mxu0 0.0
      %830 = vmatpush1.msra.mxu0 0.0
      %831 = vmatprep.subr.mxu0 0.0
      %832 = vmatpush1.msra.mxu0 0.0
      %833 = vmatprep.subr.mxu0 0.0
      %834 = vmatpush1.msra.mxu0 0.0
      %835 = vmatprep.subr.mxu0 0.0
      %836 = vmatpush1.msra.mxu0 0.0
      %837 = vmatprep.subr.mxu0 0.0
      %838 = vmatpush1.msra.mxu0 0.0
      %839 = vmatprep.subr.mxu0 0.0
      %840 = vmatpush1.msra.mxu0 0.0
      %841 = vmatprep.subr.mxu0 0.0
      %842 = vmatpush1.msra.mxu0 0.0
      %843 = vmatprep.subr.mxu0 0.0
      %844 = vmatpush1.msra.mxu0 0.0
      %845 = vmatprep.subr.mxu0 0.0
      %846 = vmatpush1.msra.mxu0 0.0
      %847 = vmatprep.subr.mxu0 0.0
      %848 = vmatpush1.msra.mxu0 0.0
      %849 = vmatprep.subr.mxu0 0.0
      %850 = vmatpush1.msra.mxu0 0.0
      %851 = vmatprep.subr.mxu0 0.0
      %852 = vmatpush1.msra.mxu0 0.0
      %853 = vmatprep.subr.mxu0 0.0
      %854 = vmatpush1.msra.mxu0 0.0
      %855 = vmatprep.subr.mxu0 0.0
      %856 = vmatpush1.msra.mxu0 0.0
      %857 = vmatprep.mubr.f32.mxu0 0.0
      %858 = vmatmul.mubr.f32.gmra.mrb[0].mxu0 %v729
      %v859 = vpop.f32.mrb[0].mxu0
      %v860 = vadd.f32 %v571, %v859
      %v861 = vpop.f32.mrb[0].mxu0
      %862 = vmatprep.mubr.f32.mxu0 0.0
      %863 = vmatmul.mubr.f32.gmra.mrb[0].mxu0 %v731
      %v864 = vpop.f32.mrb[0].mxu0
      %v865 = vadd.f32 %v576, %v864
      %v866 = vpop.f32.mrb[0].mxu0
      %867 = vmatprep.mubr.f32.mxu0 0.0
      %868 = vmatmul.mubr.f32.gmra.mrb[0].mxu0 %v733
      %v869 = vpop.f32.mrb[0].mxu0
      %v870 = vadd.f32 %v581, %v869
      %v871 = vpop.f32.mrb[0].mxu0
      %872 = vmatprep.mubr.f32.mxu0 0.0
      %873 = vmatmul.mubr.f32.gmra.mrb[0].mxu0 %v735
      %v874 = vpop.f32.mrb[0].mxu0
      %v875 = vadd.f32 %v586, %v874
      %v876 = vpop.f32.mrb[0].mxu0
      %877 = vmatprep.mubr.f32.mxu0 0.0
      %878 = vmatmul.mubr.f32.gmra.mrb[0].mxu0 %v737
      %v879 = vpop.f32.mrb[0].mxu0
      %v880 = vadd.f32 %v591, %v879
      %v881 = vpop.f32.mrb[0].mxu0
      %882 = vmatprep.mubr.f32.mxu0 0.0
      %883 = vmatmul.mubr.f32.gmra.mrb[0].mxu0 %v739
      %v884 = vpop.f32.mrb[0].mxu0
      %v885 = vadd.f32 %v596, %v884
      %v886 = vpop.f32.mrb[0].mxu0
      %887 = vmatprep.mubr.f32.mxu0 0.0
      %888 = vmatmul.mubr.f32.gmra.mrb[0].mxu0 %v741
      %v889 = vpop.f32.mrb[0].mxu0
      %v890 = vadd.f32 %v601, %v889
      %v891 = vpop.f32.mrb[0].mxu0
      %892 = vmatprep.mubr.f32.mxu0 0.0
      %893 = vmatmul.mubr.f32.gmra.mrb[0].mxu0 %v743
      %v894 = vpop.f32.mrb[0].mxu0
      %v895 = vadd.f32 %v606, %v894
      %v896 = vpop.f32.mrb[0].mxu0
      %897 = vmatprep.mubr.f32.mxu0 0.0
      %898 = vmatmul.mubr.f32.gmra.mrb[0].mxu0 %v745
      %v899 = vpop.f32.mrb[0].mxu0
      %v900 = vadd.f32 %v611, %v899
      %v901 = vpop.f32.mrb[0].mxu0
      %902 = vmatprep.mubr.f32.mxu0 0.0
      %903 = vmatmul.mubr.f32.gmra.mrb[0].mxu0 %v747
      %v904 = vpop.f32.mrb[0].mxu0
      %v905 = vadd.f32 %v616, %v904
      %v906 = vpop.f32.mrb[0].mxu0
      %907 = vmatprep.mubr.f32.mxu0 0.0
      %908 = vmatmul.mubr.f32.gmra.mrb[0].mxu0 %v749
      %v909 = vpop.f32.mrb[0].mxu0
      %v910 = vadd.f32 %v621, %v909
      %v911 = vpop.f32.mrb[0].mxu0
      %912 = vmatprep.mubr.f32.mxu0 0.0
      %913 = vmatmul.mubr.f32.gmra.mrb[0].mxu0 %v751
      %v914 = vpop.f32.mrb[0].mxu0
      %v915 = vadd.f32 %v626, %v914
      %v916 = vpop.f32.mrb[0].mxu0
      %917 = vmatprep.mubr.f32.mxu0 0.0
      %918 = vmatmul.mubr.f32.gmra.mrb[0].mxu0 %v753
      %v919 = vpop.f32.mrb[0].mxu0
      %v920 = vadd.f32 %v631, %v919
      %v921 = vpop.f32.mrb[0].mxu0
      %922 = vmatprep.mubr.f32.mxu0 0.0
      %923 = vmatmul.mubr.f32.gmra.mrb[0].mxu0 %v755
      %v924 = vpop.f32.mrb[0].mxu0
      %v925 = vadd.f32 %v636, %v924
      %v926 = vpop.f32.mrb[0].mxu0
      %927 = vmatprep.mubr.f32.mxu0 0.0
      %928 = vmatmul.mubr.f32.gmra.mrb[0].mxu0 %v757
      %v929 = vpop.f32.mrb[0].mxu0
      %v930 = vadd.f32 %v641, %v929
      %v931 = vpop.f32.mrb[0].mxu0
      %932 = vmatprep.mubr.f32.mxu0 0.0
      %933 = vmatmul.mubr.f32.gmra.mrb[0].mxu0 %v759
      %v934 = vpop.f32.mrb[0].mxu0
      %v935 = vadd.f32 %v646, %v934
      %v936 = vpop.f32.mrb[0].mxu0
      %937 = vmatprep.mubr.f32.mxu0 0.0
      %938 = vmatmul.mubr.f32.gmra.mrb[0].mxu0 %v761
      %v939 = vpop.f32.mrb[0].mxu0
      %v940 = vadd.f32 %v651, %v939
      %v941 = vpop.f32.mrb[0].mxu0
      %942 = vmatprep.mubr.f32.mxu0 0.0
      %943 = vmatmul.mubr.f32.gmra.mrb[0].mxu0 %v763
      %v944 = vpop.f32.mrb[0].mxu0
      %v945 = vadd.f32 %v656, %v944
      %v946 = vpop.f32.mrb[0].mxu0
      %947 = vmatprep.mubr.f32.mxu0 0.0
      %948 = vmatmul.mubr.f32.gmra.mrb[0].mxu0 %v765
      %v949 = vpop.f32.mrb[0].mxu0
      %v950 = vadd.f32 %v661, %v949
      %v951 = vpop.f32.mrb[0].mxu0
      %952 = vmatprep.mubr.f32.mxu0 0.0
      %953 = vmatmul.mubr.f32.gmra.mrb[0].mxu0 %v767
      %v954 = vpop.f32.mrb[0].mxu0
      %v955 = vadd.f32 %v666, %v954
      %v956 = vpop.f32.mrb[0].mxu0
      %957 = vmatprep.mubr.f32.mxu0 0.0
      %958 = vmatmul.mubr.f32.gmra.mrb[0].mxu0 %v769
      %v959 = vpop.f32.mrb[0].mxu0
      %v960 = vadd.f32 %v671, %v959
      %v961 = vpop.f32.mrb[0].mxu0
      %962 = vmatprep.mubr.f32.mxu0 0.0
      %963 = vmatmul.mubr.f32.gmra.mrb[0].mxu0 %v771
      %v964 = vpop.f32.mrb[0].mxu0
      %v965 = vadd.f32 %v676, %v964
      %v966 = vpop.f32.mrb[0].mxu0
      %967 = vmatprep.mubr.f32.mxu0 0.0
      %968 = vmatmul.mubr.f32.gmra.mrb[0].mxu0 %v773
      %v969 = vpop.f32.mrb[0].mxu0
      %v970 = vadd.f32 %v681, %v969
      %v971 = vpop.f32.mrb[0].mxu0
      %972 = vmatprep.mubr.f32.mxu0 0.0
      %973 = vmatmul.mubr.f32.gmra.mrb[0].mxu0 %v775
      %v974 = vpop.f32.mrb[0].mxu0
      %v975 = vadd.f32 %v686, %v974
      %v976 = vpop.f32.mrb[0].mxu0
      %977 = vmatprep.mubr.f32.mxu0 0.0
      %978 = vmatmul.mubr.f32.gmra.mrb[0].mxu0 %v777
      %v979 = vpop.f32.mrb[0].mxu0
      %v980 = vadd.f32 %v691, %v979
      %v981 = vpop.f32.mrb[0].mxu0
      %982 = vmatprep.mubr.f32.mxu0 0.0
      %983 = vmatmul.mubr.f32.gmra.mrb[0].mxu0 %v779
      %v984 = vpop.f32.mrb[0].mxu0
      %v985 = vadd.f32 %v696, %v984
      %v986 = vpop.f32.mrb[0].mxu0
      %987 = vmatprep.mubr.f32.mxu0 0.0
      %988 = vmatmul.mubr.f32.gmra.mrb[0].mxu0 %v781
      %v989 = vpop.f32.mrb[0].mxu0
      %v990 = vadd.f32 %v701, %v989
      %v991 = vpop.f32.mrb[0].mxu0
      %992 = vmatprep.mubr.f32.mxu0 0.0
      %993 = vmatmul.mubr.f32.gmra.mrb[0].mxu0 %v783
      %v994 = vpop.f32.mrb[0].mxu0
      %v995 = vadd.f32 %v706, %v994
      %v996 = vpop.f32.mrb[0].mxu0
      %997 = vmatprep.mubr.f32.mxu0 0.0
      %998 = vmatmul.mubr.f32.gmra.mrb[0].mxu0 %v785
      %v999 = vpop.f32.mrb[0].mxu0
      %v1000 = vadd.f32 %v711, %v999
      %v1001 = vpop.f32.mrb[0].mxu0
      %1002 = vmatprep.mubr.f32.mxu0 0.0
      %1003 = vmatmul.mubr.f32.gmra.mrb[0].mxu0 %v787
      %v1004 = vpop.f32.mrb[0].mxu0
      %v1005 = vadd.f32 %v716, %v1004
      %v1006 = vpop.f32.mrb[0].mxu0
      %1007 = vmatprep.mubr.f32.mxu0 0.0
      %1008 = vmatmul.mubr.f32.gmra.mrb[0].mxu0 %v789
      %v1009 = vpop.f32.mrb[0].mxu0
      %v1010 = vadd.f32 %v721, %v1009
      %v1011 = vpop.f32.mrb[0].mxu0
      %1012 = vmatprep.mubr.f32.mxu0 0.0
      %1013 = vmatmul.mubr.f32.gmra.mrb[0].mxu0 %v791
      %v1014 = vpop.f32.mrb[0].mxu0
      %v1015 = vadd.f32 %v726, %v1014
      %v1016 = vpop.f32.mrb[0].mxu0
      %1017 = vdwg.mxu0
      %vm1018 = vcmask 1045504
      %v1019 = vrot.slane %v283, 2
      %v1020 = vrot.slane %v284, 2
      %v1021 = vsel %vm1018, %v1019, %v1020
      %v1022 = vrot.slane %v285, 2
      %v1023 = vsel %vm1018, %v1020, %v1022
      %v1024 = vrot.slane %v286, 2
      %v1025 = vsel %vm1018, %v1022, %v1024
      %v1026 = vrot.slane %v287, 2
      %v1027 = vsel %vm1018, %v1024, %v1026
      %v1028 = vrot.slane %v288, 2
      %v1029 = vrot.slane %v289, 2
      %v1030 = vsel %vm1018, %v1028, %v1029
      %v1031 = vrot.slane %v290, 2
      %v1032 = vsel %vm1018, %v1029, %v1031
      %v1033 = vrot.slane %v291, 2
      %v1034 = vsel %vm1018, %v1031, %v1033
      %v1035 = vrot.slane %v292, 2
      %v1036 = vsel %vm1018, %v1033, %v1035
      %v1037 = vrot.slane %v293, 2
      %v1038 = vrot.slane %v294, 2
      %v1039 = vsel %vm1018, %v1037, %v1038
      %v1040 = vrot.slane %v295, 2
      %v1041 = vsel %vm1018, %v1038, %v1040
      %v1042 = vrot.slane %v296, 2
      %v1043 = vsel %vm1018, %v1040, %v1042
      %v1044 = vrot.slane %v297, 2
      %v1045 = vsel %vm1018, %v1042, %v1044
      %v1046 = vrot.slane %v298, 2
      %v1047 = vrot.slane %v299, 2
      %v1048 = vsel %vm1018, %v1046, %v1047
      %v1049 = vrot.slane %v300, 2
      %v1050 = vsel %vm1018, %v1047, %v1049
      %v1051 = vrot.slane %v301, 2
      %v1052 = vsel %vm1018, %v1049, %v1051
      %v1053 = vrot.slane %v302, 2
      %v1054 = vsel %vm1018, %v1051, %v1053
      %v1055 = vrot.slane %v303, 2
      %v1056 = vrot.slane %v304, 2
      %v1057 = vsel %vm1018, %v1055, %v1056
      %v1058 = vrot.slane %v305, 2
      %v1059 = vsel %vm1018, %v1056, %v1058
      %v1060 = vrot.slane %v306, 2
      %v1061 = vsel %vm1018, %v1058, %v1060
      %v1062 = vrot.slane %v307, 2
      %v1063 = vsel %vm1018, %v1060, %v1062
      %v1064 = vrot.slane %v308, 2
      %v1065 = vrot.slane %v309, 2
      %v1066 = vsel %vm1018, %v1064, %v1065
      %v1067 = vrot.slane %v310, 2
      %v1068 = vsel %vm1018, %v1065, %v1067
      %v1069 = vrot.slane %v311, 2
      %v1070 = vsel %vm1018, %v1067, %v1069
      %v1071 = vrot.slane %v312, 2
      %v1072 = vsel %vm1018, %v1069, %v1071
      %v1073 = vrot.slane %v313, 2
      %v1074 = vrot.slane %v314, 2
      %v1075 = vsel %vm1018, %v1073, %v1074
      %v1076 = vrot.slane %v315, 2
      %v1077 = vsel %vm1018, %v1074, %v1076
      %v1078 = vrot.slane %v316, 2
      %v1079 = vsel %vm1018, %v1076, %v1078
      %v1080 = vrot.slane %v317, 2
      %v1081 = vsel %vm1018, %v1078, %v1080
      %v1082 = vrot.slane %v318, 2
      %v1083 = vrot.slane %v319, 2
      %v1084 = vsel %vm1018, %v1082, %v1083
      %v1085 = vrot.slane %v320, 2
      %v1086 = vsel %vm1018, %v1083, %v1085
      %v1087 = vrot.slane %v321, 2
      %v1088 = vsel %vm1018, %v1085, %v1087
      %v1089 = vrot.slane %v322, 2
      %v1090 = vsel %vm1018, %v1087, %v1089
      %s1091 = scalar_lea.vmem %s3, 16
      %v1092 = vld [vmem:[%s1091] sm:$0xff]
      %v1093 = vsel %vm439, %v1021, 0
      %v1095 = vsel %vm439, %v1023, 0
      %v1097 = vsel %vm439, %v1025, 0
      %v1099 = vsel %vm439, %v1027, 0
      %v1101 = vsel %vm439, %v1030, 0
      %v1103 = vsel %vm439, %v1032, 0
      %v1105 = vsel %vm439, %v1034, 0
      %v1107 = vsel %vm439, %v1036, 0
      %v1109 = vsel %vm439, %v1039, 0
      %v1111 = vsel %vm439, %v1041, 0
      %v1113 = vsel %vm439, %v1043, 0
      %v1115 = vsel %vm439, %v1045, 0
      %v1117 = vsel %vm439, %v1048, 0
      %v1119 = vsel %vm439, %v1050, 0
      %v1121 = vsel %vm439, %v1052, 0
      %v1123 = vsel %vm439, %v1054, 0
      %v1125 = vsel %vm439, %v1057, 0
      %v1127 = vsel %vm439, %v1059, 0
      %v1129 = vsel %vm439, %v1061, 0
      %v1131 = vsel %vm439, %v1063, 0
      %v1133 = vsel %vm439, %v1066, 0
      %v1135 = vsel %vm439, %v1068, 0
      %v1137 = vsel %vm439, %v1070, 0
      %v1139 = vsel %vm439, %v1072, 0
      %v1141 = vsel %vm439, %v1075, 0
      %v1143 = vsel %vm439, %v1077, 0
      %v1145 = vsel %vm439, %v1079, 0
      %v1147 = vsel %vm439, %v1081, 0
      %v1149 = vsel %vm439, %v1084, 0
      %v1151 = vsel %vm439, %v1086, 0
      %v1153 = vsel %vm439, %v1088, 0
      %v1155 = vsel %vm439, %v1090, 0
      %1157 = vmatprep.subr.mxu0 0.0
      %1158 = vmatpush1.msra.mxu0 %v1092
      %1159 = vmatprep.subr.mxu0 0.0
      %1160 = vmatpush1.msra.mxu0 0.0
      %1161 = vmatprep.subr.mxu0 0.0
      %1162 = vmatpush1.msra.mxu0 0.0
      %1163 = vmatprep.subr.mxu0 0.0
      %1164 = vmatpush1.msra.mxu0 0.0
      %1165 = vmatprep.subr.mxu0 0.0
      %1166 = vmatpush1.msra.mxu0 0.0
      %1167 = vmatprep.subr.mxu0 0.0
      %1168 = vmatpush1.msra.mxu0 0.0
      %1169 = vmatprep.subr.mxu0 0.0
      %1170 = vmatpush1.msra.mxu0 0.0
      %1171 = vmatprep.subr.mxu0 0.0
      %1172 = vmatpush1.msra.mxu0 0.0
      %1173 = vmatprep.subr.mxu0 0.0
      %1174 = vmatpush1.msra.mxu0 0.0
      %1175 = vmatprep.subr.mxu0 0.0
      %1176 = vmatpush1.msra.mxu0 0.0
      %1177 = vmatprep.subr.mxu0 0.0
      %1178 = vmatpush1.msra.mxu0 0.0
      %1179 = vmatprep.subr.mxu0 0.0
      %1180 = vmatpush1.msra.mxu0 0.0
      %1181 = vmatprep.subr.mxu0 0.0
      %1182 = vmatpush1.msra.mxu0 0.0
      %1183 = vmatprep.subr.mxu0 0.0
      %1184 = vmatpush1.msra.mxu0 0.0
      %1185 = vmatprep.subr.mxu0 0.0
      %1186 = vmatpush1.msra.mxu0 0.0
      %1187 = vmatprep.subr.mxu0 0.0
      %1188 = vmatpush1.msra.mxu0 0.0
      %1189 = vmatprep.subr.mxu0 0.0
      %1190 = vmatpush1.msra.mxu0 0.0
      %1191 = vmatprep.subr.mxu0 0.0
      %1192 = vmatpush1.msra.mxu0 0.0
      %1193 = vmatprep.subr.mxu0 0.0
      %1194 = vmatpush1.msra.mxu0 0.0
      %1195 = vmatprep.subr.mxu0 0.0
      %1196 = vmatpush1.msra.mxu0 0.0
      %1197 = vmatprep.subr.mxu0 0.0
      %1198 = vmatpush1.msra.mxu0 0.0
      %1199 = vmatprep.subr.mxu0 0.0
      %1200 = vmatpush1.msra.mxu0 0.0
      %1201 = vmatprep.subr.mxu0 0.0
      %1202 = vmatpush1.msra.mxu0 0.0
      %1203 = vmatprep.subr.mxu0 0.0
      %1204 = vmatpush1.msra.mxu0 0.0
      %1205 = vmatprep.subr.mxu0 0.0
      %1206 = vmatpush1.msra.mxu0 0.0
      %1207 = vmatprep.subr.mxu0 0.0
      %1208 = vmatpush1.msra.mxu0 0.0
      %1209 = vmatprep.subr.mxu0 0.0
      %1210 = vmatpush1.msra.mxu0 0.0
      %1211 = vmatprep.subr.mxu0 0.0
      %1212 = vmatpush1.msra.mxu0 0.0
      %1213 = vmatprep.subr.mxu0 0.0
      %1214 = vmatpush1.msra.mxu0 0.0
      %1215 = vmatprep.subr.mxu0 0.0
      %1216 = vmatpush1.msra.mxu0 0.0
      %1217 = vmatprep.subr.mxu0 0.0
      %1218 = vmatpush1.msra.mxu0 0.0
      %1219 = vmatprep.subr.mxu0 0.0
      %1220 = vmatpush1.msra.mxu0 0.0
      %1221 = vmatprep.mubr.f32.mxu0 0.0
      %1222 = vmatmul.mubr.f32.gmra.mrb[0].mxu0 %v1093
      %v1223 = vpop.f32.mrb[0].mxu0
      %v1224 = vadd.f32 0.0, %v1223
      %v1225 = vpop.f32.mrb[0].mxu0
      %1226 = vmatprep.mubr.f32.mxu0 0.0
      %1227 = vmatmul.mubr.f32.gmra.mrb[0].mxu0 %v1095
      %v1228 = vpop.f32.mrb[0].mxu0
      %v1229 = vadd.f32 0.0, %v1228
      %v1230 = vpop.f32.mrb[0].mxu0
      %1231 = vmatprep.mubr.f32.mxu0 0.0
      %1232 = vmatmul.mubr.f32.gmra.mrb[0].mxu0 %v1097
      %v1233 = vpop.f32.mrb[0].mxu0
      %v1234 = vadd.f32 0.0, %v1233
      %v1235 = vpop.f32.mrb[0].mxu0
      %1236 = vmatprep.mubr.f32.mxu0 0.0
      %1237 = vmatmul.mubr.f32.gmra.mrb[0].mxu0 %v1099
      %v1238 = vpop.f32.mrb[0].mxu0
      %v1239 = vadd.f32 0.0, %v1238
      %v1240 = vpop.f32.mrb[0].mxu0
      %1241 = vmatprep.mubr.f32.mxu0 0.0
      %1242 = vmatmul.mubr.f32.gmra.mrb[0].mxu0 %v1101
      %v1243 = vpop.f32.mrb[0].mxu0
      %v1244 = vadd.f32 0.0, %v1243
      %v1245 = vpop.f32.mrb[0].mxu0
      %1246 = vmatprep.mubr.f32.mxu0 0.0
      %1247 = vmatmul.mubr.f32.gmra.mrb[0].mxu0 %v1103
      %v1248 = vpop.f32.mrb[0].mxu0
      %v1249 = vadd.f32 0.0, %v1248
      %v1250 = vpop.f32.mrb[0].mxu0
      %1251 = vmatprep.mubr.f32.mxu0 0.0
      %1252 = vmatmul.mubr.f32.gmra.mrb[0].mxu0 %v1105
      %v1253 = vpop.f32.mrb[0].mxu0
      %v1254 = vadd.f32 0.0, %v1253
      %v1255 = vpop.f32.mrb[0].mxu0
      %1256 = vmatprep.mubr.f32.mxu0 0.0
      %1257 = vmatmul.mubr.f32.gmra.mrb[0].mxu0 %v1107
      %v1258 = vpop.f32.mrb[0].mxu0
      %v1259 = vadd.f32 0.0, %v1258
      %v1260 = vpop.f32.mrb[0].mxu0
      %1261 = vmatprep.mubr.f32.mxu0 0.0
      %1262 = vmatmul.mubr.f32.gmra.mrb[0].mxu0 %v1109
      %v1263 = vpop.f32.mrb[0].mxu0
      %v1264 = vadd.f32 0.0, %v1263
      %v1265 = vpop.f32.mrb[0].mxu0
      %1266 = vmatprep.mubr.f32.mxu0 0.0
      %1267 = vmatmul.mubr.f32.gmra.mrb[0].mxu0 %v1111
      %v1268 = vpop.f32.mrb[0].mxu0
      %v1269 = vadd.f32 0.0, %v1268
      %v1270 = vpop.f32.mrb[0].mxu0
      %1271 = vmatprep.mubr.f32.mxu0 0.0
      %1272 = vmatmul.mubr.f32.gmra.mrb[0].mxu0 %v1113
      %v1273 = vpop.f32.mrb[0].mxu0
      %v1274 = vadd.f32 0.0, %v1273
      %v1275 = vpop.f32.mrb[0].mxu0
      %1276 = vmatprep.mubr.f32.mxu0 0.0
      %1277 = vmatmul.mubr.f32.gmra.mrb[0].mxu0 %v1115
      %v1278 = vpop.f32.mrb[0].mxu0
      %v1279 = vadd.f32 0.0, %v1278
      %v1280 = vpop.f32.mrb[0].mxu0
      %1281 = vmatprep.mubr.f32.mxu0 0.0
      %1282 = vmatmul.mubr.f32.gmra.mrb[0].mxu0 %v1117
      %v1283 = vpop.f32.mrb[0].mxu0
      %v1284 = vadd.f32 0.0, %v1283
      %v1285 = vpop.f32.mrb[0].mxu0
      %1286 = vmatprep.mubr.f32.mxu0 0.0
      %1287 = vmatmul.mubr.f32.gmra.mrb[0].mxu0 %v1119
      %v1288 = vpop.f32.mrb[0].mxu0
      %v1289 = vadd.f32 0.0, %v1288
      %v1290 = vpop.f32.mrb[0].mxu0
      %1291 = vmatprep.mubr.f32.mxu0 0.0
      %1292 = vmatmul.mubr.f32.gmra.mrb[0].mxu0 %v1121
      %v1293 = vpop.f32.mrb[0].mxu0
      %v1294 = vadd.f32 0.0, %v1293
      %v1295 = vpop.f32.mrb[0].mxu0
      %1296 = vmatprep.mubr.f32.mxu0 0.0
      %1297 = vmatmul.mubr.f32.gmra.mrb[0].mxu0 %v1123
      %v1298 = vpop.f32.mrb[0].mxu0
      %v1299 = vadd.f32 0.0, %v1298
      %v1300 = vpop.f32.mrb[0].mxu0
      %1301 = vmatprep.mubr.f32.mxu0 0.0
      %1302 = vmatmul.mubr.f32.gmra.mrb[0].mxu0 %v1125
      %v1303 = vpop.f32.mrb[0].mxu0
      %v1304 = vadd.f32 0.0, %v1303
      %v1305 = vpop.f32.mrb[0].mxu0
      %1306 = vmatprep.mubr.f32.mxu0 0.0
      %1307 = vmatmul.mubr.f32.gmra.mrb[0].mxu0 %v1127
      %v1308 = vpop.f32.mrb[0].mxu0
      %v1309 = vadd.f32 0.0, %v1308
      %v1310 = vpop.f32.mrb[0].mxu0
      %1311 = vmatprep.mubr.f32.mxu0 0.0
      %1312 = vmatmul.mubr.f32.gmra.mrb[0].mxu0 %v1129
      %v1313 = vpop.f32.mrb[0].mxu0
      %v1314 = vadd.f32 0.0, %v1313
      %v1315 = vpop.f32.mrb[0].mxu0
      %1316 = vmatprep.mubr.f32.mxu0 0.0
      %1317 = vmatmul.mubr.f32.gmra.mrb[0].mxu0 %v1131
      %v1318 = vpop.f32.mrb[0].mxu0
      %v1319 = vadd.f32 0.0, %v1318
      %v1320 = vpop.f32.mrb[0].mxu0
      %1321 = vmatprep.mubr.f32.mxu0 0.0
      %1322 = vmatmul.mubr.f32.gmra.mrb[0].mxu0 %v1133
      %v1323 = vpop.f32.mrb[0].mxu0
      %v1324 = vadd.f32 0.0, %v1323
      %v1325 = vpop.f32.mrb[0].mxu0
      %1326 = vmatprep.mubr.f32.mxu0 0.0
      %1327 = vmatmul.mubr.f32.gmra.mrb[0].mxu0 %v1135
      %v1328 = vpop.f32.mrb[0].mxu0
      %v1329 = vadd.f32 0.0, %v1328
      %v1330 = vpop.f32.mrb[0].mxu0
      %1331 = vmatprep.mubr.f32.mxu0 0.0
      %1332 = vmatmul.mubr.f32.gmra.mrb[0].mxu0 %v1137
      %v1333 = vpop.f32.mrb[0].mxu0
      %v1334 = vadd.f32 0.0, %v1333
      %v1335 = vpop.f32.mrb[0].mxu0
      %1336 = vmatprep.mubr.f32.mxu0 0.0
      %1337 = vmatmul.mubr.f32.gmra.mrb[0].mxu0 %v1139
      %v1338 = vpop.f32.mrb[0].mxu0
      %v1339 = vadd.f32 0.0, %v1338
      %v1340 = vpop.f32.mrb[0].mxu0
      %1341 = vmatprep.mubr.f32.mxu0 0.0
      %1342 = vmatmul.mubr.f32.gmra.mrb[0].mxu0 %v1141
      %v1343 = vpop.f32.mrb[0].mxu0
      %v1344 = vadd.f32 0.0, %v1343
      %v1345 = vpop.f32.mrb[0].mxu0
      %1346 = vmatprep.mubr.f32.mxu0 0.0
      %1347 = vmatmul.mubr.f32.gmra.mrb[0].mxu0 %v1143
      %v1348 = vpop.f32.mrb[0].mxu0
      %v1349 = vadd.f32 0.0, %v1348
      %v1350 = vpop.f32.mrb[0].mxu0
      %1351 = vmatprep.mubr.f32.mxu0 0.0
      %1352 = vmatmul.mubr.f32.gmra.mrb[0].mxu0 %v1145
      %v1353 = vpop.f32.mrb[0].mxu0
      %v1354 = vadd.f32 0.0, %v1353
      %v1355 = vpop.f32.mrb[0].mxu0
      %1356 = vmatprep.mubr.f32.mxu0 0.0
      %1357 = vmatmul.mubr.f32.gmra.mrb[0].mxu0 %v1147
      %v1358 = vpop.f32.mrb[0].mxu0
      %v1359 = vadd.f32 0.0, %v1358
      %v1360 = vpop.f32.mrb[0].mxu0
      %1361 = vmatprep.mubr.f32.mxu0 0.0
      %1362 = vmatmul.mubr.f32.gmra.mrb[0].mxu0 %v1149
      %v1363 = vpop.f32.mrb[0].mxu0
      %v1364 = vadd.f32 0.0, %v1363
      %v1365 = vpop.f32.mrb[0].mxu0
      %1366 = vmatprep.mubr.f32.mxu0 0.0
      %1367 = vmatmul.mubr.f32.gmra.mrb[0].mxu0 %v1151
      %v1368 = vpop.f32.mrb[0].mxu0
      %v1369 = vadd.f32 0.0, %v1368
      %v1370 = vpop.f32.mrb[0].mxu0
      %1371 = vmatprep.mubr.f32.mxu0 0.0
      %1372 = vmatmul.mubr.f32.gmra.mrb[0].mxu0 %v1153
      %v1373 = vpop.f32.mrb[0].mxu0
      %v1374 = vadd.f32 0.0, %v1373
      %v1375 = vpop.f32.mrb[0].mxu0
      %1376 = vmatprep.mubr.f32.mxu0 0.0
      %1377 = vmatmul.mubr.f32.gmra.mrb[0].mxu0 %v1155
      %v1378 = vpop.f32.mrb[0].mxu0
      %v1379 = vadd.f32 0.0, %v1378
      %v1380 = vpop.f32.mrb[0].mxu0
      %1381 = vdwg.mxu0
      %v1382 = vadd.f32 %v860, %v1224
      %v1383 = vadd.f32 %v865, %v1229
      %v1384 = vadd.f32 %v870, %v1234
      %v1385 = vadd.f32 %v875, %v1239
      %v1386 = vadd.f32 %v880, %v1244
      %v1387 = vadd.f32 %v885, %v1249
      %v1388 = vadd.f32 %v890, %v1254
      %v1389 = vadd.f32 %v895, %v1259
      %v1390 = vadd.f32 %v900, %v1264
      %v1391 = vadd.f32 %v905, %v1269
      %v1392 = vadd.f32 %v910, %v1274
      %v1393 = vadd.f32 %v915, %v1279
      %v1394 = vadd.f32 %v920, %v1284
      %v1395 = vadd.f32 %v925, %v1289
      %v1396 = vadd.f32 %v930, %v1294
      %v1397 = vadd.f32 %v935, %v1299
      %v1398 = vadd.f32 %v940, %v1304
      %v1399 = vadd.f32 %v945, %v1309
      %v1400 = vadd.f32 %v950, %v1314
      %v1401 = vadd.f32 %v955, %v1319
      %v1402 = vadd.f32 %v960, %v1324
      %v1403 = vadd.f32 %v965, %v1329
      %v1404 = vadd.f32 %v970, %v1334
      %v1405 = vadd.f32 %v975, %v1339
      %v1406 = vadd.f32 %v980, %v1344
      %v1407 = vadd.f32 %v985, %v1349
      %v1408 = vadd.f32 %v990, %v1354
      %v1409 = vadd.f32 %v995, %v1359
      %v1410 = vadd.f32 %v1000, %v1364
      %v1411 = vadd.f32 %v1005, %v1369
      %v1412 = vadd.f32 %v1010, %v1374
      %v1413 = vadd.f32 %v1015, %v1379
      %v1414 = vld [vmem:[%s267] sm:$0xff]
      %v1415 = vld [vmem:[%s267 + $0x8] sm:$0xff]
      %v1416 = vld [vmem:[%s267 + $0x10] sm:$0xff]
      %v1417 = vld [vmem:[%s267 + $0x18] sm:$0xff]
      %v1418 = vld [vmem:[%s267 + $0x20] sm:$0x3]
      %v1419 = vld [vmem:[%s267 + $0x28] sm:$0xff]
      %v1420 = vld [vmem:[%s267 + $0x30] sm:$0xff]
      %v1421 = vld [vmem:[%s267 + $0x38] sm:$0xff]
      %v1422 = vld [vmem:[%s267 + $0x40] sm:$0xff]
      %v1423 = vld [vmem:[%s267 + $0x48] sm:$0x3]
      %v1424 = vld [vmem:[%s267 + $0x50] sm:$0xff]
      %v1425 = vld [vmem:[%s267 + $0x58] sm:$0xff]
      %v1426 = vld [vmem:[%s267 + $0x60] sm:$0xff]
      %v1427 = vld [vmem:[%s267 + $0x68] sm:$0xff]
      %v1428 = vld [vmem:[%s267 + $0x70] sm:$0x3]
      %v1429 = vld [vmem:[%s267 + $0x78] sm:$0xff]
      %v1430 = vld [vmem:[%s267 + $0x80] sm:$0xff]
      %v1431 = vld [vmem:[%s267 + $0x88] sm:$0xff]
      %v1432 = vld [vmem:[%s267 + $0x90] sm:$0xff]
      %v1433 = vld [vmem:[%s267 + $0x98] sm:$0x3]
      %v1434 = vld [vmem:[%s267 + $0xa0] sm:$0xff]
      %v1435 = vld [vmem:[%s267 + $0xa8] sm:$0xff]
      %v1436 = vld [vmem:[%s267 + $0xb0] sm:$0xff]
      %v1437 = vld [vmem:[%s267 + $0xb8] sm:$0xff]
      %v1438 = vld [vmem:[%s267 + $0xc0] sm:$0x3]
      %v1439 = vld [vmem:[%s267 + $0xc8] sm:$0xff]
      %v1440 = vld [vmem:[%s267 + $0xd0] sm:$0xff]
      %v1441 = vld [vmem:[%s267 + $0xd8] sm:$0xff]
      %v1442 = vld [vmem:[%s267 + $0xe0] sm:$0xff]
      %v1443 = vld [vmem:[%s267 + $0xe8] sm:$0x3]
      %v1444 = vld [vmem:[%s267 + $0xf0] sm:$0xff]
      %v1445 = vld [vmem:[%s267 + $0xf8] sm:$0xff]
      %v1446 = vld [vmem:[%s267 + $0x100] sm:$0xff]
      %v1447 = vld [vmem:[%s267 + $0x108] sm:$0xff]
      %v1448 = vld [vmem:[%s267 + $0x110] sm:$0x3]
      %v1449 = vld [vmem:[%s267 + $0x118] sm:$0xff]
      %v1450 = vld [vmem:[%s267 + $0x120] sm:$0xff]
      %v1451 = vld [vmem:[%s267 + $0x128] sm:$0xff]
      %v1452 = vld [vmem:[%s267 + $0x130] sm:$0xff]
      %v1453 = vld [vmem:[%s267 + $0x138] sm:$0x3]
      %s1454 = scalar_lea.vmem %s3, 24
      %v1455 = vld [vmem:[%s1454] sm:$0xff]
      %v1457 = vsel %vm439, %v1414, 0
      %v1460 = vsel %vm439, %v1415, 0
      %v1463 = vsel %vm439, %v1416, 0
      %v1466 = vsel %vm439, %v1417, 0
      %v1469 = vsel %vm439, %v1419, 0
      %v1472 = vsel %vm439, %v1420, 0
      %v1475 = vsel %vm439, %v1421, 0
      %v1478 = vsel %vm439, %v1422, 0
      %v1481 = vsel %vm439, %v1424, 0
      %v1484 = vsel %vm439, %v1425, 0
      %v1487 = vsel %vm439, %v1426, 0
      %v1490 = vsel %vm439, %v1427, 0
      %v1493 = vsel %vm439, %v1429, 0
      %v1496 = vsel %vm439, %v1430, 0
      %v1499 = vsel %vm439, %v1431, 0
      %v1502 = vsel %vm439, %v1432, 0
      %v1505 = vsel %vm439, %v1434, 0
      %v1508 = vsel %vm439, %v1435, 0
      %v1511 = vsel %vm439, %v1436, 0
      %v1514 = vsel %vm439, %v1437, 0
      %v1517 = vsel %vm439, %v1439, 0
      %v1520 = vsel %vm439, %v1440, 0
      %v1523 = vsel %vm439, %v1441, 0
      %v1526 = vsel %vm439, %v1442, 0
      %v1529 = vsel %vm439, %v1444, 0
      %v1532 = vsel %vm439, %v1445, 0
      %v1535 = vsel %vm439, %v1446, 0
      %v1538 = vsel %vm439, %v1447, 0
      %v1541 = vsel %vm439, %v1449, 0
      %v1544 = vsel %vm439, %v1450, 0
      %v1547 = vsel %vm439, %v1451, 0
      %v1550 = vsel %vm439, %v1452, 0
      %1552 = vmatprep.subr.mxu0 0.0
      %1553 = vmatpush1.msra.mxu0 %v1455
      %1554 = vmatprep.subr.mxu0 0.0
      %1555 = vmatpush1.msra.mxu0 0.0
      %1556 = vmatprep.subr.mxu0 0.0
      %1557 = vmatpush1.msra.mxu0 0.0
      %1558 = vmatprep.subr.mxu0 0.0
      %1559 = vmatpush1.msra.mxu0 0.0
      %1560 = vmatprep.subr.mxu0 0.0
      %1561 = vmatpush1.msra.mxu0 0.0
      %1562 = vmatprep.subr.mxu0 0.0
      %1563 = vmatpush1.msra.mxu0 0.0
      %1564 = vmatprep.subr.mxu0 0.0
      %1565 = vmatpush1.msra.mxu0 0.0
      %1566 = vmatprep.subr.mxu0 0.0
      %1567 = vmatpush1.msra.mxu0 0.0
      %1568 = vmatprep.subr.mxu0 0.0
      %1569 = vmatpush1.msra.mxu0 0.0
      %1570 = vmatprep.subr.mxu0 0.0
      %1571 = vmatpush1.msra.mxu0 0.0
      %1572 = vmatprep.subr.mxu0 0.0
      %1573 = vmatpush1.msra.mxu0 0.0
      %1574 = vmatprep.subr.mxu0 0.0
      %1575 = vmatpush1.msra.mxu0 0.0
      %1576 = vmatprep.subr.mxu0 0.0
      %1577 = vmatpush1.msra.mxu0 0.0
      %1578 = vmatprep.subr.mxu0 0.0
      %1579 = vmatpush1.msra.mxu0 0.0
      %1580 = vmatprep.subr.mxu0 0.0
      %1581 = vmatpush1.msra.mxu0 0.0
      %1582 = vmatprep.subr.mxu0 0.0
      %1583 = vmatpush1.msra.mxu0 0.0
      %1584 = vmatprep.subr.mxu0 0.0
      %1585 = vmatpush1.msra.mxu0 0.0
      %1586 = vmatprep.subr.mxu0 0.0
      %1587 = vmatpush1.msra.mxu0 0.0
      %1588 = vmatprep.subr.mxu0 0.0
      %1589 = vmatpush1.msra.mxu0 0.0
      %1590 = vmatprep.subr.mxu0 0.0
      %1591 = vmatpush1.msra.mxu0 0.0
      %1592 = vmatprep.subr.mxu0 0.0
      %1593 = vmatpush1.msra.mxu0 0.0
      %1594 = vmatprep.subr.mxu0 0.0
      %1595 = vmatpush1.msra.mxu0 0.0
      %1596 = vmatprep.subr.mxu0 0.0
      %1597 = vmatpush1.msra.mxu0 0.0
      %1598 = vmatprep.subr.mxu0 0.0
      %1599 = vmatpush1.msra.mxu0 0.0
      %1600 = vmatprep.subr.mxu0 0.0
      %1601 = vmatpush1.msra.mxu0 0.0
      %1602 = vmatprep.subr.mxu0 0.0
      %1603 = vmatpush1.msra.mxu0 0.0
      %1604 = vmatprep.subr.mxu0 0.0
      %1605 = vmatpush1.msra.mxu0 0.0
      %1606 = vmatprep.subr.mxu0 0.0
      %1607 = vmatpush1.msra.mxu0 0.0
      %1608 = vmatprep.subr.mxu0 0.0
      %1609 = vmatpush1.msra.mxu0 0.0
      %1610 = vmatprep.subr.mxu0 0.0
      %1611 = vmatpush1.msra.mxu0 0.0
      %1612 = vmatprep.subr.mxu0 0.0
      %1613 = vmatpush1.msra.mxu0 0.0
      %1614 = vmatprep.subr.mxu0 0.0
      %1615 = vmatpush1.msra.mxu0 0.0
      %1616 = vmatprep.mubr.f32.mxu0 0.0
      %1617 = vmatmul.mubr.f32.gmra.mrb[0].mxu0 %v1457
      %v1618 = vpop.f32.mrb[0].mxu0
      %v1619 = vadd.f32 0.0, %v1618
      %v1620 = vpop.f32.mrb[0].mxu0
      %1621 = vmatprep.mubr.f32.mxu0 0.0
      %1622 = vmatmul.mubr.f32.gmra.mrb[0].mxu0 %v1460
      %v1623 = vpop.f32.mrb[0].mxu0
      %v1624 = vadd.f32 0.0, %v1623
      %v1625 = vpop.f32.mrb[0].mxu0
      %1626 = vmatprep.mubr.f32.mxu0 0.0
      %1627 = vmatmul.mubr.f32.gmra.mrb[0].mxu0 %v1463
      %v1628 = vpop.f32.mrb[0].mxu0
      %v1629 = vadd.f32 0.0, %v1628
      %v1630 = vpop.f32.mrb[0].mxu0
      %1631 = vmatprep.mubr.f32.mxu0 0.0
      %1632 = vmatmul.mubr.f32.gmra.mrb[0].mxu0 %v1466
      %v1633 = vpop.f32.mrb[0].mxu0
      %v1634 = vadd.f32 0.0, %v1633
      %v1635 = vpop.f32.mrb[0].mxu0
      %1636 = vmatprep.mubr.f32.mxu0 0.0
      %1637 = vmatmul.mubr.f32.gmra.mrb[0].mxu0 %v1469
      %v1638 = vpop.f32.mrb[0].mxu0
      %v1639 = vadd.f32 0.0, %v1638
      %v1640 = vpop.f32.mrb[0].mxu0
      %1641 = vmatprep.mubr.f32.mxu0 0.0
      %1642 = vmatmul.mubr.f32.gmra.mrb[0].mxu0 %v1472
      %v1643 = vpop.f32.mrb[0].mxu0
      %v1644 = vadd.f32 0.0, %v1643
      %v1645 = vpop.f32.mrb[0].mxu0
      %1646 = vmatprep.mubr.f32.mxu0 0.0
      %1647 = vmatmul.mubr.f32.gmra.mrb[0].mxu0 %v1475
      %v1648 = vpop.f32.mrb[0].mxu0
      %v1649 = vadd.f32 0.0, %v1648
      %v1650 = vpop.f32.mrb[0].mxu0
      %1651 = vmatprep.mubr.f32.mxu0 0.0
      %1652 = vmatmul.mubr.f32.gmra.mrb[0].mxu0 %v1478
      %v1653 = vpop.f32.mrb[0].mxu0
      %v1654 = vadd.f32 0.0, %v1653
      %v1655 = vpop.f32.mrb[0].mxu0
      %1656 = vmatprep.mubr.f32.mxu0 0.0
      %1657 = vmatmul.mubr.f32.gmra.mrb[0].mxu0 %v1481
      %v1658 = vpop.f32.mrb[0].mxu0
      %v1659 = vadd.f32 0.0, %v1658
      %v1660 = vpop.f32.mrb[0].mxu0
      %1661 = vmatprep.mubr.f32.mxu0 0.0
      %1662 = vmatmul.mubr.f32.gmra.mrb[0].mxu0 %v1484
      %v1663 = vpop.f32.mrb[0].mxu0
      %v1664 = vadd.f32 0.0, %v1663
      %v1665 = vpop.f32.mrb[0].mxu0
      %1666 = vmatprep.mubr.f32.mxu0 0.0
      %1667 = vmatmul.mubr.f32.gmra.mrb[0].mxu0 %v1487
      %v1668 = vpop.f32.mrb[0].mxu0
      %v1669 = vadd.f32 0.0, %v1668
      %v1670 = vpop.f32.mrb[0].mxu0
      %1671 = vmatprep.mubr.f32.mxu0 0.0
      %1672 = vmatmul.mubr.f32.gmra.mrb[0].mxu0 %v1490
      %v1673 = vpop.f32.mrb[0].mxu0
      %v1674 = vadd.f32 0.0, %v1673
      %v1675 = vpop.f32.mrb[0].mxu0
      %1676 = vmatprep.mubr.f32.mxu0 0.0
      %1677 = vmatmul.mubr.f32.gmra.mrb[0].mxu0 %v1493
      %v1678 = vpop.f32.mrb[0].mxu0
      %v1679 = vadd.f32 0.0, %v1678
      %v1680 = vpop.f32.mrb[0].mxu0
      %1681 = vmatprep.mubr.f32.mxu0 0.0
      %1682 = vmatmul.mubr.f32.gmra.mrb[0].mxu0 %v1496
      %v1683 = vpop.f32.mrb[0].mxu0
      %v1684 = vadd.f32 0.0, %v1683
      %v1685 = vpop.f32.mrb[0].mxu0
      %1686 = vmatprep.mubr.f32.mxu0 0.0
      %1687 = vmatmul.mubr.f32.gmra.mrb[0].mxu0 %v1499
      %v1688 = vpop.f32.mrb[0].mxu0
      %v1689 = vadd.f32 0.0, %v1688
      %v1690 = vpop.f32.mrb[0].mxu0
      %1691 = vmatprep.mubr.f32.mxu0 0.0
      %1692 = vmatmul.mubr.f32.gmra.mrb[0].mxu0 %v1502
      %v1693 = vpop.f32.mrb[0].mxu0
      %v1694 = vadd.f32 0.0, %v1693
      %v1695 = vpop.f32.mrb[0].mxu0
      %1696 = vmatprep.mubr.f32.mxu0 0.0
      %1697 = vmatmul.mubr.f32.gmra.mrb[0].mxu0 %v1505
      %v1698 = vpop.f32.mrb[0].mxu0
      %v1699 = vadd.f32 0.0, %v1698
      %v1700 = vpop.f32.mrb[0].mxu0
      %1701 = vmatprep.mubr.f32.mxu0 0.0
      %1702 = vmatmul.mubr.f32.gmra.mrb[0].mxu0 %v1508
      %v1703 = vpop.f32.mrb[0].mxu0
      %v1704 = vadd.f32 0.0, %v1703
      %v1705 = vpop.f32.mrb[0].mxu0
      %1706 = vmatprep.mubr.f32.mxu0 0.0
      %1707 = vmatmul.mubr.f32.gmra.mrb[0].mxu0 %v1511
      %v1708 = vpop.f32.mrb[0].mxu0
      %v1709 = vadd.f32 0.0, %v1708
      %v1710 = vpop.f32.mrb[0].mxu0
      %1711 = vmatprep.mubr.f32.mxu0 0.0
      %1712 = vmatmul.mubr.f32.gmra.mrb[0].mxu0 %v1514
      %v1713 = vpop.f32.mrb[0].mxu0
      %v1714 = vadd.f32 0.0, %v1713
      %v1715 = vpop.f32.mrb[0].mxu0
      %1716 = vmatprep.mubr.f32.mxu0 0.0
      %1717 = vmatmul.mubr.f32.gmra.mrb[0].mxu0 %v1517
      %v1718 = vpop.f32.mrb[0].mxu0
      %v1719 = vadd.f32 0.0, %v1718
      %v1720 = vpop.f32.mrb[0].mxu0
      %1721 = vmatprep.mubr.f32.mxu0 0.0
      %1722 = vmatmul.mubr.f32.gmra.mrb[0].mxu0 %v1520
      %v1723 = vpop.f32.mrb[0].mxu0
      %v1724 = vadd.f32 0.0, %v1723
      %v1725 = vpop.f32.mrb[0].mxu0
      %1726 = vmatprep.mubr.f32.mxu0 0.0
      %1727 = vmatmul.mubr.f32.gmra.mrb[0].mxu0 %v1523
      %v1728 = vpop.f32.mrb[0].mxu0
      %v1729 = vadd.f32 0.0, %v1728
      %v1730 = vpop.f32.mrb[0].mxu0
      %1731 = vmatprep.mubr.f32.mxu0 0.0
      %1732 = vmatmul.mubr.f32.gmra.mrb[0].mxu0 %v1526
      %v1733 = vpop.f32.mrb[0].mxu0
      %v1734 = vadd.f32 0.0, %v1733
      %v1735 = vpop.f32.mrb[0].mxu0
      %1736 = vmatprep.mubr.f32.mxu0 0.0
      %1737 = vmatmul.mubr.f32.gmra.mrb[0].mxu0 %v1529
      %v1738 = vpop.f32.mrb[0].mxu0
      %v1739 = vadd.f32 0.0, %v1738
      %v1740 = vpop.f32.mrb[0].mxu0
      %1741 = vmatprep.mubr.f32.mxu0 0.0
      %1742 = vmatmul.mubr.f32.gmra.mrb[0].mxu0 %v1532
      %v1743 = vpop.f32.mrb[0].mxu0
      %v1744 = vadd.f32 0.0, %v1743
      %v1745 = vpop.f32.mrb[0].mxu0
      %1746 = vmatprep.mubr.f32.mxu0 0.0
      %1747 = vmatmul.mubr.f32.gmra.mrb[0].mxu0 %v1535
      %v1748 = vpop.f32.mrb[0].mxu0
      %v1749 = vadd.f32 0.0, %v1748
      %v1750 = vpop.f32.mrb[0].mxu0
      %1751 = vmatprep.mubr.f32.mxu0 0.0
      %1752 = vmatmul.mubr.f32.gmra.mrb[0].mxu0 %v1538
      %v1753 = vpop.f32.mrb[0].mxu0
      %v1754 = vadd.f32 0.0, %v1753
      %v1755 = vpop.f32.mrb[0].mxu0
      %1756 = vmatprep.mubr.f32.mxu0 0.0
      %1757 = vmatmul.mubr.f32.gmra.mrb[0].mxu0 %v1541
      %v1758 = vpop.f32.mrb[0].mxu0
      %v1759 = vadd.f32 0.0, %v1758
      %v1760 = vpop.f32.mrb[0].mxu0
      %1761 = vmatprep.mubr.f32.mxu0 0.0
      %1762 = vmatmul.mubr.f32.gmra.mrb[0].mxu0 %v1544
      %v1763 = vpop.f32.mrb[0].mxu0
      %v1764 = vadd.f32 0.0, %v1763
      %v1765 = vpop.f32.mrb[0].mxu0
      %1766 = vmatprep.mubr.f32.mxu0 0.0
      %1767 = vmatmul.mubr.f32.gmra.mrb[0].mxu0 %v1547
      %v1768 = vpop.f32.mrb[0].mxu0
      %v1769 = vadd.f32 0.0, %v1768
      %v1770 = vpop.f32.mrb[0].mxu0
      %1771 = vmatprep.mubr.f32.mxu0 0.0
      %1772 = vmatmul.mubr.f32.gmra.mrb[0].mxu0 %v1550
      %v1773 = vpop.f32.mrb[0].mxu0
      %v1774 = vadd.f32 0.0, %v1773
      %v1775 = vpop.f32.mrb[0].mxu0
      %1776 = vdwg.mxu0
      %v1777 = vadd.f32 %v1382, %v1619
      %v1778 = vadd.f32 %v1383, %v1624
      %v1779 = vadd.f32 %v1384, %v1629
      %v1780 = vadd.f32 %v1385, %v1634
      %v1781 = vadd.f32 %v1386, %v1639
      %v1782 = vadd.f32 %v1387, %v1644
      %v1783 = vadd.f32 %v1388, %v1649
      %v1784 = vadd.f32 %v1389, %v1654
      %v1785 = vadd.f32 %v1390, %v1659
      %v1786 = vadd.f32 %v1391, %v1664
      %v1787 = vadd.f32 %v1392, %v1669
      %v1788 = vadd.f32 %v1393, %v1674
      %v1789 = vadd.f32 %v1394, %v1679
      %v1790 = vadd.f32 %v1395, %v1684
      %v1791 = vadd.f32 %v1396, %v1689
      %v1792 = vadd.f32 %v1397, %v1694
      %v1793 = vadd.f32 %v1398, %v1699
      %v1794 = vadd.f32 %v1399, %v1704
      %v1795 = vadd.f32 %v1400, %v1709
      %v1796 = vadd.f32 %v1401, %v1714
      %v1797 = vadd.f32 %v1402, %v1719
      %v1798 = vadd.f32 %v1403, %v1724
      %v1799 = vadd.f32 %v1404, %v1729
      %v1800 = vadd.f32 %v1405, %v1734
      %v1801 = vadd.f32 %v1406, %v1739
      %v1802 = vadd.f32 %v1407, %v1744
      %v1803 = vadd.f32 %v1408, %v1749
      %v1804 = vadd.f32 %v1409, %v1754
      %v1805 = vadd.f32 %v1410, %v1759
      %v1806 = vadd.f32 %v1411, %v1764
      %v1807 = vadd.f32 %v1412, %v1769
      %v1808 = vadd.f32 %v1413, %v1774
      %v1817 = vrot.slane %v1414, 1
      %v1818 = vrot.slane %v1415, 1
      %v1819 = vsel %vm364, %v1817, %v1818
      %v1820 = vrot.slane %v1416, 1
      %v1821 = vsel %vm364, %v1818, %v1820
      %v1822 = vrot.slane %v1417, 1
      %v1823 = vsel %vm364, %v1820, %v1822
      %v1824 = vrot.slane %v1418, 1
      %v1825 = vsel %vm364, %v1822, %v1824
      %v1826 = vrot.slane %v1419, 1
      %v1827 = vrot.slane %v1420, 1
      %v1828 = vsel %vm364, %v1826, %v1827
      %v1829 = vrot.slane %v1421, 1
      %v1830 = vsel %vm364, %v1827, %v1829
      %v1831 = vrot.slane %v1422, 1
      %v1832 = vsel %vm364, %v1829, %v1831
      %v1833 = vrot.slane %v1423, 1
      %v1834 = vsel %vm364, %v1831, %v1833
      %v1835 = vrot.slane %v1424, 1
      %v1836 = vrot.slane %v1425, 1
      %v1837 = vsel %vm364, %v1835, %v1836
      %v1838 = vrot.slane %v1426, 1
      %v1839 = vsel %vm364, %v1836, %v1838
      %v1840 = vrot.slane %v1427, 1
      %v1841 = vsel %vm364, %v1838, %v1840
      %v1842 = vrot.slane %v1428, 1
      %v1843 = vsel %vm364, %v1840, %v1842
      %v1844 = vrot.slane %v1429, 1
      %v1845 = vrot.slane %v1430, 1
      %v1846 = vsel %vm364, %v1844, %v1845
      %v1847 = vrot.slane %v1431, 1
      %v1848 = vsel %vm364, %v1845, %v1847
      %v1849 = vrot.slane %v1432, 1
      %v1850 = vsel %vm364, %v1847, %v1849
      %v1851 = vrot.slane %v1433, 1
      %v1852 = vsel %vm364, %v1849, %v1851
      %v1853 = vrot.slane %v1434, 1
      %v1854 = vrot.slane %v1435, 1
      %v1855 = vsel %vm364, %v1853, %v1854
      %v1856 = vrot.slane %v1436, 1
      %v1857 = vsel %vm364, %v1854, %v1856
      %v1858 = vrot.slane %v1437, 1
      %v1859 = vsel %vm364, %v1856, %v1858
      %v1860 = vrot.slane %v1438, 1
      %v1861 = vsel %vm364, %v1858, %v1860
      %v1862 = vrot.slane %v1439, 1
      %v1863 = vrot.slane %v1440, 1
      %v1864 = vsel %vm364, %v1862, %v1863
      %v1865 = vrot.slane %v1441, 1
      %v1866 = vsel %vm364, %v1863, %v1865
      %v1867 = vrot.slane %v1442, 1
      %v1868 = vsel %vm364, %v1865, %v1867
      %v1869 = vrot.slane %v1443, 1
      %v1870 = vsel %vm364, %v1867, %v1869
      %v1871 = vrot.slane %v1444, 1
      %v1872 = vrot.slane %v1445, 1
      %v1873 = vsel %vm364, %v1871, %v1872
      %v1874 = vrot.slane %v1446, 1
      %v1875 = vsel %vm364, %v1872, %v1874
      %v1876 = vrot.slane %v1447, 1
      %v1877 = vsel %vm364, %v1874, %v1876
      %v1878 = vrot.slane %v1448, 1
      %v1879 = vsel %vm364, %v1876, %v1878
      %v1880 = vrot.slane %v1449, 1
      %v1881 = vrot.slane %v1450, 1
      %v1882 = vsel %vm364, %v1880, %v1881
      %v1883 = vrot.slane %v1451, 1
      %v1884 = vsel %vm364, %v1881, %v1883
      %v1885 = vrot.slane %v1452, 1
      %v1886 = vsel %vm364, %v1883, %v1885
      %v1887 = vrot.slane %v1453, 1
      %v1888 = vsel %vm364, %v1885, %v1887
      %s1889 = scalar_lea.vmem %s3, 32
      %v1890 = vld [vmem:[%s1889] sm:$0xff]
      %v1891 = vsel %vm439, %v1819, 0
      %v1893 = vsel %vm439, %v1821, 0
      %v1895 = vsel %vm439, %v1823, 0
      %v1897 = vsel %vm439, %v1825, 0
      %v1899 = vsel %vm439, %v1828, 0
      %v1901 = vsel %vm439, %v1830, 0
      %v1903 = vsel %vm439, %v1832, 0
      %v1905 = vsel %vm439, %v1834, 0
      %v1907 = vsel %vm439, %v1837, 0
      %v1909 = vsel %vm439, %v1839, 0
      %v1911 = vsel %vm439, %v1841, 0
      %v1913 = vsel %vm439, %v1843, 0
      %v1915 = vsel %vm439, %v1846, 0
      %v1917 = vsel %vm439, %v1848, 0
      %v1919 = vsel %vm439, %v1850, 0
      %v1921 = vsel %vm439, %v1852, 0
      %v1923 = vsel %vm439, %v1855, 0
      %v1925 = vsel %vm439, %v1857, 0
      %v1927 = vsel %vm439, %v1859, 0
      %v1929 = vsel %vm439, %v1861, 0
      %v1931 = vsel %vm439, %v1864, 0
      %v1933 = vsel %vm439, %v1866, 0
      %v1935 = vsel %vm439, %v1868, 0
      %v1937 = vsel %vm439, %v1870, 0
      %v1939 = vsel %vm439, %v1873, 0
      %v1941 = vsel %vm439, %v1875, 0
      %v1943 = vsel %vm439, %v1877, 0
      %v1945 = vsel %vm439, %v1879, 0
      %v1947 = vsel %vm439, %v1882, 0
      %v1949 = vsel %vm439, %v1884, 0
      %v1951 = vsel %vm439, %v1886, 0
      %v1953 = vsel %vm439, %v1888, 0
      %1955 = vmatprep.subr.mxu0 0.0
      %1956 = vmatpush1.msra.mxu0 %v1890
      %1957 = vmatprep.subr.mxu0 0.0
      %1958 = vmatpush1.msra.mxu0 0.0
      %1959 = vmatprep.subr.mxu0 0.0
      %1960 = vmatpush1.msra.mxu0 0.0
      %1961 = vmatprep.subr.mxu0 0.0
      %1962 = vmatpush1.msra.mxu0 0.0
      %1963 = vmatprep.subr.mxu0 0.0
      %1964 = vmatpush1.msra.mxu0 0.0
      %1965 = vmatprep.subr.mxu0 0.0
      %1966 = vmatpush1.msra.mxu0 0.0
      %1967 = vmatprep.subr.mxu0 0.0
      %1968 = vmatpush1.msra.mxu0 0.0
      %1969 = vmatprep.subr.mxu0 0.0
      %1970 = vmatpush1.msra.mxu0 0.0
      %1971 = vmatprep.subr.mxu0 0.0
      %1972 = vmatpush1.msra.mxu0 0.0
      %1973 = vmatprep.subr.mxu0 0.0
      %1974 = vmatpush1.msra.mxu0 0.0
      %1975 = vmatprep.subr.mxu0 0.0
      %1976 = vmatpush1.msra.mxu0 0.0
      %1977 = vmatprep.subr.mxu0 0.0
      %1978 = vmatpush1.msra.mxu0 0.0
      %1979 = vmatprep.subr.mxu0 0.0
      %1980 = vmatpush1.msra.mxu0 0.0
      %1981 = vmatprep.subr.mxu0 0.0
      %1982 = vmatpush1.msra.mxu0 0.0
      %1983 = vmatprep.subr.mxu0 0.0
      %1984 = vmatpush1.msra.mxu0 0.0
      %1985 = vmatprep.subr.mxu0 0.0
      %1986 = vmatpush1.msra.mxu0 0.0
      %1987 = vmatprep.subr.mxu0 0.0
      %1988 = vmatpush1.msra.mxu0 0.0
      %1989 = vmatprep.subr.mxu0 0.0
      %1990 = vmatpush1.msra.mxu0 0.0
      %1991 = vmatprep.subr.mxu0 0.0
      %1992 = vmatpush1.msra.mxu0 0.0
      %1993 = vmatprep.subr.mxu0 0.0
      %1994 = vmatpush1.msra.mxu0 0.0
      %1995 = vmatprep.subr.mxu0 0.0
      %1996 = vmatpush1.msra.mxu0 0.0
      %1997 = vmatprep.subr.mxu0 0.0
      %1998 = vmatpush1.msra.mxu0 0.0
      %1999 = vmatprep.subr.mxu0 0.0
      %2000 = vmatpush1.msra.mxu0 0.0
      %2001 = vmatprep.subr.mxu0 0.0
      %2002 = vmatpush1.msra.mxu0 0.0
      %2003 = vmatprep.subr.mxu0 0.0
      %2004 = vmatpush1.msra.mxu0 0.0
      %2005 = vmatprep.subr.mxu0 0.0
      %2006 = vmatpush1.msra.mxu0 0.0
      %2007 = vmatprep.subr.mxu0 0.0
      %2008 = vmatpush1.msra.mxu0 0.0
      %2009 = vmatprep.subr.mxu0 0.0
      %2010 = vmatpush1.msra.mxu0 0.0
      %2011 = vmatprep.subr.mxu0 0.0
      %2012 = vmatpush1.msra.mxu0 0.0
      %2013 = vmatprep.subr.mxu0 0.0
      %2014 = vmatpush1.msra.mxu0 0.0
      %2015 = vmatprep.subr.mxu0 0.0
      %2016 = vmatpush1.msra.mxu0 0.0
      %2017 = vmatprep.subr.mxu0 0.0
      %2018 = vmatpush1.msra.mxu0 0.0
      %2019 = vmatprep.mubr.f32.mxu0 0.0
      %2020 = vmatmul.mubr.f32.gmra.mrb[0].mxu0 %v1891
      %v2021 = vpop.f32.mrb[0].mxu0
      %v2022 = vadd.f32 0.0, %v2021
      %v2023 = vpop.f32.mrb[0].mxu0
      %2024 = vmatprep.mubr.f32.mxu0 0.0
      %2025 = vmatmul.mubr.f32.gmra.mrb[0].mxu0 %v1893
      %v2026 = vpop.f32.mrb[0].mxu0
      %v2027 = vadd.f32 0.0, %v2026
      %v2028 = vpop.f32.mrb[0].mxu0
      %2029 = vmatprep.mubr.f32.mxu0 0.0
      %2030 = vmatmul.mubr.f32.gmra.mrb[0].mxu0 %v1895
      %v2031 = vpop.f32.mrb[0].mxu0
      %v2032 = vadd.f32 0.0, %v2031
      %v2033 = vpop.f32.mrb[0].mxu0
      %2034 = vmatprep.mubr.f32.mxu0 0.0
      %2035 = vmatmul.mubr.f32.gmra.mrb[0].mxu0 %v1897
      %v2036 = vpop.f32.mrb[0].mxu0
      %v2037 = vadd.f32 0.0, %v2036
      %v2038 = vpop.f32.mrb[0].mxu0
      %2039 = vmatprep.mubr.f32.mxu0 0.0
      %2040 = vmatmul.mubr.f32.gmra.mrb[0].mxu0 %v1899
      %v2041 = vpop.f32.mrb[0].mxu0
      %v2042 = vadd.f32 0.0, %v2041
      %v2043 = vpop.f32.mrb[0].mxu0
      %2044 = vmatprep.mubr.f32.mxu0 0.0
      %2045 = vmatmul.mubr.f32.gmra.mrb[0].mxu0 %v1901
      %v2046 = vpop.f32.mrb[0].mxu0
      %v2047 = vadd.f32 0.0, %v2046
      %v2048 = vpop.f32.mrb[0].mxu0
      %2049 = vmatprep.mubr.f32.mxu0 0.0
      %2050 = vmatmul.mubr.f32.gmra.mrb[0].mxu0 %v1903
      %v2051 = vpop.f32.mrb[0].mxu0
      %v2052 = vadd.f32 0.0, %v2051
      %v2053 = vpop.f32.mrb[0].mxu0
      %2054 = vmatprep.mubr.f32.mxu0 0.0
      %2055 = vmatmul.mubr.f32.gmra.mrb[0].mxu0 %v1905
      %v2056 = vpop.f32.mrb[0].mxu0
      %v2057 = vadd.f32 0.0, %v2056
      %v2058 = vpop.f32.mrb[0].mxu0
      %2059 = vmatprep.mubr.f32.mxu0 0.0
      %2060 = vmatmul.mubr.f32.gmra.mrb[0].mxu0 %v1907
      %v2061 = vpop.f32.mrb[0].mxu0
      %v2062 = vadd.f32 0.0, %v2061
      %v2063 = vpop.f32.mrb[0].mxu0
      %2064 = vmatprep.mubr.f32.mxu0 0.0
      %2065 = vmatmul.mubr.f32.gmra.mrb[0].mxu0 %v1909
      %v2066 = vpop.f32.mrb[0].mxu0
      %v2067 = vadd.f32 0.0, %v2066
      %v2068 = vpop.f32.mrb[0].mxu0
      %2069 = vmatprep.mubr.f32.mxu0 0.0
      %2070 = vmatmul.mubr.f32.gmra.mrb[0].mxu0 %v1911
      %v2071 = vpop.f32.mrb[0].mxu0
      %v2072 = vadd.f32 0.0, %v2071
      %v2073 = vpop.f32.mrb[0].mxu0
      %2074 = vmatprep.mubr.f32.mxu0 0.0
      %2075 = vmatmul.mubr.f32.gmra.mrb[0].mxu0 %v1913
      %v2076 = vpop.f32.mrb[0].mxu0
      %v2077 = vadd.f32 0.0, %v2076
      %v2078 = vpop.f32.mrb[0].mxu0
      %2079 = vmatprep.mubr.f32.mxu0 0.0
      %2080 = vmatmul.mubr.f32.gmra.mrb[0].mxu0 %v1915
      %v2081 = vpop.f32.mrb[0].mxu0
      %v2082 = vadd.f32 0.0, %v2081
      %v2083 = vpop.f32.mrb[0].mxu0
      %2084 = vmatprep.mubr.f32.mxu0 0.0
      %2085 = vmatmul.mubr.f32.gmra.mrb[0].mxu0 %v1917
      %v2086 = vpop.f32.mrb[0].mxu0
      %v2087 = vadd.f32 0.0, %v2086
      %v2088 = vpop.f32.mrb[0].mxu0
      %2089 = vmatprep.mubr.f32.mxu0 0.0
      %2090 = vmatmul.mubr.f32.gmra.mrb[0].mxu0 %v1919
      %v2091 = vpop.f32.mrb[0].mxu0
      %v2092 = vadd.f32 0.0, %v2091
      %v2093 = vpop.f32.mrb[0].mxu0
      %2094 = vmatprep.mubr.f32.mxu0 0.0
      %2095 = vmatmul.mubr.f32.gmra.mrb[0].mxu0 %v1921
      %v2096 = vpop.f32.mrb[0].mxu0
      %v2097 = vadd.f32 0.0, %v2096
      %v2098 = vpop.f32.mrb[0].mxu0
      %2099 = vmatprep.mubr.f32.mxu0 0.0
      %2100 = vmatmul.mubr.f32.gmra.mrb[0].mxu0 %v1923
      %v2101 = vpop.f32.mrb[0].mxu0
      %v2102 = vadd.f32 0.0, %v2101
      %v2103 = vpop.f32.mrb[0].mxu0
      %2104 = vmatprep.mubr.f32.mxu0 0.0
      %2105 = vmatmul.mubr.f32.gmra.mrb[0].mxu0 %v1925
      %v2106 = vpop.f32.mrb[0].mxu0
      %v2107 = vadd.f32 0.0, %v2106
      %v2108 = vpop.f32.mrb[0].mxu0
      %2109 = vmatprep.mubr.f32.mxu0 0.0
      %2110 = vmatmul.mubr.f32.gmra.mrb[0].mxu0 %v1927
      %v2111 = vpop.f32.mrb[0].mxu0
      %v2112 = vadd.f32 0.0, %v2111
      %v2113 = vpop.f32.mrb[0].mxu0
      %2114 = vmatprep.mubr.f32.mxu0 0.0
      %2115 = vmatmul.mubr.f32.gmra.mrb[0].mxu0 %v1929
      %v2116 = vpop.f32.mrb[0].mxu0
      %v2117 = vadd.f32 0.0, %v2116
      %v2118 = vpop.f32.mrb[0].mxu0
      %2119 = vmatprep.mubr.f32.mxu0 0.0
      %2120 = vmatmul.mubr.f32.gmra.mrb[0].mxu0 %v1931
      %v2121 = vpop.f32.mrb[0].mxu0
      %v2122 = vadd.f32 0.0, %v2121
      %v2123 = vpop.f32.mrb[0].mxu0
      %2124 = vmatprep.mubr.f32.mxu0 0.0
      %2125 = vmatmul.mubr.f32.gmra.mrb[0].mxu0 %v1933
      %v2126 = vpop.f32.mrb[0].mxu0
      %v2127 = vadd.f32 0.0, %v2126
      %v2128 = vpop.f32.mrb[0].mxu0
      %2129 = vmatprep.mubr.f32.mxu0 0.0
      %2130 = vmatmul.mubr.f32.gmra.mrb[0].mxu0 %v1935
      %v2131 = vpop.f32.mrb[0].mxu0
      %v2132 = vadd.f32 0.0, %v2131
      %v2133 = vpop.f32.mrb[0].mxu0
      %2134 = vmatprep.mubr.f32.mxu0 0.0
      %2135 = vmatmul.mubr.f32.gmra.mrb[0].mxu0 %v1937
      %v2136 = vpop.f32.mrb[0].mxu0
      %v2137 = vadd.f32 0.0, %v2136
      %v2138 = vpop.f32.mrb[0].mxu0
      %2139 = vmatprep.mubr.f32.mxu0 0.0
      %2140 = vmatmul.mubr.f32.gmra.mrb[0].mxu0 %v1939
      %v2141 = vpop.f32.mrb[0].mxu0
      %v2142 = vadd.f32 0.0, %v2141
      %v2143 = vpop.f32.mrb[0].mxu0
      %2144 = vmatprep.mubr.f32.mxu0 0.0
      %2145 = vmatmul.mubr.f32.gmra.mrb[0].mxu0 %v1941
      %v2146 = vpop.f32.mrb[0].mxu0
      %v2147 = vadd.f32 0.0, %v2146
      %v2148 = vpop.f32.mrb[0].mxu0
      %2149 = vmatprep.mubr.f32.mxu0 0.0
      %2150 = vmatmul.mubr.f32.gmra.mrb[0].mxu0 %v1943
      %v2151 = vpop.f32.mrb[0].mxu0
      %v2152 = vadd.f32 0.0, %v2151
      %v2153 = vpop.f32.mrb[0].mxu0
      %2154 = vmatprep.mubr.f32.mxu0 0.0
      %2155 = vmatmul.mubr.f32.gmra.mrb[0].mxu0 %v1945
      %v2156 = vpop.f32.mrb[0].mxu0
      %v2157 = vadd.f32 0.0, %v2156
      %v2158 = vpop.f32.mrb[0].mxu0
      %2159 = vmatprep.mubr.f32.mxu0 0.0
      %2160 = vmatmul.mubr.f32.gmra.mrb[0].mxu0 %v1947
      %v2161 = vpop.f32.mrb[0].mxu0
      %v2162 = vadd.f32 0.0, %v2161
      %v2163 = vpop.f32.mrb[0].mxu0
      %2164 = vmatprep.mubr.f32.mxu0 0.0
      %2165 = vmatmul.mubr.f32.gmra.mrb[0].mxu0 %v1949
      %v2166 = vpop.f32.mrb[0].mxu0
      %v2167 = vadd.f32 0.0, %v2166
      %v2168 = vpop.f32.mrb[0].mxu0
      %2169 = vmatprep.mubr.f32.mxu0 0.0
      %2170 = vmatmul.mubr.f32.gmra.mrb[0].mxu0 %v1951
      %v2171 = vpop.f32.mrb[0].mxu0
      %v2172 = vadd.f32 0.0, %v2171
      %v2173 = vpop.f32.mrb[0].mxu0
      %2174 = vmatprep.mubr.f32.mxu0 0.0
      %2175 = vmatmul.mubr.f32.gmra.mrb[0].mxu0 %v1953
      %v2176 = vpop.f32.mrb[0].mxu0
      %v2177 = vadd.f32 0.0, %v2176
      %v2178 = vpop.f32.mrb[0].mxu0
      %2179 = vdwg.mxu0
      %v2180 = vadd.f32 %v1777, %v2022
      %v2181 = vadd.f32 %v1778, %v2027
      %v2182 = vadd.f32 %v1779, %v2032
      %v2183 = vadd.f32 %v1780, %v2037
      %v2184 = vadd.f32 %v1781, %v2042
      %v2185 = vadd.f32 %v1782, %v2047
      %v2186 = vadd.f32 %v1783, %v2052
      %v2187 = vadd.f32 %v1784, %v2057
      %v2188 = vadd.f32 %v1785, %v2062
      %v2189 = vadd.f32 %v1786, %v2067
      %v2190 = vadd.f32 %v1787, %v2072
      %v2191 = vadd.f32 %v1788, %v2077
      %v2192 = vadd.f32 %v1789, %v2082
      %v2193 = vadd.f32 %v1790, %v2087
      %v2194 = vadd.f32 %v1791, %v2092
      %v2195 = vadd.f32 %v1792, %v2097
      %v2196 = vadd.f32 %v1793, %v2102
      %v2197 = vadd.f32 %v1794, %v2107
      %v2198 = vadd.f32 %v1795, %v2112
      %v2199 = vadd.f32 %v1796, %v2117
      %v2200 = vadd.f32 %v1797, %v2122
      %v2201 = vadd.f32 %v1798, %v2127
      %v2202 = vadd.f32 %v1799, %v2132
      %v2203 = vadd.f32 %v1800, %v2137
      %v2204 = vadd.f32 %v1801, %v2142
      %v2205 = vadd.f32 %v1802, %v2147
      %v2206 = vadd.f32 %v1803, %v2152
      %v2207 = vadd.f32 %v1804, %v2157
      %v2208 = vadd.f32 %v1805, %v2162
      %v2209 = vadd.f32 %v1806, %v2167
      %v2210 = vadd.f32 %v1807, %v2172
      %v2211 = vadd.f32 %v1808, %v2177
      %v2212 = vrot.slane %v1414, 2
      %v2213 = vrot.slane %v1415, 2
      %v2214 = vsel %vm1018, %v2212, %v2213
      %v2215 = vrot.slane %v1416, 2
      %v2216 = vsel %vm1018, %v2213, %v2215
      %v2217 = vrot.slane %v1417, 2
      %v2218 = vsel %vm1018, %v2215, %v2217
      %v2219 = vrot.slane %v1418, 2
      %v2220 = vsel %vm1018, %v2217, %v2219
      %v2221 = vrot.slane %v1419, 2
      %v2222 = vrot.slane %v1420, 2
      %v2223 = vsel %vm1018, %v2221, %v2222
      %v2224 = vrot.slane %v1421, 2
      %v2225 = vsel %vm1018, %v2222, %v2224
      %v2226 = vrot.slane %v1422, 2
      %v2227 = vsel %vm1018, %v2224, %v2226
      %v2228 = vrot.slane %v1423, 2
      %v2229 = vsel %vm1018, %v2226, %v2228
      %v2230 = vrot.slane %v1424, 2
      %v2231 = vrot.slane %v1425, 2
      %v2232 = vsel %vm1018, %v2230, %v2231
      %v2233 = vrot.slane %v1426, 2
      %v2234 = vsel %vm1018, %v2231, %v2233
      %v2235 = vrot.slane %v1427, 2
      %v2236 = vsel %vm1018, %v2233, %v2235
      %v2237 = vrot.slane %v1428, 2
      %v2238 = vsel %vm1018, %v2235, %v2237
      %v2239 = vrot.slane %v1429, 2
      %v2240 = vrot.slane %v1430, 2
      %v2241 = vsel %vm1018, %v2239, %v2240
      %v2242 = vrot.slane %v1431, 2
      %v2243 = vsel %vm1018, %v2240, %v2242
      %v2244 = vrot.slane %v1432, 2
      %v2245 = vsel %vm1018, %v2242, %v2244
      %v2246 = vrot.slane %v1433, 2
      %v2247 = vsel %vm1018, %v2244, %v2246
      %v2248 = vrot.slane %v1434, 2
      %v2249 = vrot.slane %v1435, 2
      %v2250 = vsel %vm1018, %v2248, %v2249
      %v2251 = vrot.slane %v1436, 2
      %v2252 = vsel %vm1018, %v2249, %v2251
      %v2253 = vrot.slane %v1437, 2
      %v2254 = vsel %vm1018, %v2251, %v2253
      %v2255 = vrot.slane %v1438, 2
      %v2256 = vsel %vm1018, %v2253, %v2255
      %v2257 = vrot.slane %v1439, 2
      %v2258 = vrot.slane %v1440, 2
      %v2259 = vsel %vm1018, %v2257, %v2258
      %v2260 = vrot.slane %v1441, 2
      %v2261 = vsel %vm1018, %v2258, %v2260
      %v2262 = vrot.slane %v1442, 2
      %v2263 = vsel %vm1018, %v2260, %v2262
      %v2264 = vrot.slane %v1443, 2
      %v2265 = vsel %vm1018, %v2262, %v2264
      %v2266 = vrot.slane %v1444, 2
      %v2267 = vrot.slane %v1445, 2
      %v2268 = vsel %vm1018, %v2266, %v2267
      %v2269 = vrot.slane %v1446, 2
      %v2270 = vsel %vm1018, %v2267, %v2269
      %v2271 = vrot.slane %v1447, 2
      %v2272 = vsel %vm1018, %v2269, %v2271
      %v2273 = vrot.slane %v1448, 2
      %v2274 = vsel %vm1018, %v2271, %v2273
      %v2275 = vrot.slane %v1449, 2
      %v2276 = vrot.slane %v1450, 2
      %v2277 = vsel %vm1018, %v2275, %v2276
      %v2278 = vrot.slane %v1451, 2
      %v2279 = vsel %vm1018, %v2276, %v2278
      %v2280 = vrot.slane %v1452, 2
      %v2281 = vsel %vm1018, %v2278, %v2280
      %v2282 = vrot.slane %v1453, 2
      %v2283 = vsel %vm1018, %v2280, %v2282
      %s2284 = scalar_lea.vmem %s3, 40
      %v2285 = vld [vmem:[%s2284] sm:$0xff]
      %v2286 = vsel %vm439, %v2214, 0
      %v2288 = vsel %vm439, %v2216, 0
      %v2290 = vsel %vm439, %v2218, 0
      %v2292 = vsel %vm439, %v2220, 0
      %v2294 = vsel %vm439, %v2223, 0
      %v2296 = vsel %vm439, %v2225, 0
      %v2298 = vsel %vm439, %v2227, 0
      %v2300 = vsel %vm439, %v2229, 0
      %v2302 = vsel %vm439, %v2232, 0
      %v2304 = vsel %vm439, %v2234, 0
      %v2306 = vsel %vm439, %v2236, 0
      %v2308 = vsel %vm439, %v2238, 0
      %v2310 = vsel %vm439, %v2241, 0
      %v2312 = vsel %vm439, %v2243, 0
      %v2314 = vsel %vm439, %v2245, 0
      %v2316 = vsel %vm439, %v2247, 0
      %v2318 = vsel %vm439, %v2250, 0
      %v2320 = vsel %vm439, %v2252, 0
      %v2322 = vsel %vm439, %v2254, 0
      %v2324 = vsel %vm439, %v2256, 0
      %v2326 = vsel %vm439, %v2259, 0
      %v2328 = vsel %vm439, %v2261, 0
      %v2330 = vsel %vm439, %v2263, 0
      %v2332 = vsel %vm439, %v2265, 0
      %v2334 = vsel %vm439, %v2268, 0
      %v2336 = vsel %vm439, %v2270, 0
      %v2338 = vsel %vm439, %v2272, 0
      %v2340 = vsel %vm439, %v2274, 0
      %v2342 = vsel %vm439, %v2277, 0
      %v2344 = vsel %vm439, %v2279, 0
      %v2346 = vsel %vm439, %v2281, 0
      %v2348 = vsel %vm439, %v2283, 0
      %2350 = vmatprep.subr.mxu0 0.0
      %2351 = vmatpush1.msra.mxu0 %v2285
      %2352 = vmatprep.subr.mxu0 0.0
      %2353 = vmatpush1.msra.mxu0 0.0
      %2354 = vmatprep.subr.mxu0 0.0
      %2355 = vmatpush1.msra.mxu0 0.0
      %2356 = vmatprep.subr.mxu0 0.0
      %2357 = vmatpush1.msra.mxu0 0.0
      %2358 = vmatprep.subr.mxu0 0.0
      %2359 = vmatpush1.msra.mxu0 0.0
      %2360 = vmatprep.subr.mxu0 0.0
      %2361 = vmatpush1.msra.mxu0 0.0
      %2362 = vmatprep.subr.mxu0 0.0
      %2363 = vmatpush1.msra.mxu0 0.0
      %2364 = vmatprep.subr.mxu0 0.0
      %2365 = vmatpush1.msra.mxu0 0.0
      %2366 = vmatprep.subr.mxu0 0.0
      %2367 = vmatpush1.msra.mxu0 0.0
      %2368 = vmatprep.subr.mxu0 0.0
      %2369 = vmatpush1.msra.mxu0 0.0
      %2370 = vmatprep.subr.mxu0 0.0
      %2371 = vmatpush1.msra.mxu0 0.0
      %2372 = vmatprep.subr.mxu0 0.0
      %2373 = vmatpush1.msra.mxu0 0.0
      %2374 = vmatprep.subr.mxu0 0.0
      %2375 = vmatpush1.msra.mxu0 0.0
      %2376 = vmatprep.subr.mxu0 0.0
      %2377 = vmatpush1.msra.mxu0 0.0
      %2378 = vmatprep.subr.mxu0 0.0
      %2379 = vmatpush1.msra.mxu0 0.0
      %2380 = vmatprep.subr.mxu0 0.0
      %2381 = vmatpush1.msra.mxu0 0.0
      %2382 = vmatprep.subr.mxu0 0.0
      %2383 = vmatpush1.msra.mxu0 0.0
      %2384 = vmatprep.subr.mxu0 0.0
      %2385 = vmatpush1.msra.mxu0 0.0
      %2386 = vmatprep.subr.mxu0 0.0
      %2387 = vmatpush1.msra.mxu0 0.0
      %2388 = vmatprep.subr.mxu0 0.0
      %2389 = vmatpush1.msra.mxu0 0.0
      %2390 = vmatprep.subr.mxu0 0.0
      %2391 = vmatpush1.msra.mxu0 0.0
      %2392 = vmatprep.subr.mxu0 0.0
      %2393 = vmatpush1.msra.mxu0 0.0
      %2394 = vmatprep.subr.mxu0 0.0
      %2395 = vmatpush1.msra.mxu0 0.0
      %2396 = vmatprep.subr.mxu0 0.0
      %2397 = vmatpush1.msra.mxu0 0.0
      %2398 = vmatprep.subr.mxu0 0.0
      %2399 = vmatpush1.msra.mxu0 0.0
      %2400 = vmatprep.subr.mxu0 0.0
      %2401 = vmatpush1.msra.mxu0 0.0
      %2402 = vmatprep.subr.mxu0 0.0
      %2403 = vmatpush1.msra.mxu0 0.0
      %2404 = vmatprep.subr.mxu0 0.0
      %2405 = vmatpush1.msra.mxu0 0.0
      %2406 = vmatprep.subr.mxu0 0.0
      %2407 = vmatpush1.msra.mxu0 0.0
      %2408 = vmatprep.subr.mxu0 0.0
      %2409 = vmatpush1.msra.mxu0 0.0
      %2410 = vmatprep.subr.mxu0 0.0
      %2411 = vmatpush1.msra.mxu0 0.0
      %2412 = vmatprep.subr.mxu0 0.0
      %2413 = vmatpush1.msra.mxu0 0.0
      %2414 = vmatprep.mubr.f32.mxu0 0.0
      %2415 = vmatmul.mubr.f32.gmra.mrb[0].mxu0 %v2286
      %v2416 = vpop.f32.mrb[0].mxu0
      %v2417 = vadd.f32 0.0, %v2416
      %v2418 = vpop.f32.mrb[0].mxu0
      %2419 = vmatprep.mubr.f32.mxu0 0.0
      %2420 = vmatmul.mubr.f32.gmra.mrb[0].mxu0 %v2288
      %v2421 = vpop.f32.mrb[0].mxu0
      %v2422 = vadd.f32 0.0, %v2421
      %v2423 = vpop.f32.mrb[0].mxu0
      %2424 = vmatprep.mubr.f32.mxu0 0.0
      %2425 = vmatmul.mubr.f32.gmra.mrb[0].mxu0 %v2290
      %v2426 = vpop.f32.mrb[0].mxu0
      %v2427 = vadd.f32 0.0, %v2426
      %v2428 = vpop.f32.mrb[0].mxu0
      %2429 = vmatprep.mubr.f32.mxu0 0.0
      %2430 = vmatmul.mubr.f32.gmra.mrb[0].mxu0 %v2292
      %v2431 = vpop.f32.mrb[0].mxu0
      %v2432 = vadd.f32 0.0, %v2431
      %v2433 = vpop.f32.mrb[0].mxu0
      %2434 = vmatprep.mubr.f32.mxu0 0.0
      %2435 = vmatmul.mubr.f32.gmra.mrb[0].mxu0 %v2294
      %v2436 = vpop.f32.mrb[0].mxu0
      %v2437 = vadd.f32 0.0, %v2436
      %v2438 = vpop.f32.mrb[0].mxu0
      %2439 = vmatprep.mubr.f32.mxu0 0.0
      %2440 = vmatmul.mubr.f32.gmra.mrb[0].mxu0 %v2296
      %v2441 = vpop.f32.mrb[0].mxu0
      %v2442 = vadd.f32 0.0, %v2441
      %v2443 = vpop.f32.mrb[0].mxu0
      %2444 = vmatprep.mubr.f32.mxu0 0.0
      %2445 = vmatmul.mubr.f32.gmra.mrb[0].mxu0 %v2298
      %v2446 = vpop.f32.mrb[0].mxu0
      %v2447 = vadd.f32 0.0, %v2446
      %v2448 = vpop.f32.mrb[0].mxu0
      %2449 = vmatprep.mubr.f32.mxu0 0.0
      %2450 = vmatmul.mubr.f32.gmra.mrb[0].mxu0 %v2300
      %v2451 = vpop.f32.mrb[0].mxu0
      %v2452 = vadd.f32 0.0, %v2451
      %v2453 = vpop.f32.mrb[0].mxu0
      %2454 = vmatprep.mubr.f32.mxu0 0.0
      %2455 = vmatmul.mubr.f32.gmra.mrb[0].mxu0 %v2302
      %v2456 = vpop.f32.mrb[0].mxu0
      %v2457 = vadd.f32 0.0, %v2456
      %v2458 = vpop.f32.mrb[0].mxu0
      %2459 = vmatprep.mubr.f32.mxu0 0.0
      %2460 = vmatmul.mubr.f32.gmra.mrb[0].mxu0 %v2304
      %v2461 = vpop.f32.mrb[0].mxu0
      %v2462 = vadd.f32 0.0, %v2461
      %v2463 = vpop.f32.mrb[0].mxu0
      %2464 = vmatprep.mubr.f32.mxu0 0.0
      %2465 = vmatmul.mubr.f32.gmra.mrb[0].mxu0 %v2306
      %v2466 = vpop.f32.mrb[0].mxu0
      %v2467 = vadd.f32 0.0, %v2466
      %v2468 = vpop.f32.mrb[0].mxu0
      %2469 = vmatprep.mubr.f32.mxu0 0.0
      %2470 = vmatmul.mubr.f32.gmra.mrb[0].mxu0 %v2308
      %v2471 = vpop.f32.mrb[0].mxu0
      %v2472 = vadd.f32 0.0, %v2471
      %v2473 = vpop.f32.mrb[0].mxu0
      %2474 = vmatprep.mubr.f32.mxu0 0.0
      %2475 = vmatmul.mubr.f32.gmra.mrb[0].mxu0 %v2310
      %v2476 = vpop.f32.mrb[0].mxu0
      %v2477 = vadd.f32 0.0, %v2476
      %v2478 = vpop.f32.mrb[0].mxu0
      %2479 = vmatprep.mubr.f32.mxu0 0.0
      %2480 = vmatmul.mubr.f32.gmra.mrb[0].mxu0 %v2312
      %v2481 = vpop.f32.mrb[0].mxu0
      %v2482 = vadd.f32 0.0, %v2481
      %v2483 = vpop.f32.mrb[0].mxu0
      %2484 = vmatprep.mubr.f32.mxu0 0.0
      %2485 = vmatmul.mubr.f32.gmra.mrb[0].mxu0 %v2314
      %v2486 = vpop.f32.mrb[0].mxu0
      %v2487 = vadd.f32 0.0, %v2486
      %v2488 = vpop.f32.mrb[0].mxu0
      %2489 = vmatprep.mubr.f32.mxu0 0.0
      %2490 = vmatmul.mubr.f32.gmra.mrb[0].mxu0 %v2316
      %v2491 = vpop.f32.mrb[0].mxu0
      %v2492 = vadd.f32 0.0, %v2491
      %v2493 = vpop.f32.mrb[0].mxu0
      %2494 = vmatprep.mubr.f32.mxu0 0.0
      %2495 = vmatmul.mubr.f32.gmra.mrb[0].mxu0 %v2318
      %v2496 = vpop.f32.mrb[0].mxu0
      %v2497 = vadd.f32 0.0, %v2496
      %v2498 = vpop.f32.mrb[0].mxu0
      %2499 = vmatprep.mubr.f32.mxu0 0.0
      %2500 = vmatmul.mubr.f32.gmra.mrb[0].mxu0 %v2320
      %v2501 = vpop.f32.mrb[0].mxu0
      %v2502 = vadd.f32 0.0, %v2501
      %v2503 = vpop.f32.mrb[0].mxu0
      %2504 = vmatprep.mubr.f32.mxu0 0.0
      %2505 = vmatmul.mubr.f32.gmra.mrb[0].mxu0 %v2322
      %v2506 = vpop.f32.mrb[0].mxu0
      %v2507 = vadd.f32 0.0, %v2506
      %v2508 = vpop.f32.mrb[0].mxu0
      %2509 = vmatprep.mubr.f32.mxu0 0.0
      %2510 = vmatmul.mubr.f32.gmra.mrb[0].mxu0 %v2324
      %v2511 = vpop.f32.mrb[0].mxu0
      %v2512 = vadd.f32 0.0, %v2511
      %v2513 = vpop.f32.mrb[0].mxu0
      %2514 = vmatprep.mubr.f32.mxu0 0.0
      %2515 = vmatmul.mubr.f32.gmra.mrb[0].mxu0 %v2326
      %v2516 = vpop.f32.mrb[0].mxu0
      %v2517 = vadd.f32 0.0, %v2516
      %v2518 = vpop.f32.mrb[0].mxu0
      %2519 = vmatprep.mubr.f32.mxu0 0.0
      %2520 = vmatmul.mubr.f32.gmra.mrb[0].mxu0 %v2328
      %v2521 = vpop.f32.mrb[0].mxu0
      %v2522 = vadd.f32 0.0, %v2521
      %v2523 = vpop.f32.mrb[0].mxu0
      %2524 = vmatprep.mubr.f32.mxu0 0.0
      %2525 = vmatmul.mubr.f32.gmra.mrb[0].mxu0 %v2330
      %v2526 = vpop.f32.mrb[0].mxu0
      %v2527 = vadd.f32 0.0, %v2526
      %v2528 = vpop.f32.mrb[0].mxu0
      %2529 = vmatprep.mubr.f32.mxu0 0.0
      %2530 = vmatmul.mubr.f32.gmra.mrb[0].mxu0 %v2332
      %v2531 = vpop.f32.mrb[0].mxu0
      %v2532 = vadd.f32 0.0, %v2531
      %v2533 = vpop.f32.mrb[0].mxu0
      %2534 = vmatprep.mubr.f32.mxu0 0.0
      %2535 = vmatmul.mubr.f32.gmra.mrb[0].mxu0 %v2334
      %v2536 = vpop.f32.mrb[0].mxu0
      %v2537 = vadd.f32 0.0, %v2536
      %v2538 = vpop.f32.mrb[0].mxu0
      %2539 = vmatprep.mubr.f32.mxu0 0.0
      %2540 = vmatmul.mubr.f32.gmra.mrb[0].mxu0 %v2336
      %v2541 = vpop.f32.mrb[0].mxu0
      %v2542 = vadd.f32 0.0, %v2541
      %v2543 = vpop.f32.mrb[0].mxu0
      %2544 = vmatprep.mubr.f32.mxu0 0.0
      %2545 = vmatmul.mubr.f32.gmra.mrb[0].mxu0 %v2338
      %v2546 = vpop.f32.mrb[0].mxu0
      %v2547 = vadd.f32 0.0, %v2546
      %v2548 = vpop.f32.mrb[0].mxu0
      %2549 = vmatprep.mubr.f32.mxu0 0.0
      %2550 = vmatmul.mubr.f32.gmra.mrb[0].mxu0 %v2340
      %v2551 = vpop.f32.mrb[0].mxu0
      %v2552 = vadd.f32 0.0, %v2551
      %v2553 = vpop.f32.mrb[0].mxu0
      %2554 = vmatprep.mubr.f32.mxu0 0.0
      %2555 = vmatmul.mubr.f32.gmra.mrb[0].mxu0 %v2342
      %v2556 = vpop.f32.mrb[0].mxu0
      %v2557 = vadd.f32 0.0, %v2556
      %v2558 = vpop.f32.mrb[0].mxu0
      %2559 = vmatprep.mubr.f32.mxu0 0.0
      %2560 = vmatmul.mubr.f32.gmra.mrb[0].mxu0 %v2344
      %v2561 = vpop.f32.mrb[0].mxu0
      %v2562 = vadd.f32 0.0, %v2561
      %v2563 = vpop.f32.mrb[0].mxu0
      %2564 = vmatprep.mubr.f32.mxu0 0.0
      %2565 = vmatmul.mubr.f32.gmra.mrb[0].mxu0 %v2346
      %v2566 = vpop.f32.mrb[0].mxu0
      %v2567 = vadd.f32 0.0, %v2566
      %v2568 = vpop.f32.mrb[0].mxu0
      %2569 = vmatprep.mubr.f32.mxu0 0.0
      %2570 = vmatmul.mubr.f32.gmra.mrb[0].mxu0 %v2348
      %v2571 = vpop.f32.mrb[0].mxu0
      %v2572 = vadd.f32 0.0, %v2571
      %v2573 = vpop.f32.mrb[0].mxu0
      %2574 = vdwg.mxu0
      %v2575 = vadd.f32 %v2180, %v2417
      %v2576 = vadd.f32 %v2181, %v2422
      %v2577 = vadd.f32 %v2182, %v2427
      %v2578 = vadd.f32 %v2183, %v2432
      %v2579 = vadd.f32 %v2184, %v2437
      %v2580 = vadd.f32 %v2185, %v2442
      %v2581 = vadd.f32 %v2186, %v2447
      %v2582 = vadd.f32 %v2187, %v2452
      %v2583 = vadd.f32 %v2188, %v2457
      %v2584 = vadd.f32 %v2189, %v2462
      %v2585 = vadd.f32 %v2190, %v2467
      %v2586 = vadd.f32 %v2191, %v2472
      %v2587 = vadd.f32 %v2192, %v2477
      %v2588 = vadd.f32 %v2193, %v2482
      %v2589 = vadd.f32 %v2194, %v2487
      %v2590 = vadd.f32 %v2195, %v2492
      %v2591 = vadd.f32 %v2196, %v2497
      %v2592 = vadd.f32 %v2197, %v2502
      %v2593 = vadd.f32 %v2198, %v2507
      %v2594 = vadd.f32 %v2199, %v2512
      %v2595 = vadd.f32 %v2200, %v2517
      %v2596 = vadd.f32 %v2201, %v2522
      %v2597 = vadd.f32 %v2202, %v2527
      %v2598 = vadd.f32 %v2203, %v2532
      %v2599 = vadd.f32 %v2204, %v2537
      %v2600 = vadd.f32 %v2205, %v2542
      %v2601 = vadd.f32 %v2206, %v2547
      %v2602 = vadd.f32 %v2207, %v2552
      %v2603 = vadd.f32 %v2208, %v2557
      %v2604 = vadd.f32 %v2209, %v2562
      %v2605 = vadd.f32 %v2210, %v2567
      %v2606 = vadd.f32 %v2211, %v2572
      %v2607 = vld [vmem:[%s274] sm:$0xff]
      %v2608 = vld [vmem:[%s274 + $0x8] sm:$0xff]
      %v2609 = vld [vmem:[%s274 + $0x10] sm:$0xff]
      %v2610 = vld [vmem:[%s274 + $0x18] sm:$0xff]
      %v2611 = vld [vmem:[%s274 + $0x20] sm:$0x3]
      %v2612 = vld [vmem:[%s274 + $0x28] sm:$0xff]
      %v2613 = vld [vmem:[%s274 + $0x30] sm:$0xff]
      %v2614 = vld [vmem:[%s274 + $0x38] sm:$0xff]
      %v2615 = vld [vmem:[%s274 + $0x40] sm:$0xff]
      %v2616 = vld [vmem:[%s274 + $0x48] sm:$0x3]
      %v2617 = vld [vmem:[%s274 + $0x50] sm:$0xff]
      %v2618 = vld [vmem:[%s274 + $0x58] sm:$0xff]
      %v2619 = vld [vmem:[%s274 + $0x60] sm:$0xff]
      %v2620 = vld [vmem:[%s274 + $0x68] sm:$0xff]
      %v2621 = vld [vmem:[%s274 + $0x70] sm:$0x3]
      %v2622 = vld [vmem:[%s274 + $0x78] sm:$0xff]
      %v2623 = vld [vmem:[%s274 + $0x80] sm:$0xff]
      %v2624 = vld [vmem:[%s274 + $0x88] sm:$0xff]
      %v2625 = vld [vmem:[%s274 + $0x90] sm:$0xff]
      %v2626 = vld [vmem:[%s274 + $0x98] sm:$0x3]
      %v2627 = vld [vmem:[%s274 + $0xa0] sm:$0xff]
      %v2628 = vld [vmem:[%s274 + $0xa8] sm:$0xff]
      %v2629 = vld [vmem:[%s274 + $0xb0] sm:$0xff]
      %v2630 = vld [vmem:[%s274 + $0xb8] sm:$0xff]
      %v2631 = vld [vmem:[%s274 + $0xc0] sm:$0x3]
      %v2632 = vld [vmem:[%s274 + $0xc8] sm:$0xff]
      %v2633 = vld [vmem:[%s274 + $0xd0] sm:$0xff]
      %v2634 = vld [vmem:[%s274 + $0xd8] sm:$0xff]
      %v2635 = vld [vmem:[%s274 + $0xe0] sm:$0xff]
      %v2636 = vld [vmem:[%s274 + $0xe8] sm:$0x3]
      %v2637 = vld [vmem:[%s274 + $0xf0] sm:$0xff]
      %v2638 = vld [vmem:[%s274 + $0xf8] sm:$0xff]
      %v2639 = vld [vmem:[%s274 + $0x100] sm:$0xff]
      %v2640 = vld [vmem:[%s274 + $0x108] sm:$0xff]
      %v2641 = vld [vmem:[%s274 + $0x110] sm:$0x3]
      %v2642 = vld [vmem:[%s274 + $0x118] sm:$0xff]
      %v2643 = vld [vmem:[%s274 + $0x120] sm:$0xff]
      %v2644 = vld [vmem:[%s274 + $0x128] sm:$0xff]
      %v2645 = vld [vmem:[%s274 + $0x130] sm:$0xff]
      %v2646 = vld [vmem:[%s274 + $0x138] sm:$0x3]
      %s2647 = scalar_lea.vmem %s3, 48
      %v2648 = vld [vmem:[%s2647] sm:$0xff]
      %v2650 = vsel %vm439, %v2607, 0
      %v2653 = vsel %vm439, %v2608, 0
      %v2656 = vsel %vm439, %v2609, 0
      %v2659 = vsel %vm439, %v2610, 0
      %v2662 = vsel %vm439, %v2612, 0
      %v2665 = vsel %vm439, %v2613, 0
      %v2668 = vsel %vm439, %v2614, 0
      %v2671 = vsel %vm439, %v2615, 0
      %v2674 = vsel %vm439, %v2617, 0
      %v2677 = vsel %vm439, %v2618, 0
      %v2680 = vsel %vm439, %v2619, 0
      %v2683 = vsel %vm439, %v2620, 0
      %v2686 = vsel %vm439, %v2622, 0
      %v2689 = vsel %vm439, %v2623, 0
      %v2692 = vsel %vm439, %v2624, 0
      %v2695 = vsel %vm439, %v2625, 0
      %v2698 = vsel %vm439, %v2627, 0
      %v2701 = vsel %vm439, %v2628, 0
      %v2704 = vsel %vm439, %v2629, 0
      %v2707 = vsel %vm439, %v2630, 0
      %v2710 = vsel %vm439, %v2632, 0
      %v2713 = vsel %vm439, %v2633, 0
      %v2716 = vsel %vm439, %v2634, 0
      %v2719 = vsel %vm439, %v2635, 0
      %v2722 = vsel %vm439, %v2637, 0
      %v2725 = vsel %vm439, %v2638, 0
      %v2728 = vsel %vm439, %v2639, 0
      %v2731 = vsel %vm439, %v2640, 0
      %v2734 = vsel %vm439, %v2642, 0
      %v2737 = vsel %vm439, %v2643, 0
      %v2740 = vsel %vm439, %v2644, 0
      %v2743 = vsel %vm439, %v2645, 0
      %2745 = vmatprep.subr.mxu0 0.0
      %2746 = vmatpush1.msra.mxu0 %v2648
      %2747 = vmatprep.subr.mxu0 0.0
      %2748 = vmatpush1.msra.mxu0 0.0
      %2749 = vmatprep.subr.mxu0 0.0
      %2750 = vmatpush1.msra.mxu0 0.0
      %2751 = vmatprep.subr.mxu0 0.0
      %2752 = vmatpush1.msra.mxu0 0.0
      %2753 = vmatprep.subr.mxu0 0.0
      %2754 = vmatpush1.msra.mxu0 0.0
      %2755 = vmatprep.subr.mxu0 0.0
      %2756 = vmatpush1.msra.mxu0 0.0
      %2757 = vmatprep.subr.mxu0 0.0
      %2758 = vmatpush1.msra.mxu0 0.0
      %2759 = vmatprep.subr.mxu0 0.0
      %2760 = vmatpush1.msra.mxu0 0.0
      %2761 = vmatprep.subr.mxu0 0.0
      %2762 = vmatpush1.msra.mxu0 0.0
      %2763 = vmatprep.subr.mxu0 0.0
      %2764 = vmatpush1.msra.mxu0 0.0
      %2765 = vmatprep.subr.mxu0 0.0
      %2766 = vmatpush1.msra.mxu0 0.0
      %2767 = vmatprep.subr.mxu0 0.0
      %2768 = vmatpush1.msra.mxu0 0.0
      %2769 = vmatprep.subr.mxu0 0.0
      %2770 = vmatpush1.msra.mxu0 0.0
      %2771 = vmatprep.subr.mxu0 0.0
      %2772 = vmatpush1.msra.mxu0 0.0
      %2773 = vmatprep.subr.mxu0 0.0
      %2774 = vmatpush1.msra.mxu0 0.0
      %2775 = vmatprep.subr.mxu0 0.0
      %2776 = vmatpush1.msra.mxu0 0.0
      %2777 = vmatprep.subr.mxu0 0.0
      %2778 = vmatpush1.msra.mxu0 0.0
      %2779 = vmatprep.subr.mxu0 0.0
      %2780 = vmatpush1.msra.mxu0 0.0
      %2781 = vmatprep.subr.mxu0 0.0
      %2782 = vmatpush1.msra.mxu0 0.0
      %2783 = vmatprep.subr.mxu0 0.0
      %2784 = vmatpush1.msra.mxu0 0.0
      %2785 = vmatprep.subr.mxu0 0.0
      %2786 = vmatpush1.msra.mxu0 0.0
      %2787 = vmatprep.subr.mxu0 0.0
      %2788 = vmatpush1.msra.mxu0 0.0
      %2789 = vmatprep.subr.mxu0 0.0
      %2790 = vmatpush1.msra.mxu0 0.0
      %2791 = vmatprep.subr.mxu0 0.0
      %2792 = vmatpush1.msra.mxu0 0.0
      %2793 = vmatprep.subr.mxu0 0.0
      %2794 = vmatpush1.msra.mxu0 0.0
      %2795 = vmatprep.subr.mxu0 0.0
      %2796 = vmatpush1.msra.mxu0 0.0
      %2797 = vmatprep.subr.mxu0 0.0
      %2798 = vmatpush1.msra.mxu0 0.0
      %2799 = vmatprep.subr.mxu0 0.0
      %2800 = vmatpush1.msra.mxu0 0.0
      %2801 = vmatprep.subr.mxu0 0.0
      %2802 = vmatpush1.msra.mxu0 0.0
      %2803 = vmatprep.subr.mxu0 0.0
      %2804 = vmatpush1.msra.mxu0 0.0
      %2805 = vmatprep.subr.mxu0 0.0
      %2806 = vmatpush1.msra.mxu0 0.0
      %2807 = vmatprep.subr.mxu0 0.0
      %2808 = vmatpush1.msra.mxu0 0.0
      %2809 = vmatprep.mubr.f32.mxu0 0.0
      %2810 = vmatmul.mubr.f32.gmra.mrb[0].mxu0 %v2650
      %v2811 = vpop.f32.mrb[0].mxu0
      %v2812 = vadd.f32 0.0, %v2811
      %v2813 = vpop.f32.mrb[0].mxu0
      %2814 = vmatprep.mubr.f32.mxu0 0.0
      %2815 = vmatmul.mubr.f32.gmra.mrb[0].mxu0 %v2653
      %v2816 = vpop.f32.mrb[0].mxu0
      %v2817 = vadd.f32 0.0, %v2816
      %v2818 = vpop.f32.mrb[0].mxu0
      %2819 = vmatprep.mubr.f32.mxu0 0.0
      %2820 = vmatmul.mubr.f32.gmra.mrb[0].mxu0 %v2656
      %v2821 = vpop.f32.mrb[0].mxu0
      %v2822 = vadd.f32 0.0, %v2821
      %v2823 = vpop.f32.mrb[0].mxu0
      %2824 = vmatprep.mubr.f32.mxu0 0.0
      %2825 = vmatmul.mubr.f32.gmra.mrb[0].mxu0 %v2659
      %v2826 = vpop.f32.mrb[0].mxu0
      %v2827 = vadd.f32 0.0, %v2826
      %v2828 = vpop.f32.mrb[0].mxu0
      %2829 = vmatprep.mubr.f32.mxu0 0.0
      %2830 = vmatmul.mubr.f32.gmra.mrb[0].mxu0 %v2662
      %v2831 = vpop.f32.mrb[0].mxu0
      %v2832 = vadd.f32 0.0, %v2831
      %v2833 = vpop.f32.mrb[0].mxu0
      %2834 = vmatprep.mubr.f32.mxu0 0.0
      %2835 = vmatmul.mubr.f32.gmra.mrb[0].mxu0 %v2665
      %v2836 = vpop.f32.mrb[0].mxu0
      %v2837 = vadd.f32 0.0, %v2836
      %v2838 = vpop.f32.mrb[0].mxu0
      %2839 = vmatprep.mubr.f32.mxu0 0.0
      %2840 = vmatmul.mubr.f32.gmra.mrb[0].mxu0 %v2668
      %v2841 = vpop.f32.mrb[0].mxu0
      %v2842 = vadd.f32 0.0, %v2841
      %v2843 = vpop.f32.mrb[0].mxu0
      %2844 = vmatprep.mubr.f32.mxu0 0.0
      %2845 = vmatmul.mubr.f32.gmra.mrb[0].mxu0 %v2671
      %v2846 = vpop.f32.mrb[0].mxu0
      %v2847 = vadd.f32 0.0, %v2846
      %v2848 = vpop.f32.mrb[0].mxu0
      %2849 = vmatprep.mubr.f32.mxu0 0.0
      %2850 = vmatmul.mubr.f32.gmra.mrb[0].mxu0 %v2674
      %v2851 = vpop.f32.mrb[0].mxu0
      %v2852 = vadd.f32 0.0, %v2851
      %v2853 = vpop.f32.mrb[0].mxu0
      %2854 = vmatprep.mubr.f32.mxu0 0.0
      %2855 = vmatmul.mubr.f32.gmra.mrb[0].mxu0 %v2677
      %v2856 = vpop.f32.mrb[0].mxu0
      %v2857 = vadd.f32 0.0, %v2856
      %v2858 = vpop.f32.mrb[0].mxu0
      %2859 = vmatprep.mubr.f32.mxu0 0.0
      %2860 = vmatmul.mubr.f32.gmra.mrb[0].mxu0 %v2680
      %v2861 = vpop.f32.mrb[0].mxu0
      %v2862 = vadd.f32 0.0, %v2861
      %v2863 = vpop.f32.mrb[0].mxu0
      %2864 = vmatprep.mubr.f32.mxu0 0.0
      %2865 = vmatmul.mubr.f32.gmra.mrb[0].mxu0 %v2683
      %v2866 = vpop.f32.mrb[0].mxu0
      %v2867 = vadd.f32 0.0, %v2866
      %v2868 = vpop.f32.mrb[0].mxu0
      %2869 = vmatprep.mubr.f32.mxu0 0.0
      %2870 = vmatmul.mubr.f32.gmra.mrb[0].mxu0 %v2686
      %v2871 = vpop.f32.mrb[0].mxu0
      %v2872 = vadd.f32 0.0, %v2871
      %v2873 = vpop.f32.mrb[0].mxu0
      %2874 = vmatprep.mubr.f32.mxu0 0.0
      %2875 = vmatmul.mubr.f32.gmra.mrb[0].mxu0 %v2689
      %v2876 = vpop.f32.mrb[0].mxu0
      %v2877 = vadd.f32 0.0, %v2876
      %v2878 = vpop.f32.mrb[0].mxu0
      %2879 = vmatprep.mubr.f32.mxu0 0.0
      %2880 = vmatmul.mubr.f32.gmra.mrb[0].mxu0 %v2692
      %v2881 = vpop.f32.mrb[0].mxu0
      %v2882 = vadd.f32 0.0, %v2881
      %v2883 = vpop.f32.mrb[0].mxu0
      %2884 = vmatprep.mubr.f32.mxu0 0.0
      %2885 = vmatmul.mubr.f32.gmra.mrb[0].mxu0 %v2695
      %v2886 = vpop.f32.mrb[0].mxu0
      %v2887 = vadd.f32 0.0, %v2886
      %v2888 = vpop.f32.mrb[0].mxu0
      %2889 = vmatprep.mubr.f32.mxu0 0.0
      %2890 = vmatmul.mubr.f32.gmra.mrb[0].mxu0 %v2698
      %v2891 = vpop.f32.mrb[0].mxu0
      %v2892 = vadd.f32 0.0, %v2891
      %v2893 = vpop.f32.mrb[0].mxu0
      %2894 = vmatprep.mubr.f32.mxu0 0.0
      %2895 = vmatmul.mubr.f32.gmra.mrb[0].mxu0 %v2701
      %v2896 = vpop.f32.mrb[0].mxu0
      %v2897 = vadd.f32 0.0, %v2896
      %v2898 = vpop.f32.mrb[0].mxu0
      %2899 = vmatprep.mubr.f32.mxu0 0.0
      %2900 = vmatmul.mubr.f32.gmra.mrb[0].mxu0 %v2704
      %v2901 = vpop.f32.mrb[0].mxu0
      %v2902 = vadd.f32 0.0, %v2901
      %v2903 = vpop.f32.mrb[0].mxu0
      %2904 = vmatprep.mubr.f32.mxu0 0.0
      %2905 = vmatmul.mubr.f32.gmra.mrb[0].mxu0 %v2707
      %v2906 = vpop.f32.mrb[0].mxu0
      %v2907 = vadd.f32 0.0, %v2906
      %v2908 = vpop.f32.mrb[0].mxu0
      %2909 = vmatprep.mubr.f32.mxu0 0.0
      %2910 = vmatmul.mubr.f32.gmra.mrb[0].mxu0 %v2710
      %v2911 = vpop.f32.mrb[0].mxu0
      %v2912 = vadd.f32 0.0, %v2911
      %v2913 = vpop.f32.mrb[0].mxu0
      %2914 = vmatprep.mubr.f32.mxu0 0.0
      %2915 = vmatmul.mubr.f32.gmra.mrb[0].mxu0 %v2713
      %v2916 = vpop.f32.mrb[0].mxu0
      %v2917 = vadd.f32 0.0, %v2916
      %v2918 = vpop.f32.mrb[0].mxu0
      %2919 = vmatprep.mubr.f32.mxu0 0.0
      %2920 = vmatmul.mubr.f32.gmra.mrb[0].mxu0 %v2716
      %v2921 = vpop.f32.mrb[0].mxu0
      %v2922 = vadd.f32 0.0, %v2921
      %v2923 = vpop.f32.mrb[0].mxu0
      %2924 = vmatprep.mubr.f32.mxu0 0.0
      %2925 = vmatmul.mubr.f32.gmra.mrb[0].mxu0 %v2719
      %v2926 = vpop.f32.mrb[0].mxu0
      %v2927 = vadd.f32 0.0, %v2926
      %v2928 = vpop.f32.mrb[0].mxu0
      %2929 = vmatprep.mubr.f32.mxu0 0.0
      %2930 = vmatmul.mubr.f32.gmra.mrb[0].mxu0 %v2722
      %v2931 = vpop.f32.mrb[0].mxu0
      %v2932 = vadd.f32 0.0, %v2931
      %v2933 = vpop.f32.mrb[0].mxu0
      %2934 = vmatprep.mubr.f32.mxu0 0.0
      %2935 = vmatmul.mubr.f32.gmra.mrb[0].mxu0 %v2725
      %v2936 = vpop.f32.mrb[0].mxu0
      %v2937 = vadd.f32 0.0, %v2936
      %v2938 = vpop.f32.mrb[0].mxu0
      %2939 = vmatprep.mubr.f32.mxu0 0.0
      %2940 = vmatmul.mubr.f32.gmra.mrb[0].mxu0 %v2728
      %v2941 = vpop.f32.mrb[0].mxu0
      %v2942 = vadd.f32 0.0, %v2941
      %v2943 = vpop.f32.mrb[0].mxu0
      %2944 = vmatprep.mubr.f32.mxu0 0.0
      %2945 = vmatmul.mubr.f32.gmra.mrb[0].mxu0 %v2731
      %v2946 = vpop.f32.mrb[0].mxu0
      %v2947 = vadd.f32 0.0, %v2946
      %v2948 = vpop.f32.mrb[0].mxu0
      %2949 = vmatprep.mubr.f32.mxu0 0.0
      %2950 = vmatmul.mubr.f32.gmra.mrb[0].mxu0 %v2734
      %v2951 = vpop.f32.mrb[0].mxu0
      %v2952 = vadd.f32 0.0, %v2951
      %v2953 = vpop.f32.mrb[0].mxu0
      %2954 = vmatprep.mubr.f32.mxu0 0.0
      %2955 = vmatmul.mubr.f32.gmra.mrb[0].mxu0 %v2737
      %v2956 = vpop.f32.mrb[0].mxu0
      %v2957 = vadd.f32 0.0, %v2956
      %v2958 = vpop.f32.mrb[0].mxu0
      %2959 = vmatprep.mubr.f32.mxu0 0.0
      %2960 = vmatmul.mubr.f32.gmra.mrb[0].mxu0 %v2740
      %v2961 = vpop.f32.mrb[0].mxu0
      %v2962 = vadd.f32 0.0, %v2961
      %v2963 = vpop.f32.mrb[0].mxu0
      %2964 = vmatprep.mubr.f32.mxu0 0.0
      %2965 = vmatmul.mubr.f32.gmra.mrb[0].mxu0 %v2743
      %v2966 = vpop.f32.mrb[0].mxu0
      %v2967 = vadd.f32 0.0, %v2966
      %v2968 = vpop.f32.mrb[0].mxu0
      %2969 = vdwg.mxu0
      %v2970 = vadd.f32 %v2575, %v2812
      %v2971 = vadd.f32 %v2576, %v2817
      %v2972 = vadd.f32 %v2577, %v2822
      %v2973 = vadd.f32 %v2578, %v2827
      %v2974 = vadd.f32 %v2579, %v2832
      %v2975 = vadd.f32 %v2580, %v2837
      %v2976 = vadd.f32 %v2581, %v2842
      %v2977 = vadd.f32 %v2582, %v2847
      %v2978 = vadd.f32 %v2583, %v2852
      %v2979 = vadd.f32 %v2584, %v2857
      %v2980 = vadd.f32 %v2585, %v2862
      %v2981 = vadd.f32 %v2586, %v2867
      %v2982 = vadd.f32 %v2587, %v2872
      %v2983 = vadd.f32 %v2588, %v2877
      %v2984 = vadd.f32 %v2589, %v2882
      %v2985 = vadd.f32 %v2590, %v2887
      %v2986 = vadd.f32 %v2591, %v2892
      %v2987 = vadd.f32 %v2592, %v2897
      %v2988 = vadd.f32 %v2593, %v2902
      %v2989 = vadd.f32 %v2594, %v2907
      %v2990 = vadd.f32 %v2595, %v2912
      %v2991 = vadd.f32 %v2596, %v2917
      %v2992 = vadd.f32 %v2597, %v2922
      %v2993 = vadd.f32 %v2598, %v2927
      %v2994 = vadd.f32 %v2599, %v2932
      %v2995 = vadd.f32 %v2600, %v2937
      %v2996 = vadd.f32 %v2601, %v2942
      %v2997 = vadd.f32 %v2602, %v2947
      %v2998 = vadd.f32 %v2603, %v2952
      %v2999 = vadd.f32 %v2604, %v2957
      %v3000 = vadd.f32 %v2605, %v2962
      %v3001 = vadd.f32 %v2606, %v2967
      %v3010 = vrot.slane %v2607, 1
      %v3011 = vrot.slane %v2608, 1
      %v3012 = vsel %vm364, %v3010, %v3011
      %v3013 = vrot.slane %v2609, 1
      %v3014 = vsel %vm364, %v3011, %v3013
      %v3015 = vrot.slane %v2610, 1
      %v3016 = vsel %vm364, %v3013, %v3015
      %v3017 = vrot.slane %v2611, 1
      %v3018 = vsel %vm364, %v3015, %v3017
      %v3019 = vrot.slane %v2612, 1
      %v3020 = vrot.slane %v2613, 1
      %v3021 = vsel %vm364, %v3019, %v3020
      %v3022 = vrot.slane %v2614, 1
      %v3023 = vsel %vm364, %v3020, %v3022
      %v3024 = vrot.slane %v2615, 1
      %v3025 = vsel %vm364, %v3022, %v3024
      %v3026 = vrot.slane %v2616, 1
      %v3027 = vsel %vm364, %v3024, %v3026
      %v3028 = vrot.slane %v2617, 1
      %v3029 = vrot.slane %v2618, 1
      %v3030 = vsel %vm364, %v3028, %v3029
      %v3031 = vrot.slane %v2619, 1
      %v3032 = vsel %vm364, %v3029, %v3031
      %v3033 = vrot.slane %v2620, 1
      %v3034 = vsel %vm364, %v3031, %v3033
      %v3035 = vrot.slane %v2621, 1
      %v3036 = vsel %vm364, %v3033, %v3035
      %v3037 = vrot.slane %v2622, 1
      %v3038 = vrot.slane %v2623, 1
      %v3039 = vsel %vm364, %v3037, %v3038
      %v3040 = vrot.slane %v2624, 1
      %v3041 = vsel %vm364, %v3038, %v3040
      %v3042 = vrot.slane %v2625, 1
      %v3043 = vsel %vm364, %v3040, %v3042
      %v3044 = vrot.slane %v2626, 1
      %v3045 = vsel %vm364, %v3042, %v3044
      %v3046 = vrot.slane %v2627, 1
      %v3047 = vrot.slane %v2628, 1
      %v3048 = vsel %vm364, %v3046, %v3047
      %v3049 = vrot.slane %v2629, 1
      %v3050 = vsel %vm364, %v3047, %v3049
      %v3051 = vrot.slane %v2630, 1
      %v3052 = vsel %vm364, %v3049, %v3051
      %v3053 = vrot.slane %v2631, 1
      %v3054 = vsel %vm364, %v3051, %v3053
      %v3055 = vrot.slane %v2632, 1
      %v3056 = vrot.slane %v2633, 1
      %v3057 = vsel %vm364, %v3055, %v3056
      %v3058 = vrot.slane %v2634, 1
      %v3059 = vsel %vm364, %v3056, %v3058
      %v3060 = vrot.slane %v2635, 1
      %v3061 = vsel %vm364, %v3058, %v3060
      %v3062 = vrot.slane %v2636, 1
      %v3063 = vsel %vm364, %v3060, %v3062
      %v3064 = vrot.slane %v2637, 1
      %v3065 = vrot.slane %v2638, 1
      %v3066 = vsel %vm364, %v3064, %v3065
      %v3067 = vrot.slane %v2639, 1
      %v3068 = vsel %vm364, %v3065, %v3067
      %v3069 = vrot.slane %v2640, 1
      %v3070 = vsel %vm364, %v3067, %v3069
      %v3071 = vrot.slane %v2641, 1
      %v3072 = vsel %vm364, %v3069, %v3071
      %v3073 = vrot.slane %v2642, 1
      %v3074 = vrot.slane %v2643, 1
      %v3075 = vsel %vm364, %v3073, %v3074
      %v3076 = vrot.slane %v2644, 1
      %v3077 = vsel %vm364, %v3074, %v3076
      %v3078 = vrot.slane %v2645, 1
      %v3079 = vsel %vm364, %v3076, %v3078
      %v3080 = vrot.slane %v2646, 1
      %v3081 = vsel %vm364, %v3078, %v3080
      %s3082 = scalar_lea.vmem %s3, 56
      %v3083 = vld [vmem:[%s3082] sm:$0xff]
      %v3084 = vsel %vm439, %v3012, 0
      %v3086 = vsel %vm439, %v3014, 0
      %v3088 = vsel %vm439, %v3016, 0
      %v3090 = vsel %vm439, %v3018, 0
      %v3092 = vsel %vm439, %v3021, 0
      %v3094 = vsel %vm439, %v3023, 0
      %v3096 = vsel %vm439, %v3025, 0
      %v3098 = vsel %vm439, %v3027, 0
      %v3100 = vsel %vm439, %v3030, 0
      %v3102 = vsel %vm439, %v3032, 0
      %v3104 = vsel %vm439, %v3034, 0
      %v3106 = vsel %vm439, %v3036, 0
      %v3108 = vsel %vm439, %v3039, 0
      %v3110 = vsel %vm439, %v3041, 0
      %v3112 = vsel %vm439, %v3043, 0
      %v3114 = vsel %vm439, %v3045, 0
      %v3116 = vsel %vm439, %v3048, 0
      %v3118 = vsel %vm439, %v3050, 0
      %v3120 = vsel %vm439, %v3052, 0
      %v3122 = vsel %vm439, %v3054, 0
      %v3124 = vsel %vm439, %v3057, 0
      %v3126 = vsel %vm439, %v3059, 0
      %v3128 = vsel %vm439, %v3061, 0
      %v3130 = vsel %vm439, %v3063, 0
      %v3132 = vsel %vm439, %v3066, 0
      %v3134 = vsel %vm439, %v3068, 0
      %v3136 = vsel %vm439, %v3070, 0
      %v3138 = vsel %vm439, %v3072, 0
      %v3140 = vsel %vm439, %v3075, 0
      %v3142 = vsel %vm439, %v3077, 0
      %v3144 = vsel %vm439, %v3079, 0
      %v3146 = vsel %vm439, %v3081, 0
      %3148 = vmatprep.subr.mxu0 0.0
      %3149 = vmatpush1.msra.mxu0 %v3083
      %3150 = vmatprep.subr.mxu0 0.0
      %3151 = vmatpush1.msra.mxu0 0.0
      %3152 = vmatprep.subr.mxu0 0.0
      %3153 = vmatpush1.msra.mxu0 0.0
      %3154 = vmatprep.subr.mxu0 0.0
      %3155 = vmatpush1.msra.mxu0 0.0
      %3156 = vmatprep.subr.mxu0 0.0
      %3157 = vmatpush1.msra.mxu0 0.0
      %3158 = vmatprep.subr.mxu0 0.0
      %3159 = vmatpush1.msra.mxu0 0.0
      %3160 = vmatprep.subr.mxu0 0.0
      %3161 = vmatpush1.msra.mxu0 0.0
      %3162 = vmatprep.subr.mxu0 0.0
      %3163 = vmatpush1.msra.mxu0 0.0
      %3164 = vmatprep.subr.mxu0 0.0
      %3165 = vmatpush1.msra.mxu0 0.0
      %3166 = vmatprep.subr.mxu0 0.0
      %3167 = vmatpush1.msra.mxu0 0.0
      %3168 = vmatprep.subr.mxu0 0.0
      %3169 = vmatpush1.msra.mxu0 0.0
      %3170 = vmatprep.subr.mxu0 0.0
      %3171 = vmatpush1.msra.mxu0 0.0
      %3172 = vmatprep.subr.mxu0 0.0
      %3173 = vmatpush1.msra.mxu0 0.0
      %3174 = vmatprep.subr.mxu0 0.0
      %3175 = vmatpush1.msra.mxu0 0.0
      %3176 = vmatprep.subr.mxu0 0.0
      %3177 = vmatpush1.msra.mxu0 0.0
      %3178 = vmatprep.subr.mxu0 0.0
      %3179 = vmatpush1.msra.mxu0 0.0
      %3180 = vmatprep.subr.mxu0 0.0
      %3181 = vmatpush1.msra.mxu0 0.0
      %3182 = vmatprep.subr.mxu0 0.0
      %3183 = vmatpush1.msra.mxu0 0.0
      %3184 = vmatprep.subr.mxu0 0.0
      %3185 = vmatpush1.msra.mxu0 0.0
      %3186 = vmatprep.subr.mxu0 0.0
      %3187 = vmatpush1.msra.mxu0 0.0
      %3188 = vmatprep.subr.mxu0 0.0
      %3189 = vmatpush1.msra.mxu0 0.0
      %3190 = vmatprep.subr.mxu0 0.0
      %3191 = vmatpush1.msra.mxu0 0.0
      %3192 = vmatprep.subr.mxu0 0.0
      %3193 = vmatpush1.msra.mxu0 0.0
      %3194 = vmatprep.subr.mxu0 0.0
      %3195 = vmatpush1.msra.mxu0 0.0
      %3196 = vmatprep.subr.mxu0 0.0
      %3197 = vmatpush1.msra.mxu0 0.0
      %3198 = vmatprep.subr.mxu0 0.0
      %3199 = vmatpush1.msra.mxu0 0.0
      %3200 = vmatprep.subr.mxu0 0.0
      %3201 = vmatpush1.msra.mxu0 0.0
      %3202 = vmatprep.subr.mxu0 0.0
      %3203 = vmatpush1.msra.mxu0 0.0
      %3204 = vmatprep.subr.mxu0 0.0
      %3205 = vmatpush1.msra.mxu0 0.0
      %3206 = vmatprep.subr.mxu0 0.0
      %3207 = vmatpush1.msra.mxu0 0.0
      %3208 = vmatprep.subr.mxu0 0.0
      %3209 = vmatpush1.msra.mxu0 0.0
      %3210 = vmatprep.subr.mxu0 0.0
      %3211 = vmatpush1.msra.mxu0 0.0
      %3212 = vmatprep.mubr.f32.mxu0 0.0
      %3213 = vmatmul.mubr.f32.gmra.mrb[0].mxu0 %v3084
      %v3214 = vpop.f32.mrb[0].mxu0
      %v3215 = vadd.f32 0.0, %v3214
      %v3216 = vpop.f32.mrb[0].mxu0
      %3217 = vmatprep.mubr.f32.mxu0 0.0
      %3218 = vmatmul.mubr.f32.gmra.mrb[0].mxu0 %v3086
      %v3219 = vpop.f32.mrb[0].mxu0
      %v3220 = vadd.f32 0.0, %v3219
      %v3221 = vpop.f32.mrb[0].mxu0
      %3222 = vmatprep.mubr.f32.mxu0 0.0
      %3223 = vmatmul.mubr.f32.gmra.mrb[0].mxu0 %v3088
      %v3224 = vpop.f32.mrb[0].mxu0
      %v3225 = vadd.f32 0.0, %v3224
      %v3226 = vpop.f32.mrb[0].mxu0
      %3227 = vmatprep.mubr.f32.mxu0 0.0
      %3228 = vmatmul.mubr.f32.gmra.mrb[0].mxu0 %v3090
      %v3229 = vpop.f32.mrb[0].mxu0
      %v3230 = vadd.f32 0.0, %v3229
      %v3231 = vpop.f32.mrb[0].mxu0
      %3232 = vmatprep.mubr.f32.mxu0 0.0
      %3233 = vmatmul.mubr.f32.gmra.mrb[0].mxu0 %v3092
      %v3234 = vpop.f32.mrb[0].mxu0
      %v3235 = vadd.f32 0.0, %v3234
      %v3236 = vpop.f32.mrb[0].mxu0
      %3237 = vmatprep.mubr.f32.mxu0 0.0
      %3238 = vmatmul.mubr.f32.gmra.mrb[0].mxu0 %v3094
      %v3239 = vpop.f32.mrb[0].mxu0
      %v3240 = vadd.f32 0.0, %v3239
      %v3241 = vpop.f32.mrb[0].mxu0
      %3242 = vmatprep.mubr.f32.mxu0 0.0
      %3243 = vmatmul.mubr.f32.gmra.mrb[0].mxu0 %v3096
      %v3244 = vpop.f32.mrb[0].mxu0
      %v3245 = vadd.f32 0.0, %v3244
      %v3246 = vpop.f32.mrb[0].mxu0
      %3247 = vmatprep.mubr.f32.mxu0 0.0
      %3248 = vmatmul.mubr.f32.gmra.mrb[0].mxu0 %v3098
      %v3249 = vpop.f32.mrb[0].mxu0
      %v3250 = vadd.f32 0.0, %v3249
      %v3251 = vpop.f32.mrb[0].mxu0
      %3252 = vmatprep.mubr.f32.mxu0 0.0
      %3253 = vmatmul.mubr.f32.gmra.mrb[0].mxu0 %v3100
      %v3254 = vpop.f32.mrb[0].mxu0
      %v3255 = vadd.f32 0.0, %v3254
      %v3256 = vpop.f32.mrb[0].mxu0
      %3257 = vmatprep.mubr.f32.mxu0 0.0
      %3258 = vmatmul.mubr.f32.gmra.mrb[0].mxu0 %v3102
      %v3259 = vpop.f32.mrb[0].mxu0
      %v3260 = vadd.f32 0.0, %v3259
      %v3261 = vpop.f32.mrb[0].mxu0
      %3262 = vmatprep.mubr.f32.mxu0 0.0
      %3263 = vmatmul.mubr.f32.gmra.mrb[0].mxu0 %v3104
      %v3264 = vpop.f32.mrb[0].mxu0
      %v3265 = vadd.f32 0.0, %v3264
      %v3266 = vpop.f32.mrb[0].mxu0
      %3267 = vmatprep.mubr.f32.mxu0 0.0
      %3268 = vmatmul.mubr.f32.gmra.mrb[0].mxu0 %v3106
      %v3269 = vpop.f32.mrb[0].mxu0
      %v3270 = vadd.f32 0.0, %v3269
      %v3271 = vpop.f32.mrb[0].mxu0
      %3272 = vmatprep.mubr.f32.mxu0 0.0
      %3273 = vmatmul.mubr.f32.gmra.mrb[0].mxu0 %v3108
      %v3274 = vpop.f32.mrb[0].mxu0
      %v3275 = vadd.f32 0.0, %v3274
      %v3276 = vpop.f32.mrb[0].mxu0
      %3277 = vmatprep.mubr.f32.mxu0 0.0
      %3278 = vmatmul.mubr.f32.gmra.mrb[0].mxu0 %v3110
      %v3279 = vpop.f32.mrb[0].mxu0
      %v3280 = vadd.f32 0.0, %v3279
      %v3281 = vpop.f32.mrb[0].mxu0
      %3282 = vmatprep.mubr.f32.mxu0 0.0
      %3283 = vmatmul.mubr.f32.gmra.mrb[0].mxu0 %v3112
      %v3284 = vpop.f32.mrb[0].mxu0
      %v3285 = vadd.f32 0.0, %v3284
      %v3286 = vpop.f32.mrb[0].mxu0
      %3287 = vmatprep.mubr.f32.mxu0 0.0
      %3288 = vmatmul.mubr.f32.gmra.mrb[0].mxu0 %v3114
      %v3289 = vpop.f32.mrb[0].mxu0
      %v3290 = vadd.f32 0.0, %v3289
      %v3291 = vpop.f32.mrb[0].mxu0
      %3292 = vmatprep.mubr.f32.mxu0 0.0
      %3293 = vmatmul.mubr.f32.gmra.mrb[0].mxu0 %v3116
      %v3294 = vpop.f32.mrb[0].mxu0
      %v3295 = vadd.f32 0.0, %v3294
      %v3296 = vpop.f32.mrb[0].mxu0
      %3297 = vmatprep.mubr.f32.mxu0 0.0
      %3298 = vmatmul.mubr.f32.gmra.mrb[0].mxu0 %v3118
      %v3299 = vpop.f32.mrb[0].mxu0
      %v3300 = vadd.f32 0.0, %v3299
      %v3301 = vpop.f32.mrb[0].mxu0
      %3302 = vmatprep.mubr.f32.mxu0 0.0
      %3303 = vmatmul.mubr.f32.gmra.mrb[0].mxu0 %v3120
      %v3304 = vpop.f32.mrb[0].mxu0
      %v3305 = vadd.f32 0.0, %v3304
      %v3306 = vpop.f32.mrb[0].mxu0
      %3307 = vmatprep.mubr.f32.mxu0 0.0
      %3308 = vmatmul.mubr.f32.gmra.mrb[0].mxu0 %v3122
      %v3309 = vpop.f32.mrb[0].mxu0
      %v3310 = vadd.f32 0.0, %v3309
      %v3311 = vpop.f32.mrb[0].mxu0
      %3312 = vmatprep.mubr.f32.mxu0 0.0
      %3313 = vmatmul.mubr.f32.gmra.mrb[0].mxu0 %v3124
      %v3314 = vpop.f32.mrb[0].mxu0
      %v3315 = vadd.f32 0.0, %v3314
      %v3316 = vpop.f32.mrb[0].mxu0
      %3317 = vmatprep.mubr.f32.mxu0 0.0
      %3318 = vmatmul.mubr.f32.gmra.mrb[0].mxu0 %v3126
      %v3319 = vpop.f32.mrb[0].mxu0
      %v3320 = vadd.f32 0.0, %v3319
      %v3321 = vpop.f32.mrb[0].mxu0
      %3322 = vmatprep.mubr.f32.mxu0 0.0
      %3323 = vmatmul.mubr.f32.gmra.mrb[0].mxu0 %v3128
      %v3324 = vpop.f32.mrb[0].mxu0
      %v3325 = vadd.f32 0.0, %v3324
      %v3326 = vpop.f32.mrb[0].mxu0
      %3327 = vmatprep.mubr.f32.mxu0 0.0
      %3328 = vmatmul.mubr.f32.gmra.mrb[0].mxu0 %v3130
      %v3329 = vpop.f32.mrb[0].mxu0
      %v3330 = vadd.f32 0.0, %v3329
      %v3331 = vpop.f32.mrb[0].mxu0
      %3332 = vmatprep.mubr.f32.mxu0 0.0
      %3333 = vmatmul.mubr.f32.gmra.mrb[0].mxu0 %v3132
      %v3334 = vpop.f32.mrb[0].mxu0
      %v3335 = vadd.f32 0.0, %v3334
      %v3336 = vpop.f32.mrb[0].mxu0
      %3337 = vmatprep.mubr.f32.mxu0 0.0
      %3338 = vmatmul.mubr.f32.gmra.mrb[0].mxu0 %v3134
      %v3339 = vpop.f32.mrb[0].mxu0
      %v3340 = vadd.f32 0.0, %v3339
      %v3341 = vpop.f32.mrb[0].mxu0
      %3342 = vmatprep.mubr.f32.mxu0 0.0
      %3343 = vmatmul.mubr.f32.gmra.mrb[0].mxu0 %v3136
      %v3344 = vpop.f32.mrb[0].mxu0
      %v3345 = vadd.f32 0.0, %v3344
      %v3346 = vpop.f32.mrb[0].mxu0
      %3347 = vmatprep.mubr.f32.mxu0 0.0
      %3348 = vmatmul.mubr.f32.gmra.mrb[0].mxu0 %v3138
      %v3349 = vpop.f32.mrb[0].mxu0
      %v3350 = vadd.f32 0.0, %v3349
      %v3351 = vpop.f32.mrb[0].mxu0
      %3352 = vmatprep.mubr.f32.mxu0 0.0
      %3353 = vmatmul.mubr.f32.gmra.mrb[0].mxu0 %v3140
      %v3354 = vpop.f32.mrb[0].mxu0
      %v3355 = vadd.f32 0.0, %v3354
      %v3356 = vpop.f32.mrb[0].mxu0
      %3357 = vmatprep.mubr.f32.mxu0 0.0
      %3358 = vmatmul.mubr.f32.gmra.mrb[0].mxu0 %v3142
      %v3359 = vpop.f32.mrb[0].mxu0
      %v3360 = vadd.f32 0.0, %v3359
      %v3361 = vpop.f32.mrb[0].mxu0
      %3362 = vmatprep.mubr.f32.mxu0 0.0
      %3363 = vmatmul.mubr.f32.gmra.mrb[0].mxu0 %v3144
      %v3364 = vpop.f32.mrb[0].mxu0
      %v3365 = vadd.f32 0.0, %v3364
      %v3366 = vpop.f32.mrb[0].mxu0
      %3367 = vmatprep.mubr.f32.mxu0 0.0
      %3368 = vmatmul.mubr.f32.gmra.mrb[0].mxu0 %v3146
      %v3369 = vpop.f32.mrb[0].mxu0
      %v3370 = vadd.f32 0.0, %v3369
      %v3371 = vpop.f32.mrb[0].mxu0
      %3372 = vdwg.mxu0
      %v3373 = vadd.f32 %v2970, %v3215
      %v3374 = vadd.f32 %v2971, %v3220
      %v3375 = vadd.f32 %v2972, %v3225
      %v3376 = vadd.f32 %v2973, %v3230
      %v3377 = vadd.f32 %v2974, %v3235
      %v3378 = vadd.f32 %v2975, %v3240
      %v3379 = vadd.f32 %v2976, %v3245
      %v3380 = vadd.f32 %v2977, %v3250
      %v3381 = vadd.f32 %v2978, %v3255
      %v3382 = vadd.f32 %v2979, %v3260
      %v3383 = vadd.f32 %v2980, %v3265
      %v3384 = vadd.f32 %v2981, %v3270
      %v3385 = vadd.f32 %v2982, %v3275
      %v3386 = vadd.f32 %v2983, %v3280
      %v3387 = vadd.f32 %v2984, %v3285
      %v3388 = vadd.f32 %v2985, %v3290
      %v3389 = vadd.f32 %v2986, %v3295
      %v3390 = vadd.f32 %v2987, %v3300
      %v3391 = vadd.f32 %v2988, %v3305
      %v3392 = vadd.f32 %v2989, %v3310
      %v3393 = vadd.f32 %v2990, %v3315
      %v3394 = vadd.f32 %v2991, %v3320
      %v3395 = vadd.f32 %v2992, %v3325
      %v3396 = vadd.f32 %v2993, %v3330
      %v3397 = vadd.f32 %v2994, %v3335
      %v3398 = vadd.f32 %v2995, %v3340
      %v3399 = vadd.f32 %v2996, %v3345
      %v3400 = vadd.f32 %v2997, %v3350
      %v3401 = vadd.f32 %v2998, %v3355
      %v3402 = vadd.f32 %v2999, %v3360
      %v3403 = vadd.f32 %v3000, %v3365
      %v3404 = vadd.f32 %v3001, %v3370
      %v3405 = vrot.slane %v2607, 2
      %v3406 = vrot.slane %v2608, 2
      %v3407 = vsel %vm1018, %v3405, %v3406
      %v3408 = vrot.slane %v2609, 2
      %v3409 = vsel %vm1018, %v3406, %v3408
      %v3410 = vrot.slane %v2610, 2
      %v3411 = vsel %vm1018, %v3408, %v3410
      %v3412 = vrot.slane %v2611, 2
      %v3413 = vsel %vm1018, %v3410, %v3412
      %v3414 = vrot.slane %v2612, 2
      %v3415 = vrot.slane %v2613, 2
      %v3416 = vsel %vm1018, %v3414, %v3415
      %v3417 = vrot.slane %v2614, 2
      %v3418 = vsel %vm1018, %v3415, %v3417
      %v3419 = vrot.slane %v2615, 2
      %v3420 = vsel %vm1018, %v3417, %v3419
      %v3421 = vrot.slane %v2616, 2
      %v3422 = vsel %vm1018, %v3419, %v3421
      %v3423 = vrot.slane %v2617, 2
      %v3424 = vrot.slane %v2618, 2
      %v3425 = vsel %vm1018, %v3423, %v3424
      %v3426 = vrot.slane %v2619, 2
      %v3427 = vsel %vm1018, %v3424, %v3426
      %v3428 = vrot.slane %v2620, 2
      %v3429 = vsel %vm1018, %v3426, %v3428
      %v3430 = vrot.slane %v2621, 2
      %v3431 = vsel %vm1018, %v3428, %v3430
      %v3432 = vrot.slane %v2622, 2
      %v3433 = vrot.slane %v2623, 2
      %v3434 = vsel %vm1018, %v3432, %v3433
      %v3435 = vrot.slane %v2624, 2
      %v3436 = vsel %vm1018, %v3433, %v3435
      %v3437 = vrot.slane %v2625, 2
      %v3438 = vsel %vm1018, %v3435, %v3437
      %v3439 = vrot.slane %v2626, 2
      %v3440 = vsel %vm1018, %v3437, %v3439
      %v3441 = vrot.slane %v2627, 2
      %v3442 = vrot.slane %v2628, 2
      %v3443 = vsel %vm1018, %v3441, %v3442
      %v3444 = vrot.slane %v2629, 2
      %v3445 = vsel %vm1018, %v3442, %v3444
      %v3446 = vrot.slane %v2630, 2
      %v3447 = vsel %vm1018, %v3444, %v3446
      %v3448 = vrot.slane %v2631, 2
      %v3449 = vsel %vm1018, %v3446, %v3448
      %v3450 = vrot.slane %v2632, 2
      %v3451 = vrot.slane %v2633, 2
      %v3452 = vsel %vm1018, %v3450, %v3451
      %v3453 = vrot.slane %v2634, 2
      %v3454 = vsel %vm1018, %v3451, %v3453
      %v3455 = vrot.slane %v2635, 2
      %v3456 = vsel %vm1018, %v3453, %v3455
      %v3457 = vrot.slane %v2636, 2
      %v3458 = vsel %vm1018, %v3455, %v3457
      %v3459 = vrot.slane %v2637, 2
      %v3460 = vrot.slane %v2638, 2
      %v3461 = vsel %vm1018, %v3459, %v3460
      %v3462 = vrot.slane %v2639, 2
      %v3463 = vsel %vm1018, %v3460, %v3462
      %v3464 = vrot.slane %v2640, 2
      %v3465 = vsel %vm1018, %v3462, %v3464
      %v3466 = vrot.slane %v2641, 2
      %v3467 = vsel %vm1018, %v3464, %v3466
      %v3468 = vrot.slane %v2642, 2
      %v3469 = vrot.slane %v2643, 2
      %v3470 = vsel %vm1018, %v3468, %v3469
      %v3471 = vrot.slane %v2644, 2
      %v3472 = vsel %vm1018, %v3469, %v3471
      %v3473 = vrot.slane %v2645, 2
      %v3474 = vsel %vm1018, %v3471, %v3473
      %v3475 = vrot.slane %v2646, 2
      %v3476 = vsel %vm1018, %v3473, %v3475
      %s3477 = scalar_lea.vmem %s3, 64
      %v3478 = vld [vmem:[%s3477] sm:$0xff]
      %v3479 = vsel %vm439, %v3407, 0
      %v3481 = vsel %vm439, %v3409, 0
      %v3483 = vsel %vm439, %v3411, 0
      %v3485 = vsel %vm439, %v3413, 0
      %v3487 = vsel %vm439, %v3416, 0
      %v3489 = vsel %vm439, %v3418, 0
      %v3491 = vsel %vm439, %v3420, 0
      %v3493 = vsel %vm439, %v3422, 0
      %v3495 = vsel %vm439, %v3425, 0
      %v3497 = vsel %vm439, %v3427, 0
      %v3499 = vsel %vm439, %v3429, 0
      %v3501 = vsel %vm439, %v3431, 0
      %v3503 = vsel %vm439, %v3434, 0
      %v3505 = vsel %vm439, %v3436, 0
      %v3507 = vsel %vm439, %v3438, 0
      %v3509 = vsel %vm439, %v3440, 0
      %v3511 = vsel %vm439, %v3443, 0
      %v3513 = vsel %vm439, %v3445, 0
      %v3515 = vsel %vm439, %v3447, 0
      %v3517 = vsel %vm439, %v3449, 0
      %v3519 = vsel %vm439, %v3452, 0
      %v3521 = vsel %vm439, %v3454, 0
      %v3523 = vsel %vm439, %v3456, 0
      %v3525 = vsel %vm439, %v3458, 0
      %v3527 = vsel %vm439, %v3461, 0
      %v3529 = vsel %vm439, %v3463, 0
      %v3531 = vsel %vm439, %v3465, 0
      %v3533 = vsel %vm439, %v3467, 0
      %v3535 = vsel %vm439, %v3470, 0
      %v3537 = vsel %vm439, %v3472, 0
      %v3539 = vsel %vm439, %v3474, 0
      %v3541 = vsel %vm439, %v3476, 0
      %3543 = vmatprep.subr.mxu0 0.0
      %3544 = vmatpush1.msra.mxu0 %v3478
      %3545 = vmatprep.subr.mxu0 0.0
      %3546 = vmatpush1.msra.mxu0 0.0
      %3547 = vmatprep.subr.mxu0 0.0
      %3548 = vmatpush1.msra.mxu0 0.0
      %3549 = vmatprep.subr.mxu0 0.0
      %3550 = vmatpush1.msra.mxu0 0.0
      %3551 = vmatprep.subr.mxu0 0.0
      %3552 = vmatpush1.msra.mxu0 0.0
      %3553 = vmatprep.subr.mxu0 0.0
      %3554 = vmatpush1.msra.mxu0 0.0
      %3555 = vmatprep.subr.mxu0 0.0
      %3556 = vmatpush1.msra.mxu0 0.0
      %3557 = vmatprep.subr.mxu0 0.0
      %3558 = vmatpush1.msra.mxu0 0.0
      %3559 = vmatprep.subr.mxu0 0.0
      %3560 = vmatpush1.msra.mxu0 0.0
      %3561 = vmatprep.subr.mxu0 0.0
      %3562 = vmatpush1.msra.mxu0 0.0
      %3563 = vmatprep.subr.mxu0 0.0
      %3564 = vmatpush1.msra.mxu0 0.0
      %3565 = vmatprep.subr.mxu0 0.0
      %3566 = vmatpush1.msra.mxu0 0.0
      %3567 = vmatprep.subr.mxu0 0.0
      %3568 = vmatpush1.msra.mxu0 0.0
      %3569 = vmatprep.subr.mxu0 0.0
      %3570 = vmatpush1.msra.mxu0 0.0
      %3571 = vmatprep.subr.mxu0 0.0
      %3572 = vmatpush1.msra.mxu0 0.0
      %3573 = vmatprep.subr.mxu0 0.0
      %3574 = vmatpush1.msra.mxu0 0.0
      %3575 = vmatprep.subr.mxu0 0.0
      %3576 = vmatpush1.msra.mxu0 0.0
      %3577 = vmatprep.subr.mxu0 0.0
      %3578 = vmatpush1.msra.mxu0 0.0
      %3579 = vmatprep.subr.mxu0 0.0
      %3580 = vmatpush1.msra.mxu0 0.0
      %3581 = vmatprep.subr.mxu0 0.0
      %3582 = vmatpush1.msra.mxu0 0.0
      %3583 = vmatprep.subr.mxu0 0.0
      %3584 = vmatpush1.msra.mxu0 0.0
      %3585 = vmatprep.subr.mxu0 0.0
      %3586 = vmatpush1.msra.mxu0 0.0
      %3587 = vmatprep.subr.mxu0 0.0
      %3588 = vmatpush1.msra.mxu0 0.0
      %3589 = vmatprep.subr.mxu0 0.0
      %3590 = vmatpush1.msra.mxu0 0.0
      %3591 = vmatprep.subr.mxu0 0.0
      %3592 = vmatpush1.msra.mxu0 0.0
      %3593 = vmatprep.subr.mxu0 0.0
      %3594 = vmatpush1.msra.mxu0 0.0
      %3595 = vmatprep.subr.mxu0 0.0
      %3596 = vmatpush1.msra.mxu0 0.0
      %3597 = vmatprep.subr.mxu0 0.0
      %3598 = vmatpush1.msra.mxu0 0.0
      %3599 = vmatprep.subr.mxu0 0.0
      %3600 = vmatpush1.msra.mxu0 0.0
      %3601 = vmatprep.subr.mxu0 0.0
      %3602 = vmatpush1.msra.mxu0 0.0
      %3603 = vmatprep.subr.mxu0 0.0
      %3604 = vmatpush1.msra.mxu0 0.0
      %3605 = vmatprep.subr.mxu0 0.0
      %3606 = vmatpush1.msra.mxu0 0.0
      %3607 = vmatprep.mubr.f32.mxu0 0.0
      %3608 = vmatmul.mubr.f32.gmra.mrb[0].mxu0 %v3479
      %v3609 = vpop.f32.mrb[0].mxu0
      %v3610 = vadd.f32 0.0, %v3609
      %v3611 = vpop.f32.mrb[0].mxu0
      %3612 = vmatprep.mubr.f32.mxu0 0.0
      %3613 = vmatmul.mubr.f32.gmra.mrb[0].mxu0 %v3481
      %v3614 = vpop.f32.mrb[0].mxu0
      %v3615 = vadd.f32 0.0, %v3614
      %v3616 = vpop.f32.mrb[0].mxu0
      %3617 = vmatprep.mubr.f32.mxu0 0.0
      %3618 = vmatmul.mubr.f32.gmra.mrb[0].mxu0 %v3483
      %v3619 = vpop.f32.mrb[0].mxu0
      %v3620 = vadd.f32 0.0, %v3619
      %v3621 = vpop.f32.mrb[0].mxu0
      %3622 = vmatprep.mubr.f32.mxu0 0.0
      %3623 = vmatmul.mubr.f32.gmra.mrb[0].mxu0 %v3485
      %v3624 = vpop.f32.mrb[0].mxu0
      %v3625 = vadd.f32 0.0, %v3624
      %v3626 = vpop.f32.mrb[0].mxu0
      %3627 = vmatprep.mubr.f32.mxu0 0.0
      %3628 = vmatmul.mubr.f32.gmra.mrb[0].mxu0 %v3487
      %v3629 = vpop.f32.mrb[0].mxu0
      %v3630 = vadd.f32 0.0, %v3629
      %v3631 = vpop.f32.mrb[0].mxu0
      %3632 = vmatprep.mubr.f32.mxu0 0.0
      %3633 = vmatmul.mubr.f32.gmra.mrb[0].mxu0 %v3489
      %v3634 = vpop.f32.mrb[0].mxu0
      %v3635 = vadd.f32 0.0, %v3634
      %v3636 = vpop.f32.mrb[0].mxu0
      %3637 = vmatprep.mubr.f32.mxu0 0.0
      %3638 = vmatmul.mubr.f32.gmra.mrb[0].mxu0 %v3491
      %v3639 = vpop.f32.mrb[0].mxu0
      %v3640 = vadd.f32 0.0, %v3639
      %v3641 = vpop.f32.mrb[0].mxu0
      %3642 = vmatprep.mubr.f32.mxu0 0.0
      %3643 = vmatmul.mubr.f32.gmra.mrb[0].mxu0 %v3493
      %v3644 = vpop.f32.mrb[0].mxu0
      %v3645 = vadd.f32 0.0, %v3644
      %v3646 = vpop.f32.mrb[0].mxu0
      %3647 = vmatprep.mubr.f32.mxu0 0.0
      %3648 = vmatmul.mubr.f32.gmra.mrb[0].mxu0 %v3495
      %v3649 = vpop.f32.mrb[0].mxu0
      %v3650 = vadd.f32 0.0, %v3649
      %v3651 = vpop.f32.mrb[0].mxu0
      %3652 = vmatprep.mubr.f32.mxu0 0.0
      %3653 = vmatmul.mubr.f32.gmra.mrb[0].mxu0 %v3497
      %v3654 = vpop.f32.mrb[0].mxu0
      %v3655 = vadd.f32 0.0, %v3654
      %v3656 = vpop.f32.mrb[0].mxu0
      %3657 = vmatprep.mubr.f32.mxu0 0.0
      %3658 = vmatmul.mubr.f32.gmra.mrb[0].mxu0 %v3499
      %v3659 = vpop.f32.mrb[0].mxu0
      %v3660 = vadd.f32 0.0, %v3659
      %v3661 = vpop.f32.mrb[0].mxu0
      %3662 = vmatprep.mubr.f32.mxu0 0.0
      %3663 = vmatmul.mubr.f32.gmra.mrb[0].mxu0 %v3501
      %v3664 = vpop.f32.mrb[0].mxu0
      %v3665 = vadd.f32 0.0, %v3664
      %v3666 = vpop.f32.mrb[0].mxu0
      %3667 = vmatprep.mubr.f32.mxu0 0.0
      %3668 = vmatmul.mubr.f32.gmra.mrb[0].mxu0 %v3503
      %v3669 = vpop.f32.mrb[0].mxu0
      %v3670 = vadd.f32 0.0, %v3669
      %v3671 = vpop.f32.mrb[0].mxu0
      %3672 = vmatprep.mubr.f32.mxu0 0.0
      %3673 = vmatmul.mubr.f32.gmra.mrb[0].mxu0 %v3505
      %v3674 = vpop.f32.mrb[0].mxu0
      %v3675 = vadd.f32 0.0, %v3674
      %v3676 = vpop.f32.mrb[0].mxu0
      %3677 = vmatprep.mubr.f32.mxu0 0.0
      %3678 = vmatmul.mubr.f32.gmra.mrb[0].mxu0 %v3507
      %v3679 = vpop.f32.mrb[0].mxu0
      %v3680 = vadd.f32 0.0, %v3679
      %v3681 = vpop.f32.mrb[0].mxu0
      %3682 = vmatprep.mubr.f32.mxu0 0.0
      %3683 = vmatmul.mubr.f32.gmra.mrb[0].mxu0 %v3509
      %v3684 = vpop.f32.mrb[0].mxu0
      %v3685 = vadd.f32 0.0, %v3684
      %v3686 = vpop.f32.mrb[0].mxu0
      %3687 = vmatprep.mubr.f32.mxu0 0.0
      %3688 = vmatmul.mubr.f32.gmra.mrb[0].mxu0 %v3511
      %v3689 = vpop.f32.mrb[0].mxu0
      %v3690 = vadd.f32 0.0, %v3689
      %v3691 = vpop.f32.mrb[0].mxu0
      %3692 = vmatprep.mubr.f32.mxu0 0.0
      %3693 = vmatmul.mubr.f32.gmra.mrb[0].mxu0 %v3513
      %v3694 = vpop.f32.mrb[0].mxu0
      %v3695 = vadd.f32 0.0, %v3694
      %v3696 = vpop.f32.mrb[0].mxu0
      %3697 = vmatprep.mubr.f32.mxu0 0.0
      %3698 = vmatmul.mubr.f32.gmra.mrb[0].mxu0 %v3515
      %v3699 = vpop.f32.mrb[0].mxu0
      %v3700 = vadd.f32 0.0, %v3699
      %v3701 = vpop.f32.mrb[0].mxu0
      %3702 = vmatprep.mubr.f32.mxu0 0.0
      %3703 = vmatmul.mubr.f32.gmra.mrb[0].mxu0 %v3517
      %v3704 = vpop.f32.mrb[0].mxu0
      %v3705 = vadd.f32 0.0, %v3704
      %v3706 = vpop.f32.mrb[0].mxu0
      %3707 = vmatprep.mubr.f32.mxu0 0.0
      %3708 = vmatmul.mubr.f32.gmra.mrb[0].mxu0 %v3519
      %v3709 = vpop.f32.mrb[0].mxu0
      %v3710 = vadd.f32 0.0, %v3709
      %v3711 = vpop.f32.mrb[0].mxu0
      %3712 = vmatprep.mubr.f32.mxu0 0.0
      %3713 = vmatmul.mubr.f32.gmra.mrb[0].mxu0 %v3521
      %v3714 = vpop.f32.mrb[0].mxu0
      %v3715 = vadd.f32 0.0, %v3714
      %v3716 = vpop.f32.mrb[0].mxu0
      %3717 = vmatprep.mubr.f32.mxu0 0.0
      %3718 = vmatmul.mubr.f32.gmra.mrb[0].mxu0 %v3523
      %v3719 = vpop.f32.mrb[0].mxu0
      %v3720 = vadd.f32 0.0, %v3719
      %v3721 = vpop.f32.mrb[0].mxu0
      %3722 = vmatprep.mubr.f32.mxu0 0.0
      %3723 = vmatmul.mubr.f32.gmra.mrb[0].mxu0 %v3525
      %v3724 = vpop.f32.mrb[0].mxu0
      %v3725 = vadd.f32 0.0, %v3724
      %v3726 = vpop.f32.mrb[0].mxu0
      %3727 = vmatprep.mubr.f32.mxu0 0.0
      %3728 = vmatmul.mubr.f32.gmra.mrb[0].mxu0 %v3527
      %v3729 = vpop.f32.mrb[0].mxu0
      %v3730 = vadd.f32 0.0, %v3729
      %v3731 = vpop.f32.mrb[0].mxu0
      %3732 = vmatprep.mubr.f32.mxu0 0.0
      %3733 = vmatmul.mubr.f32.gmra.mrb[0].mxu0 %v3529
      %v3734 = vpop.f32.mrb[0].mxu0
      %v3735 = vadd.f32 0.0, %v3734
      %v3736 = vpop.f32.mrb[0].mxu0
      %3737 = vmatprep.mubr.f32.mxu0 0.0
      %3738 = vmatmul.mubr.f32.gmra.mrb[0].mxu0 %v3531
      %v3739 = vpop.f32.mrb[0].mxu0
      %v3740 = vadd.f32 0.0, %v3739
      %v3741 = vpop.f32.mrb[0].mxu0
      %3742 = vmatprep.mubr.f32.mxu0 0.0
      %3743 = vmatmul.mubr.f32.gmra.mrb[0].mxu0 %v3533
      %v3744 = vpop.f32.mrb[0].mxu0
      %v3745 = vadd.f32 0.0, %v3744
      %v3746 = vpop.f32.mrb[0].mxu0
      %3747 = vmatprep.mubr.f32.mxu0 0.0
      %3748 = vmatmul.mubr.f32.gmra.mrb[0].mxu0 %v3535
      %v3749 = vpop.f32.mrb[0].mxu0
      %v3750 = vadd.f32 0.0, %v3749
      %v3751 = vpop.f32.mrb[0].mxu0
      %3752 = vmatprep.mubr.f32.mxu0 0.0
      %3753 = vmatmul.mubr.f32.gmra.mrb[0].mxu0 %v3537
      %v3754 = vpop.f32.mrb[0].mxu0
      %v3755 = vadd.f32 0.0, %v3754
      %v3756 = vpop.f32.mrb[0].mxu0
      %3757 = vmatprep.mubr.f32.mxu0 0.0
      %3758 = vmatmul.mubr.f32.gmra.mrb[0].mxu0 %v3539
      %v3759 = vpop.f32.mrb[0].mxu0
      %v3760 = vadd.f32 0.0, %v3759
      %v3761 = vpop.f32.mrb[0].mxu0
      %3762 = vmatprep.mubr.f32.mxu0 0.0
      %3763 = vmatmul.mubr.f32.gmra.mrb[0].mxu0 %v3541
      %v3764 = vpop.f32.mrb[0].mxu0
      %v3765 = vadd.f32 0.0, %v3764
      %v3766 = vpop.f32.mrb[0].mxu0
      %3767 = vdwg.mxu0
      %v3768 = vadd.f32 %v3373, %v3610
      %v3769 = vadd.f32 %v3374, %v3615
      %v3770 = vadd.f32 %v3375, %v3620
      %v3771 = vadd.f32 %v3376, %v3625
      %v3772 = vadd.f32 %v3377, %v3630
      %v3773 = vadd.f32 %v3378, %v3635
      %v3774 = vadd.f32 %v3379, %v3640
      %v3775 = vadd.f32 %v3380, %v3645
      %v3776 = vadd.f32 %v3381, %v3650
      %v3777 = vadd.f32 %v3382, %v3655
      %v3778 = vadd.f32 %v3383, %v3660
      %v3779 = vadd.f32 %v3384, %v3665
      %v3780 = vadd.f32 %v3385, %v3670
      %v3781 = vadd.f32 %v3386, %v3675
      %v3782 = vadd.f32 %v3387, %v3680
      %v3783 = vadd.f32 %v3388, %v3685
      %v3784 = vadd.f32 %v3389, %v3690
      %v3785 = vadd.f32 %v3390, %v3695
      %v3786 = vadd.f32 %v3391, %v3700
      %v3787 = vadd.f32 %v3392, %v3705
      %v3788 = vadd.f32 %v3393, %v3710
      %v3789 = vadd.f32 %v3394, %v3715
      %v3790 = vadd.f32 %v3395, %v3720
      %v3791 = vadd.f32 %v3396, %v3725
      %v3792 = vadd.f32 %v3397, %v3730
      %v3793 = vadd.f32 %v3398, %v3735
      %v3794 = vadd.f32 %v3399, %v3740
      %v3795 = vadd.f32 %v3400, %v3745
      %v3796 = vadd.f32 %v3401, %v3750
      %v3797 = vadd.f32 %v3402, %v3755
      %v3798 = vadd.f32 %v3403, %v3760
      %v3799 = vadd.f32 %v3404, %v3765
      %v3800 = vld [vmem:[%s4] sm:$0x1]
      %v3802 = vlaneseq
      %v3803 = vshrl.u32 %v3802, 7
      %v3804 = vsub.s32 0, %v3803
      %v3805 = vrot.slane %v3800, %v3804
      %v3807 = vadd.f32 %v3768, %v3805
      %v3808 = vadd.f32 %v3769, %v3805
      %v3809 = vadd.f32 %v3770, %v3805
      %v3810 = vadd.f32 %v3771, %v3805
      %v3811 = vadd.f32 %v3772, %v3805
      %v3812 = vadd.f32 %v3773, %v3805
      %v3813 = vadd.f32 %v3774, %v3805
      %v3814 = vadd.f32 %v3775, %v3805
      %v3815 = vadd.f32 %v3776, %v3805
      %v3816 = vadd.f32 %v3777, %v3805
      %v3817 = vadd.f32 %v3778, %v3805
      %v3818 = vadd.f32 %v3779, %v3805
      %v3819 = vadd.f32 %v3780, %v3805
      %v3820 = vadd.f32 %v3781, %v3805
      %v3821 = vadd.f32 %v3782, %v3805
      %v3822 = vadd.f32 %v3783, %v3805
      %v3823 = vadd.f32 %v3784, %v3805
      %v3824 = vadd.f32 %v3785, %v3805
      %v3825 = vadd.f32 %v3786, %v3805
      %v3826 = vadd.f32 %v3787, %v3805
      %v3827 = vadd.f32 %v3788, %v3805
      %v3828 = vadd.f32 %v3789, %v3805
      %v3829 = vadd.f32 %v3790, %v3805
      %v3830 = vadd.f32 %v3791, %v3805
      %v3831 = vadd.f32 %v3792, %v3805
      %v3832 = vadd.f32 %v3793, %v3805
      %v3833 = vadd.f32 %v3794, %v3805
      %v3834 = vadd.f32 %v3795, %v3805
      %v3835 = vadd.f32 %v3796, %v3805
      %v3836 = vadd.f32 %v3797, %v3805
      %v3837 = vadd.f32 %v3798, %v3805
      %v3838 = vadd.f32 %v3799, %v3805
      %vm3839 = vcmask 523264
      %3840 = vst.msk [vmem:[%s281] sm:$0xff] %vm3839, %v3807
      %3841 = vst.msk [vmem:[%s281 + $0x8] sm:$0xff] %vm3839, %v3808
      %3842 = vst.msk [vmem:[%s281 + $0x10] sm:$0xff] %vm3839, %v3809
      %3843 = vst.msk [vmem:[%s281 + $0x18] sm:$0xff] %vm3839, %v3810
      %3844 = vst.msk [vmem:[%s281 + $0x20] sm:$0xff] %vm3839, %v3811
      %3845 = vst.msk [vmem:[%s281 + $0x28] sm:$0xff] %vm3839, %v3812
      %3846 = vst.msk [vmem:[%s281 + $0x30] sm:$0xff] %vm3839, %v3813
      %3847 = vst.msk [vmem:[%s281 + $0x38] sm:$0xff] %vm3839, %v3814
      %3848 = vst.msk [vmem:[%s281 + $0x40] sm:$0xff] %vm3839, %v3815
      %3849 = vst.msk [vmem:[%s281 + $0x48] sm:$0xff] %vm3839, %v3816
      %3850 = vst.msk [vmem:[%s281 + $0x50] sm:$0xff] %vm3839, %v3817
      %3851 = vst.msk [vmem:[%s281 + $0x58] sm:$0xff] %vm3839, %v3818
      %3852 = vst.msk [vmem:[%s281 + $0x60] sm:$0xff] %vm3839, %v3819
      %3853 = vst.msk [vmem:[%s281 + $0x68] sm:$0xff] %vm3839, %v3820
      %3854 = vst.msk [vmem:[%s281 + $0x70] sm:$0xff] %vm3839, %v3821
      %3855 = vst.msk [vmem:[%s281 + $0x78] sm:$0xff] %vm3839, %v3822
      %3856 = vst.msk [vmem:[%s281 + $0x80] sm:$0xff] %vm3839, %v3823
      %3857 = vst.msk [vmem:[%s281 + $0x88] sm:$0xff] %vm3839, %v3824
      %3858 = vst.msk [vmem:[%s281 + $0x90] sm:$0xff] %vm3839, %v3825
      %3859 = vst.msk [vmem:[%s281 + $0x98] sm:$0xff] %vm3839, %v3826
      %3860 = vst.msk [vmem:[%s281 + $0xa0] sm:$0xff] %vm3839, %v3827
      %3861 = vst.msk [vmem:[%s281 + $0xa8] sm:$0xff] %vm3839, %v3828
      %3862 = vst.msk [vmem:[%s281 + $0xb0] sm:$0xff] %vm3839, %v3829
      %3863 = vst.msk [vmem:[%s281 + $0xb8] sm:$0xff] %vm3839, %v3830
      %3864 = vst.msk [vmem:[%s281 + $0xc0] sm:$0xff] %vm3839, %v3831
      %3865 = vst.msk [vmem:[%s281 + $0xc8] sm:$0xff] %vm3839, %v3832
      %3866 = vst.msk [vmem:[%s281 + $0xd0] sm:$0xff] %vm3839, %v3833
      %3867 = vst.msk [vmem:[%s281 + $0xd8] sm:$0xff] %vm3839, %v3834
      %3868 = vst.msk [vmem:[%s281 + $0xe0] sm:$0xff] %vm3839, %v3835
      %3869 = vst.msk [vmem:[%s281 + $0xe8] sm:$0xff] %vm3839, %v3836
      %3870 = vst.msk [vmem:[%s281 + $0xf0] sm:$0xff] %vm3839, %v3837
      %3871 = vst.msk [vmem:[%s281 + $0xf8] sm:$0xff] %vm3839, %v3838
      %s3872 = smul.u32 8, %s16
      %p3873 = scmp.lt.s32.totalorder %s3872, 63
      %s3874 = scalar_select %p3873, %s3872, 63
      %s3875 = smul.addr %s3874, 4
      %s3876 = smul.addr %s3875, 8
      %s3877 = scalar_lea.vmem %s5, %s3876
      // Predicated region
      $region41: #{downsample_x8_forward.5} parent=39 // pred_check
        %p3878 = pneg %p154
      $region42: #{downsample_x8_forward.5} parent=39 // pred_check_branch
        %3880 = sbr.rel (%p3878) target = $region44
      $region43: #{downsample_x8_forward.5} parent=39 // pred_region
        %s3881 = smul.u32 8, %s16
      $region44: #{downsample_x8_forward.5} parent=39 // pred_fallthru
        _
    $region40: #{downsample_x8_forward.5} parent=5 // pred_fallthru
      _
    %p3882 = scmp.le.s32.totalorder 2, %s11
    // Predicated region
    $region45: #{downsample_x8_forward.5} parent=5 // pred_check
      %p3883 = pneg %p3882
    $region46: #{downsample_x8_forward.5} parent=5 // pred_check_branch
      %3885 = sbr.rel (%p3883) target = $region48
    $region47: #{downsample_x8_forward.5} parent=5 // pred_region
      %s3886 = ssub.s32 %s11, 2
      // Predicated region
      $region49: #{downsample_x8_forward.5} parent=47 // pred_check
        %p3887 = pneg %p160
      $region50: #{downsample_x8_forward.5} parent=47 // pred_check_branch
        %3889 = sbr.rel (%p3887) target = $region52
      $region51: #{downsample_x8_forward.5} parent=47 // pred_region
        %s3890 = smul.u32 8, %s17
        %p3891 = scmp.lt.s32.totalorder %s3890, 63
        %s3892 = scalar_select %p3891, %s3890, 63
        %s3893 = smul.addr %s3892, 4
        %s3894 = smul.addr %s3893, 8
        %s3895 = scalar_lea.vmem %s5, %s3894
      $region52: #{downsample_x8_forward.5} parent=47 // pred_fallthru
        _
    $region48: #{downsample_x8_forward.5} parent=5 // pred_fallthru
      _
  $region6: #{downsample_x8_forward.5} parent=0 // loop_footer
    %s15 = sadd.s32 1, %s11
  $region7: #{downsample_x8_forward.5} parent=0 // loop_footer_branch
    %10 = sbr.rel target = $region3
  $region8: #{downsample_x8_forward.5} parent=0 // loop_exit
    _

// kernel: downsample_x8_forward.8
$region0: #{downsample_x8_forward.8}
  #allocation0 [shape = 'u32[]', space=smem, size = 0x4, offset = 0x4, fixed_abs, tag = 'smem constant byte address 0x4 - core index']
  #allocation1 [shape = 'u32[144,128]{1,0:T(1,128)}', space=vmem, size = 0x12000, scoped, tag = 'internal scratch']
  %s0 = inlined_call_operand.vmem [shape: f32[8,8,128], index: 0, kind: input, shape index: {}]
  %s1 = inlined_call_operand.vmem [shape: f32[2,128,64], index: 1, kind: input, shape index: {}]
  %s2 = inlined_call_operand.vmem [shape: f32[1,64], index: 2, kind: input, shape index: {}]
  %s3 = inlined_call_operand.vmem [shape: f32[8,4,64], index: 3, kind: output, shape index: {}]
  %s4 = sld [smem:[#allocation0]]
  $region45: #{downsample_x8_forward.8} parent=0
    _
  %s6 = ssub.s32 1, %s4
  %s7 = scalar_select 0, %s6, %s4
  loop: start=0, step=1, limit=4
  $region2: #{downsample_x8_forward.8} parent=0 // loop_pre_header
    _
  $region3: #{downsample_x8_forward.8} parent=0 // loop_header
    %s9 = sphi 0, %s13
    %p10 = scmp.ge.s32.totalorder %s9, 4
    %s19 = sphi 0, %s21
    %s22 = sphi 0, %s19
    %s23 = sphi 0, %s22
    %s39 = sphi 0, %s23
    %s43 = sphi 0, %s43
    %s45 = sphi 0, %s43
    %s46 = sphi 0, %s45
    %s60 = sphi 0, %s46
    %s64 = sphi 0, %s64
    %s66 = sphi 0, %s64
    %s67 = sphi 0, %s66
    %s81 = sphi 0, %s67
    %s87 = sphi 0, %s89
    %s90 = sphi 0, %s87
    %s91 = sphi 0, %s90
    %s107 = sphi 0, %s91
  $region4: #{downsample_x8_forward.8} parent=0 // loop_header_branch
    %12 = sbr.rel (%p10) target = $region8
  $region5: #{downsample_x8_forward.8} parent=0 // loop_body
    %s14 = ssub.s32 %s9, 1
    %s15 = ssub.s32 %s9, 2
    %s16 = sadd.s32 %s9, 1
    %s17 = ssub.s32 %s9, %s16
    %p18 = scmp.eq.s32.totalorder %s17, 0
    %s20 = sadd.s32 %s19, 1
    %s21 = scalar_select %p18, %s19, %s20
    %p24 = pneg %p18
    %p25 = scmp.eq.s32.totalorder %s9, 1
    %p26 = por %p24, %p25
    %p27 = scmp.ne.s32.totalorder %s19, %s22
    %p28 = scmp.eq.s32.totalorder %s9, 0
    %p29 = por %p27, %p28
    %p30 = scmp.ne.s32.totalorder %s19, %s22
    %p31 = scmp.eq.s32.totalorder %s14, 1
    %p32 = por %p30, %p31
    %p33 = scmp.ne.s32.totalorder %s22, %s23
    %p34 = scmp.eq.s32.totalorder %s14, 0
    %p35 = por %p33, %p34
    %p36 = scmp.ne.s32.totalorder %s22, %s23
    %p37 = scmp.eq.s32.totalorder %s15, 1
    %p38 = por %p36, %p37
    %p40 = scmp.ne.s32.totalorder %s23, %s39
    %p41 = scmp.eq.s32.totalorder %s15, 0
    %p42 = por %p40, %p41
    %s44 = sadd.s32 %s43, 1
    %p47 = scmp.eq.s32.totalorder %s9, 1
    %p48 = scmp.ne.s32.totalorder %s43, %s45
    %p49 = scmp.eq.s32.totalorder %s9, 0
    %p50 = por %p48, %p49
    %p51 = scmp.ne.s32.totalorder %s43, %s45
    %p52 = scmp.eq.s32.totalorder %s14, 1
    %p53 = por %p51, %p52
    %p54 = scmp.ne.s32.totalorder %s45, %s46
    %p55 = scmp.eq.s32.totalorder %s14, 0
    %p56 = por %p54, %p55
    %p57 = scmp.ne.s32.totalorder %s45, %s46
    %p58 = scmp.eq.s32.totalorder %s15, 1
    %p59 = por %p57, %p58
    %p61 = scmp.ne.s32.totalorder %s46, %s60
    %p62 = scmp.eq.s32.totalorder %s15, 0
    %p63 = por %p61, %p62
    %s65 = sadd.s32 %s64, 1
    %p68 = scmp.eq.s32.totalorder %s9, 1
    %p69 = scmp.ne.s32.totalorder %s64, %s66
    %p70 = scmp.eq.s32.totalorder %s9, 0
    %p71 = por %p69, %p70
    %p72 = scmp.ne.s32.totalorder %s64, %s66
    %p73 = scmp.eq.s32.totalorder %s14, 1
    %p74 = por %p72, %p73
    %p75 = scmp.ne.s32.totalorder %s66, %s67
    %p76 = scmp.eq.s32.totalorder %s14, 0
    %p77 = por %p75, %p76
    %p78 = scmp.ne.s32.totalorder %s66, %s67
    %p79 = scmp.eq.s32.totalorder %s15, 1
    %p80 = por %p78, %p79
    %p82 = scmp.ne.s32.totalorder %s67, %s81
    %p83 = scmp.eq.s32.totalorder %s15, 0
    %p84 = por %p82, %p83
    %s85 = ssub.s32 %s9, %s16
    %p86 = scmp.eq.s32.totalorder %s85, 0
    %s88 = sadd.s32 %s87, 1
    %s89 = scalar_select %p86, %s87, %s88
    %p92 = pneg %p86
    %p93 = scmp.eq.s32.totalorder %s9, 1
    %p94 = por %p92, %p93
    %p95 = scmp.ne.s32.totalorder %s87, %s90
    %p96 = scmp.eq.s32.totalorder %s9, 0
    %p97 = por %p95, %p96
    %p98 = scmp.ne.s32.totalorder %s87, %s90
    %p99 = scmp.eq.s32.totalorder %s14, 1
    %p100 = por %p98, %p99
    %p101 = scmp.ne.s32.totalorder %s90, %s91
    %p102 = scmp.eq.s32.totalorder %s14, 0
    %p103 = por %p101, %p102
    %p104 = scmp.ne.s32.totalorder %s90, %s91
    %p105 = scmp.eq.s32.totalorder %s15, 1
    %p106 = por %p104, %p105
    %p108 = scmp.ne.s32.totalorder %s91, %s107
    %p109 = scmp.eq.s32.totalorder %s15, 0
    %p110 = por %p108, %p109
    %p111 = scmp.le.s32.totalorder 1, %s9
    %p112 = scmp.lt.s32.totalorder %s9, 3
    %p113 = pnand %p111, %p112
    %p114 = pneg %p113
    // Predicated region
    $region9: #{downsample_x8_forward.8} parent=5 // pred_check
      _
    $region10: #{downsample_x8_forward.8} parent=5 // pred_check_branch
      %116 = sbr.rel (%p113) target = $region12
    $region11: #{downsample_x8_forward.8} parent=5 // pred_region
      %s117 = ssub.s32 %s9, 1
      // Predicated region
      $region13: #{downsample_x8_forward.8} parent=11 // pred_check
        %p118 = pneg %p56
      $region14: #{downsample_x8_forward.8} parent=11 // pred_check_branch
        %120 = sbr.rel (%p118) target = $region16
      $region15: #{downsample_x8_forward.8} parent=11 // pred_region
        _
      $region16: #{downsample_x8_forward.8} parent=11 // pred_fallthru
        _
      // Predicated region
      $region17: #{downsample_x8_forward.8} parent=11 // pred_check
        %p121 = pneg %p77
      $region18: #{downsample_x8_forward.8} parent=11 // pred_check_branch
        %123 = sbr.rel (%p121) target = $region20
      $region19: #{downsample_x8_forward.8} parent=11 // pred_region
        _
      $region20: #{downsample_x8_forward.8} parent=11 // pred_fallthru
        _
    $region12: #{downsample_x8_forward.8} parent=5 // pred_fallthru
      _
    %p124 = scmp.lt.s32.totalorder %s9, 2
    // Predicated region
    $region21: #{downsample_x8_forward.8} parent=5 // pred_check
      %p125 = pneg %p124
    $region22: #{downsample_x8_forward.8} parent=5 // pred_check_branch
      %127 = sbr.rel (%p125) target = $region24
    $region23: #{downsample_x8_forward.8} parent=5 // pred_region
      // Predicated region
      $region25: #{downsample_x8_forward.8} parent=23 // pred_check
        %p128 = pneg %p29
      $region26: #{downsample_x8_forward.8} parent=23 // pred_check_branch
        %130 = sbr.rel (%p128) target = $region28
      $region27: #{downsample_x8_forward.8} parent=23 // pred_region
        %s131 = smul.u32 4, %s9
        %p132 = scmp.lt.s32.totalorder %s131, 7
        %s133 = scalar_select %p132, %s131, 7
        %s134 = smul.addr %s133, 8
        %s135 = scalar_lea.vmem %s0, %s134
        %s136 = smul.u32 4, %s9
      $region28: #{downsample_x8_forward.8} parent=23 // pred_fallthru
        _
    $region24: #{downsample_x8_forward.8} parent=5 // pred_fallthru
      _
    %p137 = scmp.le.s32.totalorder 1, %s9
    %p138 = scmp.lt.s32.totalorder %s9, 3
    %p139 = pnand %p137, %p138
    %p140 = pneg %p139
    // Predicated region
    $region29: #{downsample_x8_forward.8} parent=5 // pred_check
      _
    $region30: #{downsample_x8_forward.8} parent=5 // pred_check_branch
      %142 = sbr.rel (%p139) target = $region32
    $region31: #{downsample_x8_forward.8} parent=5 // pred_region
      %s143 = ssub.s32 %s9, 1
      %s144 = smul.u32 4, %s14
      %p145 = scmp.lt.s32.totalorder %s144, 7
      %s146 = scalar_select %p145, %s144, 7
      %s147 = smul.addr %s146, 8
      %s148 = scalar_lea.vmem %s0, %s147
      %p149 = pneg %p35
      %p150 = pneg %p32
      %p151 = pneg %p56
      %p152 = pneg %p53
      %p153 = pneg %p77
      %p154 = pneg %p74
      %p155 = pneg %p103
      %p156 = pneg %p100
      %s157 = smul.u32 4, %s14
      %p158 = scmp.lt.s32.totalorder %s157, 7
      %s159 = scalar_select %p158, %s157, 7
      %s160 = smul.addr %s159, 4
      %s161 = scalar_lea.vmem %s3, %s160
      %s162 = smul.u32 4, %s14
      %p163 = scmp.lt.s32.totalorder %s162, 7
      %s164 = scalar_select %p163, %s162, 7
      %s165 = smul.addr %s164, 8
      %s166 = scalar_lea.vmem %s0, %s165
      %s167 = smul.u32 4, %s14
      %s168 = smul.u32 4, %s14
      %p169 = scmp.lt.s32.totalorder %s168, 7
      %s170 = scalar_select %p169, %s168, 7
      %s171 = smul.addr %s170, 4
      %s172 = scalar_lea.vmem %s3, %s171
      %s173 = smul.u32 4, %s14
      %v174 = vld [vmem:[%s166] sm:$0xff]
      %v175 = vld [vmem:[%s166 + $0x8] sm:$0xff]
      %v176 = vld [vmem:[%s166 + $0x10] sm:$0xff]
      %v177 = vld [vmem:[%s166 + $0x18] sm:$0xff]
      %v182 = vcombine.high %v174, %v174
      %v183 = vcombine.high %v175, %v175
      %v184 = vcombine.high %v176, %v176
      %v185 = vcombine.high %v177, %v177
      %190 = vrot.lane.b32.xlu0 %v174, 64
      %v191 = vpop.permute.xlu0 %190
      %192 = vrot.lane.b32.xlu0 %v175, 64
      %v193 = vpop.permute.xlu0 %192
      %194 = vrot.lane.b32.xlu0 %v176, 64
      %v195 = vpop.permute.xlu0 %194
      %196 = vrot.lane.b32.xlu0 %v177, 64
      %v197 = vpop.permute.xlu0 %196
      %v202 = vmax.f32 %v174, %v191
      %v203 = vmax.f32 %v175, %v193
      %v204 = vmax.f32 %v176, %v195
      %v205 = vmax.f32 %v177, %v197
      %206 = vrot.lane.b32.xlu0 %v182, 64
      %v207 = vpop.permute.xlu0 %206
      %208 = vrot.lane.b32.xlu0 %v183, 64
      %v209 = vpop.permute.xlu0 %208
      %210 = vrot.lane.b32.xlu0 %v184, 64
      %v211 = vpop.permute.xlu0 %210
      %212 = vrot.lane.b32.xlu0 %v185, 64
      %v213 = vpop.permute.xlu0 %212
      %v218 = vmax.f32 %v182, %v207
      %v219 = vmax.f32 %v183, %v209
      %v220 = vmax.f32 %v184, %v211
      %v221 = vmax.f32 %v185, %v213
      %v222 = vmax.f32 %v202, %v218
      %v223 = vmax.f32 %v203, %v219
      %v224 = vmax.f32 %v204, %v220
      %v225 = vmax.f32 %v205, %v221
      %v226 = vld [vmem:[%s1] sm:$0xff]
      %v227 = vld [vmem:[%s1 + $0x8] sm:$0xff]
      %v228 = vld [vmem:[%s1 + $0x10] sm:$0xff]
      %v229 = vld [vmem:[%s1 + $0x18] sm:$0xff]
      %v230 = vld [vmem:[%s1 + $0x20] sm:$0xff]
      %v231 = vld [vmem:[%s1 + $0x28] sm:$0xff]
      %v232 = vld [vmem:[%s1 + $0x30] sm:$0xff]
      %v233 = vld [vmem:[%s1 + $0x38] sm:$0xff]
      %v234 = vld [vmem:[%s1 + $0x40] sm:$0xff]
      %v235 = vld [vmem:[%s1 + $0x48] sm:$0xff]
      %v236 = vld [vmem:[%s1 + $0x50] sm:$0xff]
      %v237 = vld [vmem:[%s1 + $0x58] sm:$0xff]
      %v238 = vld [vmem:[%s1 + $0x60] sm:$0xff]
      %v239 = vld [vmem:[%s1 + $0x68] sm:$0xff]
      %v240 = vld [vmem:[%s1 + $0x70] sm:$0xff]
      %v241 = vld [vmem:[%s1 + $0x78] sm:$0xff]
      %s242 = scalar_lea.vmem %s1, 128
      %v243 = vld [vmem:[%s242] sm:$0xff]
      %v244 = vld [vmem:[%s242 + $0x8] sm:$0xff]
      %v245 = vld [vmem:[%s242 + $0x10] sm:$0xff]
      %v246 = vld [vmem:[%s242 + $0x18] sm:$0xff]
      %v247 = vld [vmem:[%s242 + $0x20] sm:$0xff]
      %v248 = vld [vmem:[%s242 + $0x28] sm:$0xff]
      %v249 = vld [vmem:[%s242 + $0x30] sm:$0xff]
      %v250 = vld [vmem:[%s242 + $0x38] sm:$0xff]
      %v251 = vld [vmem:[%s242 + $0x40] sm:$0xff]
      %v252 = vld [vmem:[%s242 + $0x48] sm:$0xff]
      %v253 = vld [vmem:[%s242 + $0x50] sm:$0xff]
      %v254 = vld [vmem:[%s242 + $0x58] sm:$0xff]
      %v255 = vld [vmem:[%s242 + $0x60] sm:$0xff]
      %v256 = vld [vmem:[%s242 + $0x68] sm:$0xff]
      %v257 = vld [vmem:[%s242 + $0x70] sm:$0xff]
      %v258 = vld [vmem:[%s242 + $0x78] sm:$0xff]
      %v259 = vcombine.low %v182, %v183
      %v260 = vcombine.low %v184, %v185
      %263 = vmatprep.subr.mxu0 0.0
      %264 = vmatpush1.msra.mxu0 %v243
      %265 = vmatprep.subr.mxu0 0.0
      %266 = vmatpush1.msra.mxu0 %v244
      %267 = vmatprep.subr.mxu0 0.0
      %268 = vmatpush1.msra.mxu0 %v245
      %269 = vmatprep.subr.mxu0 0.0
      %270 = vmatpush1.msra.mxu0 %v246
      %271 = vmatprep.subr.mxu0 0.0
      %272 = vmatpush1.msra.mxu0 %v247
      %273 = vmatprep.subr.mxu0 0.0
      %274 = vmatpush1.msra.mxu0 %v248
      %275 = vmatprep.subr.mxu0 0.0
      %276 = vmatpush1.msra.mxu0 %v249
      %277 = vmatprep.subr.mxu0 0.0
      %278 = vmatpush1.msra.mxu0 %v250
      %279 = vmatprep.subr.mxu0 0.0
      %280 = vmatpush1.msra.mxu0 %v251
      %281 = vmatprep.subr.mxu0 0.0
      %282 = vmatpush1.msra.mxu0 %v252
      %283 = vmatprep.subr.mxu0 0.0
      %284 = vmatpush1.msra.mxu0 %v253
      %285 = vmatprep.subr.mxu0 0.0
      %286 = vmatpush1.msra.mxu0 %v254
      %287 = vmatprep.subr.mxu0 0.0
      %288 = vmatpush1.msra.mxu0 %v255
      %289 = vmatprep.subr.mxu0 0.0
      %290 = vmatpush1.msra.mxu0 %v256
      %291 = vmatprep.subr.mxu0 0.0
      %292 = vmatpush1.msra.mxu0 %v257
      %293 = vmatprep.subr.mxu0 0.0
      %294 = vmatpush1.msra.mxu0 %v258
      %295 = vmatprep.subr.mxu0 0.0
      %296 = vmatpush1.msra.mxu0 0.0
      %297 = vmatprep.subr.mxu0 0.0
      %298 = vmatpush1.msra.mxu0 0.0
      %299 = vmatprep.subr.mxu0 0.0
      %300 = vmatpush1.msra.mxu0 0.0
      %301 = vmatprep.subr.mxu0 0.0
      %302 = vmatpush1.msra.mxu0 0.0
      %303 = vmatprep.subr.mxu0 0.0
      %304 = vmatpush1.msra.mxu0 0.0
      %305 = vmatprep.subr.mxu0 0.0
      %306 = vmatpush1.msra.mxu0 0.0
      %307 = vmatprep.subr.mxu0 0.0
      %308 = vmatpush1.msra.mxu0 0.0
      %309 = vmatprep.subr.mxu0 0.0
      %310 = vmatpush1.msra.mxu0 0.0
      %311 = vmatprep.subr.mxu0 0.0
      %312 = vmatpush1.msra.mxu0 0.0
      %313 = vmatprep.subr.mxu0 0.0
      %314 = vmatpush1.msra.mxu0 0.0
      %315 = vmatprep.subr.mxu0 0.0
      %316 = vmatpush1.msra.mxu0 0.0
      %317 = vmatprep.subr.mxu0 0.0
      %318 = vmatpush1.msra.mxu0 0.0
      %319 = vmatprep.subr.mxu0 0.0
      %320 = vmatpush1.msra.mxu0 0.0
      %321 = vmatprep.subr.mxu0 0.0
      %322 = vmatpush1.msra.mxu0 0.0
      %323 = vmatprep.subr.mxu0 0.0
      %324 = vmatpush1.msra.mxu0 0.0
      %325 = vmatprep.subr.mxu0 0.0
      %326 = vmatpush1.msra.mxu0 0.0
      %327 = vmatprep.mubr.f32.mxu0 0.0
      %328 = vmatmul.mubr.f32.gmra.mrb[0].mxu0 %v259
      %v329 = vpop.f32.mrb[0].mxu0
      %v330 = vadd.f32 0.0, %v329
      %v331 = vpop.f32.mrb[0].mxu0
      %332 = vmatprep.mubr.f32.mxu0 0.0
      %333 = vmatmul.mubr.f32.gmra.mrb[0].mxu0 %v260
      %v334 = vpop.f32.mrb[0].mxu0
      %v335 = vadd.f32 0.0, %v334
      %v336 = vpop.f32.mrb[0].mxu0
      %337 = vdwg.mxu0
      %v338 = vcombine.low %v174, %v175
      %v339 = vcombine.low %v176, %v177
      %342 = vmatprep.subr.mxu0 0.0
      %343 = vmatpush1.msra.mxu0 %v226
      %344 = vmatprep.subr.mxu0 0.0
      %345 = vmatpush1.msra.mxu0 %v227
      %346 = vmatprep.subr.mxu0 0.0
      %347 = vmatpush1.msra.mxu0 %v228
      %348 = vmatprep.subr.mxu0 0.0
      %349 = vmatpush1.msra.mxu0 %v229
      %350 = vmatprep.subr.mxu0 0.0
      %351 = vmatpush1.msra.mxu0 %v230
      %352 = vmatprep.subr.mxu0 0.0
      %353 = vmatpush1.msra.mxu0 %v231
      %354 = vmatprep.subr.mxu0 0.0
      %355 = vmatpush1.msra.mxu0 %v232
      %356 = vmatprep.subr.mxu0 0.0
      %357 = vmatpush1.msra.mxu0 %v233
      %358 = vmatprep.subr.mxu0 0.0
      %359 = vmatpush1.msra.mxu0 %v234
      %360 = vmatprep.subr.mxu0 0.0
      %361 = vmatpush1.msra.mxu0 %v235
      %362 = vmatprep.subr.mxu0 0.0
      %363 = vmatpush1.msra.mxu0 %v236
      %364 = vmatprep.subr.mxu0 0.0
      %365 = vmatpush1.msra.mxu0 %v237
      %366 = vmatprep.subr.mxu0 0.0
      %367 = vmatpush1.msra.mxu0 %v238
      %368 = vmatprep.subr.mxu0 0.0
      %369 = vmatpush1.msra.mxu0 %v239
      %370 = vmatprep.subr.mxu0 0.0
      %371 = vmatpush1.msra.mxu0 %v240
      %372 = vmatprep.subr.mxu0 0.0
      %373 = vmatpush1.msra.mxu0 %v241
      %374 = vmatprep.subr.mxu0 0.0
      %375 = vmatpush1.msra.mxu0 0.0
      %376 = vmatprep.subr.mxu0 0.0
      %377 = vmatpush1.msra.mxu0 0.0
      %378 = vmatprep.subr.mxu0 0.0
      %379 = vmatpush1.msra.mxu0 0.0
      %380 = vmatprep.subr.mxu0 0.0
      %381 = vmatpush1.msra.mxu0 0.0
      %382 = vmatprep.subr.mxu0 0.0
      %383 = vmatpush1.msra.mxu0 0.0
      %384 = vmatprep.subr.mxu0 0.0
      %385 = vmatpush1.msra.mxu0 0.0
      %386 = vmatprep.subr.mxu0 0.0
      %387 = vmatpush1.msra.mxu0 0.0
      %388 = vmatprep.subr.mxu0 0.0
      %389 = vmatpush1.msra.mxu0 0.0
      %390 = vmatprep.subr.mxu0 0.0
      %391 = vmatpush1.msra.mxu0 0.0
      %392 = vmatprep.subr.mxu0 0.0
      %393 = vmatpush1.msra.mxu0 0.0
      %394 = vmatprep.subr.mxu0 0.0
      %395 = vmatpush1.msra.mxu0 0.0
      %396 = vmatprep.subr.mxu0 0.0
      %397 = vmatpush1.msra.mxu0 0.0
      %398 = vmatprep.subr.mxu0 0.0
      %399 = vmatpush1.msra.mxu0 0.0
      %400 = vmatprep.subr.mxu0 0.0
      %401 = vmatpush1.msra.mxu0 0.0
      %402 = vmatprep.subr.mxu0 0.0
      %403 = vmatpush1.msra.mxu0 0.0
      %404 = vmatprep.subr.mxu0 0.0
      %405 = vmatpush1.msra.mxu0 0.0
      %406 = vmatprep.mubr.f32.mxu0 0.0
      %407 = vmatmul.mubr.f32.gmra.mrb[0].mxu0 %v338
      %v408 = vpop.f32.mrb[0].mxu0
      %v409 = vadd.f32 %v330, %v408
      %v410 = vpop.f32.mrb[0].mxu0
      %411 = vmatprep.mubr.f32.mxu0 0.0
      %412 = vmatmul.mubr.f32.gmra.mrb[0].mxu0 %v339
      %v413 = vpop.f32.mrb[0].mxu0
      %v414 = vadd.f32 %v335, %v413
      %v415 = vpop.f32.mrb[0].mxu0
      %416 = vdwg.mxu0
      %v417 = vld [vmem:[%s2] sm:$0x1]
      %v419 = vlaneseq
      %v420 = vshrl.u32 %v419, 7
      %v421 = vsub.s32 0, %v420
      %v422 = vrot.slane %v417, %v421
      %v424 = vadd.f32 %v409, %v422
      %v425 = vadd.f32 %v414, %v422
      %v428 = vcombine.high %v424, %v424
      %v429 = vcombine.high %v425, %v425
      %v432 = vadd.f32 %v222, %v424
      %v433 = vadd.f32 %v223, %v428
      %v434 = vadd.f32 %v224, %v425
      %v435 = vadd.f32 %v225, %v429
      %vm436 = vcmask 519168
      %437 = vst.msk [vmem:[%s172] sm:$0xf] %vm436, %v432
      %438 = vst.msk [vmem:[%s172 + $0x4] sm:$0xf] %vm436, %v433
      %439 = vst.msk [vmem:[%s172 + $0x8] sm:$0xf] %vm436, %v434
      %440 = vst.msk [vmem:[%s172 + $0xc] sm:$0xf] %vm436, %v435
      %s441 = smul.u32 4, %s14
      %p442 = scmp.lt.s32.totalorder %s441, 7
      %s443 = scalar_select %p442, %s441, 7
      %s444 = smul.addr %s443, 4
      %s445 = scalar_lea.vmem %s3, %s444
      // Predicated region
      $region33: #{downsample_x8_forward.8} parent=31 // pred_check
        %p446 = pneg %p100
      $region34: #{downsample_x8_forward.8} parent=31 // pred_check_branch
        %448 = sbr.rel (%p446) target = $region36
      $region35: #{downsample_x8_forward.8} parent=31 // pred_region
        %s449 = smul.u32 4, %s14
      $region36: #{downsample_x8_forward.8} parent=31 // pred_fallthru
        _
    $region32: #{downsample_x8_forward.8} parent=5 // pred_fallthru
      _
    %p450 = scmp.le.s32.totalorder 2, %s9
    // Predicated region
    $region37: #{downsample_x8_forward.8} parent=5 // pred_check
      %p451 = pneg %p450
    $region38: #{downsample_x8_forward.8} parent=5 // pred_check_branch
      %453 = sbr.rel (%p451) target = $region40
    $region39: #{downsample_x8_forward.8} parent=5 // pred_region
      %s454 = ssub.s32 %s9, 2
      // Predicated region
      $region41: #{downsample_x8_forward.8} parent=39 // pred_check
        %p455 = pneg %p106
      $region42: #{downsample_x8_forward.8} parent=39 // pred_check_branch
        %457 = sbr.rel (%p455) target = $region44
      $region43: #{downsample_x8_forward.8} parent=39 // pred_region
        %s458 = smul.u32 4, %s15
        %p459 = scmp.lt.s32.totalorder %s458, 7
        %s460 = scalar_select %p459, %s458, 7
        %s461 = smul.addr %s460, 4
        %s462 = scalar_lea.vmem %s3, %s461
      $region44: #{downsample_x8_forward.8} parent=39 // pred_fallthru
        _
    $region40: #{downsample_x8_forward.8} parent=5 // pred_fallthru
      _
  $region6: #{downsample_x8_forward.8} parent=0 // loop_footer
    %s13 = sadd.s32 1, %s9
  $region7: #{downsample_x8_forward.8} parent=0 // loop_footer_branch
    %8 = sbr.rel target = $region3
  $region8: #{downsample_x8_forward.8} parent=0 // loop_exit
    _

// kernel: downsample_x8_forward.9
$region0: #{downsample_x8_forward.9}
  #allocation0 [shape = 'u32[]', space=smem, size = 0x4, offset = 0x4, fixed_abs, tag = 'smem constant byte address 0x4 - core index']
  #allocation1 [shape = 'u32[144,128]{1,0:T(1,128)}', space=vmem, size = 0x12000, scoped, tag = 'internal scratch']
  %s0 = inlined_call_operand.vmem [shape: f32[8,6,64], index: 0, kind: input, shape index: {}]
  %s1 = inlined_call_operand.vmem [shape: f32[8,6,64], index: 1, kind: input, shape index: {}]
  %s2 = inlined_call_operand.vmem [shape: f32[8,6,64], index: 2, kind: input, shape index: {}]
  %s3 = inlined_call_operand.vmem [shape: f32[3,3,64,128], index: 3, kind: input, shape index: {}]
  %s4 = inlined_call_operand.vmem [shape: f32[1,128], index: 4, kind: input, shape index: {}]
  %s5 = inlined_call_operand.vmem [shape: f32[8,4,128], index: 5, kind: output, shape index: {}]
  %s6 = sld [smem:[#allocation0]]
  $region53: #{downsample_x8_forward.9} parent=0
    _
  %s8 = ssub.s32 1, %s6
  %s9 = scalar_select 0, %s8, %s6
  loop: start=0, step=1, limit=4
  $region2: #{downsample_x8_forward.9} parent=0 // loop_pre_header
    _
  $region3: #{downsample_x8_forward.9} parent=0 // loop_header
    %s11 = sphi 0, %s15
    %p12 = scmp.ge.s32.totalorder %s11, 4
    %s21 = sphi 0, %s23
    %s24 = sphi 0, %s21
    %s25 = sphi 0, %s24
    %s41 = sphi 0, %s25
    %s47 = sphi 0, %s49
    %s50 = sphi 0, %s47
    %s51 = sphi 0, %s50
    %s67 = sphi 0, %s51
    %s73 = sphi 0, %s75
    %s76 = sphi 0, %s73
    %s77 = sphi 0, %s76
    %s93 = sphi 0, %s77
    %s97 = sphi 0, %s97
    %s99 = sphi 0, %s97
    %s100 = sphi 0, %s99
    %s114 = sphi 0, %s100
    %s118 = sphi 0, %s118
    %s120 = sphi 0, %s118
    %s121 = sphi 0, %s120
    %s135 = sphi 0, %s121
    %s141 = sphi 0, %s143
    %s144 = sphi 0, %s141
    %s145 = sphi 0, %s144
    %s161 = sphi 0, %s145
  $region4: #{downsample_x8_forward.9} parent=0 // loop_header_branch
    %14 = sbr.rel (%p12) target = $region8
  $region5: #{downsample_x8_forward.9} parent=0 // loop_body
    %s16 = ssub.s32 %s11, 1
    %s17 = ssub.s32 %s11, 2
    %s18 = sadd.s32 %s11, 1
    %s19 = ssub.s32 %s11, %s18
    %p20 = scmp.eq.s32.totalorder %s19, 0
    %s22 = sadd.s32 %s21, 1
    %s23 = scalar_select %p20, %s21, %s22
    %p26 = pneg %p20
    %p27 = scmp.eq.s32.totalorder %s11, 1
    %p28 = por %p26, %p27
    %p29 = scmp.ne.s32.totalorder %s21, %s24
    %p30 = scmp.eq.s32.totalorder %s11, 0
    %p31 = por %p29, %p30
    %p32 = scmp.ne.s32.totalorder %s21, %s24
    %p33 = scmp.eq.s32.totalorder %s16, 1
    %p34 = por %p32, %p33
    %p35 = scmp.ne.s32.totalorder %s24, %s25
    %p36 = scmp.eq.s32.totalorder %s16, 0
    %p37 = por %p35, %p36
    %p38 = scmp.ne.s32.totalorder %s24, %s25
    %p39 = scmp.eq.s32.totalorder %s17, 1
    %p40 = por %p38, %p39
    %p42 = scmp.ne.s32.totalorder %s25, %s41
    %p43 = scmp.eq.s32.totalorder %s17, 0
    %p44 = por %p42, %p43
    %s45 = ssub.s32 %s11, %s18
    %p46 = scmp.eq.s32.totalorder %s45, 0
    %s48 = sadd.s32 %s47, 1
    %s49 = scalar_select %p46, %s47, %s48
    %p52 = pneg %p46
    %p53 = scmp.eq.s32.totalorder %s11, 1
    %p54 = por %p52, %p53
    %p55 = scmp.ne.s32.totalorder %s47, %s50
    %p56 = scmp.eq.s32.totalorder %s11, 0
    %p57 = por %p55, %p56
    %p58 = scmp.ne.s32.totalorder %s47, %s50
    %p59 = scmp.eq.s32.totalorder %s16, 1
    %p60 = por %p58, %p59
    %p61 = scmp.ne.s32.totalorder %s50, %s51
    %p62 = scmp.eq.s32.totalorder %s16, 0
    %p63 = por %p61, %p62
    %p64 = scmp.ne.s32.totalorder %s50, %s51
    %p65 = scmp.eq.s32.totalorder %s17, 1
    %p66 = por %p64, %p65
    %p68 = scmp.ne.s32.totalorder %s51, %s67
    %p69 = scmp.eq.s32.totalorder %s17, 0
    %p70 = por %p68, %p69
    %s71 = ssub.s32 %s11, %s18
    %p72 = scmp.eq.s32.totalorder %s71, 0
    %s74 = sadd.s32 %s73, 1
    %s75 = scalar_select %p72, %s73, %s74
    %p78 = pneg %p72
    %p79 = scmp.eq.s32.totalorder %s11, 1
    %p80 = por %p78, %p79
    %p81 = scmp.ne.s32.totalorder %s73, %s76
    %p82 = scmp.eq.s32.totalorder %s11, 0
    %p83 = por %p81, %p82
    %p84 = scmp.ne.s32.totalorder %s73, %s76
    %p85 = scmp.eq.s32.totalorder %s16, 1
    %p86 = por %p84, %p85
    %p87 = scmp.ne.s32.totalorder %s76, %s77
    %p88 = scmp.eq.s32.totalorder %s16, 0
    %p89 = por %p87, %p88
    %p90 = scmp.ne.s32.totalorder %s76, %s77
    %p91 = scmp.eq.s32.totalorder %s17, 1
    %p92 = por %p90, %p91
    %p94 = scmp.ne.s32.totalorder %s77, %s93
    %p95 = scmp.eq.s32.totalorder %s17, 0
    %p96 = por %p94, %p95
    %s98 = sadd.s32 %s97, 1
    %p101 = scmp.eq.s32.totalorder %s11, 1
    %p102 = scmp.ne.s32.totalorder %s97, %s99
    %p103 = scmp.eq.s32.totalorder %s11, 0
    %p104 = por %p102, %p103
    %p105 = scmp.ne.s32.totalorder %s97, %s99
    %p106 = scmp.eq.s32.totalorder %s16, 1
    %p107 = por %p105, %p106
    %p108 = scmp.ne.s32.totalorder %s99, %s100
    %p109 = scmp.eq.s32.totalorder %s16, 0
    %p110 = por %p108, %p109
    %p111 = scmp.ne.s32.totalorder %s99, %s100
    %p112 = scmp.eq.s32.totalorder %s17, 1
    %p113 = por %p111, %p112
    %p115 = scmp.ne.s32.totalorder %s100, %s114
    %p116 = scmp.eq.s32.totalorder %s17, 0
    %p117 = por %p115, %p116
    %s119 = sadd.s32 %s118, 1
    %p122 = scmp.eq.s32.totalorder %s11, 1
    %p123 = scmp.ne.s32.totalorder %s118, %s120
    %p124 = scmp.eq.s32.totalorder %s11, 0
    %p125 = por %p123, %p124
    %p126 = scmp.ne.s32.totalorder %s118, %s120
    %p127 = scmp.eq.s32.totalorder %s16, 1
    %p128 = por %p126, %p127
    %p129 = scmp.ne.s32.totalorder %s120, %s121
    %p130 = scmp.eq.s32.totalorder %s16, 0
    %p131 = por %p129, %p130
    %p132 = scmp.ne.s32.totalorder %s120, %s121
    %p133 = scmp.eq.s32.totalorder %s17, 1
    %p134 = por %p132, %p133
    %p136 = scmp.ne.s32.totalorder %s121, %s135
    %p137 = scmp.eq.s32.totalorder %s17, 0
    %p138 = por %p136, %p137
    %s139 = ssub.s32 %s11, %s18
    %p140 = scmp.eq.s32.totalorder %s139, 0
    %s142 = sadd.s32 %s141, 1
    %s143 = scalar_select %p140, %s141, %s142
    %p146 = pneg %p140
    %p147 = scmp.eq.s32.totalorder %s11, 1
    %p148 = por %p146, %p147
    %p149 = scmp.ne.s32.totalorder %s141, %s144
    %p150 = scmp.eq.s32.totalorder %s11, 0
    %p151 = por %p149, %p150
    %p152 = scmp.ne.s32.totalorder %s141, %s144
    %p153 = scmp.eq.s32.totalorder %s16, 1
    %p154 = por %p152, %p153
    %p155 = scmp.ne.s32.totalorder %s144, %s145
    %p156 = scmp.eq.s32.totalorder %s16, 0
    %p157 = por %p155, %p156
    %p158 = scmp.ne.s32.totalorder %s144, %s145
    %p159 = scmp.eq.s32.totalorder %s17, 1
    %p160 = por %p158, %p159
    %p162 = scmp.ne.s32.totalorder %s145, %s161
    %p163 = scmp.eq.s32.totalorder %s17, 0
    %p164 = por %p162, %p163
    %p165 = scmp.le.s32.totalorder 1, %s11
    %p166 = scmp.lt.s32.totalorder %s11, 3
    %p167 = pnand %p165, %p166
    %p168 = pneg %p167
    // Predicated region
    $region9: #{downsample_x8_forward.9} parent=5 // pred_check
      _
    $region10: #{downsample_x8_forward.9} parent=5 // pred_check_branch
      %170 = sbr.rel (%p167) target = $region12
    $region11: #{downsample_x8_forward.9} parent=5 // pred_region
      %s171 = ssub.s32 %s11, 1
      // Predicated region
      $region13: #{downsample_x8_forward.9} parent=11 // pred_check
        %p172 = pneg %p110
      $region14: #{downsample_x8_forward.9} parent=11 // pred_check_branch
        %174 = sbr.rel (%p172) target = $region16
      $region15: #{downsample_x8_forward.9} parent=11 // pred_region
        _
      $region16: #{downsample_x8_forward.9} parent=11 // pred_fallthru
        _
      // Predicated region
      $region17: #{downsample_x8_forward.9} parent=11 // pred_check
        %p175 = pneg %p131
      $region18: #{downsample_x8_forward.9} parent=11 // pred_check_branch
        %177 = sbr.rel (%p175) target = $region20
      $region19: #{downsample_x8_forward.9} parent=11 // pred_region
        _
      $region20: #{downsample_x8_forward.9} parent=11 // pred_fallthru
        _
    $region12: #{downsample_x8_forward.9} parent=5 // pred_fallthru
      _
    %p178 = scmp.lt.s32.totalorder %s11, 2
    // Predicated region
    $region21: #{downsample_x8_forward.9} parent=5 // pred_check
      %p179 = pneg %p178
    $region22: #{downsample_x8_forward.9} parent=5 // pred_check_branch
      %181 = sbr.rel (%p179) target = $region24
    $region23: #{downsample_x8_forward.9} parent=5 // pred_region
      // Predicated region
      $region25: #{downsample_x8_forward.9} parent=23 // pred_check
        %p182 = pneg %p31
      $region26: #{downsample_x8_forward.9} parent=23 // pred_check_branch
        %184 = sbr.rel (%p182) target = $region28
      $region27: #{downsample_x8_forward.9} parent=23 // pred_region
        %s185 = smul.u32 4, %s11
        %p186 = scmp.lt.s32.totalorder %s185, 7
        %s187 = scalar_select %p186, %s185, 7
        %s188 = smul.addr %s187, 8
        %s189 = scalar_lea.vmem %s0, %s188
        %s190 = smul.u32 4, %s11
      $region28: #{downsample_x8_forward.9} parent=23 // pred_fallthru
        _
      // Predicated region
      $region29: #{downsample_x8_forward.9} parent=23 // pred_check
        %p191 = pneg %p57
      $region30: #{downsample_x8_forward.9} parent=23 // pred_check_branch
        %193 = sbr.rel (%p191) target = $region32
      $region31: #{downsample_x8_forward.9} parent=23 // pred_region
        %s194 = smul.u32 4, %s11
        %p195 = scmp.lt.s32.totalorder %s194, 7
        %s196 = scalar_select %p195, %s194, 7
        %s197 = smul.addr %s196, 8
        %s198 = scalar_lea.vmem %s1, %s197
        %s199 = smul.u32 4, %s11
      $region32: #{downsample_x8_forward.9} parent=23 // pred_fallthru
        _
      // Predicated region
      $region33: #{downsample_x8_forward.9} parent=23 // pred_check
        %p200 = pneg %p83
      $region34: #{downsample_x8_forward.9} parent=23 // pred_check_branch
        %202 = sbr.rel (%p200) target = $region36
      $region35: #{downsample_x8_forward.9} parent=23 // pred_region
        %s203 = smul.u32 4, %s11
        %p204 = scmp.lt.s32.totalorder %s203, 7
        %s205 = scalar_select %p204, %s203, 7
        %s206 = smul.addr %s205, 8
        %s207 = scalar_lea.vmem %s2, %s206
        %s208 = smul.u32 4, %s11
      $region36: #{downsample_x8_forward.9} parent=23 // pred_fallthru
        _
    $region24: #{downsample_x8_forward.9} parent=5 // pred_fallthru
      _
    %p209 = scmp.le.s32.totalorder 1, %s11
    %p210 = scmp.lt.s32.totalorder %s11, 3
    %p211 = pnand %p209, %p210
    %p212 = pneg %p211
    // Predicated region
    $region37: #{downsample_x8_forward.9} parent=5 // pred_check
      _
    $region38: #{downsample_x8_forward.9} parent=5 // pred_check_branch
      %214 = sbr.rel (%p211) target = $region40
    $region39: #{downsample_x8_forward.9} parent=5 // pred_region
      %s215 = ssub.s32 %s11, 1
      %s216 = smul.u32 4, %s16
      %p217 = scmp.lt.s32.totalorder %s216, 7
      %s218 = scalar_select %p217, %s216, 7
      %s219 = smul.addr %s218, 8
      %s220 = scalar_lea.vmem %s0, %s219
      %p221 = pneg %p37
      %p222 = pneg %p34
      %s223 = smul.u32 4, %s16
      %p224 = scmp.lt.s32.totalorder %s223, 7
      %s225 = scalar_select %p224, %s223, 7
      %s226 = smul.addr %s225, 8
      %s227 = scalar_lea.vmem %s1, %s226
      %p228 = pneg %p63
      %p229 = pneg %p60
      %s230 = smul.u32 4, %s16
      %p231 = scmp.lt.s32.totalorder %s230, 7
      %s232 = scalar_select %p231, %s230, 7
      %s233 = smul.addr %s232, 8
      %s234 = scalar_lea.vmem %s2, %s233
      %p235 = pneg %p89
      %p236 = pneg %p86
      %p237 = pneg %p110
      %p238 = pneg %p107
      %p239 = pneg %p131
      %p240 = pneg %p128
      %p241 = pneg %p157
      %p242 = pneg %p154
      %s243 = smul.u32 4, %s16
      %p244 = scmp.lt.s32.totalorder %s243, 7
      %s245 = scalar_select %p244, %s243, 7
      %s246 = smul.addr %s245, 4
      %s247 = scalar_lea.vmem %s5, %s246
      %s248 = smul.u32 4, %s16
      %p249 = scmp.lt.s32.totalorder %s248, 7
      %s250 = scalar_select %p249, %s248, 7
      %s251 = smul.addr %s250, 8
      %s252 = scalar_lea.vmem %s0, %s251
      %s253 = smul.u32 4, %s16
      %s254 = smul.u32 4, %s16
      %p255 = scmp.lt.s32.totalorder %s254, 7
      %s256 = scalar_select %p255, %s254, 7
      %s257 = smul.addr %s256, 8
      %s258 = scalar_lea.vmem %s1, %s257
      %s259 = smul.u32 4, %s16
      %s260 = smul.u32 4, %s16
      %p261 = scmp.lt.s32.totalorder %s260, 7
      %s262 = scalar_select %p261, %s260, 7
      %s263 = smul.addr %s262, 8
      %s264 = scalar_lea.vmem %s2, %s263
      %s265 = smul.u32 4, %s16
      %s266 = smul.u32 4, %s16
      %p267 = scmp.lt.s32.totalorder %s266, 7
      %s268 = scalar_select %p267, %s266, 7
      %s269 = smul.addr %s268, 4
      %s270 = scalar_lea.vmem %s5, %s269
      %s271 = smul.u32 4, %s16
      %v272 = vld [vmem:[%s252] sm:$0x3f]
      %v273 = vld [vmem:[%s252 + $0x8] sm:$0x3f]
      %v274 = vld [vmem:[%s252 + $0x10] sm:$0x3f]
      %v275 = vld [vmem:[%s252 + $0x18] sm:$0x3f]
      %v276 = vld [vmem:[%s3] sm:$0xff]
      %v277 = vld [vmem:[%s3 + $0x8] sm:$0xff]
      %v278 = vld [vmem:[%s3 + $0x10] sm:$0xff]
      %v279 = vld [vmem:[%s3 + $0x18] sm:$0xff]
      %v280 = vld [vmem:[%s3 + $0x20] sm:$0xff]
      %v281 = vld [vmem:[%s3 + $0x28] sm:$0xff]
      %v282 = vld [vmem:[%s3 + $0x30] sm:$0xff]
      %v283 = vld [vmem:[%s3 + $0x38] sm:$0xff]
      %v288 = vcombine.high %v272, %v272
      %v289 = vcombine.high %v273, %v273
      %v290 = vcombine.high %v274, %v274
      %v291 = vcombine.high %v275, %v275
      %vm292 = vcmask 1042432
      %vm293 = vcmask 1046532
      %vm294 = vmor %vm292, %vm293
      %v295 = vrot.slane %v272, 5
      %v296 = vrot.slane %v295, 4
      %v297 = vrot.slane %v288, 5
      %v298 = vsel %vm294, %v296, %v297
      %v299 = vrot.slane %v273, 5
      %v300 = vrot.slane %v299, 4
      %v301 = vrot.slane %v289, 5
      %v302 = vsel %vm294, %v300, %v301
      %v303 = vrot.slane %v274, 5
      %v304 = vrot.slane %v303, 4
      %v305 = vrot.slane %v290, 5
      %v306 = vsel %vm294, %v304, %v305
      %v307 = vrot.slane %v275, 5
      %v308 = vrot.slane %v307, 4
      %v309 = vrot.slane %v291, 5
      %v310 = vsel %vm294, %v308, %v309
      %s311 = scalar_lea.vmem %s3, 64
      %v312 = vld [vmem:[%s311] sm:$0xff]
      %v313 = vld [vmem:[%s311 + $0x8] sm:$0xff]
      %v314 = vld [vmem:[%s311 + $0x10] sm:$0xff]
      %v315 = vld [vmem:[%s311 + $0x18] sm:$0xff]
      %v316 = vld [vmem:[%s311 + $0x20] sm:$0xff]
      %v317 = vld [vmem:[%s311 + $0x28] sm:$0xff]
      %v318 = vld [vmem:[%s311 + $0x30] sm:$0xff]
      %v319 = vld [vmem:[%s311 + $0x38] sm:$0xff]
      %v320 = vcombine.low %v298, %v302
      %v321 = vcombine.low %v306, %v310
      %vm322 = vcmask 523264
      %v323 = vsel %vm322, %v320, 0
      %v325 = vsel %vm322, %v321, 0
      %327 = vmatprep.subr.mxu0 0.0
      %328 = vmatpush1.msra.mxu0 %v312
      %329 = vmatprep.subr.mxu0 0.0
      %330 = vmatpush1.msra.mxu0 %v313
      %331 = vmatprep.subr.mxu0 0.0
      %332 = vmatpush1.msra.mxu0 %v314
      %333 = vmatprep.subr.mxu0 0.0
      %334 = vmatpush1.msra.mxu0 %v315
      %335 = vmatprep.subr.mxu0 0.0
      %336 = vmatpush1.msra.mxu0 %v316
      %337 = vmatprep.subr.mxu0 0.0
      %338 = vmatpush1.msra.mxu0 %v317
      %339 = vmatprep.subr.mxu0 0.0
      %340 = vmatpush1.msra.mxu0 %v318
      %341 = vmatprep.subr.mxu0 0.0
      %342 = vmatpush1.msra.mxu0 %v319
      %343 = vmatprep.subr.mxu0 0.0
      %344 = vmatpush1.msra.mxu0 0.0
      %345 = vmatprep.subr.mxu0 0.0
      %346 = vmatpush1.msra.mxu0 0.0
      %347 = vmatprep.subr.mxu0 0.0
      %348 = vmatpush1.msra.mxu0 0.0
      %349 = vmatprep.subr.mxu0 0.0
      %350 = vmatpush1.msra.mxu0 0.0
      %351 = vmatprep.subr.mxu0 0.0
      %352 = vmatpush1.msra.mxu0 0.0
      %353 = vmatprep.subr.mxu0 0.0
      %354 = vmatpush1.msra.mxu0 0.0
      %355 = vmatprep.subr.mxu0 0.0
      %356 = vmatpush1.msra.mxu0 0.0
      %357 = vmatprep.subr.mxu0 0.0
      %358 = vmatpush1.msra.mxu0 0.0
      %359 = vmatprep.subr.mxu0 0.0
      %360 = vmatpush1.msra.mxu0 0.0
      %361 = vmatprep.subr.mxu0 0.0
      %362 = vmatpush1.msra.mxu0 0.0
      %363 = vmatprep.subr.mxu0 0.0
      %364 = vmatpush1.msra.mxu0 0.0
      %365 = vmatprep.subr.mxu0 0.0
      %366 = vmatpush1.msra.mxu0 0.0
      %367 = vmatprep.subr.mxu0 0.0
      %368 = vmatpush1.msra.mxu0 0.0
      %369 = vmatprep.subr.mxu0 0.0
      %370 = vmatpush1.msra.mxu0 0.0
      %371 = vmatprep.subr.mxu0 0.0
      %372 = vmatpush1.msra.mxu0 0.0
      %373 = vmatprep.subr.mxu0 0.0
      %374 = vmatpush1.msra.mxu0 0.0
      %375 = vmatprep.subr.mxu0 0.0
      %376 = vmatpush1.msra.mxu0 0.0
      %377 = vmatprep.subr.mxu0 0.0
      %378 = vmatpush1.msra.mxu0 0.0
      %379 = vmatprep.subr.mxu0 0.0
      %380 = vmatpush1.msra.mxu0 0.0
      %381 = vmatprep.subr.mxu0 0.0
      %382 = vmatpush1.msra.mxu0 0.0
      %383 = vmatprep.subr.mxu0 0.0
      %384 = vmatpush1.msra.mxu0 0.0
      %385 = vmatprep.subr.mxu0 0.0
      %386 = vmatpush1.msra.mxu0 0.0
      %387 = vmatprep.subr.mxu0 0.0
      %388 = vmatpush1.msra.mxu0 0.0
      %389 = vmatprep.subr.mxu0 0.0
      %390 = vmatpush1.msra.mxu0 0.0
      %391 = vmatprep.mubr.f32.mxu0 0.0
      %392 = vmatmul.mubr.f32.gmra.mrb[0].mxu0 %v323
      %v393 = vpop.f32.mrb[0].mxu0
      %v394 = vadd.f32 0.0, %v393
      %v395 = vpop.f32.mrb[0].mxu0
      %396 = vmatprep.mubr.f32.mxu0 0.0
      %397 = vmatmul.mubr.f32.gmra.mrb[0].mxu0 %v325
      %v398 = vpop.f32.mrb[0].mxu0
      %v399 = vadd.f32 0.0, %v398
      %v400 = vpop.f32.mrb[0].mxu0
      %401 = vdwg.mxu0
      %v402 = vcombine.low %v272, %v273
      %v403 = vcombine.low %v274, %v275
      %v404 = vsel %vm322, %v402, 0
      %v406 = vsel %vm322, %v403, 0
      %408 = vmatprep.subr.mxu0 0.0
      %409 = vmatpush1.msra.mxu0 %v276
      %410 = vmatprep.subr.mxu0 0.0
      %411 = vmatpush1.msra.mxu0 %v277
      %412 = vmatprep.subr.mxu0 0.0
      %413 = vmatpush1.msra.mxu0 %v278
      %414 = vmatprep.subr.mxu0 0.0
      %415 = vmatpush1.msra.mxu0 %v279
      %416 = vmatprep.subr.mxu0 0.0
      %417 = vmatpush1.msra.mxu0 %v280
      %418 = vmatprep.subr.mxu0 0.0
      %419 = vmatpush1.msra.mxu0 %v281
      %420 = vmatprep.subr.mxu0 0.0
      %421 = vmatpush1.msra.mxu0 %v282
      %422 = vmatprep.subr.mxu0 0.0
      %423 = vmatpush1.msra.mxu0 %v283
      %424 = vmatprep.subr.mxu0 0.0
      %425 = vmatpush1.msra.mxu0 0.0
      %426 = vmatprep.subr.mxu0 0.0
      %427 = vmatpush1.msra.mxu0 0.0
      %428 = vmatprep.subr.mxu0 0.0
      %429 = vmatpush1.msra.mxu0 0.0
      %430 = vmatprep.subr.mxu0 0.0
      %431 = vmatpush1.msra.mxu0 0.0
      %432 = vmatprep.subr.mxu0 0.0
      %433 = vmatpush1.msra.mxu0 0.0
      %434 = vmatprep.subr.mxu0 0.0
      %435 = vmatpush1.msra.mxu0 0.0
      %436 = vmatprep.subr.mxu0 0.0
      %437 = vmatpush1.msra.mxu0 0.0
      %438 = vmatprep.subr.mxu0 0.0
      %439 = vmatpush1.msra.mxu0 0.0
      %440 = vmatprep.subr.mxu0 0.0
      %441 = vmatpush1.msra.mxu0 0.0
      %442 = vmatprep.subr.mxu0 0.0
      %443 = vmatpush1.msra.mxu0 0.0
      %444 = vmatprep.subr.mxu0 0.0
      %445 = vmatpush1.msra.mxu0 0.0
      %446 = vmatprep.subr.mxu0 0.0
      %447 = vmatpush1.msra.mxu0 0.0
      %448 = vmatprep.subr.mxu0 0.0
      %449 = vmatpush1.msra.mxu0 0.0
      %450 = vmatprep.subr.mxu0 0.0
      %451 = vmatpush1.msra.mxu0 0.0
      %452 = vmatprep.subr.mxu0 0.0
      %453 = vmatpush1.msra.mxu0 0.0
      %454 = vmatprep.subr.mxu0 0.0
      %455 = vmatpush1.msra.mxu0 0.0
      %456 = vmatprep.subr.mxu0 0.0
      %457 = vmatpush1.msra.mxu0 0.0
      %458 = vmatprep.subr.mxu0 0.0
      %459 = vmatpush1.msra.mxu0 0.0
      %460 = vmatprep.subr.mxu0 0.0
      %461 = vmatpush1.msra.mxu0 0.0
      %462 = vmatprep.subr.mxu0 0.0
      %463 = vmatpush1.msra.mxu0 0.0
      %464 = vmatprep.subr.mxu0 0.0
      %465 = vmatpush1.msra.mxu0 0.0
      %466 = vmatprep.subr.mxu0 0.0
      %467 = vmatpush1.msra.mxu0 0.0
      %468 = vmatprep.subr.mxu0 0.0
      %469 = vmatpush1.msra.mxu0 0.0
      %470 = vmatprep.subr.mxu0 0.0
      %471 = vmatpush1.msra.mxu0 0.0
      %472 = vmatprep.mubr.f32.mxu0 0.0
      %473 = vmatmul.mubr.f32.gmra.mrb[0].mxu0 %v404
      %v474 = vpop.f32.mrb[0].mxu0
      %v475 = vadd.f32 %v394, %v474
      %v476 = vpop.f32.mrb[0].mxu0
      %477 = vmatprep.mubr.f32.mxu0 0.0
      %478 = vmatmul.mubr.f32.gmra.mrb[0].mxu0 %v406
      %v479 = vpop.f32.mrb[0].mxu0
      %v480 = vadd.f32 %v399, %v479
      %v481 = vpop.f32.mrb[0].mxu0
      %482 = vdwg.mxu0
      %vm483 = vcmask 1041408
      %vm484 = vcmask 1045508
      %vm485 = vmor %vm483, %vm484
      %v486 = vrot.slane %v272, 6
      %v487 = vrot.slane %v486, 4
      %v488 = vrot.slane %v288, 6
      %v489 = vsel %vm485, %v487, %v488
      %v490 = vrot.slane %v273, 6
      %v491 = vrot.slane %v490, 4
      %v492 = vrot.slane %v289, 6
      %v493 = vsel %vm485, %v491, %v492
      %v494 = vrot.slane %v274, 6
      %v495 = vrot.slane %v494, 4
      %v496 = vrot.slane %v290, 6
      %v497 = vsel %vm485, %v495, %v496
      %v498 = vrot.slane %v275, 6
      %v499 = vrot.slane %v498, 4
      %v500 = vrot.slane %v291, 6
      %v501 = vsel %vm485, %v499, %v500
      %s502 = scalar_lea.vmem %s3, 128
      %v503 = vld [vmem:[%s502] sm:$0xff]
      %v504 = vld [vmem:[%s502 + $0x8] sm:$0xff]
      %v505 = vld [vmem:[%s502 + $0x10] sm:$0xff]
      %v506 = vld [vmem:[%s502 + $0x18] sm:$0xff]
      %v507 = vld [vmem:[%s502 + $0x20] sm:$0xff]
      %v508 = vld [vmem:[%s502 + $0x28] sm:$0xff]
      %v509 = vld [vmem:[%s502 + $0x30] sm:$0xff]
      %v510 = vld [vmem:[%s502 + $0x38] sm:$0xff]
      %v511 = vcombine.low %v489, %v493
      %v512 = vcombine.low %v497, %v501
      %v513 = vsel %vm322, %v511, 0
      %v515 = vsel %vm322, %v512, 0
      %517 = vmatprep.subr.mxu0 0.0
      %518 = vmatpush1.msra.mxu0 %v503
      %519 = vmatprep.subr.mxu0 0.0
      %520 = vmatpush1.msra.mxu0 %v504
      %521 = vmatprep.subr.mxu0 0.0
      %522 = vmatpush1.msra.mxu0 %v505
      %523 = vmatprep.subr.mxu0 0.0
      %524 = vmatpush1.msra.mxu0 %v506
      %525 = vmatprep.subr.mxu0 0.0
      %526 = vmatpush1.msra.mxu0 %v507
      %527 = vmatprep.subr.mxu0 0.0
      %528 = vmatpush1.msra.mxu0 %v508
      %529 = vmatprep.subr.mxu0 0.0
      %530 = vmatpush1.msra.mxu0 %v509
      %531 = vmatprep.subr.mxu0 0.0
      %532 = vmatpush1.msra.mxu0 %v510
      %533 = vmatprep.subr.mxu0 0.0
      %534 = vmatpush1.msra.mxu0 0.0
      %535 = vmatprep.subr.mxu0 0.0
      %536 = vmatpush1.msra.mxu0 0.0
      %537 = vmatprep.subr.mxu0 0.0
      %538 = vmatpush1.msra.mxu0 0.0
      %539 = vmatprep.subr.mxu0 0.0
      %540 = vmatpush1.msra.mxu0 0.0
      %541 = vmatprep.subr.mxu0 0.0
      %542 = vmatpush1.msra.mxu0 0.0
      %543 = vmatprep.subr.mxu0 0.0
      %544 = vmatpush1.msra.mxu0 0.0
      %545 = vmatprep.subr.mxu0 0.0
      %546 = vmatpush1.msra.mxu0 0.0
      %547 = vmatprep.subr.mxu0 0.0
      %548 = vmatpush1.msra.mxu0 0.0
      %549 = vmatprep.subr.mxu0 0.0
      %550 = vmatpush1.msra.mxu0 0.0
      %551 = vmatprep.subr.mxu0 0.0
      %552 = vmatpush1.msra.mxu0 0.0
      %553 = vmatprep.subr.mxu0 0.0
      %554 = vmatpush1.msra.mxu0 0.0
      %555 = vmatprep.subr.mxu0 0.0
      %556 = vmatpush1.msra.mxu0 0.0
      %557 = vmatprep.subr.mxu0 0.0
      %558 = vmatpush1.msra.mxu0 0.0
      %559 = vmatprep.subr.mxu0 0.0
      %560 = vmatpush1.msra.mxu0 0.0
      %561 = vmatprep.subr.mxu0 0.0
      %562 = vmatpush1.msra.mxu0 0.0
      %563 = vmatprep.subr.mxu0 0.0
      %564 = vmatpush1.msra.mxu0 0.0
      %565 = vmatprep.subr.mxu0 0.0
      %566 = vmatpush1.msra.mxu0 0.0
      %567 = vmatprep.subr.mxu0 0.0
      %568 = vmatpush1.msra.mxu0 0.0
      %569 = vmatprep.subr.mxu0 0.0
      %570 = vmatpush1.msra.mxu0 0.0
      %571 = vmatprep.subr.mxu0 0.0
      %572 = vmatpush1.msra.mxu0 0.0
      %573 = vmatprep.subr.mxu0 0.0
      %574 = vmatpush1.msra.mxu0 0.0
      %575 = vmatprep.subr.mxu0 0.0
      %576 = vmatpush1.msra.mxu0 0.0
      %577 = vmatprep.subr.mxu0 0.0
      %578 = vmatpush1.msra.mxu0 0.0
      %579 = vmatprep.subr.mxu0 0.0
      %580 = vmatpush1.msra.mxu0 0.0
      %581 = vmatprep.mubr.f32.mxu0 0.0
      %582 = vmatmul.mubr.f32.gmra.mrb[0].mxu0 %v513
      %v583 = vpop.f32.mrb[0].mxu0
      %v584 = vadd.f32 0.0, %v583
      %v585 = vpop.f32.mrb[0].mxu0
      %586 = vmatprep.mubr.f32.mxu0 0.0
      %587 = vmatmul.mubr.f32.gmra.mrb[0].mxu0 %v515
      %v588 = vpop.f32.mrb[0].mxu0
      %v589 = vadd.f32 0.0, %v588
      %v590 = vpop.f32.mrb[0].mxu0
      %591 = vdwg.mxu0
      %v592 = vadd.f32 %v475, %v584
      %v593 = vadd.f32 %v480, %v589
      %v594 = vld [vmem:[%s258] sm:$0x3f]
      %v595 = vld [vmem:[%s258 + $0x8] sm:$0x3f]
      %v596 = vld [vmem:[%s258 + $0x10] sm:$0x3f]
      %v597 = vld [vmem:[%s258 + $0x18] sm:$0x3f]
      %s598 = scalar_lea.vmem %s3, 192
      %v599 = vld [vmem:[%s598] sm:$0xff]
      %v600 = vld [vmem:[%s598 + $0x8] sm:$0xff]
      %v601 = vld [vmem:[%s598 + $0x10] sm:$0xff]
      %v602 = vld [vmem:[%s598 + $0x18] sm:$0xff]
      %v603 = vld [vmem:[%s598 + $0x20] sm:$0xff]
      %v604 = vld [vmem:[%s598 + $0x28] sm:$0xff]
      %v605 = vld [vmem:[%s598 + $0x30] sm:$0xff]
      %v606 = vld [vmem:[%s598 + $0x38] sm:$0xff]
      %v611 = vcombine.low %v594, %v595
      %v612 = vcombine.low %v596, %v597
      %v613 = vsel %vm322, %v611, 0
      %v615 = vsel %vm322, %v612, 0
      %617 = vmatprep.subr.mxu0 0.0
      %618 = vmatpush1.msra.mxu0 %v599
      %619 = vmatprep.subr.mxu0 0.0
      %620 = vmatpush1.msra.mxu0 %v600
      %621 = vmatprep.subr.mxu0 0.0
      %622 = vmatpush1.msra.mxu0 %v601
      %623 = vmatprep.subr.mxu0 0.0
      %624 = vmatpush1.msra.mxu0 %v602
      %625 = vmatprep.subr.mxu0 0.0
      %626 = vmatpush1.msra.mxu0 %v603
      %627 = vmatprep.subr.mxu0 0.0
      %628 = vmatpush1.msra.mxu0 %v604
      %629 = vmatprep.subr.mxu0 0.0
      %630 = vmatpush1.msra.mxu0 %v605
      %631 = vmatprep.subr.mxu0 0.0
      %632 = vmatpush1.msra.mxu0 %v606
      %633 = vmatprep.subr.mxu0 0.0
      %634 = vmatpush1.msra.mxu0 0.0
      %635 = vmatprep.subr.mxu0 0.0
      %636 = vmatpush1.msra.mxu0 0.0
      %637 = vmatprep.subr.mxu0 0.0
      %638 = vmatpush1.msra.mxu0 0.0
      %639 = vmatprep.subr.mxu0 0.0
      %640 = vmatpush1.msra.mxu0 0.0
      %641 = vmatprep.subr.mxu0 0.0
      %642 = vmatpush1.msra.mxu0 0.0
      %643 = vmatprep.subr.mxu0 0.0
      %644 = vmatpush1.msra.mxu0 0.0
      %645 = vmatprep.subr.mxu0 0.0
      %646 = vmatpush1.msra.mxu0 0.0
      %647 = vmatprep.subr.mxu0 0.0
      %648 = vmatpush1.msra.mxu0 0.0
      %649 = vmatprep.subr.mxu0 0.0
      %650 = vmatpush1.msra.mxu0 0.0
      %651 = vmatprep.subr.mxu0 0.0
      %652 = vmatpush1.msra.mxu0 0.0
      %653 = vmatprep.subr.mxu0 0.0
      %654 = vmatpush1.msra.mxu0 0.0
      %655 = vmatprep.subr.mxu0 0.0
      %656 = vmatpush1.msra.mxu0 0.0
      %657 = vmatprep.subr.mxu0 0.0
      %658 = vmatpush1.msra.mxu0 0.0
      %659 = vmatprep.subr.mxu0 0.0
      %660 = vmatpush1.msra.mxu0 0.0
      %661 = vmatprep.subr.mxu0 0.0
      %662 = vmatpush1.msra.mxu0 0.0
      %663 = vmatprep.subr.mxu0 0.0
      %664 = vmatpush1.msra.mxu0 0.0
      %665 = vmatprep.subr.mxu0 0.0
      %666 = vmatpush1.msra.mxu0 0.0
      %667 = vmatprep.subr.mxu0 0.0
      %668 = vmatpush1.msra.mxu0 0.0
      %669 = vmatprep.subr.mxu0 0.0
      %670 = vmatpush1.msra.mxu0 0.0
      %671 = vmatprep.subr.mxu0 0.0
      %672 = vmatpush1.msra.mxu0 0.0
      %673 = vmatprep.subr.mxu0 0.0
      %674 = vmatpush1.msra.mxu0 0.0
      %675 = vmatprep.subr.mxu0 0.0
      %676 = vmatpush1.msra.mxu0 0.0
      %677 = vmatprep.subr.mxu0 0.0
      %678 = vmatpush1.msra.mxu0 0.0
      %679 = vmatprep.subr.mxu0 0.0
      %680 = vmatpush1.msra.mxu0 0.0
      %681 = vmatprep.mubr.f32.mxu0 0.0
      %682 = vmatmul.mubr.f32.gmra.mrb[0].mxu0 %v613
      %v683 = vpop.f32.mrb[0].mxu0
      %v684 = vadd.f32 0.0, %v683
      %v685 = vpop.f32.mrb[0].mxu0
      %686 = vmatprep.mubr.f32.mxu0 0.0
      %687 = vmatmul.mubr.f32.gmra.mrb[0].mxu0 %v615
      %v688 = vpop.f32.mrb[0].mxu0
      %v689 = vadd.f32 0.0, %v688
      %v690 = vpop.f32.mrb[0].mxu0
      %691 = vdwg.mxu0
      %v692 = vadd.f32 %v592, %v684
      %v693 = vadd.f32 %v593, %v689
      %v694 = vcombine.high %v594, %v594
      %v695 = vcombine.high %v595, %v595
      %v696 = vcombine.high %v596, %v596
      %v697 = vcombine.high %v597, %v597
      %v698 = vrot.slane %v594, 5
      %v699 = vrot.slane %v698, 4
      %v700 = vrot.slane %v694, 5
      %v701 = vsel %vm294, %v699, %v700
      %v702 = vrot.slane %v595, 5
      %v703 = vrot.slane %v702, 4
      %v704 = vrot.slane %v695, 5
      %v705 = vsel %vm294, %v703, %v704
      %v706 = vrot.slane %v596, 5
      %v707 = vrot.slane %v706, 4
      %v708 = vrot.slane %v696, 5
      %v709 = vsel %vm294, %v707, %v708
      %v710 = vrot.slane %v597, 5
      %v711 = vrot.slane %v710, 4
      %v712 = vrot.slane %v697, 5
      %v713 = vsel %vm294, %v711, %v712
      %s714 = scalar_lea.vmem %s3, 256
      %v715 = vld [vmem:[%s714] sm:$0xff]
      %v716 = vld [vmem:[%s714 + $0x8] sm:$0xff]
      %v717 = vld [vmem:[%s714 + $0x10] sm:$0xff]
      %v718 = vld [vmem:[%s714 + $0x18] sm:$0xff]
      %v719 = vld [vmem:[%s714 + $0x20] sm:$0xff]
      %v720 = vld [vmem:[%s714 + $0x28] sm:$0xff]
      %v721 = vld [vmem:[%s714 + $0x30] sm:$0xff]
      %v722 = vld [vmem:[%s714 + $0x38] sm:$0xff]
      %v723 = vcombine.low %v701, %v705
      %v724 = vcombine.low %v709, %v713
      %v725 = vsel %vm322, %v723, 0
      %v727 = vsel %vm322, %v724, 0
      %729 = vmatprep.subr.mxu0 0.0
      %730 = vmatpush1.msra.mxu0 %v715
      %731 = vmatprep.subr.mxu0 0.0
      %732 = vmatpush1.msra.mxu0 %v716
      %733 = vmatprep.subr.mxu0 0.0
      %734 = vmatpush1.msra.mxu0 %v717
      %735 = vmatprep.subr.mxu0 0.0
      %736 = vmatpush1.msra.mxu0 %v718
      %737 = vmatprep.subr.mxu0 0.0
      %738 = vmatpush1.msra.mxu0 %v719
      %739 = vmatprep.subr.mxu0 0.0
      %740 = vmatpush1.msra.mxu0 %v720
      %741 = vmatprep.subr.mxu0 0.0
      %742 = vmatpush1.msra.mxu0 %v721
      %743 = vmatprep.subr.mxu0 0.0
      %744 = vmatpush1.msra.mxu0 %v722
      %745 = vmatprep.subr.mxu0 0.0
      %746 = vmatpush1.msra.mxu0 0.0
      %747 = vmatprep.subr.mxu0 0.0
      %748 = vmatpush1.msra.mxu0 0.0
      %749 = vmatprep.subr.mxu0 0.0
      %750 = vmatpush1.msra.mxu0 0.0
      %751 = vmatprep.subr.mxu0 0.0
      %752 = vmatpush1.msra.mxu0 0.0
      %753 = vmatprep.subr.mxu0 0.0
      %754 = vmatpush1.msra.mxu0 0.0
      %755 = vmatprep.subr.mxu0 0.0
      %756 = vmatpush1.msra.mxu0 0.0
      %757 = vmatprep.subr.mxu0 0.0
      %758 = vmatpush1.msra.mxu0 0.0
      %759 = vmatprep.subr.mxu0 0.0
      %760 = vmatpush1.msra.mxu0 0.0
      %761 = vmatprep.subr.mxu0 0.0
      %762 = vmatpush1.msra.mxu0 0.0
      %763 = vmatprep.subr.mxu0 0.0
      %764 = vmatpush1.msra.mxu0 0.0
      %765 = vmatprep.subr.mxu0 0.0
      %766 = vmatpush1.msra.mxu0 0.0
      %767 = vmatprep.subr.mxu0 0.0
      %768 = vmatpush1.msra.mxu0 0.0
      %769 = vmatprep.subr.mxu0 0.0
      %770 = vmatpush1.msra.mxu0 0.0
      %771 = vmatprep.subr.mxu0 0.0
      %772 = vmatpush1.msra.mxu0 0.0
      %773 = vmatprep.subr.mxu0 0.0
      %774 = vmatpush1.msra.mxu0 0.0
      %775 = vmatprep.subr.mxu0 0.0
      %776 = vmatpush1.msra.mxu0 0.0
      %777 = vmatprep.subr.mxu0 0.0
      %778 = vmatpush1.msra.mxu0 0.0
      %779 = vmatprep.subr.mxu0 0.0
      %780 = vmatpush1.msra.mxu0 0.0
      %781 = vmatprep.subr.mxu0 0.0
      %782 = vmatpush1.msra.mxu0 0.0
      %783 = vmatprep.subr.mxu0 0.0
      %784 = vmatpush1.msra.mxu0 0.0
      %785 = vmatprep.subr.mxu0 0.0
      %786 = vmatpush1.msra.mxu0 0.0
      %787 = vmatprep.subr.mxu0 0.0
      %788 = vmatpush1.msra.mxu0 0.0
      %789 = vmatprep.subr.mxu0 0.0
      %790 = vmatpush1.msra.mxu0 0.0
      %791 = vmatprep.subr.mxu0 0.0
      %792 = vmatpush1.msra.mxu0 0.0
      %793 = vmatprep.mubr.f32.mxu0 0.0
      %794 = vmatmul.mubr.f32.gmra.mrb[0].mxu0 %v725
      %v795 = vpop.f32.mrb[0].mxu0
      %v796 = vadd.f32 0.0, %v795
      %v797 = vpop.f32.mrb[0].mxu0
      %798 = vmatprep.mubr.f32.mxu0 0.0
      %799 = vmatmul.mubr.f32.gmra.mrb[0].mxu0 %v727
      %v800 = vpop.f32.mrb[0].mxu0
      %v801 = vadd.f32 0.0, %v800
      %v802 = vpop.f32.mrb[0].mxu0
      %803 = vdwg.mxu0
      %v804 = vadd.f32 %v692, %v796
      %v805 = vadd.f32 %v693, %v801
      %v806 = vrot.slane %v594, 6
      %v807 = vrot.slane %v806, 4
      %v808 = vrot.slane %v694, 6
      %v809 = vsel %vm485, %v807, %v808
      %v810 = vrot.slane %v595, 6
      %v811 = vrot.slane %v810, 4
      %v812 = vrot.slane %v695, 6
      %v813 = vsel %vm485, %v811, %v812
      %v814 = vrot.slane %v596, 6
      %v815 = vrot.slane %v814, 4
      %v816 = vrot.slane %v696, 6
      %v817 = vsel %vm485, %v815, %v816
      %v818 = vrot.slane %v597, 6
      %v819 = vrot.slane %v818, 4
      %v820 = vrot.slane %v697, 6
      %v821 = vsel %vm485, %v819, %v820
      %s822 = scalar_lea.vmem %s3, 320
      %v823 = vld [vmem:[%s822] sm:$0xff]
      %v824 = vld [vmem:[%s822 + $0x8] sm:$0xff]
      %v825 = vld [vmem:[%s822 + $0x10] sm:$0xff]
      %v826 = vld [vmem:[%s822 + $0x18] sm:$0xff]
      %v827 = vld [vmem:[%s822 + $0x20] sm:$0xff]
      %v828 = vld [vmem:[%s822 + $0x28] sm:$0xff]
      %v829 = vld [vmem:[%s822 + $0x30] sm:$0xff]
      %v830 = vld [vmem:[%s822 + $0x38] sm:$0xff]
      %v831 = vcombine.low %v809, %v813
      %v832 = vcombine.low %v817, %v821
      %v833 = vsel %vm322, %v831, 0
      %v835 = vsel %vm322, %v832, 0
      %837 = vmatprep.subr.mxu0 0.0
      %838 = vmatpush1.msra.mxu0 %v823
      %839 = vmatprep.subr.mxu0 0.0
      %840 = vmatpush1.msra.mxu0 %v824
      %841 = vmatprep.subr.mxu0 0.0
      %842 = vmatpush1.msra.mxu0 %v825
      %843 = vmatprep.subr.mxu0 0.0
      %844 = vmatpush1.msra.mxu0 %v826
      %845 = vmatprep.subr.mxu0 0.0
      %846 = vmatpush1.msra.mxu0 %v827
      %847 = vmatprep.subr.mxu0 0.0
      %848 = vmatpush1.msra.mxu0 %v828
      %849 = vmatprep.subr.mxu0 0.0
      %850 = vmatpush1.msra.mxu0 %v829
      %851 = vmatprep.subr.mxu0 0.0
      %852 = vmatpush1.msra.mxu0 %v830
      %853 = vmatprep.subr.mxu0 0.0
      %854 = vmatpush1.msra.mxu0 0.0
      %855 = vmatprep.subr.mxu0 0.0
      %856 = vmatpush1.msra.mxu0 0.0
      %857 = vmatprep.subr.mxu0 0.0
      %858 = vmatpush1.msra.mxu0 0.0
      %859 = vmatprep.subr.mxu0 0.0
      %860 = vmatpush1.msra.mxu0 0.0
      %861 = vmatprep.subr.mxu0 0.0
      %862 = vmatpush1.msra.mxu0 0.0
      %863 = vmatprep.subr.mxu0 0.0
      %864 = vmatpush1.msra.mxu0 0.0
      %865 = vmatprep.subr.mxu0 0.0
      %866 = vmatpush1.msra.mxu0 0.0
      %867 = vmatprep.subr.mxu0 0.0
      %868 = vmatpush1.msra.mxu0 0.0
      %869 = vmatprep.subr.mxu0 0.0
      %870 = vmatpush1.msra.mxu0 0.0
      %871 = vmatprep.subr.mxu0 0.0
      %872 = vmatpush1.msra.mxu0 0.0
      %873 = vmatprep.subr.mxu0 0.0
      %874 = vmatpush1.msra.mxu0 0.0
      %875 = vmatprep.subr.mxu0 0.0
      %876 = vmatpush1.msra.mxu0 0.0
      %877 = vmatprep.subr.mxu0 0.0
      %878 = vmatpush1.msra.mxu0 0.0
      %879 = vmatprep.subr.mxu0 0.0
      %880 = vmatpush1.msra.mxu0 0.0
      %881 = vmatprep.subr.mxu0 0.0
      %882 = vmatpush1.msra.mxu0 0.0
      %883 = vmatprep.subr.mxu0 0.0
      %884 = vmatpush1.msra.mxu0 0.0
      %885 = vmatprep.subr.mxu0 0.0
      %886 = vmatpush1.msra.mxu0 0.0
      %887 = vmatprep.subr.mxu0 0.0
      %888 = vmatpush1.msra.mxu0 0.0
      %889 = vmatprep.subr.mxu0 0.0
      %890 = vmatpush1.msra.mxu0 0.0
      %891 = vmatprep.subr.mxu0 0.0
      %892 = vmatpush1.msra.mxu0 0.0
      %893 = vmatprep.subr.mxu0 0.0
      %894 = vmatpush1.msra.mxu0 0.0
      %895 = vmatprep.subr.mxu0 0.0
      %896 = vmatpush1.msra.mxu0 0.0
      %897 = vmatprep.subr.mxu0 0.0
      %898 = vmatpush1.msra.mxu0 0.0
      %899 = vmatprep.subr.mxu0 0.0
      %900 = vmatpush1.msra.mxu0 0.0
      %901 = vmatprep.mubr.f32.mxu0 0.0
      %902 = vmatmul.mubr.f32.gmra.mrb[0].mxu0 %v833
      %v903 = vpop.f32.mrb[0].mxu0
      %v904 = vadd.f32 0.0, %v903
      %v905 = vpop.f32.mrb[0].mxu0
      %906 = vmatprep.mubr.f32.mxu0 0.0
      %907 = vmatmul.mubr.f32.gmra.mrb[0].mxu0 %v835
      %v908 = vpop.f32.mrb[0].mxu0
      %v909 = vadd.f32 0.0, %v908
      %v910 = vpop.f32.mrb[0].mxu0
      %911 = vdwg.mxu0
      %v912 = vadd.f32 %v804, %v904
      %v913 = vadd.f32 %v805, %v909
      %v914 = vld [vmem:[%s264] sm:$0x3f]
      %v915 = vld [vmem:[%s264 + $0x8] sm:$0x3f]
      %v916 = vld [vmem:[%s264 + $0x10] sm:$0x3f]
      %v917 = vld [vmem:[%s264 + $0x18] sm:$0x3f]
      %s918 = scalar_lea.vmem %s3, 384
      %v919 = vld [vmem:[%s918] sm:$0xff]
      %v920 = vld [vmem:[%s918 + $0x8] sm:$0xff]
      %v921 = vld [vmem:[%s918 + $0x10] sm:$0xff]
      %v922 = vld [vmem:[%s918 + $0x18] sm:$0xff]
      %v923 = vld [vmem:[%s918 + $0x20] sm:$0xff]
      %v924 = vld [vmem:[%s918 + $0x28] sm:$0xff]
      %v925 = vld [vmem:[%s918 + $0x30] sm:$0xff]
      %v926 = vld [vmem:[%s918 + $0x38] sm:$0xff]
      %v931 = vcombine.low %v914, %v915
      %v932 = vcombine.low %v916, %v917
      %v933 = vsel %vm322, %v931, 0
      %v935 = vsel %vm322, %v932, 0
      %937 = vmatprep.subr.mxu0 0.0
      %938 = vmatpush1.msra.mxu0 %v919
      %939 = vmatprep.subr.mxu0 0.0
      %940 = vmatpush1.msra.mxu0 %v920
      %941 = vmatprep.subr.mxu0 0.0
      %942 = vmatpush1.msra.mxu0 %v921
      %943 = vmatprep.subr.mxu0 0.0
      %944 = vmatpush1.msra.mxu0 %v922
      %945 = vmatprep.subr.mxu0 0.0
      %946 = vmatpush1.msra.mxu0 %v923
      %947 = vmatprep.subr.mxu0 0.0
      %948 = vmatpush1.msra.mxu0 %v924
      %949 = vmatprep.subr.mxu0 0.0
      %950 = vmatpush1.msra.mxu0 %v925
      %951 = vmatprep.subr.mxu0 0.0
      %952 = vmatpush1.msra.mxu0 %v926
      %953 = vmatprep.subr.mxu0 0.0
      %954 = vmatpush1.msra.mxu0 0.0
      %955 = vmatprep.subr.mxu0 0.0
      %956 = vmatpush1.msra.mxu0 0.0
      %957 = vmatprep.subr.mxu0 0.0
      %958 = vmatpush1.msra.mxu0 0.0
      %959 = vmatprep.subr.mxu0 0.0
      %960 = vmatpush1.msra.mxu0 0.0
      %961 = vmatprep.subr.mxu0 0.0
      %962 = vmatpush1.msra.mxu0 0.0
      %963 = vmatprep.subr.mxu0 0.0
      %964 = vmatpush1.msra.mxu0 0.0
      %965 = vmatprep.subr.mxu0 0.0
      %966 = vmatpush1.msra.mxu0 0.0
      %967 = vmatprep.subr.mxu0 0.0
      %968 = vmatpush1.msra.mxu0 0.0
      %969 = vmatprep.subr.mxu0 0.0
      %970 = vmatpush1.msra.mxu0 0.0
      %971 = vmatprep.subr.mxu0 0.0
      %972 = vmatpush1.msra.mxu0 0.0
      %973 = vmatprep.subr.mxu0 0.0
      %974 = vmatpush1.msra.mxu0 0.0
      %975 = vmatprep.subr.mxu0 0.0
      %976 = vmatpush1.msra.mxu0 0.0
      %977 = vmatprep.subr.mxu0 0.0
      %978 = vmatpush1.msra.mxu0 0.0
      %979 = vmatprep.subr.mxu0 0.0
      %980 = vmatpush1.msra.mxu0 0.0
      %981 = vmatprep.subr.mxu0 0.0
      %982 = vmatpush1.msra.mxu0 0.0
      %983 = vmatprep.subr.mxu0 0.0
      %984 = vmatpush1.msra.mxu0 0.0
      %985 = vmatprep.subr.mxu0 0.0
      %986 = vmatpush1.msra.mxu0 0.0
      %987 = vmatprep.subr.mxu0 0.0
      %988 = vmatpush1.msra.mxu0 0.0
      %989 = vmatprep.subr.mxu0 0.0
      %990 = vmatpush1.msra.mxu0 0.0
      %991 = vmatprep.subr.mxu0 0.0
      %992 = vmatpush1.msra.mxu0 0.0
      %993 = vmatprep.subr.mxu0 0.0
      %994 = vmatpush1.msra.mxu0 0.0
      %995 = vmatprep.subr.mxu0 0.0
      %996 = vmatpush1.msra.mxu0 0.0
      %997 = vmatprep.subr.mxu0 0.0
      %998 = vmatpush1.msra.mxu0 0.0
      %999 = vmatprep.subr.mxu0 0.0
      %1000 = vmatpush1.msra.mxu0 0.0
      %1001 = vmatprep.mubr.f32.mxu0 0.0
      %1002 = vmatmul.mubr.f32.gmra.mrb[0].mxu0 %v933
      %v1003 = vpop.f32.mrb[0].mxu0
      %v1004 = vadd.f32 0.0, %v1003
      %v1005 = vpop.f32.mrb[0].mxu0
      %1006 = vmatprep.mubr.f32.mxu0 0.0
      %1007 = vmatmul.mubr.f32.gmra.mrb[0].mxu0 %v935
      %v1008 = vpop.f32.mrb[0].mxu0
      %v1009 = vadd.f32 0.0, %v1008
      %v1010 = vpop.f32.mrb[0].mxu0
      %1011 = vdwg.mxu0
      %v1012 = vadd.f32 %v912, %v1004
      %v1013 = vadd.f32 %v913, %v1009
      %v1014 = vcombine.high %v914, %v914
      %v1015 = vcombine.high %v915, %v915
      %v1016 = vcombine.high %v916, %v916
      %v1017 = vcombine.high %v917, %v917
      %v1018 = vrot.slane %v914, 5
      %v1019 = vrot.slane %v1018, 4
      %v1020 = vrot.slane %v1014, 5
      %v1021 = vsel %vm294, %v1019, %v1020
      %v1022 = vrot.slane %v915, 5
      %v1023 = vrot.slane %v1022, 4
      %v1024 = vrot.slane %v1015, 5
      %v1025 = vsel %vm294, %v1023, %v1024
      %v1026 = vrot.slane %v916, 5
      %v1027 = vrot.slane %v1026, 4
      %v1028 = vrot.slane %v1016, 5
      %v1029 = vsel %vm294, %v1027, %v1028
      %v1030 = vrot.slane %v917, 5
      %v1031 = vrot.slane %v1030, 4
      %v1032 = vrot.slane %v1017, 5
      %v1033 = vsel %vm294, %v1031, %v1032
      %s1034 = scalar_lea.vmem %s3, 448
      %v1035 = vld [vmem:[%s1034] sm:$0xff]
      %v1036 = vld [vmem:[%s1034 + $0x8] sm:$0xff]
      %v1037 = vld [vmem:[%s1034 + $0x10] sm:$0xff]
      %v1038 = vld [vmem:[%s1034 + $0x18] sm:$0xff]
      %v1039 = vld [vmem:[%s1034 + $0x20] sm:$0xff]
      %v1040 = vld [vmem:[%s1034 + $0x28] sm:$0xff]
      %v1041 = vld [vmem:[%s1034 + $0x30] sm:$0xff]
      %v1042 = vld [vmem:[%s1034 + $0x38] sm:$0xff]
      %v1043 = vcombine.low %v1021, %v1025
      %v1044 = vcombine.low %v1029, %v1033
      %v1045 = vsel %vm322, %v1043, 0
      %v1047 = vsel %vm322, %v1044, 0
      %1049 = vmatprep.subr.mxu0 0.0
      %1050 = vmatpush1.msra.mxu0 %v1035
      %1051 = vmatprep.subr.mxu0 0.0
      %1052 = vmatpush1.msra.mxu0 %v1036
      %1053 = vmatprep.subr.mxu0 0.0
      %1054 = vmatpush1.msra.mxu0 %v1037
      %1055 = vmatprep.subr.mxu0 0.0
      %1056 = vmatpush1.msra.mxu0 %v1038
      %1057 = vmatprep.subr.mxu0 0.0
      %1058 = vmatpush1.msra.mxu0 %v1039
      %1059 = vmatprep.subr.mxu0 0.0
      %1060 = vmatpush1.msra.mxu0 %v1040
      %1061 = vmatprep.subr.mxu0 0.0
      %1062 = vmatpush1.msra.mxu0 %v1041
      %1063 = vmatprep.subr.mxu0 0.0
      %1064 = vmatpush1.msra.mxu0 %v1042
      %1065 = vmatprep.subr.mxu0 0.0
      %1066 = vmatpush1.msra.mxu0 0.0
      %1067 = vmatprep.subr.mxu0 0.0
      %1068 = vmatpush1.msra.mxu0 0.0
      %1069 = vmatprep.subr.mxu0 0.0
      %1070 = vmatpush1.msra.mxu0 0.0
      %1071 = vmatprep.subr.mxu0 0.0
      %1072 = vmatpush1.msra.mxu0 0.0
      %1073 = vmatprep.subr.mxu0 0.0
      %1074 = vmatpush1.msra.mxu0 0.0
      %1075 = vmatprep.subr.mxu0 0.0
      %1076 = vmatpush1.msra.mxu0 0.0
      %1077 = vmatprep.subr.mxu0 0.0
      %1078 = vmatpush1.msra.mxu0 0.0
      %1079 = vmatprep.subr.mxu0 0.0
      %1080 = vmatpush1.msra.mxu0 0.0
      %1081 = vmatprep.subr.mxu0 0.0
      %1082 = vmatpush1.msra.mxu0 0.0
      %1083 = vmatprep.subr.mxu0 0.0
      %1084 = vmatpush1.msra.mxu0 0.0
      %1085 = vmatprep.subr.mxu0 0.0
      %1086 = vmatpush1.msra.mxu0 0.0
      %1087 = vmatprep.subr.mxu0 0.0
      %1088 = vmatpush1.msra.mxu0 0.0
      %1089 = vmatprep.subr.mxu0 0.0
      %1090 = vmatpush1.msra.mxu0 0.0
      %1091 = vmatprep.subr.mxu0 0.0
      %1092 = vmatpush1.msra.mxu0 0.0
      %1093 = vmatprep.subr.mxu0 0.0
      %1094 = vmatpush1.msra.mxu0 0.0
      %1095 = vmatprep.subr.mxu0 0.0
      %1096 = vmatpush1.msra.mxu0 0.0
      %1097 = vmatprep.subr.mxu0 0.0
      %1098 = vmatpush1.msra.mxu0 0.0
      %1099 = vmatprep.subr.mxu0 0.0
      %1100 = vmatpush1.msra.mxu0 0.0
      %1101 = vmatprep.subr.mxu0 0.0
      %1102 = vmatpush1.msra.mxu0 0.0
      %1103 = vmatprep.subr.mxu0 0.0
      %1104 = vmatpush1.msra.mxu0 0.0
      %1105 = vmatprep.subr.mxu0 0.0
      %1106 = vmatpush1.msra.mxu0 0.0
      %1107 = vmatprep.subr.mxu0 0.0
      %1108 = vmatpush1.msra.mxu0 0.0
      %1109 = vmatprep.subr.mxu0 0.0
      %1110 = vmatpush1.msra.mxu0 0.0
      %1111 = vmatprep.subr.mxu0 0.0
      %1112 = vmatpush1.msra.mxu0 0.0
      %1113 = vmatprep.mubr.f32.mxu0 0.0
      %1114 = vmatmul.mubr.f32.gmra.mrb[0].mxu0 %v1045
      %v1115 = vpop.f32.mrb[0].mxu0
      %v1116 = vadd.f32 0.0, %v1115
      %v1117 = vpop.f32.mrb[0].mxu0
      %1118 = vmatprep.mubr.f32.mxu0 0.0
      %1119 = vmatmul.mubr.f32.gmra.mrb[0].mxu0 %v1047
      %v1120 = vpop.f32.mrb[0].mxu0
      %v1121 = vadd.f32 0.0, %v1120
      %v1122 = vpop.f32.mrb[0].mxu0
      %1123 = vdwg.mxu0
      %v1124 = vadd.f32 %v1012, %v1116
      %v1125 = vadd.f32 %v1013, %v1121
      %v1126 = vrot.slane %v914, 6
      %v1127 = vrot.slane %v1126, 4
      %v1128 = vrot.slane %v1014, 6
      %v1129 = vsel %vm485, %v1127, %v1128
      %v1130 = vrot.slane %v915, 6
      %v1131 = vrot.slane %v1130, 4
      %v1132 = vrot.slane %v1015, 6
      %v1133 = vsel %vm485, %v1131, %v1132
      %v1134 = vrot.slane %v916, 6
      %v1135 = vrot.slane %v1134, 4
      %v1136 = vrot.slane %v1016, 6
      %v1137 = vsel %vm485, %v1135, %v1136
      %v1138 = vrot.slane %v917, 6
      %v1139 = vrot.slane %v1138, 4
      %v1140 = vrot.slane %v1017, 6
      %v1141 = vsel %vm485, %v1139, %v1140
      %s1142 = scalar_lea.vmem %s3, 512
      %v1143 = vld [vmem:[%s1142] sm:$0xff]
      %v1144 = vld [vmem:[%s1142 + $0x8] sm:$0xff]
      %v1145 = vld [vmem:[%s1142 + $0x10] sm:$0xff]
      %v1146 = vld [vmem:[%s1142 + $0x18] sm:$0xff]
      %v1147 = vld [vmem:[%s1142 + $0x20] sm:$0xff]
      %v1148 = vld [vmem:[%s1142 + $0x28] sm:$0xff]
      %v1149 = vld [vmem:[%s1142 + $0x30] sm:$0xff]
      %v1150 = vld [vmem:[%s1142 + $0x38] sm:$0xff]
      %v1151 = vcombine.low %v1129, %v1133
      %v1152 = vcombine.low %v1137, %v1141
      %v1153 = vsel %vm322, %v1151, 0
      %v1155 = vsel %vm322, %v1152, 0
      %1157 = vmatprep.subr.mxu0 0.0
      %1158 = vmatpush1.msra.mxu0 %v1143
      %1159 = vmatprep.subr.mxu0 0.0
      %1160 = vmatpush1.msra.mxu0 %v1144
      %1161 = vmatprep.subr.mxu0 0.0
      %1162 = vmatpush1.msra.mxu0 %v1145
      %1163 = vmatprep.subr.mxu0 0.0
      %1164 = vmatpush1.msra.mxu0 %v1146
      %1165 = vmatprep.subr.mxu0 0.0
      %1166 = vmatpush1.msra.mxu0 %v1147
      %1167 = vmatprep.subr.mxu0 0.0
      %1168 = vmatpush1.msra.mxu0 %v1148
      %1169 = vmatprep.subr.mxu0 0.0
      %1170 = vmatpush1.msra.mxu0 %v1149
      %1171 = vmatprep.subr.mxu0 0.0
      %1172 = vmatpush1.msra.mxu0 %v1150
      %1173 = vmatprep.subr.mxu0 0.0
      %1174 = vmatpush1.msra.mxu0 0.0
      %1175 = vmatprep.subr.mxu0 0.0
      %1176 = vmatpush1.msra.mxu0 0.0
      %1177 = vmatprep.subr.mxu0 0.0
      %1178 = vmatpush1.msra.mxu0 0.0
      %1179 = vmatprep.subr.mxu0 0.0
      %1180 = vmatpush1.msra.mxu0 0.0
      %1181 = vmatprep.subr.mxu0 0.0
      %1182 = vmatpush1.msra.mxu0 0.0
      %1183 = vmatprep.subr.mxu0 0.0
      %1184 = vmatpush1.msra.mxu0 0.0
      %1185 = vmatprep.subr.mxu0 0.0
      %1186 = vmatpush1.msra.mxu0 0.0
      %1187 = vmatprep.subr.mxu0 0.0
      %1188 = vmatpush1.msra.mxu0 0.0
      %1189 = vmatprep.subr.mxu0 0.0
      %1190 = vmatpush1.msra.mxu0 0.0
      %1191 = vmatprep.subr.mxu0 0.0
      %1192 = vmatpush1.msra.mxu0 0.0
      %1193 = vmatprep.subr.mxu0 0.0
      %1194 = vmatpush1.msra.mxu0 0.0
      %1195 = vmatprep.subr.mxu0 0.0
      %1196 = vmatpush1.msra.mxu0 0.0
      %1197 = vmatprep.subr.mxu0 0.0
      %1198 = vmatpush1.msra.mxu0 0.0
      %1199 = vmatprep.subr.mxu0 0.0
      %1200 = vmatpush1.msra.mxu0 0.0
      %1201 = vmatprep.subr.mxu0 0.0
      %1202 = vmatpush1.msra.mxu0 0.0
      %1203 = vmatprep.subr.mxu0 0.0
      %1204 = vmatpush1.msra.mxu0 0.0
      %1205 = vmatprep.subr.mxu0 0.0
      %1206 = vmatpush1.msra.mxu0 0.0
      %1207 = vmatprep.subr.mxu0 0.0
      %1208 = vmatpush1.msra.mxu0 0.0
      %1209 = vmatprep.subr.mxu0 0.0
      %1210 = vmatpush1.msra.mxu0 0.0
      %1211 = vmatprep.subr.mxu0 0.0
      %1212 = vmatpush1.msra.mxu0 0.0
      %1213 = vmatprep.subr.mxu0 0.0
      %1214 = vmatpush1.msra.mxu0 0.0
      %1215 = vmatprep.subr.mxu0 0.0
      %1216 = vmatpush1.msra.mxu0 0.0
      %1217 = vmatprep.subr.mxu0 0.0
      %1218 = vmatpush1.msra.mxu0 0.0
      %1219 = vmatprep.subr.mxu0 0.0
      %1220 = vmatpush1.msra.mxu0 0.0
      %1221 = vmatprep.mubr.f32.mxu0 0.0
      %1222 = vmatmul.mubr.f32.gmra.mrb[0].mxu0 %v1153
      %v1223 = vpop.f32.mrb[0].mxu0
      %v1224 = vadd.f32 0.0, %v1223
      %v1225 = vpop.f32.mrb[0].mxu0
      %1226 = vmatprep.mubr.f32.mxu0 0.0
      %1227 = vmatmul.mubr.f32.gmra.mrb[0].mxu0 %v1155
      %v1228 = vpop.f32.mrb[0].mxu0
      %v1229 = vadd.f32 0.0, %v1228
      %v1230 = vpop.f32.mrb[0].mxu0
      %1231 = vdwg.mxu0
      %v1232 = vadd.f32 %v1124, %v1224
      %v1233 = vadd.f32 %v1125, %v1229
      %v1234 = vld [vmem:[%s4] sm:$0x1]
      %v1236 = vlaneseq
      %v1237 = vshrl.u32 %v1236, 7
      %v1238 = vsub.s32 0, %v1237
      %v1239 = vrot.slane %v1234, %v1238
      %v1241 = vadd.f32 %v1232, %v1239
      %v1242 = vadd.f32 %v1233, %v1239
      %v1245 = vcombine.high %v1241, %v1241
      %v1246 = vcombine.high %v1242, %v1242
      %1249 = vst [vmem:[%s270] sm:$0xf] %v1241
      %1250 = vst [vmem:[%s270 + $0x4] sm:$0xf] %v1245
      %1251 = vst [vmem:[%s270 + $0x8] sm:$0xf] %v1242
      %1252 = vst [vmem:[%s270 + $0xc] sm:$0xf] %v1246
      %s1253 = smul.u32 4, %s16
      %p1254 = scmp.lt.s32.totalorder %s1253, 7
      %s1255 = scalar_select %p1254, %s1253, 7
      %s1256 = smul.addr %s1255, 4
      %s1257 = scalar_lea.vmem %s5, %s1256
      // Predicated region
      $region41: #{downsample_x8_forward.9} parent=39 // pred_check
        %p1258 = pneg %p154
      $region42: #{downsample_x8_forward.9} parent=39 // pred_check_branch
        %1260 = sbr.rel (%p1258) target = $region44
      $region43: #{downsample_x8_forward.9} parent=39 // pred_region
        %s1261 = smul.u32 4, %s16
      $region44: #{downsample_x8_forward.9} parent=39 // pred_fallthru
        _
    $region40: #{downsample_x8_forward.9} parent=5 // pred_fallthru
      _
    %p1262 = scmp.le.s32.totalorder 2, %s11
    // Predicated region
    $region45: #{downsample_x8_forward.9} parent=5 // pred_check
      %p1263 = pneg %p1262
    $region46: #{downsample_x8_forward.9} parent=5 // pred_check_branch
      %1265 = sbr.rel (%p1263) target = $region48
    $region47: #{downsample_x8_forward.9} parent=5 // pred_region
      %s1266 = ssub.s32 %s11, 2
      // Predicated region
      $region49: #{downsample_x8_forward.9} parent=47 // pred_check
        %p1267 = pneg %p160
      $region50: #{downsample_x8_forward.9} parent=47 // pred_check_branch
        %1269 = sbr.rel (%p1267) target = $region52
      $region51: #{downsample_x8_forward.9} parent=47 // pred_region
        %s1270 = smul.u32 4, %s17
        %p1271 = scmp.lt.s32.totalorder %s1270, 7
        %s1272 = scalar_select %p1271, %s1270, 7
        %s1273 = smul.addr %s1272, 4
        %s1274 = scalar_lea.vmem %s5, %s1273
      $region52: #{downsample_x8_forward.9} parent=47 // pred_fallthru
        _
    $region48: #{downsample_x8_forward.9} parent=5 // pred_fallthru
      _
  $region6: #{downsample_x8_forward.9} parent=0 // loop_footer
    %s15 = sadd.s32 1, %s11
  $region7: #{downsample_x8_forward.9} parent=0 // loop_footer_branch
    %10 = sbr.rel target = $region3
  $region8: #{downsample_x8_forward.9} parent=0 // loop_exit
    _

</llo_original>
